<compile_context>
chip_gen: v7x
topology: tpu7x:2x2x1
jax: 0.10.0
libtpu: 0.0.40
codegen_flags: <defaults>
</compile_context>

<pallas_src>
import numpy as np
import jax
import jax.numpy as jnp
from jax.experimental import pallas as pl
from jax.experimental.pallas import tpu as pltpu

LANE = 128  # TPU lane width; all channel dims are zero-padded to a multiple.


def _round_up(n, m):
    return ((n + m - 1) // m) * m


# ----------------------------- Pallas kernels ------------------------------

def _make_conv_bn_relu_maxpool_kernel(H, W):
    """Conv3x3(pad=1, no bias) + eval-BN + ReLU + MaxPool2x2 for an HxW map."""
    Wp = W + 2                    # padded row width (2 junk columns carried)
    M = H * Wp                    # matmul M: all H output rows, padded width
    Ho, Wo = H // 2, W // 2
    row = Wo + 1                  # row length after the even/odd-w split

    def kernel(x_ref, w_ref, scale_ref, shift_ref, o_ref, y_scr):
        # x_ref:       (1, (H+3)*Wp, Cp_in)  bf16  row-flattened padded NHWC
        # w_ref:       (9*Cp_in, Cp_out)     bf16  im2col-ordered conv weight
        # scale/shift: (1, Cp_out)           f32   folded eval-mode BatchNorm
        # o_ref:       (1, Ho, Wo, Cp_out)   bf16  2x2 max-pooled activation
        # y_scr:       (M, Cp_out)           f32   stride-1 conv activation
        #
        # In the row-flattened padded image, the pixel feeding output row r at
        # tap (ky, kx) sits at the constant offset r + ky*Wp + kx, so each of
        # the 9 patch-column chunks is a plain contiguous row slice.
        chunks = [x_ref[0, ky * Wp + kx: ky * Wp + kx + M, :]
                  for ky in range(3) for kx in range(3)]
        col = jnp.concatenate(chunks, axis=-1)               # (M, 9*Cp_in)
        y = jnp.dot(col, w_ref[...], preferred_element_type=jnp.float32)
        y_scr[...] = jnp.maximum(y * scale_ref[...] + shift_ref[...], 0.0)

        # 2x2/stride-2 max-pool, entirely in VMEM before the HBM store.
        # (a) pool along w: even/odd row deinterleave via strided ref reads.
        half = M // 2                                        # = H * (Wo + 1)
        mw = jnp.maximum(y_scr[pl.ds(0, half, 2), :],
                         y_scr[pl.ds(1, half, 2), :])        # rows = (h, wo')
        # (b) pool along h, drop the junk column, store each output row as a
        #     lane-dense (Wo, Cp_out) block.
        for ho in range(Ho):
            top = mw[(2 * ho) * row:(2 * ho) * row + Wo, :]
            bot = mw[(2 * ho + 1) * row:(2 * ho + 1) * row + Wo, :]
            o_ref[0, ho] = jnp.maximum(top, bot).astype(o_ref.dtype)

    return kernel


def _make_final_block_fc_kernel(H, W):
    """Last conv block + AdaptiveAvgPool2d(1) + loc_fc1(+ReLU) + loc_fc2."""
    Wp = W + 2
    M = H * Wp

    def kernel(x_ref, w_ref, scale_ref, shift_ref, pool_ref,
               w1_ref, b1_ref, w2_ref, b2_ref, o_ref):
        # x_ref: (1, (H+3)*Wp, Cp_in) bf16 ; pool_ref: (1, M) f32
        # w1/w2: bf16 ; b1/b2: (1, *) f32 ; o_ref: (1, 1, OUTp) f32
        chunks = [x_ref[0, ky * Wp + kx: ky * Wp + kx + M, :]
                  for ky in range(3) for kx in range(3)]
        col = jnp.concatenate(chunks, axis=-1)
        y = jnp.dot(col, w_ref[...], preferred_element_type=jnp.float32)
        y = jnp.maximum(y * scale_ref[...] + shift_ref[...], 0.0)  # (M, Cp)
        # AdaptiveAvgPool2d(1) as one MXU row-vector matmul: pool_ref carries
        # 1/(H*W) on real pixels and 0 on the padded junk columns.
        feat = jnp.dot(pool_ref[...], y,
                       preferred_element_type=jnp.float32)          # (1, Cp)
        h = jnp.dot(feat.astype(jnp.bfloat16), w1_ref[...],
                    preferred_element_type=jnp.float32) + b1_ref[...]
        h = jnp.maximum(h, 0.0)                                      # loc_fc1
        out = jnp.dot(h.astype(jnp.bfloat16), w2_ref[...],
                      preferred_element_type=jnp.float32) + b2_ref[...]
        o_ref[0] = out.astype(o_ref.dtype)                           # loc_fc2

    return kernel


# ------------------------------ JAX wrappers --------------------------------

def _flatten_padded(x_nhwc):
    """(B, H, W, C) -> (B, (H+3)*(W+2), C): zero-pad 1 top/left/right and 2
    bottom, then flatten the spatial rows.  Pure layout plumbing in XLA."""
    B, H, W, C = x_nhwc.shape
    xp = jnp.pad(x_nhwc, ((0, 0), (1, 2), (1, 1), (0, 0)))
    return xp.reshape(B, (H + 3) * (W + 2), C)


def _conv_block(x_nhwc, w_col, scale, shift):
    """One Conv+BN+ReLU+MaxPool2x2 block as a single pallas_call over batch."""
    B, H, W, cp_in = x_nhwc.shape
    Ho, Wo = H // 2, W // 2
    cp_out = w_col.shape[1]
    xflat = _flatten_padded(x_nhwc)
    m_flat = xflat.shape[1]
    return pl.pallas_call(
        _make_conv_bn_relu_maxpool_kernel(H, W),
        out_shape=jax.ShapeDtypeStruct((B, Ho, Wo, cp_out), jnp.bfloat16),
        grid=(B,),
        in_specs=[
            pl.BlockSpec((1, m_flat, cp_in), lambda b: (b, 0, 0)),
            pl.BlockSpec((9 * cp_in, cp_out), lambda b: (0, 0)),
            pl.BlockSpec((1, cp_out), lambda b: (0, 0)),
            pl.BlockSpec((1, cp_out), lambda b: (0, 0)),
        ],
        out_specs=pl.BlockSpec((1, Ho, Wo, cp_out), lambda b: (b, 0, 0, 0)),
        scratch_shapes=[pltpu.VMEM((H * (W + 2), cp_out), jnp.float32)],
        compiler_params=pltpu.CompilerParams(
            dimension_semantics=("parallel",)),
    )(xflat, w_col, scale, shift)


def _final_block_fc(x_nhwc, w_col, scale, shift, w1, b1, w2, b2):
    """Fused: last conv block + avg-pool(1) + loc_fc1(+ReLU) + loc_fc2."""
    B, H, W, cp_in = x_nhwc.shape
    cp_out = w_col.shape[1]
    fcp = w1.shape[1]
    outp = w2.shape[1]
    xflat = _flatten_padded(x_nhwc)
    m_flat = xflat.shape[1]
    Wp = W + 2
    M = H * Wp
    pool_vec = jnp.asarray(
        ((np.arange(M) % Wp) < W).astype(np.float32) / float(H * W)
    ).reshape(1, M)
    out = pl.pallas_call(
        _make_final_block_fc_kernel(H, W),
        out_shape=jax.ShapeDtypeStruct((B, 1, outp), jnp.float32),
        grid=(B,),
        in_specs=[
            pl.BlockSpec((1, m_flat, cp_in), lambda b: (b, 0, 0)),
            pl.BlockSpec((9 * cp_in, cp_out), lambda b: (0, 0)),
            pl.BlockSpec((1, cp_out), lambda b: (0, 0)),
            pl.BlockSpec((1, cp_out), lambda b: (0, 0)),
            pl.BlockSpec((1, M), lambda b: (0, 0)),
            pl.BlockSpec((cp_out, fcp), lambda b: (0, 0)),
            pl.BlockSpec((1, fcp), lambda b: (0, 0)),
            pl.BlockSpec((fcp, outp), lambda b: (0, 0)),
            pl.BlockSpec((1, outp), lambda b: (0, 0)),
        ],
        out_specs=pl.BlockSpec((1, 1, outp), lambda b: (b, 0, 0)),
        compiler_params=pltpu.CompilerParams(
            dimension_semantics=("parallel",)),
    )(xflat, w_col, scale, shift, pool_vec, w1, b1, w2, b2)
    return out[:, 0, :]


def localization_network(params, x_nchw, num_fiducial):
    """Forward pass of LocalizationNetwork (BatchNorm in eval mode)."""
    blocks = params["blocks"]
    fc = params["fc"]
    B = x_nchw.shape[0]

    # NCHW -> NHWC, bf16, zero-pad channels to the lane-padded width of the
    # first conv weight (layout plumbing only; all FLOPs run inside Pallas).
    x = jnp.transpose(x_nchw, (0, 2, 3, 1)).astype(jnp.bfloat16)
    cp_in = blocks[0]["w_col"].shape[0] // 9
    x = jnp.pad(x, ((0, 0), (0, 0), (0, 0), (0, cp_in - x.shape[-1])))

    for blk in blocks[:-1]:                       # conv blocks with MaxPool2x2
        x = _conv_block(x, blk["w_col"], blk["scale"], blk["shift"])

    last = blocks[-1]                             # fused avg-pool block + FCs
    out = _final_block_fc(x, last["w_col"], last["scale"], last["shift"],
                          fc["w1"], fc["b1"], fc["w2"], fc["b2"])
    out = out[:, :2 * num_fiducial]               # drop lane padding
    return out.reshape(B, num_fiducial, 2)


# --------------------------- parameter handling ------------------------------

def init_params(key, in_channels, num_fiducial, model_name="small"):
    """Raw f32 parameters mirroring the PyTorch module (BN eval mode, running
    stats folded into per-channel scale/shift)."""
    if model_name == "large":
        filters, fc_dim = [64, 128, 256, 512], 256
    else:
        filters, fc_dim = [16, 32, 64, 128], 64
    eps = 1e-5
    params = {"blocks": []}
    cin = in_channels
    for cout in filters:
        key, k1, k2, k3, k4, k5 = jax.random.split(key, 6)
        w = jax.random.normal(k1, (3, 3, cin, cout), jnp.float32) / np.sqrt(9 * cin)
        gamma = 1.0 + 0.1 * jax.random.uniform(k2, (cout,), jnp.float32)
        beta = 0.05 * jax.random.normal(k3, (cout,), jnp.float32)
        rmean = 0.1 * jax.random.normal(k4, (cout,), jnp.float32)
        rvar = 1.0 + 0.2 * jax.random.uniform(k5, (cout,), jnp.float32)
        scale = gamma / jnp.sqrt(rvar + eps)
        shift = beta - rmean * scale
        params["blocks"].append({"w": w, "scale": scale, "shift": shift})
        cin = cout

    key, k1, k2 = jax.random.split(key, 3)
    w1 = jax.random.normal(k1, (cin, fc_dim), jnp.float32) / np.sqrt(cin)
    b1 = 0.01 * jax.random.normal(k2, (fc_dim,), jnp.float32)

    F_ = num_fiducial
    w2 = jnp.zeros((fc_dim, 2 * F_), jnp.float32)       # loc_fc2.weight = 0
    ctrl_pts_x = np.linspace(-1.0, 1.0, F_ // 2)
    ctrl_pts_y_top = np.linspace(0.0, -1.0, num=F_ // 2)
    ctrl_pts_y_bottom = np.linspace(1.0, 0.0, num=F_ // 2)
    ctrl_pts_top = np.stack([ctrl_pts_x, ctrl_pts_y_top], axis=1)
    ctrl_pts_bottom = np.stack([ctrl_pts_x, ctrl_pts_y_bottom], axis=1)
    initial_bias = np.concatenate([ctrl_pts_top, ctrl_pts_bottom], axis=0)
    b2 = jnp.asarray(initial_bias.reshape(-1), jnp.float32)

    params["fc"] = {"w1": w1, "b1": b1, "w2": w2, "b2": b2}
    return params


def prepare_pallas_params(raw):
    """Lane-pad every channel dim to a multiple of 128, fold conv weights into
    im2col order, cast matmul operands to bf16.  Padded output channels get
    scale = shift = 0 so they stay exactly zero through ReLU/pooling."""
    blocks = []
    cin = raw["blocks"][0]["w"].shape[2]
    cp_in = _round_up(cin, LANE)
    for blk in raw["blocks"]:
        w = blk["w"]                                    # (3, 3, cin, cout)
        cout = w.shape[3]
        cp_out = _round_up(cout, LANE)
        w_p = jnp.zeros((3, 3, cp_in, cp_out), jnp.float32)
        w_p = w_p.at[:, :, :cin, :cout].set(w)
        scale = jnp.zeros((1, cp_out), jnp.float32).at[0, :cout].set(blk["scale"])
        shift = jnp.zeros((1, cp_out), jnp.float32).at[0, :cout].set(blk["shift"])
        blocks.append({
            "w_col": w_p.reshape(9 * cp_in, cp_out).astype(jnp.bfloat16),
            "scale": scale,
            "shift": shift,
        })
        cin, cp_in = cout, cp_out

    fc = raw["fc"]
    c_last, fc_dim = fc["w1"].shape
    out_dim = fc["w2"].shape[1]
    cp_last = _round_up(c_last, LANE)
    fcp = _round_up(fc_dim, LANE)
    outp = _round_up(out_dim, LANE)
    w1 = jnp.zeros((cp_last, fcp), jnp.float32).at[:c_last, :fc_dim].set(fc["w1"])
    b1 = jnp.zeros((1, fcp), jnp.float32).at[0, :fc_dim].set(fc["b1"])
    w2 = jnp.zeros((fcp, outp), jnp.float32).at[:fc_dim, :out_dim].set(fc["w2"])
    b2 = jnp.zeros((1, outp), jnp.float32).at[0, :out_dim].set(fc["b2"])
    return {"blocks": blocks,
            "fc": {"w1": w1.astype(jnp.bfloat16), "b1": b1,
                   "w2": w2.astype(jnp.bfloat16), "b2": b2}}


# ------------------------- pure-JAX f32 reference ----------------------------

def reference_forward(raw, x_nchw, num_fiducial):
    x = x_nchw.astype(jnp.float32)
    n = len(raw["blocks"])
    for i, blk in enumerate(raw["blocks"]):
        y = jax.lax.conv_general_dilated(
            x, blk["w"], window_strides=(1, 1), padding=((1, 1), (1, 1)),
            dimension_numbers=("NCHW", "HWIO", "NCHW"))
        y = y * blk["scale"][None, :, None, None] + blk["shift"][None, :, None, None]
        y = jnp.maximum(y, 0.0)
        if i < n - 1:
            x = jax.lax.reduce_window(y, -jnp.inf, jax.lax.max,
                                      (1, 1, 2, 2), (1, 1, 2, 2), "VALID")
        else:
            x = jnp.mean(y, axis=(2, 3))
    fc = raw["fc"]
    h = jnp.maximum(x @ fc["w1"] + fc["b1"], 0.0)
    out = h @ fc["w2"] + fc["b2"]
    return out.reshape(x.shape[0], num_fiducial, 2)


# ----------------------------------- main ------------------------------------

if __name__ == "__main__":
    key = jax.random.PRNGKey(0)
    B, C, H, W = 2, 4, 16, 16
    F_ = 20
    kx, kp, kw = jax.random.split(key, 3)
    x = jax.random.normal(kx, (B, C, H, W), jnp.float32)

    raw = init_params(kp, C, F_, "small")
    params = prepare_pallas_params(raw)

    fwd = jax.jit(localization_network, static_argnums=2)
    out = jax.block_until_ready(fwd(params, x, F_))
    assert out.shape == (B, F_, 2)

    # (1) Exact-semantics check: loc_fc2.weight == 0, so every sample's output
    #     must equal the RARE control-point bias (exact through the bf16 path).
    expected = np.asarray(raw["fc"]["b2"]).reshape(1, F_, 2)
    np.testing.assert_allclose(np.asarray(out),
                               np.broadcast_to(expected, (B, F_, 2)), atol=1e-5)

    # (2) Full-pipeline numeric check against a pure-JAX f32 reference with a
    #     non-zero loc_fc2 weight, so conv/BN/ReLU/pool/FC actually reach the
    #     output (loose tolerance for the bf16 matmul path).
    raw2 = {"blocks": raw["blocks"], "fc": dict(raw["fc"])}
    raw2["fc"]["w2"] = (jax.random.normal(kw, raw["fc"]["w2"].shape, jnp.float32)
                        / np.sqrt(raw["fc"]["w2"].shape[0]))
    out2 = jax.block_until_ready(fwd(prepare_pallas_params(raw2), x, F_))
    ref2 = jax.block_until_ready(reference_forward(raw2, x, F_))
    np.testing.assert_allclose(np.asarray(out2), np.asarray(ref2),
                               rtol=1e-1, atol=5e-2)

    print("KERNEL_OK")
</pallas_src>

<mosaic_0001>
module attributes {stable_mosaic.version = 11 : i64} {
  func.func @kernel(%arg0: i32, %arg1: memref<1x342x128xbf16, #tpu.memory_space<vmem>>, %arg2: memref<1152x128xbf16, #tpu.memory_space<vmem>>, %arg3: memref<1x128xf32, #tpu.memory_space<vmem>>, %arg4: memref<1x128xf32, #tpu.memory_space<vmem>>, %arg5: memref<1x8x8x128xbf16, #tpu.memory_space<vmem>>, %arg6: memref<288x128xf32, #tpu.memory_space<vmem>>) attributes {dimension_semantics = [#tpu.dimension_semantics<parallel>], iteration_bounds = array<i64: 2>, scalar_prefetch = 0 : i64, scratch_operands = 1 : i64, tpu.core_type = #tpu.core_type<tc>, window_params = [{transform_indices = @transform_0, window_bounds = array<i64: 1, 342, 128>}, {pipeline_mode = #tpu.pipeline_mode<synchronous>, transform_indices = @transform_1, window_bounds = array<i64: 1152, 128>}, {pipeline_mode = #tpu.pipeline_mode<synchronous>, transform_indices = @transform_2, window_bounds = array<i64: 1, 128>}, {pipeline_mode = #tpu.pipeline_mode<synchronous>, transform_indices = @transform_3, window_bounds = array<i64: 1, 128>}, {transform_indices = @transform_4, window_bounds = array<i64: 1, 8, 8, 128>}]} {
    %c0 = arith.constant 0 : index
    %c0_0 = arith.constant 0 : index
    %c0_1 = arith.constant 0 : index
    %0 = vector.load %arg1[%c0, %c0_0, %c0_1] : memref<1x342x128xbf16, #tpu.memory_space<vmem>>, vector<1x288x128xbf16>
    %1 = vector.shape_cast %0 : vector<1x288x128xbf16> to vector<288x128xbf16>
    %c0_2 = arith.constant 0 : index
    %c1 = arith.constant 1 : index
    %c0_3 = arith.constant 0 : index
    %2 = vector.load %arg1[%c0_2, %c1, %c0_3] : memref<1x342x128xbf16, #tpu.memory_space<vmem>>, vector<1x288x128xbf16>
    %3 = vector.shape_cast %2 : vector<1x288x128xbf16> to vector<288x128xbf16>
    %c0_4 = arith.constant 0 : index
    %c2 = arith.constant 2 : index
    %c0_5 = arith.constant 0 : index
    %4 = vector.load %arg1[%c0_4, %c2, %c0_5] : memref<1x342x128xbf16, #tpu.memory_space<vmem>>, vector<1x288x128xbf16>
    %5 = vector.shape_cast %4 : vector<1x288x128xbf16> to vector<288x128xbf16>
    %c0_6 = arith.constant 0 : index
    %c18 = arith.constant 18 : index
    %c0_7 = arith.constant 0 : index
    %6 = vector.load %arg1[%c0_6, %c18, %c0_7] : memref<1x342x128xbf16, #tpu.memory_space<vmem>>, vector<1x288x128xbf16>
    %7 = vector.shape_cast %6 : vector<1x288x128xbf16> to vector<288x128xbf16>
    %c0_8 = arith.constant 0 : index
    %c19 = arith.constant 19 : index
    %c0_9 = arith.constant 0 : index
    %8 = vector.load %arg1[%c0_8, %c19, %c0_9] : memref<1x342x128xbf16, #tpu.memory_space<vmem>>, vector<1x288x128xbf16>
    %9 = vector.shape_cast %8 : vector<1x288x128xbf16> to vector<288x128xbf16>
    %c0_10 = arith.constant 0 : index
    %c20 = arith.constant 20 : index
    %c0_11 = arith.constant 0 : index
    %10 = vector.load %arg1[%c0_10, %c20, %c0_11] : memref<1x342x128xbf16, #tpu.memory_space<vmem>>, vector<1x288x128xbf16>
    %11 = vector.shape_cast %10 : vector<1x288x128xbf16> to vector<288x128xbf16>
    %c0_12 = arith.constant 0 : index
    %c36 = arith.constant 36 : index
    %c0_13 = arith.constant 0 : index
    %12 = vector.load %arg1[%c0_12, %c36, %c0_13] : memref<1x342x128xbf16, #tpu.memory_space<vmem>>, vector<1x288x128xbf16>
    %13 = vector.shape_cast %12 : vector<1x288x128xbf16> to vector<288x128xbf16>
    %c0_14 = arith.constant 0 : index
    %c37 = arith.constant 37 : index
    %c0_15 = arith.constant 0 : index
    %14 = vector.load %arg1[%c0_14, %c37, %c0_15] : memref<1x342x128xbf16, #tpu.memory_space<vmem>>, vector<1x288x128xbf16>
    %15 = vector.shape_cast %14 : vector<1x288x128xbf16> to vector<288x128xbf16>
    %c0_16 = arith.constant 0 : index
    %c38 = arith.constant 38 : index
    %c0_17 = arith.constant 0 : index
    %16 = vector.load %arg1[%c0_16, %c38, %c0_17] : memref<1x342x128xbf16, #tpu.memory_space<vmem>>, vector<1x288x128xbf16>
    %17 = vector.shape_cast %16 : vector<1x288x128xbf16> to vector<288x128xbf16>
    %18 = tpu.concatenate %1, %3, %5, %7, %9, %11, %13, %15, %17 in 1 : vector<288x128xbf16>, vector<288x128xbf16>, vector<288x128xbf16>, vector<288x128xbf16>, vector<288x128xbf16>, vector<288x128xbf16>, vector<288x128xbf16>, vector<288x128xbf16>, vector<288x128xbf16> -> vector<288x1152xbf16>
    %c0_18 = arith.constant 0 : index
    %c0_19 = arith.constant 0 : index
    %19 = vector.load %arg2[%c0_18, %c0_19] : memref<1152x128xbf16, #tpu.memory_space<vmem>>, vector<1152x128xbf16>
    %cst = arith.constant dense<0.000000e+00> : vector<288x128xf32>
    %20 = tpu.matmul %18, %19, %cst {dimension_numbers = #tpu.dot_dimension_numbers<[1], [0], [0], [1], [0, 0, 1, 1], [], []>} : vector<288x1152xbf16>, vector<1152x128xbf16>, vector<288x128xf32> -> vector<288x128xf32>
    %c0_20 = arith.constant 0 : index
    %c0_21 = arith.constant 0 : index
    %21 = vector.load %arg3[%c0_20, %c0_21] : memref<1x128xf32, #tpu.memory_space<vmem>>, vector<1x128xf32>
    %22 = vector.broadcast %21 : vector<1x128xf32> to vector<288x128xf32>
    %23 = arith.mulf %20, %22 : vector<288x128xf32>
    %c0_22 = arith.constant 0 : index
    %c0_23 = arith.constant 0 : index
    %24 = vector.load %arg4[%c0_22, %c0_23] : memref<1x128xf32, #tpu.memory_space<vmem>>, vector<1x128xf32>
    %25 = vector.broadcast %24 : vector<1x128xf32> to vector<288x128xf32>
    %26 = arith.addf %23, %25 : vector<288x128xf32>
    %cst_24 = arith.constant 0.000000e+00 : f32
    %27 = vector.broadcast %cst_24 : f32 to vector<288x128xf32>
    %28 = arith.maximumf %26, %27 : vector<288x128xf32>
    %c0_25 = arith.constant 0 : index
    %c0_26 = arith.constant 0 : index
    %29 = vector.load %arg6[%c0_25, %c0_26] : memref<288x128xf32, #tpu.memory_space<vmem>>, vector<288x128xf32>
    tpu.vector_store %arg6[%c0_25, %c0_26], %28 {strides = array<i32>} : memref<288x128xf32, #tpu.memory_space<vmem>>, vector<288x128xf32>,
    %c0_27 = arith.constant 0 : index
    %c0_28 = arith.constant 0 : index
    %30 = tpu.strided_load %arg6[%c0_27, %c0_28] {strides = array<i32: 2, 1>} : memref<288x128xf32, #tpu.memory_space<vmem>>, vector<144x128xf32>
    %c1_29 = arith.constant 1 : index
    %c0_30 = arith.constant 0 : index
    %31 = tpu.strided_load %arg6[%c1_29, %c0_30] {strides = array<i32: 2, 1>} : memref<288x128xf32, #tpu.memory_space<vmem>>, vector<144x128xf32>
    %32 = arith.maximumf %30, %31 : vector<144x128xf32>
    %33 = vector.extract_strided_slice %32 {offsets = [0, 0], sizes = [8, 128], strides = [1, 1]} : vector<144x128xf32> to vector<8x128xf32>
    %34 = vector.extract_strided_slice %32 {offsets = [9, 0], sizes = [8, 128], strides = [1, 1]} : vector<144x128xf32> to vector<8x128xf32>
    %35 = arith.maximumf %33, %34 : vector<8x128xf32>
    %36 = arith.truncf %35 : vector<8x128xf32> to vector<8x128xbf16>
    %c0_31 = arith.constant 0 : index
    %c0_32 = arith.constant 0 : index
    %c0_33 = arith.constant 0 : index
    %c0_34 = arith.constant 0 : index
    %37 = vector.load %arg5[%c0_31, %c0_32, %c0_33, %c0_34] : memref<1x8x8x128xbf16, #tpu.memory_space<vmem>>, vector<1x1x8x128xbf16>
    %38 = vector.shape_cast %37 : vector<1x1x8x128xbf16> to vector<8x128xbf16>
    %39 = vector.shape_cast %36 : vector<8x128xbf16> to vector<1x1x8x128xbf16>
    tpu.vector_store %arg5[%c0_31, %c0_32, %c0_33, %c0_34], %39 {strides = array<i32>} : memref<1x8x8x128xbf16, #tpu.memory_space<vmem>>, vector<1x1x8x128xbf16>,
    %40 = vector.extract_strided_slice %32 {offsets = [18, 0], sizes = [8, 128], strides = [1, 1]} : vector<144x128xf32> to vector<8x128xf32>
    %41 = vector.extract_strided_slice %32 {offsets = [27, 0], sizes = [8, 128], strides = [1, 1]} : vector<144x128xf32> to vector<8x128xf32>
    %42 = arith.maximumf %40, %41 : vector<8x128xf32>
    %43 = arith.truncf %42 : vector<8x128xf32> to vector<8x128xbf16>
    %c0_35 = arith.constant 0 : index
    %c1_36 = arith.constant 1 : index
    %c0_37 = arith.constant 0 : index
    %c0_38 = arith.constant 0 : index
    %44 = vector.load %arg5[%c0_35, %c1_36, %c0_37, %c0_38] : memref<1x8x8x128xbf16, #tpu.memory_space<vmem>>, vector<1x1x8x128xbf16>
    %45 = vector.shape_cast %44 : vector<1x1x8x128xbf16> to vector<8x128xbf16>
    %46 = vector.shape_cast %43 : vector<8x128xbf16> to vector<1x1x8x128xbf16>
    tpu.vector_store %arg5[%c0_35, %c1_36, %c0_37, %c0_38], %46 {strides = array<i32>} : memref<1x8x8x128xbf16, #tpu.memory_space<vmem>>, vector<1x1x8x128xbf16>,
    %47 = vector.extract_strided_slice %32 {offsets = [36, 0], sizes = [8, 128], strides = [1, 1]} : vector<144x128xf32> to vector<8x128xf32>
    %48 = vector.extract_strided_slice %32 {offsets = [45, 0], sizes = [8, 128], strides = [1, 1]} : vector<144x128xf32> to vector<8x128xf32>
    %49 = arith.maximumf %47, %48 : vector<8x128xf32>
    %50 = arith.truncf %49 : vector<8x128xf32> to vector<8x128xbf16>
    %c0_39 = arith.constant 0 : index
    %c2_40 = arith.constant 2 : index
    %c0_41 = arith.constant 0 : index
    %c0_42 = arith.constant 0 : index
    %51 = vector.load %arg5[%c0_39, %c2_40, %c0_41, %c0_42] : memref<1x8x8x128xbf16, #tpu.memory_space<vmem>>, vector<1x1x8x128xbf16>
    %52 = vector.shape_cast %51 : vector<1x1x8x128xbf16> to vector<8x128xbf16>
    %53 = vector.shape_cast %50 : vector<8x128xbf16> to vector<1x1x8x128xbf16>
    tpu.vector_store %arg5[%c0_39, %c2_40, %c0_41, %c0_42], %53 {strides = array<i32>} : memref<1x8x8x128xbf16, #tpu.memory_space<vmem>>, vector<1x1x8x128xbf16>,
    %54 = vector.extract_strided_slice %32 {offsets = [54, 0], sizes = [8, 128], strides = [1, 1]} : vector<144x128xf32> to vector<8x128xf32>
    %55 = vector.extract_strided_slice %32 {offsets = [63, 0], sizes = [8, 128], strides = [1, 1]} : vector<144x128xf32> to vector<8x128xf32>
    %56 = arith.maximumf %54, %55 : vector<8x128xf32>
    %57 = arith.truncf %56 : vector<8x128xf32> to vector<8x128xbf16>
    %c0_43 = arith.constant 0 : index
    %c3 = arith.constant 3 : index
    %c0_44 = arith.constant 0 : index
    %c0_45 = arith.constant 0 : index
    %58 = vector.load %arg5[%c0_43, %c3, %c0_44, %c0_45] : memref<1x8x8x128xbf16, #tpu.memory_space<vmem>>, vector<1x1x8x128xbf16>
    %59 = vector.shape_cast %58 : vector<1x1x8x128xbf16> to vector<8x128xbf16>
    %60 = vector.shape_cast %57 : vector<8x128xbf16> to vector<1x1x8x128xbf16>
    tpu.vector_store %arg5[%c0_43, %c3, %c0_44, %c0_45], %60 {strides = array<i32>} : memref<1x8x8x128xbf16, #tpu.memory_space<vmem>>, vector<1x1x8x128xbf16>,
    %61 = vector.extract_strided_slice %32 {offsets = [72, 0], sizes = [8, 128], strides = [1, 1]} : vector<144x128xf32> to vector<8x128xf32>
    %62 = vector.extract_strided_slice %32 {offsets = [81, 0], sizes = [8, 128], strides = [1, 1]} : vector<144x128xf32> to vector<8x128xf32>
    %63 = arith.maximumf %61, %62 : vector<8x128xf32>
    %64 = arith.truncf %63 : vector<8x128xf32> to vector<8x128xbf16>
    %c0_46 = arith.constant 0 : index
    %c4 = arith.constant 4 : index
    %c0_47 = arith.constant 0 : index
    %c0_48 = arith.constant 0 : index
    %65 = vector.load %arg5[%c0_46, %c4, %c0_47, %c0_48] : memref<1x8x8x128xbf16, #tpu.memory_space<vmem>>, vector<1x1x8x128xbf16>
    %66 = vector.shape_cast %65 : vector<1x1x8x128xbf16> to vector<8x128xbf16>
    %67 = vector.shape_cast %64 : vector<8x128xbf16> to vector<1x1x8x128xbf16>
    tpu.vector_store %arg5[%c0_46, %c4, %c0_47, %c0_48], %67 {strides = array<i32>} : memref<1x8x8x128xbf16, #tpu.memory_space<vmem>>, vector<1x1x8x128xbf16>,
    %68 = vector.extract_strided_slice %32 {offsets = [90, 0], sizes = [8, 128], strides = [1, 1]} : vector<144x128xf32> to vector<8x128xf32>
    %69 = vector.extract_strided_slice %32 {offsets = [99, 0], sizes = [8, 128], strides = [1, 1]} : vector<144x128xf32> to vector<8x128xf32>
    %70 = arith.maximumf %68, %69 : vector<8x128xf32>
    %71 = arith.truncf %70 : vector<8x128xf32> to vector<8x128xbf16>
    %c0_49 = arith.constant 0 : index
    %c5 = arith.constant 5 : index
    %c0_50 = arith.constant 0 : index
    %c0_51 = arith.constant 0 : index
    %72 = vector.load %arg5[%c0_49, %c5, %c0_50, %c0_51] : memref<1x8x8x128xbf16, #tpu.memory_space<vmem>>, vector<1x1x8x128xbf16>
    %73 = vector.shape_cast %72 : vector<1x1x8x128xbf16> to vector<8x128xbf16>
    %74 = vector.shape_cast %71 : vector<8x128xbf16> to vector<1x1x8x128xbf16>
    tpu.vector_store %arg5[%c0_49, %c5, %c0_50, %c0_51], %74 {strides = array<i32>} : memref<1x8x8x128xbf16, #tpu.memory_space<vmem>>, vector<1x1x8x128xbf16>,
    %75 = vector.extract_strided_slice %32 {offsets = [108, 0], sizes = [8, 128], strides = [1, 1]} : vector<144x128xf32> to vector<8x128xf32>
    %76 = vector.extract_strided_slice %32 {offsets = [117, 0], sizes = [8, 128], strides = [1, 1]} : vector<144x128xf32> to vector<8x128xf32>
    %77 = arith.maximumf %75, %76 : vector<8x128xf32>
    %78 = arith.truncf %77 : vector<8x128xf32> to vector<8x128xbf16>
    %c0_52 = arith.constant 0 : index
    %c6 = arith.constant 6 : index
    %c0_53 = arith.constant 0 : index
    %c0_54 = arith.constant 0 : index
    %79 = vector.load %arg5[%c0_52, %c6, %c0_53, %c0_54] : memref<1x8x8x128xbf16, #tpu.memory_space<vmem>>, vector<1x1x8x128xbf16>
    %80 = vector.shape_cast %79 : vector<1x1x8x128xbf16> to vector<8x128xbf16>
    %81 = vector.shape_cast %78 : vector<8x128xbf16> to vector<1x1x8x128xbf16>
    tpu.vector_store %arg5[%c0_52, %c6, %c0_53, %c0_54], %81 {strides = array<i32>} : memref<1x8x8x128xbf16, #tpu.memory_space<vmem>>, vector<1x1x8x128xbf16>,
    %82 = vector.extract_strided_slice %32 {offsets = [126, 0], sizes = [8, 128], strides = [1, 1]} : vector<144x128xf32> to vector<8x128xf32>
    %83 = vector.extract_strided_slice %32 {offsets = [135, 0], sizes = [8, 128], strides = [1, 1]} : vector<144x128xf32> to vector<8x128xf32>
    %84 = arith.maximumf %82, %83 : vector<8x128xf32>
    %85 = arith.truncf %84 : vector<8x128xf32> to vector<8x128xbf16>
    %c0_55 = arith.constant 0 : index
    %c7 = arith.constant 7 : index
    %c0_56 = arith.constant 0 : index
    %c0_57 = arith.constant 0 : index
    %86 = vector.load %arg5[%c0_55, %c7, %c0_56, %c0_57] : memref<1x8x8x128xbf16, #tpu.memory_space<vmem>>, vector<1x1x8x128xbf16>
    %87 = vector.shape_cast %86 : vector<1x1x8x128xbf16> to vector<8x128xbf16>
    %88 = vector.shape_cast %85 : vector<8x128xbf16> to vector<1x1x8x128xbf16>
    tpu.vector_store %arg5[%c0_55, %c7, %c0_56, %c0_57], %88 {strides = array<i32>} : memref<1x8x8x128xbf16, #tpu.memory_space<vmem>>, vector<1x1x8x128xbf16>,
    return
  }
  func.func @transform_0(%arg0: i32) -> (i32, i32, i32) {
    %c0_i32 = arith.constant 0 : i32
    %c0_i32_0 = arith.constant 0 : i32
    %c0_i32_1 = arith.constant 0 : i32
    return %arg0, %c0_i32, %c0_i32_0 : i32, i32, i32
  }
  func.func @transform_1(%arg0: i32) -> (i32, i32) {
    %c0_i32 = arith.constant 0 : i32
    %c0_i32_0 = arith.constant 0 : i32
    %c0_i32_1 = arith.constant 0 : i32
    return %c0_i32, %c0_i32_0 : i32, i32
  }
  func.func @transform_2(%arg0: i32) -> (i32, i32) {
    %c0_i32 = arith.constant 0 : i32
    %c0_i32_0 = arith.constant 0 : i32
    %c0_i32_1 = arith.constant 0 : i32
    return %c0_i32, %c0_i32_0 : i32, i32
  }
  func.func @transform_3(%arg0: i32) -> (i32, i32) {
    %c0_i32 = arith.constant 0 : i32
    %c0_i32_0 = arith.constant 0 : i32
    %c0_i32_1 = arith.constant 0 : i32
    return %c0_i32, %c0_i32_0 : i32, i32
  }
  func.func @transform_4(%arg0: i32) -> (i32, i32, i32, i32) {
    %c0_i32 = arith.constant 0 : i32
    %c0_i32_0 = arith.constant 0 : i32
    %c0_i32_1 = arith.constant 0 : i32
    %c0_i32_2 = arith.constant 0 : i32
    return %arg0, %c0_i32, %c0_i32_0, %c0_i32_1 : i32, i32, i32, i32
  }
}

module attributes {stable_mosaic.version = 11 : i64} {
  func.func @kernel(%arg0: i32, %arg1: memref<1x110x128xbf16, #tpu.memory_space<vmem>>, %arg2: memref<1152x128xbf16, #tpu.memory_space<vmem>>, %arg3: memref<1x128xf32, #tpu.memory_space<vmem>>, %arg4: memref<1x128xf32, #tpu.memory_space<vmem>>, %arg5: memref<1x4x4x128xbf16, #tpu.memory_space<vmem>>, %arg6: memref<80x128xf32, #tpu.memory_space<vmem>>) attributes {dimension_semantics = [#tpu.dimension_semantics<parallel>], iteration_bounds = array<i64: 2>, scalar_prefetch = 0 : i64, scratch_operands = 1 : i64, tpu.core_type = #tpu.core_type<tc>, window_params = [{transform_indices = @transform_0, window_bounds = array<i64: 1, 110, 128>}, {pipeline_mode = #tpu.pipeline_mode<synchronous>, transform_indices = @transform_1, window_bounds = array<i64: 1152, 128>}, {pipeline_mode = #tpu.pipeline_mode<synchronous>, transform_indices = @transform_2, window_bounds = array<i64: 1, 128>}, {pipeline_mode = #tpu.pipeline_mode<synchronous>, transform_indices = @transform_3, window_bounds = array<i64: 1, 128>}, {transform_indices = @transform_4, window_bounds = array<i64: 1, 4, 4, 128>}]} {
    %c0 = arith.constant 0 : index
    %c0_0 = arith.constant 0 : index
    %c0_1 = arith.constant 0 : index
    %0 = vector.load %arg1[%c0, %c0_0, %c0_1] : memref<1x110x128xbf16, #tpu.memory_space<vmem>>, vector<1x80x128xbf16>
    %1 = vector.shape_cast %0 : vector<1x80x128xbf16> to vector<80x128xbf16>
    %c0_2 = arith.constant 0 : index
    %c1 = arith.constant 1 : index
    %c0_3 = arith.constant 0 : index
    %2 = vector.load %arg1[%c0_2, %c1, %c0_3] : memref<1x110x128xbf16, #tpu.memory_space<vmem>>, vector<1x80x128xbf16>
    %3 = vector.shape_cast %2 : vector<1x80x128xbf16> to vector<80x128xbf16>
    %c0_4 = arith.constant 0 : index
    %c2 = arith.constant 2 : index
    %c0_5 = arith.constant 0 : index
    %4 = vector.load %arg1[%c0_4, %c2, %c0_5] : memref<1x110x128xbf16, #tpu.memory_space<vmem>>, vector<1x80x128xbf16>
    %5 = vector.shape_cast %4 : vector<1x80x128xbf16> to vector<80x128xbf16>
    %c0_6 = arith.constant 0 : index
    %c10 = arith.constant 10 : index
    %c0_7 = arith.constant 0 : index
    %6 = vector.load %arg1[%c0_6, %c10, %c0_7] : memref<1x110x128xbf16, #tpu.memory_space<vmem>>, vector<1x80x128xbf16>
    %7 = vector.shape_cast %6 : vector<1x80x128xbf16> to vector<80x128xbf16>
    %c0_8 = arith.constant 0 : index
    %c11 = arith.constant 11 : index
    %c0_9 = arith.constant 0 : index
    %8 = vector.load %arg1[%c0_8, %c11, %c0_9] : memref<1x110x128xbf16, #tpu.memory_space<vmem>>, vector<1x80x128xbf16>
    %9 = vector.shape_cast %8 : vector<1x80x128xbf16> to vector<80x128xbf16>
    %c0_10 = arith.constant 0 : index
    %c12 = arith.constant 12 : index
    %c0_11 = arith.constant 0 : index
    %10 = vector.load %arg1[%c0_10, %c12, %c0_11] : memref<1x110x128xbf16, #tpu.memory_space<vmem>>, vector<1x80x128xbf16>
    %11 = vector.shape_cast %10 : vector<1x80x128xbf16> to vector<80x128xbf16>
    %c0_12 = arith.constant 0 : index
    %c20 = arith.constant 20 : index
    %c0_13 = arith.constant 0 : index
    %12 = vector.load %arg1[%c0_12, %c20, %c0_13] : memref<1x110x128xbf16, #tpu.memory_space<vmem>>, vector<1x80x128xbf16>
    %13 = vector.shape_cast %12 : vector<1x80x128xbf16> to vector<80x128xbf16>
    %c0_14 = arith.constant 0 : index
    %c21 = arith.constant 21 : index
    %c0_15 = arith.constant 0 : index
    %14 = vector.load %arg1[%c0_14, %c21, %c0_15] : memref<1x110x128xbf16, #tpu.memory_space<vmem>>, vector<1x80x128xbf16>
    %15 = vector.shape_cast %14 : vector<1x80x128xbf16> to vector<80x128xbf16>
    %c0_16 = arith.constant 0 : index
    %c22 = arith.constant 22 : index
    %c0_17 = arith.constant 0 : index
    %16 = vector.load %arg1[%c0_16, %c22, %c0_17] : memref<1x110x128xbf16, #tpu.memory_space<vmem>>, vector<1x80x128xbf16>
    %17 = vector.shape_cast %16 : vector<1x80x128xbf16> to vector<80x128xbf16>
    %18 = tpu.concatenate %1, %3, %5, %7, %9, %11, %13, %15, %17 in 1 : vector<80x128xbf16>, vector<80x128xbf16>, vector<80x128xbf16>, vector<80x128xbf16>, vector<80x128xbf16>, vector<80x128xbf16>, vector<80x128xbf16>, vector<80x128xbf16>, vector<80x128xbf16> -> vector<80x1152xbf16>
    %c0_18 = arith.constant 0 : index
    %c0_19 = arith.constant 0 : index
    %19 = vector.load %arg2[%c0_18, %c0_19] : memref<1152x128xbf16, #tpu.memory_space<vmem>>, vector<1152x128xbf16>
    %cst = arith.constant dense<0.000000e+00> : vector<80x128xf32>
    %20 = tpu.matmul %18, %19, %cst {dimension_numbers = #tpu.dot_dimension_numbers<[1], [0], [0], [1], [0, 0, 1, 1], [], []>} : vector<80x1152xbf16>, vector<1152x128xbf16>, vector<80x128xf32> -> vector<80x128xf32>
    %c0_20 = arith.constant 0 : index
    %c0_21 = arith.constant 0 : index
    %21 = vector.load %arg3[%c0_20, %c0_21] : memref<1x128xf32, #tpu.memory_space<vmem>>, vector<1x128xf32>
    %22 = vector.broadcast %21 : vector<1x128xf32> to vector<80x128xf32>
    %23 = arith.mulf %20, %22 : vector<80x128xf32>
    %c0_22 = arith.constant 0 : index
    %c0_23 = arith.constant 0 : index
    %24 = vector.load %arg4[%c0_22, %c0_23] : memref<1x128xf32, #tpu.memory_space<vmem>>, vector<1x128xf32>
    %25 = vector.broadcast %24 : vector<1x128xf32> to vector<80x128xf32>
    %26 = arith.addf %23, %25 : vector<80x128xf32>
    %cst_24 = arith.constant 0.000000e+00 : f32
    %27 = vector.broadcast %cst_24 : f32 to vector<80x128xf32>
    %28 = arith.maximumf %26, %27 : vector<80x128xf32>
    %c0_25 = arith.constant 0 : index
    %c0_26 = arith.constant 0 : index
    %29 = vector.load %arg6[%c0_25, %c0_26] : memref<80x128xf32, #tpu.memory_space<vmem>>, vector<80x128xf32>
    tpu.vector_store %arg6[%c0_25, %c0_26], %28 {strides = array<i32>} : memref<80x128xf32, #tpu.memory_space<vmem>>, vector<80x128xf32>,
    %c0_27 = arith.constant 0 : index
    %c0_28 = arith.constant 0 : index
    %30 = tpu.strided_load %arg6[%c0_27, %c0_28] {strides = array<i32: 2, 1>} : memref<80x128xf32, #tpu.memory_space<vmem>>, vector<40x128xf32>
    %c1_29 = arith.constant 1 : index
    %c0_30 = arith.constant 0 : index
    %31 = tpu.strided_load %arg6[%c1_29, %c0_30] {strides = array<i32: 2, 1>} : memref<80x128xf32, #tpu.memory_space<vmem>>, vector<40x128xf32>
    %32 = arith.maximumf %30, %31 : vector<40x128xf32>
    %33 = vector.extract_strided_slice %32 {offsets = [0, 0], sizes = [4, 128], strides = [1, 1]} : vector<40x128xf32> to vector<4x128xf32>
    %34 = vector.extract_strided_slice %32 {offsets = [5, 0], sizes = [4, 128], strides = [1, 1]} : vector<40x128xf32> to vector<4x128xf32>
    %35 = arith.maximumf %33, %34 : vector<4x128xf32>
    %36 = arith.truncf %35 : vector<4x128xf32> to vector<4x128xbf16>
    %c0_31 = arith.constant 0 : index
    %c0_32 = arith.constant 0 : index
    %c0_33 = arith.constant 0 : index
    %c0_34 = arith.constant 0 : index
    %37 = vector.load %arg5[%c0_31, %c0_32, %c0_33, %c0_34] : memref<1x4x4x128xbf16, #tpu.memory_space<vmem>>, vector<1x1x4x128xbf16>
    %38 = vector.shape_cast %37 : vector<1x1x4x128xbf16> to vector<4x128xbf16>
    %39 = vector.shape_cast %36 : vector<4x128xbf16> to vector<1x1x4x128xbf16>
    tpu.vector_store %arg5[%c0_31, %c0_32, %c0_33, %c0_34], %39 {strides = array<i32>} : memref<1x4x4x128xbf16, #tpu.memory_space<vmem>>, vector<1x1x4x128xbf16>,
    %40 = vector.extract_strided_slice %32 {offsets = [10, 0], sizes = [4, 128], strides = [1, 1]} : vector<40x128xf32> to vector<4x128xf32>
    %41 = vector.extract_strided_slice %32 {offsets = [15, 0], sizes = [4, 128], strides = [1, 1]} : vector<40x128xf32> to vector<4x128xf32>
    %42 = arith.maximumf %40, %41 : vector<4x128xf32>
    %43 = arith.truncf %42 : vector<4x128xf32> to vector<4x128xbf16>
    %c0_35 = arith.constant 0 : index
    %c1_36 = arith.constant 1 : index
    %c0_37 = arith.constant 0 : index
    %c0_38 = arith.constant 0 : index
    %44 = vector.load %arg5[%c0_35, %c1_36, %c0_37, %c0_38] : memref<1x4x4x128xbf16, #tpu.memory_space<vmem>>, vector<1x1x4x128xbf16>
    %45 = vector.shape_cast %44 : vector<1x1x4x128xbf16> to vector<4x128xbf16>
    %46 = vector.shape_cast %43 : vector<4x128xbf16> to vector<1x1x4x128xbf16>
    tpu.vector_store %arg5[%c0_35, %c1_36, %c0_37, %c0_38], %46 {strides = array<i32>} : memref<1x4x4x128xbf16, #tpu.memory_space<vmem>>, vector<1x1x4x128xbf16>,
    %47 = vector.extract_strided_slice %32 {offsets = [20, 0], sizes = [4, 128], strides = [1, 1]} : vector<40x128xf32> to vector<4x128xf32>
    %48 = vector.extract_strided_slice %32 {offsets = [25, 0], sizes = [4, 128], strides = [1, 1]} : vector<40x128xf32> to vector<4x128xf32>
    %49 = arith.maximumf %47, %48 : vector<4x128xf32>
    %50 = arith.truncf %49 : vector<4x128xf32> to vector<4x128xbf16>
    %c0_39 = arith.constant 0 : index
    %c2_40 = arith.constant 2 : index
    %c0_41 = arith.constant 0 : index
    %c0_42 = arith.constant 0 : index
    %51 = vector.load %arg5[%c0_39, %c2_40, %c0_41, %c0_42] : memref<1x4x4x128xbf16, #tpu.memory_space<vmem>>, vector<1x1x4x128xbf16>
    %52 = vector.shape_cast %51 : vector<1x1x4x128xbf16> to vector<4x128xbf16>
    %53 = vector.shape_cast %50 : vector<4x128xbf16> to vector<1x1x4x128xbf16>
    tpu.vector_store %arg5[%c0_39, %c2_40, %c0_41, %c0_42], %53 {strides = array<i32>} : memref<1x4x4x128xbf16, #tpu.memory_space<vmem>>, vector<1x1x4x128xbf16>,
    %54 = vector.extract_strided_slice %32 {offsets = [30, 0], sizes = [4, 128], strides = [1, 1]} : vector<40x128xf32> to vector<4x128xf32>
    %55 = vector.extract_strided_slice %32 {offsets = [35, 0], sizes = [4, 128], strides = [1, 1]} : vector<40x128xf32> to vector<4x128xf32>
    %56 = arith.maximumf %54, %55 : vector<4x128xf32>
    %57 = arith.truncf %56 : vector<4x128xf32> to vector<4x128xbf16>
    %c0_43 = arith.constant 0 : index
    %c3 = arith.constant 3 : index
    %c0_44 = arith.constant 0 : index
    %c0_45 = arith.constant 0 : index
    %58 = vector.load %arg5[%c0_43, %c3, %c0_44, %c0_45] : memref<1x4x4x128xbf16, #tpu.memory_space<vmem>>, vector<1x1x4x128xbf16>
    %59 = vector.shape_cast %58 : vector<1x1x4x128xbf16> to vector<4x128xbf16>
    %60 = vector.shape_cast %57 : vector<4x128xbf16> to vector<1x1x4x128xbf16>
    tpu.vector_store %arg5[%c0_43, %c3, %c0_44, %c0_45], %60 {strides = array<i32>} : memref<1x4x4x128xbf16, #tpu.memory_space<vmem>>, vector<1x1x4x128xbf16>,
    return
  }
  func.func @transform_0(%arg0: i32) -> (i32, i32, i32) {
    %c0_i32 = arith.constant 0 : i32
    %c0_i32_0 = arith.constant 0 : i32
    %c0_i32_1 = arith.constant 0 : i32
    return %arg0, %c0_i32, %c0_i32_0 : i32, i32, i32
  }
  func.func @transform_1(%arg0: i32) -> (i32, i32) {
    %c0_i32 = arith.constant 0 : i32
    %c0_i32_0 = arith.constant 0 : i32
    %c0_i32_1 = arith.constant 0 : i32
    return %c0_i32, %c0_i32_0 : i32, i32
  }
  func.func @transform_2(%arg0: i32) -> (i32, i32) {
    %c0_i32 = arith.constant 0 : i32
    %c0_i32_0 = arith.constant 0 : i32
    %c0_i32_1 = arith.constant 0 : i32
    return %c0_i32, %c0_i32_0 : i32, i32
  }
  func.func @transform_3(%arg0: i32) -> (i32, i32) {
    %c0_i32 = arith.constant 0 : i32
    %c0_i32_0 = arith.constant 0 : i32
    %c0_i32_1 = arith.constant 0 : i32
    return %c0_i32, %c0_i32_0 : i32, i32
  }
  func.func @transform_4(%arg0: i32) -> (i32, i32, i32, i32) {
    %c0_i32 = arith.constant 0 : i32
    %c0_i32_0 = arith.constant 0 : i32
    %c0_i32_1 = arith.constant 0 : i32
    %c0_i32_2 = arith.constant 0 : i32
    return %arg0, %c0_i32, %c0_i32_0, %c0_i32_1 : i32, i32, i32, i32
  }
}

module attributes {stable_mosaic.version = 11 : i64} {
  func.func @kernel(%arg0: i32, %arg1: memref<1x42x128xbf16, #tpu.memory_space<vmem>>, %arg2: memref<1152x128xbf16, #tpu.memory_space<vmem>>, %arg3: memref<1x128xf32, #tpu.memory_space<vmem>>, %arg4: memref<1x128xf32, #tpu.memory_space<vmem>>, %arg5: memref<1x2x2x128xbf16, #tpu.memory_space<vmem>>, %arg6: memref<24x128xf32, #tpu.memory_space<vmem>>) attributes {dimension_semantics = [#tpu.dimension_semantics<parallel>], iteration_bounds = array<i64: 2>, scalar_prefetch = 0 : i64, scratch_operands = 1 : i64, tpu.core_type = #tpu.core_type<tc>, window_params = [{transform_indices = @transform_0, window_bounds = array<i64: 1, 42, 128>}, {pipeline_mode = #tpu.pipeline_mode<synchronous>, transform_indices = @transform_1, window_bounds = array<i64: 1152, 128>}, {pipeline_mode = #tpu.pipeline_mode<synchronous>, transform_indices = @transform_2, window_bounds = array<i64: 1, 128>}, {pipeline_mode = #tpu.pipeline_mode<synchronous>, transform_indices = @transform_3, window_bounds = array<i64: 1, 128>}, {transform_indices = @transform_4, window_bounds = array<i64: 1, 2, 2, 128>}]} {
    %c0 = arith.constant 0 : index
    %c0_0 = arith.constant 0 : index
    %c0_1 = arith.constant 0 : index
    %0 = vector.load %arg1[%c0, %c0_0, %c0_1] : memref<1x42x128xbf16, #tpu.memory_space<vmem>>, vector<1x24x128xbf16>
    %1 = vector.shape_cast %0 : vector<1x24x128xbf16> to vector<24x128xbf16>
    %c0_2 = arith.constant 0 : index
    %c1 = arith.constant 1 : index
    %c0_3 = arith.constant 0 : index
    %2 = vector.load %arg1[%c0_2, %c1, %c0_3] : memref<1x42x128xbf16, #tpu.memory_space<vmem>>, vector<1x24x128xbf16>
    %3 = vector.shape_cast %2 : vector<1x24x128xbf16> to vector<24x128xbf16>
    %c0_4 = arith.constant 0 : index
    %c2 = arith.constant 2 : index
    %c0_5 = arith.constant 0 : index
    %4 = vector.load %arg1[%c0_4, %c2, %c0_5] : memref<1x42x128xbf16, #tpu.memory_space<vmem>>, vector<1x24x128xbf16>
    %5 = vector.shape_cast %4 : vector<1x24x128xbf16> to vector<24x128xbf16>
    %c0_6 = arith.constant 0 : index
    %c6 = arith.constant 6 : index
    %c0_7 = arith.constant 0 : index
    %6 = vector.load %arg1[%c0_6, %c6, %c0_7] : memref<1x42x128xbf16, #tpu.memory_space<vmem>>, vector<1x24x128xbf16>
    %7 = vector.shape_cast %6 : vector<1x24x128xbf16> to vector<24x128xbf16>
    %c0_8 = arith.constant 0 : index
    %c7 = arith.constant 7 : index
    %c0_9 = arith.constant 0 : index
    %8 = vector.load %arg1[%c0_8, %c7, %c0_9] : memref<1x42x128xbf16, #tpu.memory_space<vmem>>, vector<1x24x128xbf16>
    %9 = vector.shape_cast %8 : vector<1x24x128xbf16> to vector<24x128xbf16>
    %c0_10 = arith.constant 0 : index
    %c8 = arith.constant 8 : index
    %c0_11 = arith.constant 0 : index
    %10 = vector.load %arg1[%c0_10, %c8, %c0_11] : memref<1x42x128xbf16, #tpu.memory_space<vmem>>, vector<1x24x128xbf16>
    %11 = vector.shape_cast %10 : vector<1x24x128xbf16> to vector<24x128xbf16>
    %c0_12 = arith.constant 0 : index
    %c12 = arith.constant 12 : index
    %c0_13 = arith.constant 0 : index
    %12 = vector.load %arg1[%c0_12, %c12, %c0_13] : memref<1x42x128xbf16, #tpu.memory_space<vmem>>, vector<1x24x128xbf16>
    %13 = vector.shape_cast %12 : vector<1x24x128xbf16> to vector<24x128xbf16>
    %c0_14 = arith.constant 0 : index
    %c13 = arith.constant 13 : index
    %c0_15 = arith.constant 0 : index
    %14 = vector.load %arg1[%c0_14, %c13, %c0_15] : memref<1x42x128xbf16, #tpu.memory_space<vmem>>, vector<1x24x128xbf16>
    %15 = vector.shape_cast %14 : vector<1x24x128xbf16> to vector<24x128xbf16>
    %c0_16 = arith.constant 0 : index
    %c14 = arith.constant 14 : index
    %c0_17 = arith.constant 0 : index
    %16 = vector.load %arg1[%c0_16, %c14, %c0_17] : memref<1x42x128xbf16, #tpu.memory_space<vmem>>, vector<1x24x128xbf16>
    %17 = vector.shape_cast %16 : vector<1x24x128xbf16> to vector<24x128xbf16>
    %18 = tpu.concatenate %1, %3, %5, %7, %9, %11, %13, %15, %17 in 1 : vector<24x128xbf16>, vector<24x128xbf16>, vector<24x128xbf16>, vector<24x128xbf16>, vector<24x128xbf16>, vector<24x128xbf16>, vector<24x128xbf16>, vector<24x128xbf16>, vector<24x128xbf16> -> vector<24x1152xbf16>
    %c0_18 = arith.constant 0 : index
    %c0_19 = arith.constant 0 : index
    %19 = vector.load %arg2[%c0_18, %c0_19] : memref<1152x128xbf16, #tpu.memory_space<vmem>>, vector<1152x128xbf16>
    %cst = arith.constant dense<0.000000e+00> : vector<24x128xf32>
    %20 = tpu.matmul %18, %19, %cst {dimension_numbers = #tpu.dot_dimension_numbers<[1], [0], [0], [1], [0, 0, 1, 1], [], []>} : vector<24x1152xbf16>, vector<1152x128xbf16>, vector<24x128xf32> -> vector<24x128xf32>
    %c0_20 = arith.constant 0 : index
    %c0_21 = arith.constant 0 : index
    %21 = vector.load %arg3[%c0_20, %c0_21] : memref<1x128xf32, #tpu.memory_space<vmem>>, vector<1x128xf32>
    %22 = vector.broadcast %21 : vector<1x128xf32> to vector<24x128xf32>
    %23 = arith.mulf %20, %22 : vector<24x128xf32>
    %c0_22 = arith.constant 0 : index
    %c0_23 = arith.constant 0 : index
    %24 = vector.load %arg4[%c0_22, %c0_23] : memref<1x128xf32, #tpu.memory_space<vmem>>, vector<1x128xf32>
    %25 = vector.broadcast %24 : vector<1x128xf32> to vector<24x128xf32>
    %26 = arith.addf %23, %25 : vector<24x128xf32>
    %cst_24 = arith.constant 0.000000e+00 : f32
    %27 = vector.broadcast %cst_24 : f32 to vector<24x128xf32>
    %28 = arith.maximumf %26, %27 : vector<24x128xf32>
    %c0_25 = arith.constant 0 : index
    %c0_26 = arith.constant 0 : index
    %29 = vector.load %arg6[%c0_25, %c0_26] : memref<24x128xf32, #tpu.memory_space<vmem>>, vector<24x128xf32>
    tpu.vector_store %arg6[%c0_25, %c0_26], %28 {strides = array<i32>} : memref<24x128xf32, #tpu.memory_space<vmem>>, vector<24x128xf32>,
    %c0_27 = arith.constant 0 : index
    %c0_28 = arith.constant 0 : index
    %30 = tpu.strided_load %arg6[%c0_27, %c0_28] {strides = array<i32: 2, 1>} : memref<24x128xf32, #tpu.memory_space<vmem>>, vector<12x128xf32>
    %c1_29 = arith.constant 1 : index
    %c0_30 = arith.constant 0 : index
    %31 = tpu.strided_load %arg6[%c1_29, %c0_30] {strides = array<i32: 2, 1>} : memref<24x128xf32, #tpu.memory_space<vmem>>, vector<12x128xf32>
    %32 = arith.maximumf %30, %31 : vector<12x128xf32>
    %33 = vector.extract_strided_slice %32 {offsets = [0, 0], sizes = [2, 128], strides = [1, 1]} : vector<12x128xf32> to vector<2x128xf32>
    %34 = vector.extract_strided_slice %32 {offsets = [3, 0], sizes = [2, 128], strides = [1, 1]} : vector<12x128xf32> to vector<2x128xf32>
    %35 = arith.maximumf %33, %34 : vector<2x128xf32>
    %36 = arith.truncf %35 : vector<2x128xf32> to vector<2x128xbf16>
    %c0_31 = arith.constant 0 : index
    %c0_32 = arith.constant 0 : index
    %c0_33 = arith.constant 0 : index
    %c0_34 = arith.constant 0 : index
    %37 = vector.load %arg5[%c0_31, %c0_32, %c0_33, %c0_34] : memref<1x2x2x128xbf16, #tpu.memory_space<vmem>>, vector<1x1x2x128xbf16>
    %38 = vector.shape_cast %37 : vector<1x1x2x128xbf16> to vector<2x128xbf16>
    %39 = vector.shape_cast %36 : vector<2x128xbf16> to vector<1x1x2x128xbf16>
    tpu.vector_store %arg5[%c0_31, %c0_32, %c0_33, %c0_34], %39 {strides = array<i32>} : memref<1x2x2x128xbf16, #tpu.memory_space<vmem>>, vector<1x1x2x128xbf16>,
    %40 = vector.extract_strided_slice %32 {offsets = [6, 0], sizes = [2, 128], strides = [1, 1]} : vector<12x128xf32> to vector<2x128xf32>
    %41 = vector.extract_strided_slice %32 {offsets = [9, 0], sizes = [2, 128], strides = [1, 1]} : vector<12x128xf32> to vector<2x128xf32>
    %42 = arith.maximumf %40, %41 : vector<2x128xf32>
    %43 = arith.truncf %42 : vector<2x128xf32> to vector<2x128xbf16>
    %c0_35 = arith.constant 0 : index
    %c1_36 = arith.constant 1 : index
    %c0_37 = arith.constant 0 : index
    %c0_38 = arith.constant 0 : index
    %44 = vector.load %arg5[%c0_35, %c1_36, %c0_37, %c0_38] : memref<1x2x2x128xbf16, #tpu.memory_space<vmem>>, vector<1x1x2x128xbf16>
    %45 = vector.shape_cast %44 : vector<1x1x2x128xbf16> to vector<2x128xbf16>
    %46 = vector.shape_cast %43 : vector<2x128xbf16> to vector<1x1x2x128xbf16>
    tpu.vector_store %arg5[%c0_35, %c1_36, %c0_37, %c0_38], %46 {strides = array<i32>} : memref<1x2x2x128xbf16, #tpu.memory_space<vmem>>, vector<1x1x2x128xbf16>,
    return
  }
  func.func @transform_0(%arg0: i32) -> (i32, i32, i32) {
    %c0_i32 = arith.constant 0 : i32
    %c0_i32_0 = arith.constant 0 : i32
    %c0_i32_1 = arith.constant 0 : i32
    return %arg0, %c0_i32, %c0_i32_0 : i32, i32, i32
  }
  func.func @transform_1(%arg0: i32) -> (i32, i32) {
    %c0_i32 = arith.constant 0 : i32
    %c0_i32_0 = arith.constant 0 : i32
    %c0_i32_1 = arith.constant 0 : i32
    return %c0_i32, %c0_i32_0 : i32, i32
  }
  func.func @transform_2(%arg0: i32) -> (i32, i32) {
    %c0_i32 = arith.constant 0 : i32
    %c0_i32_0 = arith.constant 0 : i32
    %c0_i32_1 = arith.constant 0 : i32
    return %c0_i32, %c0_i32_0 : i32, i32
  }
  func.func @transform_3(%arg0: i32) -> (i32, i32) {
    %c0_i32 = arith.constant 0 : i32
    %c0_i32_0 = arith.constant 0 : i32
    %c0_i32_1 = arith.constant 0 : i32
    return %c0_i32, %c0_i32_0 : i32, i32
  }
  func.func @transform_4(%arg0: i32) -> (i32, i32, i32, i32) {
    %c0_i32 = arith.constant 0 : i32
    %c0_i32_0 = arith.constant 0 : i32
    %c0_i32_1 = arith.constant 0 : i32
    %c0_i32_2 = arith.constant 0 : i32
    return %arg0, %c0_i32, %c0_i32_0, %c0_i32_1 : i32, i32, i32, i32
  }
}

module attributes {stable_mosaic.version = 11 : i64} {
  func.func @kernel(%arg0: i32, %arg1: memref<1x20x128xbf16, #tpu.memory_space<vmem>>, %arg2: memref<1152x128xbf16, #tpu.memory_space<vmem>>, %arg3: memref<1x128xf32, #tpu.memory_space<vmem>>, %arg4: memref<1x128xf32, #tpu.memory_space<vmem>>, %arg5: memref<1x8xf32, #tpu.memory_space<vmem>>, %arg6: memref<128x128xbf16, #tpu.memory_space<vmem>>, %arg7: memref<1x128xf32, #tpu.memory_space<vmem>>, %arg8: memref<128x128xbf16, #tpu.memory_space<vmem>>, %arg9: memref<1x128xf32, #tpu.memory_space<vmem>>, %arg10: memref<1x1x128xf32, #tpu.memory_space<vmem>>) attributes {dimension_semantics = [#tpu.dimension_semantics<parallel>], iteration_bounds = array<i64: 2>, scalar_prefetch = 0 : i64, scratch_operands = 0 : i64, tpu.core_type = #tpu.core_type<tc>, window_params = [{transform_indices = @transform_0, window_bounds = array<i64: 1, 20, 128>}, {pipeline_mode = #tpu.pipeline_mode<synchronous>, transform_indices = @transform_1, window_bounds = array<i64: 1152, 128>}, {pipeline_mode = #tpu.pipeline_mode<synchronous>, transform_indices = @transform_2, window_bounds = array<i64: 1, 128>}, {pipeline_mode = #tpu.pipeline_mode<synchronous>, transform_indices = @transform_3, window_bounds = array<i64: 1, 128>}, {pipeline_mode = #tpu.pipeline_mode<synchronous>, transform_indices = @transform_4, window_bounds = array<i64: 1, 8>}, {pipeline_mode = #tpu.pipeline_mode<synchronous>, transform_indices = @transform_5, window_bounds = array<i64: 128, 128>}, {pipeline_mode = #tpu.pipeline_mode<synchronous>, transform_indices = @transform_6, window_bounds = array<i64: 1, 128>}, {pipeline_mode = #tpu.pipeline_mode<synchronous>, transform_indices = @transform_7, window_bounds = array<i64: 128, 128>}, {pipeline_mode = #tpu.pipeline_mode<synchronous>, transform_indices = @transform_8, window_bounds = array<i64: 1, 128>}, {transform_indices = @transform_9, window_bounds = array<i64: 1, 1, 128>}]} {
    %c0 = arith.constant 0 : index
    %c0_0 = arith.constant 0 : index
    %c0_1 = arith.constant 0 : index
    %0 = vector.load %arg1[%c0, %c0_0, %c0_1] : memref<1x20x128xbf16, #tpu.memory_space<vmem>>, vector<1x8x128xbf16>
    %1 = vector.shape_cast %0 : vector<1x8x128xbf16> to vector<8x128xbf16>
    %c0_2 = arith.constant 0 : index
    %c1 = arith.constant 1 : index
    %c0_3 = arith.constant 0 : index
    %2 = vector.load %arg1[%c0_2, %c1, %c0_3] : memref<1x20x128xbf16, #tpu.memory_space<vmem>>, vector<1x8x128xbf16>
    %3 = vector.shape_cast %2 : vector<1x8x128xbf16> to vector<8x128xbf16>
    %c0_4 = arith.constant 0 : index
    %c2 = arith.constant 2 : index
    %c0_5 = arith.constant 0 : index
    %4 = vector.load %arg1[%c0_4, %c2, %c0_5] : memref<1x20x128xbf16, #tpu.memory_space<vmem>>, vector<1x8x128xbf16>
    %5 = vector.shape_cast %4 : vector<1x8x128xbf16> to vector<8x128xbf16>
    %c0_6 = arith.constant 0 : index
    %c4 = arith.constant 4 : index
    %c0_7 = arith.constant 0 : index
    %6 = vector.load %arg1[%c0_6, %c4, %c0_7] : memref<1x20x128xbf16, #tpu.memory_space<vmem>>, vector<1x8x128xbf16>
    %7 = vector.shape_cast %6 : vector<1x8x128xbf16> to vector<8x128xbf16>
    %c0_8 = arith.constant 0 : index
    %c5 = arith.constant 5 : index
    %c0_9 = arith.constant 0 : index
    %8 = vector.load %arg1[%c0_8, %c5, %c0_9] : memref<1x20x128xbf16, #tpu.memory_space<vmem>>, vector<1x8x128xbf16>
    %9 = vector.shape_cast %8 : vector<1x8x128xbf16> to vector<8x128xbf16>
    %c0_10 = arith.constant 0 : index
    %c6 = arith.constant 6 : index
    %c0_11 = arith.constant 0 : index
    %10 = vector.load %arg1[%c0_10, %c6, %c0_11] : memref<1x20x128xbf16, #tpu.memory_space<vmem>>, vector<1x8x128xbf16>
    %11 = vector.shape_cast %10 : vector<1x8x128xbf16> to vector<8x128xbf16>
    %c0_12 = arith.constant 0 : index
    %c8 = arith.constant 8 : index
    %c0_13 = arith.constant 0 : index
    %12 = vector.load %arg1[%c0_12, %c8, %c0_13] : memref<1x20x128xbf16, #tpu.memory_space<vmem>>, vector<1x8x128xbf16>
    %13 = vector.shape_cast %12 : vector<1x8x128xbf16> to vector<8x128xbf16>
    %c0_14 = arith.constant 0 : index
    %c9 = arith.constant 9 : index
    %c0_15 = arith.constant 0 : index
    %14 = vector.load %arg1[%c0_14, %c9, %c0_15] : memref<1x20x128xbf16, #tpu.memory_space<vmem>>, vector<1x8x128xbf16>
    %15 = vector.shape_cast %14 : vector<1x8x128xbf16> to vector<8x128xbf16>
    %c0_16 = arith.constant 0 : index
    %c10 = arith.constant 10 : index
    %c0_17 = arith.constant 0 : index
    %16 = vector.load %arg1[%c0_16, %c10, %c0_17] : memref<1x20x128xbf16, #tpu.memory_space<vmem>>, vector<1x8x128xbf16>
    %17 = vector.shape_cast %16 : vector<1x8x128xbf16> to vector<8x128xbf16>
    %18 = tpu.concatenate %1, %3, %5, %7, %9, %11, %13, %15, %17 in 1 : vector<8x128xbf16>, vector<8x128xbf16>, vector<8x128xbf16>, vector<8x128xbf16>, vector<8x128xbf16>, vector<8x128xbf16>, vector<8x128xbf16>, vector<8x128xbf16>, vector<8x128xbf16> -> vector<8x1152xbf16>
    %c0_18 = arith.constant 0 : index
    %c0_19 = arith.constant 0 : index
    %19 = vector.load %arg2[%c0_18, %c0_19] : memref<1152x128xbf16, #tpu.memory_space<vmem>>, vector<1152x128xbf16>
    %cst = arith.constant dense<0.000000e+00> : vector<8x128xf32>
    %20 = tpu.matmul %18, %19, %cst {dimension_numbers = #tpu.dot_dimension_numbers<[1], [0], [0], [1], [0, 0, 1, 1], [], []>} : vector<8x1152xbf16>, vector<1152x128xbf16>, vector<8x128xf32> -> vector<8x128xf32>
    %c0_20 = arith.constant 0 : index
    %c0_21 = arith.constant 0 : index
    %21 = vector.load %arg3[%c0_20, %c0_21] : memref<1x128xf32, #tpu.memory_space<vmem>>, vector<1x128xf32>
    %22 = vector.broadcast %21 : vector<1x128xf32> to vector<8x128xf32>
    %23 = arith.mulf %20, %22 : vector<8x128xf32>
    %c0_22 = arith.constant 0 : index
    %c0_23 = arith.constant 0 : index
    %24 = vector.load %arg4[%c0_22, %c0_23] : memref<1x128xf32, #tpu.memory_space<vmem>>, vector<1x128xf32>
    %25 = vector.broadcast %24 : vector<1x128xf32> to vector<8x128xf32>
    %26 = arith.addf %23, %25 : vector<8x128xf32>
    %cst_24 = arith.constant 0.000000e+00 : f32
    %27 = vector.broadcast %cst_24 : f32 to vector<8x128xf32>
    %28 = arith.maximumf %26, %27 : vector<8x128xf32>
    %c0_25 = arith.constant 0 : index
    %c0_26 = arith.constant 0 : index
    %29 = vector.load %arg5[%c0_25, %c0_26] : memref<1x8xf32, #tpu.memory_space<vmem>>, vector<1x8xf32>
    %cst_27 = arith.constant dense<0.000000e+00> : vector<1x128xf32>
    %30 = tpu.matmul %29, %28, %cst_27 {dimension_numbers = #tpu.dot_dimension_numbers<[1], [0], [0], [1], [0, 0, 1, 1], [], []>} : vector<1x8xf32>, vector<8x128xf32>, vector<1x128xf32> -> vector<1x128xf32>
    %31 = arith.truncf %30 : vector<1x128xf32> to vector<1x128xbf16>
    %c0_28 = arith.constant 0 : index
    %c0_29 = arith.constant 0 : index
    %32 = vector.load %arg6[%c0_28, %c0_29] : memref<128x128xbf16, #tpu.memory_space<vmem>>, vector<128x128xbf16>
    %cst_30 = arith.constant dense<0.000000e+00> : vector<1x128xf32>
    %33 = tpu.matmul %31, %32, %cst_30 {dimension_numbers = #tpu.dot_dimension_numbers<[1], [0], [0], [1], [0, 0, 1, 1], [], []>} : vector<1x128xbf16>, vector<128x128xbf16>, vector<1x128xf32> -> vector<1x128xf32>
    %c0_31 = arith.constant 0 : index
    %c0_32 = arith.constant 0 : index
    %34 = vector.load %arg7[%c0_31, %c0_32] : memref<1x128xf32, #tpu.memory_space<vmem>>, vector<1x128xf32>
    %35 = arith.addf %33, %34 : vector<1x128xf32>
    %cst_33 = arith.constant 0.000000e+00 : f32
    %36 = vector.broadcast %cst_33 : f32 to vector<1x128xf32>
    %37 = arith.maximumf %35, %36 : vector<1x128xf32>
    %38 = arith.truncf %37 : vector<1x128xf32> to vector<1x128xbf16>
    %c0_34 = arith.constant 0 : index
    %c0_35 = arith.constant 0 : index
    %39 = vector.load %arg8[%c0_34, %c0_35] : memref<128x128xbf16, #tpu.memory_space<vmem>>, vector<128x128xbf16>
    %cst_36 = arith.constant dense<0.000000e+00> : vector<1x128xf32>
    %40 = tpu.matmul %38, %39, %cst_36 {dimension_numbers = #tpu.dot_dimension_numbers<[1], [0], [0], [1], [0, 0, 1, 1], [], []>} : vector<1x128xbf16>, vector<128x128xbf16>, vector<1x128xf32> -> vector<1x128xf32>
    %c0_37 = arith.constant 0 : index
    %c0_38 = arith.constant 0 : index
    %41 = vector.load %arg9[%c0_37, %c0_38] : memref<1x128xf32, #tpu.memory_space<vmem>>, vector<1x128xf32>
    %42 = arith.addf %40, %41 : vector<1x128xf32>
    %c0_39 = arith.constant 0 : index
    %c0_40 = arith.constant 0 : index
    %c0_41 = arith.constant 0 : index
    %43 = vector.load %arg10[%c0_39, %c0_40, %c0_41] : memref<1x1x128xf32, #tpu.memory_space<vmem>>, vector<1x1x128xf32>
    %44 = vector.shape_cast %43 : vector<1x1x128xf32> to vector<1x128xf32>
    %45 = vector.shape_cast %42 : vector<1x128xf32> to vector<1x1x128xf32>
    tpu.vector_store %arg10[%c0_39, %c0_40, %c0_41], %45 {strides = array<i32>} : memref<1x1x128xf32, #tpu.memory_space<vmem>>, vector<1x1x128xf32>,
    return
  }
  func.func @transform_0(%arg0: i32) -> (i32, i32, i32) {
    %c0_i32 = arith.constant 0 : i32
    %c0_i32_0 = arith.constant 0 : i32
    %c0_i32_1 = arith.constant 0 : i32
    return %arg0, %c0_i32, %c0_i32_0 : i32, i32, i32
  }
  func.func @transform_1(%arg0: i32) -> (i32, i32) {
    %c0_i32 = arith.constant 0 : i32
    %c0_i32_0 = arith.constant 0 : i32
    %c0_i32_1 = arith.constant 0 : i32
    return %c0_i32, %c0_i32_0 : i32, i32
  }
  func.func @transform_2(%arg0: i32) -> (i32, i32) {
    %c0_i32 = arith.constant 0 : i32
    %c0_i32_0 = arith.constant 0 : i32
    %c0_i32_1 = arith.constant 0 : i32
    return %c0_i32, %c0_i32_0 : i32, i32
  }
  func.func @transform_3(%arg0: i32) -> (i32, i32) {
    %c0_i32 = arith.constant 0 : i32
    %c0_i32_0 = arith.constant 0 : i32
    %c0_i32_1 = arith.constant 0 : i32
    return %c0_i32, %c0_i32_0 : i32, i32
  }
  func.func @transform_4(%arg0: i32) -> (i32, i32) {
    %c0_i32 = arith.constant 0 : i32
    %c0_i32_0 = arith.constant 0 : i32
    %c0_i32_1 = arith.constant 0 : i32
    return %c0_i32, %c0_i32_0 : i32, i32
  }
  func.func @transform_5(%arg0: i32) -> (i32, i32) {
    %c0_i32 = arith.constant 0 : i32
    %c0_i32_0 = arith.constant 0 : i32
    %c0_i32_1 = arith.constant 0 : i32
    return %c0_i32, %c0_i32_0 : i32, i32
  }
  func.func @transform_6(%arg0: i32) -> (i32, i32) {
    %c0_i32 = arith.constant 0 : i32
    %c0_i32_0 = arith.constant 0 : i32
    %c0_i32_1 = arith.constant 0 : i32
    return %c0_i32, %c0_i32_0 : i32, i32
  }
  func.func @transform_7(%arg0: i32) -> (i32, i32) {
    %c0_i32 = arith.constant 0 : i32
    %c0_i32_0 = arith.constant 0 : i32
    %c0_i32_1 = arith.constant 0 : i32
    return %c0_i32, %c0_i32_0 : i32, i32
  }
  func.func @transform_8(%arg0: i32) -> (i32, i32) {
    %c0_i32 = arith.constant 0 : i32
    %c0_i32_0 = arith.constant 0 : i32
    %c0_i32_1 = arith.constant 0 : i32
    return %c0_i32, %c0_i32_0 : i32, i32
  }
  func.func @transform_9(%arg0: i32) -> (i32, i32, i32) {
    %c0_i32 = arith.constant 0 : i32
    %c0_i32_0 = arith.constant 0 : i32
    %c0_i32_1 = arith.constant 0 : i32
    return %arg0, %c0_i32, %c0_i32_0 : i32, i32, i32
  }
}

</mosaic_0001>

<llo_original>
// kernel: localization_network.7
$region0: #{localization_network.7}
  #allocation0 [shape = 'u32[]', space=smem, size = 0x4, offset = 0x4, fixed_abs, tag = 'smem constant byte address 0x4 - core index']
  #allocation1 [shape = 'u32[144,128]{1,0:T(1,128)}', space=vmem, size = 0x12000, scoped, tag = 'internal scratch']
  %s0 = inlined_call_operand.vmem [shape: bf16[2,20,128], index: 0, kind: input, shape index: {}]
  %s1 = inlined_call_operand.vmem [shape: bf16[1152,128], index: 1, kind: input, shape index: {}]
  %s2 = inlined_call_operand.vmem [shape: f32[1,128], index: 2, kind: input, shape index: {}]
  %s3 = inlined_call_operand.vmem [shape: f32[1,128], index: 3, kind: input, shape index: {}]
  %s4 = inlined_call_operand.vmem [shape: f32[1,8], index: 4, kind: input, shape index: {}]
  %s5 = inlined_call_operand.vmem [shape: bf16[128,128], index: 5, kind: input, shape index: {}]
  %s6 = inlined_call_operand.vmem [shape: f32[1,128], index: 6, kind: input, shape index: {}]
  %s7 = inlined_call_operand.vmem [shape: bf16[128,128], index: 7, kind: input, shape index: {}]
  %s8 = inlined_call_operand.vmem [shape: f32[1,128], index: 8, kind: input, shape index: {}]
  %s9 = inlined_call_operand.vmem [shape: f32[2,1,128], index: 9, kind: output, shape index: {}]
  %s10 = sld [smem:[#allocation0]]
  $region69: #{localization_network.7} parent=0
    _
  %s12 = ssub.s32 1, %s10
  %s13 = scalar_select 0, %s12, %s10
  loop: start=0, step=1, limit=4
  $region2: #{localization_network.7} parent=0 // loop_pre_header
    _
  $region3: #{localization_network.7} parent=0 // loop_header
    %s15 = sphi 0, %s19
    %p16 = scmp.ge.s32.totalorder %s15, 4
    %s25 = sphi 0, %s27
    %s28 = sphi 0, %s25
    %s29 = sphi 0, %s28
    %s45 = sphi 0, %s29
    %s49 = sphi 0, %s49
    %s51 = sphi 0, %s49
    %s52 = sphi 0, %s51
    %s66 = sphi 0, %s52
    %s70 = sphi 0, %s70
    %s72 = sphi 0, %s70
    %s73 = sphi 0, %s72
    %s87 = sphi 0, %s73
    %s91 = sphi 0, %s91
    %s93 = sphi 0, %s91
    %s94 = sphi 0, %s93
    %s108 = sphi 0, %s94
    %s112 = sphi 0, %s112
    %s114 = sphi 0, %s112
    %s115 = sphi 0, %s114
    %s129 = sphi 0, %s115
    %s133 = sphi 0, %s133
    %s135 = sphi 0, %s133
    %s136 = sphi 0, %s135
    %s150 = sphi 0, %s136
    %s154 = sphi 0, %s154
    %s156 = sphi 0, %s154
    %s157 = sphi 0, %s156
    %s171 = sphi 0, %s157
    %s175 = sphi 0, %s175
    %s177 = sphi 0, %s175
    %s178 = sphi 0, %s177
    %s192 = sphi 0, %s178
    %s196 = sphi 0, %s196
    %s198 = sphi 0, %s196
    %s199 = sphi 0, %s198
    %s213 = sphi 0, %s199
    %s219 = sphi 0, %s221
    %s222 = sphi 0, %s219
    %s223 = sphi 0, %s222
    %s239 = sphi 0, %s223
  $region4: #{localization_network.7} parent=0 // loop_header_branch
    %18 = sbr.rel (%p16) target = $region8
  $region5: #{localization_network.7} parent=0 // loop_body
    %s20 = ssub.s32 %s15, 1
    %s21 = ssub.s32 %s15, 2
    %s22 = sadd.s32 %s15, 1
    %s23 = ssub.s32 %s15, %s22
    %p24 = scmp.eq.s32.totalorder %s23, 0
    %s26 = sadd.s32 %s25, 1
    %s27 = scalar_select %p24, %s25, %s26
    %p30 = pneg %p24
    %p31 = scmp.eq.s32.totalorder %s15, 1
    %p32 = por %p30, %p31
    %p33 = scmp.ne.s32.totalorder %s25, %s28
    %p34 = scmp.eq.s32.totalorder %s15, 0
    %p35 = por %p33, %p34
    %p36 = scmp.ne.s32.totalorder %s25, %s28
    %p37 = scmp.eq.s32.totalorder %s20, 1
    %p38 = por %p36, %p37
    %p39 = scmp.ne.s32.totalorder %s28, %s29
    %p40 = scmp.eq.s32.totalorder %s20, 0
    %p41 = por %p39, %p40
    %p42 = scmp.ne.s32.totalorder %s28, %s29
    %p43 = scmp.eq.s32.totalorder %s21, 1
    %p44 = por %p42, %p43
    %p46 = scmp.ne.s32.totalorder %s29, %s45
    %p47 = scmp.eq.s32.totalorder %s21, 0
    %p48 = por %p46, %p47
    %s50 = sadd.s32 %s49, 1
    %p53 = scmp.eq.s32.totalorder %s15, 1
    %p54 = scmp.ne.s32.totalorder %s49, %s51
    %p55 = scmp.eq.s32.totalorder %s15, 0
    %p56 = por %p54, %p55
    %p57 = scmp.ne.s32.totalorder %s49, %s51
    %p58 = scmp.eq.s32.totalorder %s20, 1
    %p59 = por %p57, %p58
    %p60 = scmp.ne.s32.totalorder %s51, %s52
    %p61 = scmp.eq.s32.totalorder %s20, 0
    %p62 = por %p60, %p61
    %p63 = scmp.ne.s32.totalorder %s51, %s52
    %p64 = scmp.eq.s32.totalorder %s21, 1
    %p65 = por %p63, %p64
    %p67 = scmp.ne.s32.totalorder %s52, %s66
    %p68 = scmp.eq.s32.totalorder %s21, 0
    %p69 = por %p67, %p68
    %s71 = sadd.s32 %s70, 1
    %p74 = scmp.eq.s32.totalorder %s15, 1
    %p75 = scmp.ne.s32.totalorder %s70, %s72
    %p76 = scmp.eq.s32.totalorder %s15, 0
    %p77 = por %p75, %p76
    %p78 = scmp.ne.s32.totalorder %s70, %s72
    %p79 = scmp.eq.s32.totalorder %s20, 1
    %p80 = por %p78, %p79
    %p81 = scmp.ne.s32.totalorder %s72, %s73
    %p82 = scmp.eq.s32.totalorder %s20, 0
    %p83 = por %p81, %p82
    %p84 = scmp.ne.s32.totalorder %s72, %s73
    %p85 = scmp.eq.s32.totalorder %s21, 1
    %p86 = por %p84, %p85
    %p88 = scmp.ne.s32.totalorder %s73, %s87
    %p89 = scmp.eq.s32.totalorder %s21, 0
    %p90 = por %p88, %p89
    %s92 = sadd.s32 %s91, 1
    %p95 = scmp.eq.s32.totalorder %s15, 1
    %p96 = scmp.ne.s32.totalorder %s91, %s93
    %p97 = scmp.eq.s32.totalorder %s15, 0
    %p98 = por %p96, %p97
    %p99 = scmp.ne.s32.totalorder %s91, %s93
    %p100 = scmp.eq.s32.totalorder %s20, 1
    %p101 = por %p99, %p100
    %p102 = scmp.ne.s32.totalorder %s93, %s94
    %p103 = scmp.eq.s32.totalorder %s20, 0
    %p104 = por %p102, %p103
    %p105 = scmp.ne.s32.totalorder %s93, %s94
    %p106 = scmp.eq.s32.totalorder %s21, 1
    %p107 = por %p105, %p106
    %p109 = scmp.ne.s32.totalorder %s94, %s108
    %p110 = scmp.eq.s32.totalorder %s21, 0
    %p111 = por %p109, %p110
    %s113 = sadd.s32 %s112, 1
    %p116 = scmp.eq.s32.totalorder %s15, 1
    %p117 = scmp.ne.s32.totalorder %s112, %s114
    %p118 = scmp.eq.s32.totalorder %s15, 0
    %p119 = por %p117, %p118
    %p120 = scmp.ne.s32.totalorder %s112, %s114
    %p121 = scmp.eq.s32.totalorder %s20, 1
    %p122 = por %p120, %p121
    %p123 = scmp.ne.s32.totalorder %s114, %s115
    %p124 = scmp.eq.s32.totalorder %s20, 0
    %p125 = por %p123, %p124
    %p126 = scmp.ne.s32.totalorder %s114, %s115
    %p127 = scmp.eq.s32.totalorder %s21, 1
    %p128 = por %p126, %p127
    %p130 = scmp.ne.s32.totalorder %s115, %s129
    %p131 = scmp.eq.s32.totalorder %s21, 0
    %p132 = por %p130, %p131
    %s134 = sadd.s32 %s133, 1
    %p137 = scmp.eq.s32.totalorder %s15, 1
    %p138 = scmp.ne.s32.totalorder %s133, %s135
    %p139 = scmp.eq.s32.totalorder %s15, 0
    %p140 = por %p138, %p139
    %p141 = scmp.ne.s32.totalorder %s133, %s135
    %p142 = scmp.eq.s32.totalorder %s20, 1
    %p143 = por %p141, %p142
    %p144 = scmp.ne.s32.totalorder %s135, %s136
    %p145 = scmp.eq.s32.totalorder %s20, 0
    %p146 = por %p144, %p145
    %p147 = scmp.ne.s32.totalorder %s135, %s136
    %p148 = scmp.eq.s32.totalorder %s21, 1
    %p149 = por %p147, %p148
    %p151 = scmp.ne.s32.totalorder %s136, %s150
    %p152 = scmp.eq.s32.totalorder %s21, 0
    %p153 = por %p151, %p152
    %s155 = sadd.s32 %s154, 1
    %p158 = scmp.eq.s32.totalorder %s15, 1
    %p159 = scmp.ne.s32.totalorder %s154, %s156
    %p160 = scmp.eq.s32.totalorder %s15, 0
    %p161 = por %p159, %p160
    %p162 = scmp.ne.s32.totalorder %s154, %s156
    %p163 = scmp.eq.s32.totalorder %s20, 1
    %p164 = por %p162, %p163
    %p165 = scmp.ne.s32.totalorder %s156, %s157
    %p166 = scmp.eq.s32.totalorder %s20, 0
    %p167 = por %p165, %p166
    %p168 = scmp.ne.s32.totalorder %s156, %s157
    %p169 = scmp.eq.s32.totalorder %s21, 1
    %p170 = por %p168, %p169
    %p172 = scmp.ne.s32.totalorder %s157, %s171
    %p173 = scmp.eq.s32.totalorder %s21, 0
    %p174 = por %p172, %p173
    %s176 = sadd.s32 %s175, 1
    %p179 = scmp.eq.s32.totalorder %s15, 1
    %p180 = scmp.ne.s32.totalorder %s175, %s177
    %p181 = scmp.eq.s32.totalorder %s15, 0
    %p182 = por %p180, %p181
    %p183 = scmp.ne.s32.totalorder %s175, %s177
    %p184 = scmp.eq.s32.totalorder %s20, 1
    %p185 = por %p183, %p184
    %p186 = scmp.ne.s32.totalorder %s177, %s178
    %p187 = scmp.eq.s32.totalorder %s20, 0
    %p188 = por %p186, %p187
    %p189 = scmp.ne.s32.totalorder %s177, %s178
    %p190 = scmp.eq.s32.totalorder %s21, 1
    %p191 = por %p189, %p190
    %p193 = scmp.ne.s32.totalorder %s178, %s192
    %p194 = scmp.eq.s32.totalorder %s21, 0
    %p195 = por %p193, %p194
    %s197 = sadd.s32 %s196, 1
    %p200 = scmp.eq.s32.totalorder %s15, 1
    %p201 = scmp.ne.s32.totalorder %s196, %s198
    %p202 = scmp.eq.s32.totalorder %s15, 0
    %p203 = por %p201, %p202
    %p204 = scmp.ne.s32.totalorder %s196, %s198
    %p205 = scmp.eq.s32.totalorder %s20, 1
    %p206 = por %p204, %p205
    %p207 = scmp.ne.s32.totalorder %s198, %s199
    %p208 = scmp.eq.s32.totalorder %s20, 0
    %p209 = por %p207, %p208
    %p210 = scmp.ne.s32.totalorder %s198, %s199
    %p211 = scmp.eq.s32.totalorder %s21, 1
    %p212 = por %p210, %p211
    %p214 = scmp.ne.s32.totalorder %s199, %s213
    %p215 = scmp.eq.s32.totalorder %s21, 0
    %p216 = por %p214, %p215
    %s217 = ssub.s32 %s15, %s22
    %p218 = scmp.eq.s32.totalorder %s217, 0
    %s220 = sadd.s32 %s219, 1
    %s221 = scalar_select %p218, %s219, %s220
    %p224 = pneg %p218
    %p225 = scmp.eq.s32.totalorder %s15, 1
    %p226 = por %p224, %p225
    %p227 = scmp.ne.s32.totalorder %s219, %s222
    %p228 = scmp.eq.s32.totalorder %s15, 0
    %p229 = por %p227, %p228
    %p230 = scmp.ne.s32.totalorder %s219, %s222
    %p231 = scmp.eq.s32.totalorder %s20, 1
    %p232 = por %p230, %p231
    %p233 = scmp.ne.s32.totalorder %s222, %s223
    %p234 = scmp.eq.s32.totalorder %s20, 0
    %p235 = por %p233, %p234
    %p236 = scmp.ne.s32.totalorder %s222, %s223
    %p237 = scmp.eq.s32.totalorder %s21, 1
    %p238 = por %p236, %p237
    %p240 = scmp.ne.s32.totalorder %s223, %s239
    %p241 = scmp.eq.s32.totalorder %s21, 0
    %p242 = por %p240, %p241
    %p243 = scmp.le.s32.totalorder 1, %s15
    %p244 = scmp.lt.s32.totalorder %s15, 3
    %p245 = pnand %p243, %p244
    %p246 = pneg %p245
    // Predicated region
    $region9: #{localization_network.7} parent=5 // pred_check
      _
    $region10: #{localization_network.7} parent=5 // pred_check_branch
      %248 = sbr.rel (%p245) target = $region12
    $region11: #{localization_network.7} parent=5 // pred_region
      %s249 = ssub.s32 %s15, 1
      // Predicated region
      $region13: #{localization_network.7} parent=11 // pred_check
        %p250 = pneg %p62
      $region14: #{localization_network.7} parent=11 // pred_check_branch
        %252 = sbr.rel (%p250) target = $region16
      $region15: #{localization_network.7} parent=11 // pred_region
        _
      $region16: #{localization_network.7} parent=11 // pred_fallthru
        _
      // Predicated region
      $region17: #{localization_network.7} parent=11 // pred_check
        %p253 = pneg %p83
      $region18: #{localization_network.7} parent=11 // pred_check_branch
        %255 = sbr.rel (%p253) target = $region20
      $region19: #{localization_network.7} parent=11 // pred_region
        _
      $region20: #{localization_network.7} parent=11 // pred_fallthru
        _
      // Predicated region
      $region21: #{localization_network.7} parent=11 // pred_check
        %p256 = pneg %p104
      $region22: #{localization_network.7} parent=11 // pred_check_branch
        %258 = sbr.rel (%p256) target = $region24
      $region23: #{localization_network.7} parent=11 // pred_region
        _
      $region24: #{localization_network.7} parent=11 // pred_fallthru
        _
      // Predicated region
      $region25: #{localization_network.7} parent=11 // pred_check
        %p259 = pneg %p125
      $region26: #{localization_network.7} parent=11 // pred_check_branch
        %261 = sbr.rel (%p259) target = $region28
      $region27: #{localization_network.7} parent=11 // pred_region
        _
      $region28: #{localization_network.7} parent=11 // pred_fallthru
        _
      // Predicated region
      $region29: #{localization_network.7} parent=11 // pred_check
        %p262 = pneg %p146
      $region30: #{localization_network.7} parent=11 // pred_check_branch
        %264 = sbr.rel (%p262) target = $region32
      $region31: #{localization_network.7} parent=11 // pred_region
        _
      $region32: #{localization_network.7} parent=11 // pred_fallthru
        _
      // Predicated region
      $region33: #{localization_network.7} parent=11 // pred_check
        %p265 = pneg %p167
      $region34: #{localization_network.7} parent=11 // pred_check_branch
        %267 = sbr.rel (%p265) target = $region36
      $region35: #{localization_network.7} parent=11 // pred_region
        _
      $region36: #{localization_network.7} parent=11 // pred_fallthru
        _
      // Predicated region
      $region37: #{localization_network.7} parent=11 // pred_check
        %p268 = pneg %p188
      $region38: #{localization_network.7} parent=11 // pred_check_branch
        %270 = sbr.rel (%p268) target = $region40
      $region39: #{localization_network.7} parent=11 // pred_region
        _
      $region40: #{localization_network.7} parent=11 // pred_fallthru
        _
      // Predicated region
      $region41: #{localization_network.7} parent=11 // pred_check
        %p271 = pneg %p209
      $region42: #{localization_network.7} parent=11 // pred_check_branch
        %273 = sbr.rel (%p271) target = $region44
      $region43: #{localization_network.7} parent=11 // pred_region
        _
      $region44: #{localization_network.7} parent=11 // pred_fallthru
        _
    $region12: #{localization_network.7} parent=5 // pred_fallthru
      _
    %p274 = scmp.lt.s32.totalorder %s15, 2
    // Predicated region
    $region45: #{localization_network.7} parent=5 // pred_check
      %p275 = pneg %p274
    $region46: #{localization_network.7} parent=5 // pred_check_branch
      %277 = sbr.rel (%p275) target = $region48
    $region47: #{localization_network.7} parent=5 // pred_region
      // Predicated region
      $region49: #{localization_network.7} parent=47 // pred_check
        %p278 = pneg %p35
      $region50: #{localization_network.7} parent=47 // pred_check_branch
        %280 = sbr.rel (%p278) target = $region52
      $region51: #{localization_network.7} parent=47 // pred_region
        %p281 = scmp.lt.s32.totalorder %s15, 1
        %s282 = scalar_select %p281, %s15, 1
        %s283 = smul.addr %s282, 3
        %s284 = smul.addr %s283, 4
        %s285 = scalar_lea.vmem %s0, %s284
      $region52: #{localization_network.7} parent=47 // pred_fallthru
        _
    $region48: #{localization_network.7} parent=5 // pred_fallthru
      _
    %p286 = scmp.le.s32.totalorder 1, %s15
    %p287 = scmp.lt.s32.totalorder %s15, 3
    %p288 = pnand %p286, %p287
    %p289 = pneg %p288
    // Predicated region
    $region53: #{localization_network.7} parent=5 // pred_check
      _
    $region54: #{localization_network.7} parent=5 // pred_check_branch
      %291 = sbr.rel (%p288) target = $region56
    $region55: #{localization_network.7} parent=5 // pred_region
      %s292 = ssub.s32 %s15, 1
      %p293 = scmp.lt.s32.totalorder %s20, 1
      %s294 = scalar_select %p293, %s20, 1
      %s295 = smul.addr %s294, 3
      %s296 = smul.addr %s295, 4
      %s297 = scalar_lea.vmem %s0, %s296
      %p298 = pneg %p41
      %p299 = pneg %p38
      %p300 = pneg %p62
      %p301 = pneg %p59
      %p302 = pneg %p83
      %p303 = pneg %p80
      %p304 = pneg %p104
      %p305 = pneg %p101
      %p306 = pneg %p125
      %p307 = pneg %p122
      %p308 = pneg %p146
      %p309 = pneg %p143
      %p310 = pneg %p167
      %p311 = pneg %p164
      %p312 = pneg %p188
      %p313 = pneg %p185
      %p314 = pneg %p209
      %p315 = pneg %p206
      %p316 = pneg %p235
      %p317 = pneg %p232
      %p318 = scmp.lt.s32.totalorder %s20, 1
      %s319 = scalar_select %p318, %s20, 1
      %s320 = scalar_lea.vmem %s9, %s319
      %p321 = scmp.lt.s32.totalorder %s20, 1
      %s322 = scalar_select %p321, %s20, 1
      %s323 = smul.addr %s322, 3
      %s324 = smul.addr %s323, 4
      %s325 = scalar_lea.vmem %s0, %s324
      %p326 = scmp.lt.s32.totalorder %s20, 1
      %s327 = scalar_select %p326, %s20, 1
      %s328 = scalar_lea.vmem %s9, %s327
      %v330 = vld [vmem:[%s325] sm:$0xf]
      %v331 = vld [vmem:[%s325 + $0x4] sm:$0x1]
      %v332 = vld [vmem:[%s325] sm:$0xe]
      %v333 = vld [vmem:[%s325] sm:$0xc]
      %v334 = vld [vmem:[%s325 + $0x4] sm:$0x3]
      %v335 = vld [vmem:[%s325 + $0x4] sm:$0x7]
      %v336 = vld [vmem:[%s325] sm:$0x8]
      %v337 = vld [vmem:[%s325 + $0x4] sm:$0xf]
      %v338 = vld [vmem:[%s325 + $0x8] sm:$0x1]
      %v339 = vld [vmem:[%s325 + $0x4] sm:$0xe]
      %v342 = vunpack.c.l.b16 %v330
      %v343 = vunpack.c.l.b16 %v331
      %v344 = vpack.c.b16 %v343, %v342
      %v346 = vshrl.u32 %v344, 16
      %v348 = vshll.u32 %v344, 16
      %v350 = vrot.slane %v348, 1
      %v351 = vor.u32 %v346, %v350
      %v354 = vunpack.c.l.b16 %v332
      %v355 = vpack.c.b16 %v343, %v354
      %v356 = vrot.slane %v355, 1
      %v360 = vunpack.c.l.b16 %v333
      %v361 = vunpack.c.l.b16 %v334
      %v362 = vpack.c.b16 %v361, %v360
      %v363 = vrot.slane %v362, 2
      %v366 = vunpack.c.l.b16 %v335
      %v367 = vpack.c.b16 %v366, %v360
      %v369 = vshrl.u32 %v367, 16
      %v371 = vrot.slane %v369, 2
      %v372 = vshll.u32 %v367, 16
      %v374 = vrot.slane %v372, 3
      %v375 = vor.u32 %v371, %v374
      %v378 = vunpack.c.l.b16 %v336
      %v379 = vpack.c.b16 %v366, %v378
      %v380 = vrot.slane %v379, 3
      %v384 = vunpack.c.l.b16 %v337
      %v385 = vunpack.c.l.b16 %v338
      %v386 = vpack.c.b16 %v385, %v384
      %v388 = vshrl.u32 %v386, 16
      %v390 = vshll.u32 %v386, 16
      %v392 = vrot.slane %v390, 1
      %v393 = vor.u32 %v388, %v392
      %v396 = vunpack.c.l.b16 %v339
      %v397 = vpack.c.b16 %v385, %v396
      %v398 = vrot.slane %v397, 1
      %v400 = vld [vmem:[%s1] sm:$0xf]
      %v401 = vld [vmem:[%s1 + $0x4] sm:$0xf]
      %v402 = vld [vmem:[%s1 + $0x8] sm:$0xf]
      %v403 = vld [vmem:[%s1 + $0xc] sm:$0xf]
      %v404 = vld [vmem:[%s1 + $0x10] sm:$0xf]
      %v405 = vld [vmem:[%s1 + $0x14] sm:$0xf]
      %v406 = vld [vmem:[%s1 + $0x18] sm:$0xf]
      %v407 = vld [vmem:[%s1 + $0x1c] sm:$0xf]
      %v408 = vld [vmem:[%s1 + $0x20] sm:$0xf]
      %v409 = vld [vmem:[%s1 + $0x24] sm:$0xf]
      %v410 = vld [vmem:[%s1 + $0x28] sm:$0xf]
      %v411 = vld [vmem:[%s1 + $0x2c] sm:$0xf]
      %v412 = vld [vmem:[%s1 + $0x30] sm:$0xf]
      %v413 = vld [vmem:[%s1 + $0x34] sm:$0xf]
      %v414 = vld [vmem:[%s1 + $0x38] sm:$0xf]
      %v415 = vld [vmem:[%s1 + $0x3c] sm:$0xf]
      %v416 = vld [vmem:[%s1 + $0x40] sm:$0xf]
      %v417 = vld [vmem:[%s1 + $0x44] sm:$0xf]
      %v418 = vld [vmem:[%s1 + $0x48] sm:$0xf]
      %v419 = vld [vmem:[%s1 + $0x4c] sm:$0xf]
      %v420 = vld [vmem:[%s1 + $0x50] sm:$0xf]
      %v421 = vld [vmem:[%s1 + $0x54] sm:$0xf]
      %v422 = vld [vmem:[%s1 + $0x58] sm:$0xf]
      %v423 = vld [vmem:[%s1 + $0x5c] sm:$0xf]
      %v424 = vld [vmem:[%s1 + $0x60] sm:$0xf]
      %v425 = vld [vmem:[%s1 + $0x64] sm:$0xf]
      %v426 = vld [vmem:[%s1 + $0x68] sm:$0xf]
      %v427 = vld [vmem:[%s1 + $0x6c] sm:$0xf]
      %v428 = vld [vmem:[%s1 + $0x70] sm:$0xf]
      %v429 = vld [vmem:[%s1 + $0x74] sm:$0xf]
      %v430 = vld [vmem:[%s1 + $0x78] sm:$0xf]
      %v431 = vld [vmem:[%s1 + $0x7c] sm:$0xf]
      %v432 = vld [vmem:[%s1 + $0x80] sm:$0xf]
      %v433 = vld [vmem:[%s1 + $0x84] sm:$0xf]
      %v434 = vld [vmem:[%s1 + $0x88] sm:$0xf]
      %v435 = vld [vmem:[%s1 + $0x8c] sm:$0xf]
      %v436 = vld [vmem:[%s1 + $0x90] sm:$0xf]
      %v437 = vld [vmem:[%s1 + $0x94] sm:$0xf]
      %v438 = vld [vmem:[%s1 + $0x98] sm:$0xf]
      %v439 = vld [vmem:[%s1 + $0x9c] sm:$0xf]
      %v440 = vld [vmem:[%s1 + $0xa0] sm:$0xf]
      %v441 = vld [vmem:[%s1 + $0xa4] sm:$0xf]
      %v442 = vld [vmem:[%s1 + $0xa8] sm:$0xf]
      %v443 = vld [vmem:[%s1 + $0xac] sm:$0xf]
      %v444 = vld [vmem:[%s1 + $0xb0] sm:$0xf]
      %v445 = vld [vmem:[%s1 + $0xb4] sm:$0xf]
      %v446 = vld [vmem:[%s1 + $0xb8] sm:$0xf]
      %v447 = vld [vmem:[%s1 + $0xbc] sm:$0xf]
      %v448 = vld [vmem:[%s1 + $0xc0] sm:$0xf]
      %v449 = vld [vmem:[%s1 + $0xc4] sm:$0xf]
      %v450 = vld [vmem:[%s1 + $0xc8] sm:$0xf]
      %v451 = vld [vmem:[%s1 + $0xcc] sm:$0xf]
      %v452 = vld [vmem:[%s1 + $0xd0] sm:$0xf]
      %v453 = vld [vmem:[%s1 + $0xd4] sm:$0xf]
      %v454 = vld [vmem:[%s1 + $0xd8] sm:$0xf]
      %v455 = vld [vmem:[%s1 + $0xdc] sm:$0xf]
      %v456 = vld [vmem:[%s1 + $0xe0] sm:$0xf]
      %v457 = vld [vmem:[%s1 + $0xe4] sm:$0xf]
      %v458 = vld [vmem:[%s1 + $0xe8] sm:$0xf]
      %v459 = vld [vmem:[%s1 + $0xec] sm:$0xf]
      %v460 = vld [vmem:[%s1 + $0xf0] sm:$0xf]
      %v461 = vld [vmem:[%s1 + $0xf4] sm:$0xf]
      %v462 = vld [vmem:[%s1 + $0xf8] sm:$0xf]
      %v463 = vld [vmem:[%s1 + $0xfc] sm:$0xf]
      %v464 = vld [vmem:[%s1 + $0x100] sm:$0xf]
      %v465 = vld [vmem:[%s1 + $0x104] sm:$0xf]
      %v466 = vld [vmem:[%s1 + $0x108] sm:$0xf]
      %v467 = vld [vmem:[%s1 + $0x10c] sm:$0xf]
      %v468 = vld [vmem:[%s1 + $0x110] sm:$0xf]
      %v469 = vld [vmem:[%s1 + $0x114] sm:$0xf]
      %v470 = vld [vmem:[%s1 + $0x118] sm:$0xf]
      %v471 = vld [vmem:[%s1 + $0x11c] sm:$0xf]
      %v472 = vld [vmem:[%s1 + $0x120] sm:$0xf]
      %v473 = vld [vmem:[%s1 + $0x124] sm:$0xf]
      %v474 = vld [vmem:[%s1 + $0x128] sm:$0xf]
      %v475 = vld [vmem:[%s1 + $0x12c] sm:$0xf]
      %v476 = vld [vmem:[%s1 + $0x130] sm:$0xf]
      %v477 = vld [vmem:[%s1 + $0x134] sm:$0xf]
      %v478 = vld [vmem:[%s1 + $0x138] sm:$0xf]
      %v479 = vld [vmem:[%s1 + $0x13c] sm:$0xf]
      %v480 = vld [vmem:[%s1 + $0x140] sm:$0xf]
      %v481 = vld [vmem:[%s1 + $0x144] sm:$0xf]
      %v482 = vld [vmem:[%s1 + $0x148] sm:$0xf]
      %v483 = vld [vmem:[%s1 + $0x14c] sm:$0xf]
      %v484 = vld [vmem:[%s1 + $0x150] sm:$0xf]
      %v485 = vld [vmem:[%s1 + $0x154] sm:$0xf]
      %v486 = vld [vmem:[%s1 + $0x158] sm:$0xf]
      %v487 = vld [vmem:[%s1 + $0x15c] sm:$0xf]
      %v488 = vld [vmem:[%s1 + $0x160] sm:$0xf]
      %v489 = vld [vmem:[%s1 + $0x164] sm:$0xf]
      %v490 = vld [vmem:[%s1 + $0x168] sm:$0xf]
      %v491 = vld [vmem:[%s1 + $0x16c] sm:$0xf]
      %v492 = vld [vmem:[%s1 + $0x170] sm:$0xf]
      %v493 = vld [vmem:[%s1 + $0x174] sm:$0xf]
      %v494 = vld [vmem:[%s1 + $0x178] sm:$0xf]
      %v495 = vld [vmem:[%s1 + $0x17c] sm:$0xf]
      %v496 = vld [vmem:[%s1 + $0x180] sm:$0xf]
      %v497 = vld [vmem:[%s1 + $0x184] sm:$0xf]
      %v498 = vld [vmem:[%s1 + $0x188] sm:$0xf]
      %v499 = vld [vmem:[%s1 + $0x18c] sm:$0xf]
      %v500 = vld [vmem:[%s1 + $0x190] sm:$0xf]
      %v501 = vld [vmem:[%s1 + $0x194] sm:$0xf]
      %v502 = vld [vmem:[%s1 + $0x198] sm:$0xf]
      %v503 = vld [vmem:[%s1 + $0x19c] sm:$0xf]
      %v504 = vld [vmem:[%s1 + $0x1a0] sm:$0xf]
      %v505 = vld [vmem:[%s1 + $0x1a4] sm:$0xf]
      %v506 = vld [vmem:[%s1 + $0x1a8] sm:$0xf]
      %v507 = vld [vmem:[%s1 + $0x1ac] sm:$0xf]
      %v508 = vld [vmem:[%s1 + $0x1b0] sm:$0xf]
      %v509 = vld [vmem:[%s1 + $0x1b4] sm:$0xf]
      %v510 = vld [vmem:[%s1 + $0x1b8] sm:$0xf]
      %v511 = vld [vmem:[%s1 + $0x1bc] sm:$0xf]
      %v512 = vld [vmem:[%s1 + $0x1c0] sm:$0xf]
      %v513 = vld [vmem:[%s1 + $0x1c4] sm:$0xf]
      %v514 = vld [vmem:[%s1 + $0x1c8] sm:$0xf]
      %v515 = vld [vmem:[%s1 + $0x1cc] sm:$0xf]
      %v516 = vld [vmem:[%s1 + $0x1d0] sm:$0xf]
      %v517 = vld [vmem:[%s1 + $0x1d4] sm:$0xf]
      %v518 = vld [vmem:[%s1 + $0x1d8] sm:$0xf]
      %v519 = vld [vmem:[%s1 + $0x1dc] sm:$0xf]
      %v520 = vld [vmem:[%s1 + $0x1e0] sm:$0xf]
      %v521 = vld [vmem:[%s1 + $0x1e4] sm:$0xf]
      %v522 = vld [vmem:[%s1 + $0x1e8] sm:$0xf]
      %v523 = vld [vmem:[%s1 + $0x1ec] sm:$0xf]
      %v524 = vld [vmem:[%s1 + $0x1f0] sm:$0xf]
      %v525 = vld [vmem:[%s1 + $0x1f4] sm:$0xf]
      %v526 = vld [vmem:[%s1 + $0x1f8] sm:$0xf]
      %v527 = vld [vmem:[%s1 + $0x1fc] sm:$0xf]
      %v528 = vld [vmem:[%s1 + $0x200] sm:$0xf]
      %v529 = vld [vmem:[%s1 + $0x204] sm:$0xf]
      %v530 = vld [vmem:[%s1 + $0x208] sm:$0xf]
      %v531 = vld [vmem:[%s1 + $0x20c] sm:$0xf]
      %v532 = vld [vmem:[%s1 + $0x210] sm:$0xf]
      %v533 = vld [vmem:[%s1 + $0x214] sm:$0xf]
      %v534 = vld [vmem:[%s1 + $0x218] sm:$0xf]
      %v535 = vld [vmem:[%s1 + $0x21c] sm:$0xf]
      %v536 = vld [vmem:[%s1 + $0x220] sm:$0xf]
      %v537 = vld [vmem:[%s1 + $0x224] sm:$0xf]
      %v538 = vld [vmem:[%s1 + $0x228] sm:$0xf]
      %v539 = vld [vmem:[%s1 + $0x22c] sm:$0xf]
      %v540 = vld [vmem:[%s1 + $0x230] sm:$0xf]
      %v541 = vld [vmem:[%s1 + $0x234] sm:$0xf]
      %v542 = vld [vmem:[%s1 + $0x238] sm:$0xf]
      %v543 = vld [vmem:[%s1 + $0x23c] sm:$0xf]
      %v688 = vunpack.c.l.b16 %v400
      %v689 = vunpack.c.l.b16 %v401
      %v690 = vunpack.c.l.b16 %v402
      %v691 = vunpack.c.l.b16 %v403
      %v692 = vunpack.c.l.b16 %v404
      %v693 = vunpack.c.l.b16 %v405
      %v694 = vunpack.c.l.b16 %v406
      %v695 = vunpack.c.l.b16 %v407
      %v696 = vunpack.c.l.b16 %v408
      %v697 = vunpack.c.l.b16 %v409
      %v698 = vunpack.c.l.b16 %v410
      %v699 = vunpack.c.l.b16 %v411
      %v700 = vunpack.c.l.b16 %v412
      %v701 = vunpack.c.l.b16 %v413
      %v702 = vunpack.c.l.b16 %v414
      %v703 = vunpack.c.l.b16 %v415
      %v704 = vunpack.c.l.b16 %v416
      %v705 = vunpack.c.l.b16 %v417
      %v706 = vunpack.c.l.b16 %v418
      %v707 = vunpack.c.l.b16 %v419
      %v708 = vunpack.c.l.b16 %v420
      %v709 = vunpack.c.l.b16 %v421
      %v710 = vunpack.c.l.b16 %v422
      %v711 = vunpack.c.l.b16 %v423
      %v712 = vunpack.c.l.b16 %v424
      %v713 = vunpack.c.l.b16 %v425
      %v714 = vunpack.c.l.b16 %v426
      %v715 = vunpack.c.l.b16 %v427
      %v716 = vunpack.c.l.b16 %v428
      %v717 = vunpack.c.l.b16 %v429
      %v718 = vunpack.c.l.b16 %v430
      %v719 = vunpack.c.l.b16 %v431
      %v720 = vunpack.c.l.b16 %v432
      %v721 = vunpack.c.l.b16 %v433
      %v722 = vunpack.c.l.b16 %v434
      %v723 = vunpack.c.l.b16 %v435
      %v724 = vunpack.c.l.b16 %v436
      %v725 = vunpack.c.l.b16 %v437
      %v726 = vunpack.c.l.b16 %v438
      %v727 = vunpack.c.l.b16 %v439
      %v728 = vunpack.c.l.b16 %v440
      %v729 = vunpack.c.l.b16 %v441
      %v730 = vunpack.c.l.b16 %v442
      %v731 = vunpack.c.l.b16 %v443
      %v732 = vunpack.c.l.b16 %v444
      %v733 = vunpack.c.l.b16 %v445
      %v734 = vunpack.c.l.b16 %v446
      %v735 = vunpack.c.l.b16 %v447
      %v736 = vunpack.c.l.b16 %v448
      %v737 = vunpack.c.l.b16 %v449
      %v738 = vunpack.c.l.b16 %v450
      %v739 = vunpack.c.l.b16 %v451
      %v740 = vunpack.c.l.b16 %v452
      %v741 = vunpack.c.l.b16 %v453
      %v742 = vunpack.c.l.b16 %v454
      %v743 = vunpack.c.l.b16 %v455
      %v744 = vunpack.c.l.b16 %v456
      %v745 = vunpack.c.l.b16 %v457
      %v746 = vunpack.c.l.b16 %v458
      %v747 = vunpack.c.l.b16 %v459
      %v748 = vunpack.c.l.b16 %v460
      %v749 = vunpack.c.l.b16 %v461
      %v750 = vunpack.c.l.b16 %v462
      %v751 = vunpack.c.l.b16 %v463
      %v752 = vunpack.c.l.b16 %v464
      %v753 = vunpack.c.l.b16 %v465
      %v754 = vunpack.c.l.b16 %v466
      %v755 = vunpack.c.l.b16 %v467
      %v756 = vunpack.c.l.b16 %v468
      %v757 = vunpack.c.l.b16 %v469
      %v758 = vunpack.c.l.b16 %v470
      %v759 = vunpack.c.l.b16 %v471
      %v760 = vunpack.c.l.b16 %v472
      %v761 = vunpack.c.l.b16 %v473
      %v762 = vunpack.c.l.b16 %v474
      %v763 = vunpack.c.l.b16 %v475
      %v764 = vunpack.c.l.b16 %v476
      %v765 = vunpack.c.l.b16 %v477
      %v766 = vunpack.c.l.b16 %v478
      %v767 = vunpack.c.l.b16 %v479
      %v768 = vunpack.c.l.b16 %v480
      %v769 = vunpack.c.l.b16 %v481
      %v770 = vunpack.c.l.b16 %v482
      %v771 = vunpack.c.l.b16 %v483
      %v772 = vunpack.c.l.b16 %v484
      %v773 = vunpack.c.l.b16 %v485
      %v774 = vunpack.c.l.b16 %v486
      %v775 = vunpack.c.l.b16 %v487
      %v776 = vunpack.c.l.b16 %v488
      %v777 = vunpack.c.l.b16 %v489
      %v778 = vunpack.c.l.b16 %v490
      %v779 = vunpack.c.l.b16 %v491
      %v780 = vunpack.c.l.b16 %v492
      %v781 = vunpack.c.l.b16 %v493
      %v782 = vunpack.c.l.b16 %v494
      %v783 = vunpack.c.l.b16 %v495
      %v784 = vunpack.c.l.b16 %v496
      %v785 = vunpack.c.l.b16 %v497
      %v786 = vunpack.c.l.b16 %v498
      %v787 = vunpack.c.l.b16 %v499
      %v788 = vunpack.c.l.b16 %v500
      %v789 = vunpack.c.l.b16 %v501
      %v790 = vunpack.c.l.b16 %v502
      %v791 = vunpack.c.l.b16 %v503
      %v792 = vunpack.c.l.b16 %v504
      %v793 = vunpack.c.l.b16 %v505
      %v794 = vunpack.c.l.b16 %v506
      %v795 = vunpack.c.l.b16 %v507
      %v796 = vunpack.c.l.b16 %v508
      %v797 = vunpack.c.l.b16 %v509
      %v798 = vunpack.c.l.b16 %v510
      %v799 = vunpack.c.l.b16 %v511
      %v800 = vunpack.c.l.b16 %v512
      %v801 = vunpack.c.l.b16 %v513
      %v802 = vunpack.c.l.b16 %v514
      %v803 = vunpack.c.l.b16 %v515
      %v804 = vunpack.c.l.b16 %v516
      %v805 = vunpack.c.l.b16 %v517
      %v806 = vunpack.c.l.b16 %v518
      %v807 = vunpack.c.l.b16 %v519
      %v808 = vunpack.c.l.b16 %v520
      %v809 = vunpack.c.l.b16 %v521
      %v810 = vunpack.c.l.b16 %v522
      %v811 = vunpack.c.l.b16 %v523
      %v812 = vunpack.c.l.b16 %v524
      %v813 = vunpack.c.l.b16 %v525
      %v814 = vunpack.c.l.b16 %v526
      %v815 = vunpack.c.l.b16 %v527
      %v816 = vunpack.c.l.b16 %v528
      %v817 = vunpack.c.l.b16 %v529
      %v818 = vunpack.c.l.b16 %v530
      %v819 = vunpack.c.l.b16 %v531
      %v820 = vunpack.c.l.b16 %v532
      %v821 = vunpack.c.l.b16 %v533
      %v822 = vunpack.c.l.b16 %v534
      %v823 = vunpack.c.l.b16 %v535
      %v824 = vunpack.c.l.b16 %v536
      %v825 = vunpack.c.l.b16 %v537
      %v826 = vunpack.c.l.b16 %v538
      %v827 = vunpack.c.l.b16 %v539
      %v828 = vunpack.c.l.b16 %v540
      %v829 = vunpack.c.l.b16 %v541
      %v830 = vunpack.c.l.b16 %v542
      %v831 = vunpack.c.l.b16 %v543
      %v832 = vpack.c.b16 %v689, %v688
      %v833 = vpack.c.b16 %v691, %v690
      %v834 = vpack.c.b16 %v693, %v692
      %v835 = vpack.c.b16 %v695, %v694
      %v836 = vpack.c.b16 %v697, %v696
      %v837 = vpack.c.b16 %v699, %v698
      %v838 = vpack.c.b16 %v701, %v700
      %v839 = vpack.c.b16 %v703, %v702
      %v840 = vpack.c.b16 %v705, %v704
      %v841 = vpack.c.b16 %v707, %v706
      %v842 = vpack.c.b16 %v709, %v708
      %v843 = vpack.c.b16 %v711, %v710
      %v844 = vpack.c.b16 %v713, %v712
      %v845 = vpack.c.b16 %v715, %v714
      %v846 = vpack.c.b16 %v717, %v716
      %v847 = vpack.c.b16 %v719, %v718
      %v848 = vpack.c.b16 %v721, %v720
      %v849 = vpack.c.b16 %v723, %v722
      %v850 = vpack.c.b16 %v725, %v724
      %v851 = vpack.c.b16 %v727, %v726
      %v852 = vpack.c.b16 %v729, %v728
      %v853 = vpack.c.b16 %v731, %v730
      %v854 = vpack.c.b16 %v733, %v732
      %v855 = vpack.c.b16 %v735, %v734
      %v856 = vpack.c.b16 %v737, %v736
      %v857 = vpack.c.b16 %v739, %v738
      %v858 = vpack.c.b16 %v741, %v740
      %v859 = vpack.c.b16 %v743, %v742
      %v860 = vpack.c.b16 %v745, %v744
      %v861 = vpack.c.b16 %v747, %v746
      %v862 = vpack.c.b16 %v749, %v748
      %v863 = vpack.c.b16 %v751, %v750
      %v864 = vpack.c.b16 %v753, %v752
      %v865 = vpack.c.b16 %v755, %v754
      %v866 = vpack.c.b16 %v757, %v756
      %v867 = vpack.c.b16 %v759, %v758
      %v868 = vpack.c.b16 %v761, %v760
      %v869 = vpack.c.b16 %v763, %v762
      %v870 = vpack.c.b16 %v765, %v764
      %v871 = vpack.c.b16 %v767, %v766
      %v872 = vpack.c.b16 %v769, %v768
      %v873 = vpack.c.b16 %v771, %v770
      %v874 = vpack.c.b16 %v773, %v772
      %v875 = vpack.c.b16 %v775, %v774
      %v876 = vpack.c.b16 %v777, %v776
      %v877 = vpack.c.b16 %v779, %v778
      %v878 = vpack.c.b16 %v781, %v780
      %v879 = vpack.c.b16 %v783, %v782
      %v880 = vpack.c.b16 %v785, %v784
      %v881 = vpack.c.b16 %v787, %v786
      %v882 = vpack.c.b16 %v789, %v788
      %v883 = vpack.c.b16 %v791, %v790
      %v884 = vpack.c.b16 %v793, %v792
      %v885 = vpack.c.b16 %v795, %v794
      %v886 = vpack.c.b16 %v797, %v796
      %v887 = vpack.c.b16 %v799, %v798
      %v888 = vpack.c.b16 %v801, %v800
      %v889 = vpack.c.b16 %v803, %v802
      %v890 = vpack.c.b16 %v805, %v804
      %v891 = vpack.c.b16 %v807, %v806
      %v892 = vpack.c.b16 %v809, %v808
      %v893 = vpack.c.b16 %v811, %v810
      %v894 = vpack.c.b16 %v813, %v812
      %v895 = vpack.c.b16 %v815, %v814
      %v896 = vpack.c.b16 %v817, %v816
      %v897 = vpack.c.b16 %v819, %v818
      %v898 = vpack.c.b16 %v821, %v820
      %v899 = vpack.c.b16 %v823, %v822
      %v900 = vpack.c.b16 %v825, %v824
      %v901 = vpack.c.b16 %v827, %v826
      %v902 = vpack.c.b16 %v829, %v828
      %v903 = vpack.c.b16 %v831, %v830
      %976 = vmatprep.subr.bf16.mxu0 0
      %977 = vmatpush1.bf16.msra.mxu0 %v832
      %978 = vmatprep.subr.bf16.mxu0 0
      %979 = vmatpush1.bf16.msra.mxu0 %v833
      %980 = vmatprep.subr.bf16.mxu0 0
      %981 = vmatpush1.bf16.msra.mxu0 %v834
      %982 = vmatprep.subr.bf16.mxu0 0
      %983 = vmatpush1.bf16.msra.mxu0 %v835
      %984 = vmatprep.subr.bf16.mxu0 0
      %985 = vmatpush1.bf16.msra.mxu0 %v836
      %986 = vmatprep.subr.bf16.mxu0 0
      %987 = vmatpush1.bf16.msra.mxu0 %v837
      %988 = vmatprep.subr.bf16.mxu0 0
      %989 = vmatpush1.bf16.msra.mxu0 %v838
      %990 = vmatprep.subr.bf16.mxu0 0
      %991 = vmatpush1.bf16.msra.mxu0 %v839
      %992 = vmatprep.subr.bf16.mxu0 0
      %993 = vmatpush1.bf16.msra.mxu0 %v840
      %994 = vmatprep.subr.bf16.mxu0 0
      %995 = vmatpush1.bf16.msra.mxu0 %v841
      %996 = vmatprep.subr.bf16.mxu0 0
      %997 = vmatpush1.bf16.msra.mxu0 %v842
      %998 = vmatprep.subr.bf16.mxu0 0
      %999 = vmatpush1.bf16.msra.mxu0 %v843
      %1000 = vmatprep.subr.bf16.mxu0 0
      %1001 = vmatpush1.bf16.msra.mxu0 %v844
      %1002 = vmatprep.subr.bf16.mxu0 0
      %1003 = vmatpush1.bf16.msra.mxu0 %v845
      %1004 = vmatprep.subr.bf16.mxu0 0
      %1005 = vmatpush1.bf16.msra.mxu0 %v846
      %1006 = vmatprep.subr.bf16.mxu0 0
      %1007 = vmatpush1.bf16.msra.mxu0 %v847
      %1008 = vmatprep.mubr.bf16.mxu0 %v351
      %1009 = vmatmul.mubr.bf16.gmra.mrb[0].mxu0 %v330
      %v1010 = vpop.f32.mrb[0].mxu0
      %v1011 = vadd.f32 0.0, %v1010
      %v1012 = vpop.f32.mrb[0].mxu0
      %v1013 = vpop.f32.mrb[0].mxu0
      %v1014 = vpop.f32.mrb[0].mxu0
      %1015 = vdwg.mxu0
      %1016 = vmatprep.subr.bf16.mxu0 0
      %1017 = vmatpush1.bf16.msra.mxu0 %v848
      %1018 = vmatprep.subr.bf16.mxu0 0
      %1019 = vmatpush1.bf16.msra.mxu0 %v849
      %1020 = vmatprep.subr.bf16.mxu0 0
      %1021 = vmatpush1.bf16.msra.mxu0 %v850
      %1022 = vmatprep.subr.bf16.mxu0 0
      %1023 = vmatpush1.bf16.msra.mxu0 %v851
      %1024 = vmatprep.subr.bf16.mxu0 0
      %1025 = vmatpush1.bf16.msra.mxu0 %v852
      %1026 = vmatprep.subr.bf16.mxu0 0
      %1027 = vmatpush1.bf16.msra.mxu0 %v853
      %1028 = vmatprep.subr.bf16.mxu0 0
      %1029 = vmatpush1.bf16.msra.mxu0 %v854
      %1030 = vmatprep.subr.bf16.mxu0 0
      %1031 = vmatpush1.bf16.msra.mxu0 %v855
      %1032 = vmatprep.subr.bf16.mxu0 0
      %1033 = vmatpush1.bf16.msra.mxu0 %v856
      %1034 = vmatprep.subr.bf16.mxu0 0
      %1035 = vmatpush1.bf16.msra.mxu0 %v857
      %1036 = vmatprep.subr.bf16.mxu0 0
      %1037 = vmatpush1.bf16.msra.mxu0 %v858
      %1038 = vmatprep.subr.bf16.mxu0 0
      %1039 = vmatpush1.bf16.msra.mxu0 %v859
      %1040 = vmatprep.subr.bf16.mxu0 0
      %1041 = vmatpush1.bf16.msra.mxu0 %v860
      %1042 = vmatprep.subr.bf16.mxu0 0
      %1043 = vmatpush1.bf16.msra.mxu0 %v861
      %1044 = vmatprep.subr.bf16.mxu0 0
      %1045 = vmatpush1.bf16.msra.mxu0 %v862
      %1046 = vmatprep.subr.bf16.mxu0 0
      %1047 = vmatpush1.bf16.msra.mxu0 %v863
      %1048 = vmatprep.mubr.bf16.mxu0 %v363
      %1049 = vmatmul.mubr.bf16.gmra.mrb[0].mxu0 %v356
      %v1050 = vpop.f32.mrb[0].mxu0
      %v1051 = vadd.f32 %v1011, %v1050
      %v1052 = vpop.f32.mrb[0].mxu0
      %v1053 = vpop.f32.mrb[0].mxu0
      %v1054 = vpop.f32.mrb[0].mxu0
      %1055 = vdwg.mxu0
      %1056 = vmatprep.subr.bf16.mxu0 0
      %1057 = vmatpush1.bf16.msra.mxu0 %v864
      %1058 = vmatprep.subr.bf16.mxu0 0
      %1059 = vmatpush1.bf16.msra.mxu0 %v865
      %1060 = vmatprep.subr.bf16.mxu0 0
      %1061 = vmatpush1.bf16.msra.mxu0 %v866
      %1062 = vmatprep.subr.bf16.mxu0 0
      %1063 = vmatpush1.bf16.msra.mxu0 %v867
      %1064 = vmatprep.subr.bf16.mxu0 0
      %1065 = vmatpush1.bf16.msra.mxu0 %v868
      %1066 = vmatprep.subr.bf16.mxu0 0
      %1067 = vmatpush1.bf16.msra.mxu0 %v869
      %1068 = vmatprep.subr.bf16.mxu0 0
      %1069 = vmatpush1.bf16.msra.mxu0 %v870
      %1070 = vmatprep.subr.bf16.mxu0 0
      %1071 = vmatpush1.bf16.msra.mxu0 %v871
      %1072 = vmatprep.subr.bf16.mxu0 0
      %1073 = vmatpush1.bf16.msra.mxu0 %v872
      %1074 = vmatprep.subr.bf16.mxu0 0
      %1075 = vmatpush1.bf16.msra.mxu0 %v873
      %1076 = vmatprep.subr.bf16.mxu0 0
      %1077 = vmatpush1.bf16.msra.mxu0 %v874
      %1078 = vmatprep.subr.bf16.mxu0 0
      %1079 = vmatpush1.bf16.msra.mxu0 %v875
      %1080 = vmatprep.subr.bf16.mxu0 0
      %1081 = vmatpush1.bf16.msra.mxu0 %v876
      %1082 = vmatprep.subr.bf16.mxu0 0
      %1083 = vmatpush1.bf16.msra.mxu0 %v877
      %1084 = vmatprep.subr.bf16.mxu0 0
      %1085 = vmatpush1.bf16.msra.mxu0 %v878
      %1086 = vmatprep.subr.bf16.mxu0 0
      %1087 = vmatpush1.bf16.msra.mxu0 %v879
      %1088 = vmatprep.mubr.bf16.mxu0 %v380
      %1089 = vmatmul.mubr.bf16.gmra.mrb[0].mxu0 %v375
      %v1090 = vpop.f32.mrb[0].mxu0
      %v1091 = vadd.f32 %v1051, %v1090
      %v1092 = vpop.f32.mrb[0].mxu0
      %v1093 = vpop.f32.mrb[0].mxu0
      %v1094 = vpop.f32.mrb[0].mxu0
      %1095 = vdwg.mxu0
      %1096 = vmatprep.subr.bf16.mxu0 0
      %1097 = vmatpush1.bf16.msra.mxu0 %v880
      %1098 = vmatprep.subr.bf16.mxu0 0
      %1099 = vmatpush1.bf16.msra.mxu0 %v881
      %1100 = vmatprep.subr.bf16.mxu0 0
      %1101 = vmatpush1.bf16.msra.mxu0 %v882
      %1102 = vmatprep.subr.bf16.mxu0 0
      %1103 = vmatpush1.bf16.msra.mxu0 %v883
      %1104 = vmatprep.subr.bf16.mxu0 0
      %1105 = vmatpush1.bf16.msra.mxu0 %v884
      %1106 = vmatprep.subr.bf16.mxu0 0
      %1107 = vmatpush1.bf16.msra.mxu0 %v885
      %1108 = vmatprep.subr.bf16.mxu0 0
      %1109 = vmatpush1.bf16.msra.mxu0 %v886
      %1110 = vmatprep.subr.bf16.mxu0 0
      %1111 = vmatpush1.bf16.msra.mxu0 %v887
      %1112 = vmatprep.subr.bf16.mxu0 0
      %1113 = vmatpush1.bf16.msra.mxu0 %v888
      %1114 = vmatprep.subr.bf16.mxu0 0
      %1115 = vmatpush1.bf16.msra.mxu0 %v889
      %1116 = vmatprep.subr.bf16.mxu0 0
      %1117 = vmatpush1.bf16.msra.mxu0 %v890
      %1118 = vmatprep.subr.bf16.mxu0 0
      %1119 = vmatpush1.bf16.msra.mxu0 %v891
      %1120 = vmatprep.subr.bf16.mxu0 0
      %1121 = vmatpush1.bf16.msra.mxu0 %v892
      %1122 = vmatprep.subr.bf16.mxu0 0
      %1123 = vmatpush1.bf16.msra.mxu0 %v893
      %1124 = vmatprep.subr.bf16.mxu0 0
      %1125 = vmatpush1.bf16.msra.mxu0 %v894
      %1126 = vmatprep.subr.bf16.mxu0 0
      %1127 = vmatpush1.bf16.msra.mxu0 %v895
      %1128 = vmatprep.mubr.bf16.mxu0 %v393
      %1129 = vmatmul.mubr.bf16.gmra.mrb[0].mxu0 %v337
      %v1130 = vpop.f32.mrb[0].mxu0
      %v1131 = vadd.f32 %v1091, %v1130
      %v1132 = vpop.f32.mrb[0].mxu0
      %v1133 = vpop.f32.mrb[0].mxu0
      %v1134 = vpop.f32.mrb[0].mxu0
      %1135 = vdwg.mxu0
      %1136 = vmatprep.subr.bf16.mxu0 0
      %1137 = vmatpush1.bf16.msra.mxu0 %v896
      %1138 = vmatprep.subr.bf16.mxu0 0
      %1139 = vmatpush1.bf16.msra.mxu0 %v897
      %1140 = vmatprep.subr.bf16.mxu0 0
      %1141 = vmatpush1.bf16.msra.mxu0 %v898
      %1142 = vmatprep.subr.bf16.mxu0 0
      %1143 = vmatpush1.bf16.msra.mxu0 %v899
      %1144 = vmatprep.subr.bf16.mxu0 0
      %1145 = vmatpush1.bf16.msra.mxu0 %v900
      %1146 = vmatprep.subr.bf16.mxu0 0
      %1147 = vmatpush1.bf16.msra.mxu0 %v901
      %1148 = vmatprep.subr.bf16.mxu0 0
      %1149 = vmatpush1.bf16.msra.mxu0 %v902
      %1150 = vmatprep.subr.bf16.mxu0 0
      %1151 = vmatpush1.bf16.msra.mxu0 %v903
      %1152 = vmatprep.subr.bf16.mxu0 0
      %1153 = vmatpush1.bf16.msra.mxu0 0
      %1154 = vmatprep.subr.bf16.mxu0 0
      %1155 = vmatpush1.bf16.msra.mxu0 0
      %1156 = vmatprep.subr.bf16.mxu0 0
      %1157 = vmatpush1.bf16.msra.mxu0 0
      %1158 = vmatprep.subr.bf16.mxu0 0
      %1159 = vmatpush1.bf16.msra.mxu0 0
      %1160 = vmatprep.subr.bf16.mxu0 0
      %1161 = vmatpush1.bf16.msra.mxu0 0
      %1162 = vmatprep.subr.bf16.mxu0 0
      %1163 = vmatpush1.bf16.msra.mxu0 0
      %1164 = vmatprep.subr.bf16.mxu0 0
      %1165 = vmatpush1.bf16.msra.mxu0 0
      %1166 = vmatprep.subr.bf16.mxu0 0
      %1167 = vmatpush1.bf16.msra.mxu0 0
      %1168 = vmatprep.mubr.bf16.mxu0 0
      %1169 = vmatmul.mubr.bf16.gmra.mrb[0].mxu0 %v398
      %v1170 = vpop.f32.mrb[0].mxu0
      %v1171 = vadd.f32 %v1131, %v1170
      %v1172 = vpop.f32.mrb[0].mxu0
      %v1173 = vpop.f32.mrb[0].mxu0
      %v1174 = vpop.f32.mrb[0].mxu0
      %1175 = vdwg.mxu0
      %v1176 = vld [vmem:[%s2] sm:$0x1]
      %v1178 = vlaneseq
      %v1179 = vshrl.u32 %v1178, 7
      %v1180 = vsub.s32 0, %v1179
      %v1181 = vrot.slane %v1176, %v1180
      %v1183 = vmul.f32 %v1171, %v1181
      %v1184 = vld [vmem:[%s3] sm:$0x1]
      %v1186 = vlaneseq
      %v1187 = vshrl.u32 %v1186, 7
      %v1188 = vsub.s32 0, %v1187
      %v1189 = vrot.slane %v1184, %v1188
      %v1191 = vadd.f32 %v1183, %v1189
      %v1192 = vmax.f32 %v1191, 0.0
      %v1193 = vld [vmem:[%s4] sm:$0x1]
      %vm1194 = vcmask 64512
      %v1196 = vsel %vm1194, %v1193, 0
      %1198 = vmatprep.subr.mxu0 0.0
      %1199 = vmatpush1.msra.mxu0 %v1192
      %1200 = vmatprep.subr.mxu0 0.0
      %1201 = vmatpush1.msra.mxu0 0.0
      %1202 = vmatprep.subr.mxu0 0.0
      %1203 = vmatpush1.msra.mxu0 0.0
      %1204 = vmatprep.subr.mxu0 0.0
      %1205 = vmatpush1.msra.mxu0 0.0
      %1206 = vmatprep.subr.mxu0 0.0
      %1207 = vmatpush1.msra.mxu0 0.0
      %1208 = vmatprep.subr.mxu0 0.0
      %1209 = vmatpush1.msra.mxu0 0.0
      %1210 = vmatprep.subr.mxu0 0.0
      %1211 = vmatpush1.msra.mxu0 0.0
      %1212 = vmatprep.subr.mxu0 0.0
      %1213 = vmatpush1.msra.mxu0 0.0
      %1214 = vmatprep.subr.mxu0 0.0
      %1215 = vmatpush1.msra.mxu0 0.0
      %1216 = vmatprep.subr.mxu0 0.0
      %1217 = vmatpush1.msra.mxu0 0.0
      %1218 = vmatprep.subr.mxu0 0.0
      %1219 = vmatpush1.msra.mxu0 0.0
      %1220 = vmatprep.subr.mxu0 0.0
      %1221 = vmatpush1.msra.mxu0 0.0
      %1222 = vmatprep.subr.mxu0 0.0
      %1223 = vmatpush1.msra.mxu0 0.0
      %1224 = vmatprep.subr.mxu0 0.0
      %1225 = vmatpush1.msra.mxu0 0.0
      %1226 = vmatprep.subr.mxu0 0.0
      %1227 = vmatpush1.msra.mxu0 0.0
      %1228 = vmatprep.subr.mxu0 0.0
      %1229 = vmatpush1.msra.mxu0 0.0
      %1230 = vmatprep.subr.mxu0 0.0
      %1231 = vmatpush1.msra.mxu0 0.0
      %1232 = vmatprep.subr.mxu0 0.0
      %1233 = vmatpush1.msra.mxu0 0.0
      %1234 = vmatprep.subr.mxu0 0.0
      %1235 = vmatpush1.msra.mxu0 0.0
      %1236 = vmatprep.subr.mxu0 0.0
      %1237 = vmatpush1.msra.mxu0 0.0
      %1238 = vmatprep.subr.mxu0 0.0
      %1239 = vmatpush1.msra.mxu0 0.0
      %1240 = vmatprep.subr.mxu0 0.0
      %1241 = vmatpush1.msra.mxu0 0.0
      %1242 = vmatprep.subr.mxu0 0.0
      %1243 = vmatpush1.msra.mxu0 0.0
      %1244 = vmatprep.subr.mxu0 0.0
      %1245 = vmatpush1.msra.mxu0 0.0
      %1246 = vmatprep.subr.mxu0 0.0
      %1247 = vmatpush1.msra.mxu0 0.0
      %1248 = vmatprep.subr.mxu0 0.0
      %1249 = vmatpush1.msra.mxu0 0.0
      %1250 = vmatprep.subr.mxu0 0.0
      %1251 = vmatpush1.msra.mxu0 0.0
      %1252 = vmatprep.subr.mxu0 0.0
      %1253 = vmatpush1.msra.mxu0 0.0
      %1254 = vmatprep.subr.mxu0 0.0
      %1255 = vmatpush1.msra.mxu0 0.0
      %1256 = vmatprep.subr.mxu0 0.0
      %1257 = vmatpush1.msra.mxu0 0.0
      %1258 = vmatprep.subr.mxu0 0.0
      %1259 = vmatpush1.msra.mxu0 0.0
      %1260 = vmatprep.subr.mxu0 0.0
      %1261 = vmatpush1.msra.mxu0 0.0
      %1262 = vmatprep.mubr.f32.mxu0 0.0
      %1263 = vmatmul.mubr.f32.gmra.mrb[0].mxu0 %v1196
      %v1264 = vpop.f32.mrb[0].mxu0
      %v1265 = vadd.f32 0.0, %v1264
      %v1266 = vpop.f32.mrb[0].mxu0
      %1267 = vdwg.mxu0
      %v1268 = vpack.c.bf16 %v1265, %v1265
      %v1269 = vld [vmem:[%s5] sm:$0xf]
      %v1270 = vld [vmem:[%s5 + $0x4] sm:$0xf]
      %v1271 = vld [vmem:[%s5 + $0x8] sm:$0xf]
      %v1272 = vld [vmem:[%s5 + $0xc] sm:$0xf]
      %v1273 = vld [vmem:[%s5 + $0x10] sm:$0xf]
      %v1274 = vld [vmem:[%s5 + $0x14] sm:$0xf]
      %v1275 = vld [vmem:[%s5 + $0x18] sm:$0xf]
      %v1276 = vld [vmem:[%s5 + $0x1c] sm:$0xf]
      %v1277 = vld [vmem:[%s5 + $0x20] sm:$0xf]
      %v1278 = vld [vmem:[%s5 + $0x24] sm:$0xf]
      %v1279 = vld [vmem:[%s5 + $0x28] sm:$0xf]
      %v1280 = vld [vmem:[%s5 + $0x2c] sm:$0xf]
      %v1281 = vld [vmem:[%s5 + $0x30] sm:$0xf]
      %v1282 = vld [vmem:[%s5 + $0x34] sm:$0xf]
      %v1283 = vld [vmem:[%s5 + $0x38] sm:$0xf]
      %v1284 = vld [vmem:[%s5 + $0x3c] sm:$0xf]
      %v1285 = vld [vmem:[%s6] sm:$0x1]
      %v1302 = vunpack.c.l.b16 %v1269
      %v1303 = vunpack.c.l.b16 %v1270
      %v1304 = vunpack.c.l.b16 %v1271
      %v1305 = vunpack.c.l.b16 %v1272
      %v1306 = vunpack.c.l.b16 %v1273
      %v1307 = vunpack.c.l.b16 %v1274
      %v1308 = vunpack.c.l.b16 %v1275
      %v1309 = vunpack.c.l.b16 %v1276
      %v1310 = vunpack.c.l.b16 %v1277
      %v1311 = vunpack.c.l.b16 %v1278
      %v1312 = vunpack.c.l.b16 %v1279
      %v1313 = vunpack.c.l.b16 %v1280
      %v1314 = vunpack.c.l.b16 %v1281
      %v1315 = vunpack.c.l.b16 %v1282
      %v1316 = vunpack.c.l.b16 %v1283
      %v1317 = vunpack.c.l.b16 %v1284
      %v1318 = vpack.c.b16 %v1303, %v1302
      %v1319 = vpack.c.b16 %v1305, %v1304
      %v1320 = vpack.c.b16 %v1307, %v1306
      %v1321 = vpack.c.b16 %v1309, %v1308
      %v1322 = vpack.c.b16 %v1311, %v1310
      %v1323 = vpack.c.b16 %v1313, %v1312
      %v1324 = vpack.c.b16 %v1315, %v1314
      %v1325 = vpack.c.b16 %v1317, %v1316
      %1334 = vmatprep.subr.bf16.mxu0 0
      %1335 = vmatpush1.bf16.msra.mxu0 %v1318
      %1336 = vmatprep.subr.bf16.mxu0 0
      %1337 = vmatpush1.bf16.msra.mxu0 %v1319
      %1338 = vmatprep.subr.bf16.mxu0 0
      %1339 = vmatpush1.bf16.msra.mxu0 %v1320
      %1340 = vmatprep.subr.bf16.mxu0 0
      %1341 = vmatpush1.bf16.msra.mxu0 %v1321
      %1342 = vmatprep.subr.bf16.mxu0 0
      %1343 = vmatpush1.bf16.msra.mxu0 %v1322
      %1344 = vmatprep.subr.bf16.mxu0 0
      %1345 = vmatpush1.bf16.msra.mxu0 %v1323
      %1346 = vmatprep.subr.bf16.mxu0 0
      %1347 = vmatpush1.bf16.msra.mxu0 %v1324
      %1348 = vmatprep.subr.bf16.mxu0 0
      %1349 = vmatpush1.bf16.msra.mxu0 %v1325
      %1350 = vmatprep.subr.bf16.mxu0 0
      %1351 = vmatpush1.bf16.msra.mxu0 0
      %1352 = vmatprep.subr.bf16.mxu0 0
      %1353 = vmatpush1.bf16.msra.mxu0 0
      %1354 = vmatprep.subr.bf16.mxu0 0
      %1355 = vmatpush1.bf16.msra.mxu0 0
      %1356 = vmatprep.subr.bf16.mxu0 0
      %1357 = vmatpush1.bf16.msra.mxu0 0
      %1358 = vmatprep.subr.bf16.mxu0 0
      %1359 = vmatpush1.bf16.msra.mxu0 0
      %1360 = vmatprep.subr.bf16.mxu0 0
      %1361 = vmatpush1.bf16.msra.mxu0 0
      %1362 = vmatprep.subr.bf16.mxu0 0
      %1363 = vmatpush1.bf16.msra.mxu0 0
      %1364 = vmatprep.subr.bf16.mxu0 0
      %1365 = vmatpush1.bf16.msra.mxu0 0
      %1366 = vmatprep.mubr.bf16.mxu0 0
      %1367 = vmatmul.mubr.bf16.gmra.mrb[0].mxu0 %v1268
      %v1368 = vpop.f32.mrb[0].mxu0
      %v1369 = vadd.f32 %v1285, %v1368
      %v1370 = vpop.f32.mrb[0].mxu0
      %v1371 = vpop.f32.mrb[0].mxu0
      %v1372 = vpop.f32.mrb[0].mxu0
      %1373 = vdwg.mxu0
      %v1374 = vmax.f32 %v1369, 0.0
      %v1375 = vpack.c.bf16 %v1374, %v1374
      %v1376 = vld [vmem:[%s7] sm:$0xf]
      %v1377 = vld [vmem:[%s7 + $0x4] sm:$0xf]
      %v1378 = vld [vmem:[%s7 + $0x8] sm:$0xf]
      %v1379 = vld [vmem:[%s7 + $0xc] sm:$0xf]
      %v1380 = vld [vmem:[%s7 + $0x10] sm:$0xf]
      %v1381 = vld [vmem:[%s7 + $0x14] sm:$0xf]
      %v1382 = vld [vmem:[%s7 + $0x18] sm:$0xf]
      %v1383 = vld [vmem:[%s7 + $0x1c] sm:$0xf]
      %v1384 = vld [vmem:[%s7 + $0x20] sm:$0xf]
      %v1385 = vld [vmem:[%s7 + $0x24] sm:$0xf]
      %v1386 = vld [vmem:[%s7 + $0x28] sm:$0xf]
      %v1387 = vld [vmem:[%s7 + $0x2c] sm:$0xf]
      %v1388 = vld [vmem:[%s7 + $0x30] sm:$0xf]
      %v1389 = vld [vmem:[%s7 + $0x34] sm:$0xf]
      %v1390 = vld [vmem:[%s7 + $0x38] sm:$0xf]
      %v1391 = vld [vmem:[%s7 + $0x3c] sm:$0xf]
      %v1392 = vld [vmem:[%s8] sm:$0x1]
      %v1409 = vunpack.c.l.b16 %v1376
      %v1410 = vunpack.c.l.b16 %v1377
      %v1411 = vunpack.c.l.b16 %v1378
      %v1412 = vunpack.c.l.b16 %v1379
      %v1413 = vunpack.c.l.b16 %v1380
      %v1414 = vunpack.c.l.b16 %v1381
      %v1415 = vunpack.c.l.b16 %v1382
      %v1416 = vunpack.c.l.b16 %v1383
      %v1417 = vunpack.c.l.b16 %v1384
      %v1418 = vunpack.c.l.b16 %v1385
      %v1419 = vunpack.c.l.b16 %v1386
      %v1420 = vunpack.c.l.b16 %v1387
      %v1421 = vunpack.c.l.b16 %v1388
      %v1422 = vunpack.c.l.b16 %v1389
      %v1423 = vunpack.c.l.b16 %v1390
      %v1424 = vunpack.c.l.b16 %v1391
      %v1425 = vpack.c.b16 %v1410, %v1409
      %v1426 = vpack.c.b16 %v1412, %v1411
      %v1427 = vpack.c.b16 %v1414, %v1413
      %v1428 = vpack.c.b16 %v1416, %v1415
      %v1429 = vpack.c.b16 %v1418, %v1417
      %v1430 = vpack.c.b16 %v1420, %v1419
      %v1431 = vpack.c.b16 %v1422, %v1421
      %v1432 = vpack.c.b16 %v1424, %v1423
      %1441 = vmatprep.subr.bf16.mxu0 0
      %1442 = vmatpush1.bf16.msra.mxu0 %v1425
      %1443 = vmatprep.subr.bf16.mxu0 0
      %1444 = vmatpush1.bf16.msra.mxu0 %v1426
      %1445 = vmatprep.subr.bf16.mxu0 0
      %1446 = vmatpush1.bf16.msra.mxu0 %v1427
      %1447 = vmatprep.subr.bf16.mxu0 0
      %1448 = vmatpush1.bf16.msra.mxu0 %v1428
      %1449 = vmatprep.subr.bf16.mxu0 0
      %1450 = vmatpush1.bf16.msra.mxu0 %v1429
      %1451 = vmatprep.subr.bf16.mxu0 0
      %1452 = vmatpush1.bf16.msra.mxu0 %v1430
      %1453 = vmatprep.subr.bf16.mxu0 0
      %1454 = vmatpush1.bf16.msra.mxu0 %v1431
      %1455 = vmatprep.subr.bf16.mxu0 0
      %1456 = vmatpush1.bf16.msra.mxu0 %v1432
      %1457 = vmatprep.subr.bf16.mxu0 0
      %1458 = vmatpush1.bf16.msra.mxu0 0
      %1459 = vmatprep.subr.bf16.mxu0 0
      %1460 = vmatpush1.bf16.msra.mxu0 0
      %1461 = vmatprep.subr.bf16.mxu0 0
      %1462 = vmatpush1.bf16.msra.mxu0 0
      %1463 = vmatprep.subr.bf16.mxu0 0
      %1464 = vmatpush1.bf16.msra.mxu0 0
      %1465 = vmatprep.subr.bf16.mxu0 0
      %1466 = vmatpush1.bf16.msra.mxu0 0
      %1467 = vmatprep.subr.bf16.mxu0 0
      %1468 = vmatpush1.bf16.msra.mxu0 0
      %1469 = vmatprep.subr.bf16.mxu0 0
      %1470 = vmatpush1.bf16.msra.mxu0 0
      %1471 = vmatprep.subr.bf16.mxu0 0
      %1472 = vmatpush1.bf16.msra.mxu0 0
      %1473 = vmatprep.mubr.bf16.mxu0 0
      %1474 = vmatmul.mubr.bf16.gmra.mrb[0].mxu0 %v1375
      %v1475 = vpop.f32.mrb[0].mxu0
      %v1476 = vadd.f32 %v1392, %v1475
      %v1477 = vpop.f32.mrb[0].mxu0
      %v1478 = vpop.f32.mrb[0].mxu0
      %v1479 = vpop.f32.mrb[0].mxu0
      %1480 = vdwg.mxu0
      %1481 = vst [vmem:[%s328] sm:$0x1] %v1476
      %p1482 = scmp.lt.s32.totalorder %s20, 1
      %s1483 = scalar_select %p1482, %s20, 1
      %s1484 = scalar_lea.vmem %s9, %s1483
      // Predicated region
      $region57: #{localization_network.7} parent=55 // pred_check
        %p1485 = pneg %p232
      $region58: #{localization_network.7} parent=55 // pred_check_branch
        %1487 = sbr.rel (%p1485) target = $region60
      $region59: #{localization_network.7} parent=55 // pred_region
        _
      $region60: #{localization_network.7} parent=55 // pred_fallthru
        _
    $region56: #{localization_network.7} parent=5 // pred_fallthru
      _
    %p1488 = scmp.le.s32.totalorder 2, %s15
    // Predicated region
    $region61: #{localization_network.7} parent=5 // pred_check
      %p1489 = pneg %p1488
    $region62: #{localization_network.7} parent=5 // pred_check_branch
      %1491 = sbr.rel (%p1489) target = $region64
    $region63: #{localization_network.7} parent=5 // pred_region
      %s1492 = ssub.s32 %s15, 2
      // Predicated region
      $region65: #{localization_network.7} parent=63 // pred_check
        %p1493 = pneg %p238
      $region66: #{localization_network.7} parent=63 // pred_check_branch
        %1495 = sbr.rel (%p1493) target = $region68
      $region67: #{localization_network.7} parent=63 // pred_region
        %p1496 = scmp.lt.s32.totalorder %s21, 1
        %s1497 = scalar_select %p1496, %s21, 1
        %s1498 = scalar_lea.vmem %s9, %s1497
      $region68: #{localization_network.7} parent=63 // pred_fallthru
        _
    $region64: #{localization_network.7} parent=5 // pred_fallthru
      _
  $region6: #{localization_network.7} parent=0 // loop_footer
    %s19 = sadd.s32 1, %s15
  $region7: #{localization_network.7} parent=0 // loop_footer_branch
    %14 = sbr.rel target = $region3
  $region8: #{localization_network.7} parent=0 // loop_exit
    _

// kernel: localization_network.6
$region0: #{localization_network.6}
  #allocation0 [shape = 'u32[]', space=smem, size = 0x4, offset = 0x4, fixed_abs, tag = 'smem constant byte address 0x4 - core index']
  #allocation1 [shape = 'u32[144,128]{1,0:T(1,128)}', space=vmem, size = 0x12000, scoped, tag = 'internal scratch']
  #allocation2 [shape = 'f32[24,128]{1,0:T(8,128)}', space=vmem, size = 0x3000, scoped, tag = 'scratch operand']
  %s0 = inlined_call_operand.vmem [shape: bf16[2,42,128], index: 0, kind: input, shape index: {}]
  %s1 = inlined_call_operand.vmem [shape: bf16[1152,128], index: 1, kind: input, shape index: {}]
  %s2 = inlined_call_operand.vmem [shape: f32[1,128], index: 2, kind: input, shape index: {}]
  %s3 = inlined_call_operand.vmem [shape: f32[1,128], index: 3, kind: input, shape index: {}]
  %s4 = inlined_call_operand.vmem [shape: bf16[2,2,2,128], index: 4, kind: output, shape index: {}]
  %s5 = sld [smem:[#allocation0]]
  $region49: #{localization_network.6} parent=0
    _
  %s7 = ssub.s32 1, %s5
  %s8 = scalar_select 0, %s7, %s5
  loop: start=0, step=1, limit=4
  $region2: #{localization_network.6} parent=0 // loop_pre_header
    _
  $region3: #{localization_network.6} parent=0 // loop_header
    %s10 = sphi 0, %s14
    %p11 = scmp.ge.s32.totalorder %s10, 4
    %s20 = sphi 0, %s22
    %s23 = sphi 0, %s20
    %s24 = sphi 0, %s23
    %s40 = sphi 0, %s24
    %s44 = sphi 0, %s44
    %s46 = sphi 0, %s44
    %s47 = sphi 0, %s46
    %s61 = sphi 0, %s47
    %s65 = sphi 0, %s65
    %s67 = sphi 0, %s65
    %s68 = sphi 0, %s67
    %s82 = sphi 0, %s68
    %s86 = sphi 0, %s86
    %s88 = sphi 0, %s86
    %s89 = sphi 0, %s88
    %s103 = sphi 0, %s89
    %s109 = sphi 0, %s111
    %s112 = sphi 0, %s109
    %s113 = sphi 0, %s112
    %s129 = sphi 0, %s113
  $region4: #{localization_network.6} parent=0 // loop_header_branch
    %13 = sbr.rel (%p11) target = $region8
  $region5: #{localization_network.6} parent=0 // loop_body
    %s15 = ssub.s32 %s10, 1
    %s16 = ssub.s32 %s10, 2
    %s17 = sadd.s32 %s10, 1
    %s18 = ssub.s32 %s10, %s17
    %p19 = scmp.eq.s32.totalorder %s18, 0
    %s21 = sadd.s32 %s20, 1
    %s22 = scalar_select %p19, %s20, %s21
    %p25 = pneg %p19
    %p26 = scmp.eq.s32.totalorder %s10, 1
    %p27 = por %p25, %p26
    %p28 = scmp.ne.s32.totalorder %s20, %s23
    %p29 = scmp.eq.s32.totalorder %s10, 0
    %p30 = por %p28, %p29
    %p31 = scmp.ne.s32.totalorder %s20, %s23
    %p32 = scmp.eq.s32.totalorder %s15, 1
    %p33 = por %p31, %p32
    %p34 = scmp.ne.s32.totalorder %s23, %s24
    %p35 = scmp.eq.s32.totalorder %s15, 0
    %p36 = por %p34, %p35
    %p37 = scmp.ne.s32.totalorder %s23, %s24
    %p38 = scmp.eq.s32.totalorder %s16, 1
    %p39 = por %p37, %p38
    %p41 = scmp.ne.s32.totalorder %s24, %s40
    %p42 = scmp.eq.s32.totalorder %s16, 0
    %p43 = por %p41, %p42
    %s45 = sadd.s32 %s44, 1
    %p48 = scmp.eq.s32.totalorder %s10, 1
    %p49 = scmp.ne.s32.totalorder %s44, %s46
    %p50 = scmp.eq.s32.totalorder %s10, 0
    %p51 = por %p49, %p50
    %p52 = scmp.ne.s32.totalorder %s44, %s46
    %p53 = scmp.eq.s32.totalorder %s15, 1
    %p54 = por %p52, %p53
    %p55 = scmp.ne.s32.totalorder %s46, %s47
    %p56 = scmp.eq.s32.totalorder %s15, 0
    %p57 = por %p55, %p56
    %p58 = scmp.ne.s32.totalorder %s46, %s47
    %p59 = scmp.eq.s32.totalorder %s16, 1
    %p60 = por %p58, %p59
    %p62 = scmp.ne.s32.totalorder %s47, %s61
    %p63 = scmp.eq.s32.totalorder %s16, 0
    %p64 = por %p62, %p63
    %s66 = sadd.s32 %s65, 1
    %p69 = scmp.eq.s32.totalorder %s10, 1
    %p70 = scmp.ne.s32.totalorder %s65, %s67
    %p71 = scmp.eq.s32.totalorder %s10, 0
    %p72 = por %p70, %p71
    %p73 = scmp.ne.s32.totalorder %s65, %s67
    %p74 = scmp.eq.s32.totalorder %s15, 1
    %p75 = por %p73, %p74
    %p76 = scmp.ne.s32.totalorder %s67, %s68
    %p77 = scmp.eq.s32.totalorder %s15, 0
    %p78 = por %p76, %p77
    %p79 = scmp.ne.s32.totalorder %s67, %s68
    %p80 = scmp.eq.s32.totalorder %s16, 1
    %p81 = por %p79, %p80
    %p83 = scmp.ne.s32.totalorder %s68, %s82
    %p84 = scmp.eq.s32.totalorder %s16, 0
    %p85 = por %p83, %p84
    %s87 = sadd.s32 %s86, 1
    %p90 = scmp.eq.s32.totalorder %s10, 1
    %p91 = scmp.ne.s32.totalorder %s86, %s88
    %p92 = scmp.eq.s32.totalorder %s10, 0
    %p93 = por %p91, %p92
    %p94 = scmp.ne.s32.totalorder %s86, %s88
    %p95 = scmp.eq.s32.totalorder %s15, 1
    %p96 = por %p94, %p95
    %p97 = scmp.ne.s32.totalorder %s88, %s89
    %p98 = scmp.eq.s32.totalorder %s15, 0
    %p99 = por %p97, %p98
    %p100 = scmp.ne.s32.totalorder %s88, %s89
    %p101 = scmp.eq.s32.totalorder %s16, 1
    %p102 = por %p100, %p101
    %p104 = scmp.ne.s32.totalorder %s89, %s103
    %p105 = scmp.eq.s32.totalorder %s16, 0
    %p106 = por %p104, %p105
    %s107 = ssub.s32 %s10, %s17
    %p108 = scmp.eq.s32.totalorder %s107, 0
    %s110 = sadd.s32 %s109, 1
    %s111 = scalar_select %p108, %s109, %s110
    %p114 = pneg %p108
    %p115 = scmp.eq.s32.totalorder %s10, 1
    %p116 = por %p114, %p115
    %p117 = scmp.ne.s32.totalorder %s109, %s112
    %p118 = scmp.eq.s32.totalorder %s10, 0
    %p119 = por %p117, %p118
    %p120 = scmp.ne.s32.totalorder %s109, %s112
    %p121 = scmp.eq.s32.totalorder %s15, 1
    %p122 = por %p120, %p121
    %p123 = scmp.ne.s32.totalorder %s112, %s113
    %p124 = scmp.eq.s32.totalorder %s15, 0
    %p125 = por %p123, %p124
    %p126 = scmp.ne.s32.totalorder %s112, %s113
    %p127 = scmp.eq.s32.totalorder %s16, 1
    %p128 = por %p126, %p127
    %p130 = scmp.ne.s32.totalorder %s113, %s129
    %p131 = scmp.eq.s32.totalorder %s16, 0
    %p132 = por %p130, %p131
    %p133 = scmp.le.s32.totalorder 1, %s10
    %p134 = scmp.lt.s32.totalorder %s10, 3
    %p135 = pnand %p133, %p134
    %p136 = pneg %p135
    // Predicated region
    $region9: #{localization_network.6} parent=5 // pred_check
      _
    $region10: #{localization_network.6} parent=5 // pred_check_branch
      %138 = sbr.rel (%p135) target = $region12
    $region11: #{localization_network.6} parent=5 // pred_region
      %s139 = ssub.s32 %s10, 1
      // Predicated region
      $region13: #{localization_network.6} parent=11 // pred_check
        %p140 = pneg %p57
      $region14: #{localization_network.6} parent=11 // pred_check_branch
        %142 = sbr.rel (%p140) target = $region16
      $region15: #{localization_network.6} parent=11 // pred_region
        _
      $region16: #{localization_network.6} parent=11 // pred_fallthru
        _
      // Predicated region
      $region17: #{localization_network.6} parent=11 // pred_check
        %p143 = pneg %p78
      $region18: #{localization_network.6} parent=11 // pred_check_branch
        %145 = sbr.rel (%p143) target = $region20
      $region19: #{localization_network.6} parent=11 // pred_region
        _
      $region20: #{localization_network.6} parent=11 // pred_fallthru
        _
      // Predicated region
      $region21: #{localization_network.6} parent=11 // pred_check
        %p146 = pneg %p99
      $region22: #{localization_network.6} parent=11 // pred_check_branch
        %148 = sbr.rel (%p146) target = $region24
      $region23: #{localization_network.6} parent=11 // pred_region
        _
      $region24: #{localization_network.6} parent=11 // pred_fallthru
        _
    $region12: #{localization_network.6} parent=5 // pred_fallthru
      _
    %p149 = scmp.lt.s32.totalorder %s10, 2
    // Predicated region
    $region25: #{localization_network.6} parent=5 // pred_check
      %p150 = pneg %p149
    $region26: #{localization_network.6} parent=5 // pred_check_branch
      %152 = sbr.rel (%p150) target = $region28
    $region27: #{localization_network.6} parent=5 // pred_region
      // Predicated region
      $region29: #{localization_network.6} parent=27 // pred_check
        %p153 = pneg %p30
      $region30: #{localization_network.6} parent=27 // pred_check_branch
        %155 = sbr.rel (%p153) target = $region32
      $region31: #{localization_network.6} parent=27 // pred_region
        %p156 = scmp.lt.s32.totalorder %s10, 1
        %s157 = scalar_select %p156, %s10, 1
        %s158 = smul.addr %s157, 6
        %s159 = smul.addr %s158, 4
        %s160 = scalar_lea.vmem %s0, %s159
      $region32: #{localization_network.6} parent=27 // pred_fallthru
        _
    $region28: #{localization_network.6} parent=5 // pred_fallthru
      _
    %p161 = scmp.le.s32.totalorder 1, %s10
    %p162 = scmp.lt.s32.totalorder %s10, 3
    %p163 = pnand %p161, %p162
    %p164 = pneg %p163
    // Predicated region
    $region33: #{localization_network.6} parent=5 // pred_check
      _
    $region34: #{localization_network.6} parent=5 // pred_check_branch
      %166 = sbr.rel (%p163) target = $region36
    $region35: #{localization_network.6} parent=5 // pred_region
      %s167 = ssub.s32 %s10, 1
      %p168 = scmp.lt.s32.totalorder %s15, 1
      %s169 = scalar_select %p168, %s15, 1
      %s170 = smul.addr %s169, 6
      %s171 = smul.addr %s170, 4
      %s172 = scalar_lea.vmem %s0, %s171
      %p173 = pneg %p36
      %p174 = pneg %p33
      %p175 = pneg %p57
      %p176 = pneg %p54
      %p177 = pneg %p78
      %p178 = pneg %p75
      %p179 = pneg %p99
      %p180 = pneg %p96
      %p181 = pneg %p125
      %p182 = pneg %p122
      %p183 = scmp.lt.s32.totalorder %s15, 1
      %s184 = scalar_select %p183, %s15, 1
      %s185 = smul.addr %s184, 2
      %s186 = scalar_lea.vmem %s4, %s185
      %p187 = scmp.lt.s32.totalorder %s15, 1
      %s188 = scalar_select %p187, %s15, 1
      %s189 = smul.addr %s188, 6
      %s190 = smul.addr %s189, 4
      %s191 = scalar_lea.vmem %s0, %s190
      %p192 = scmp.lt.s32.totalorder %s15, 1
      %s193 = scalar_select %p192, %s15, 1
      %s194 = smul.addr %s193, 2
      %s195 = scalar_lea.vmem %s4, %s194
      %v197 = vld [vmem:[%s191] sm:$0xf]
      %v198 = vld [vmem:[%s191 + $0x4] sm:$0xf]
      %v199 = vld [vmem:[%s191 + $0x8] sm:$0xf]
      %v200 = vld [vmem:[%s191 + $0xc] sm:$0x1]
      %v201 = vld [vmem:[%s191] sm:$0xe]
      %v202 = vld [vmem:[%s191] sm:$0x8]
      %v203 = vld [vmem:[%s191 + $0xc] sm:$0x7]
      %v204 = vld [vmem:[%s191 + $0xc] sm:$0xf]
      %v205 = vld [vmem:[%s191 + $0x4] sm:$0xc]
      %v206 = vld [vmem:[%s191 + $0x10] sm:$0x3]
      %v207 = vld [vmem:[%s191 + $0x10] sm:$0x7]
      %v208 = vld [vmem:[%s191 + $0x4] sm:$0x8]
      %v212 = vunpack.c.l.b16 %v197
      %v213 = vunpack.c.l.b16 %v198
      %v214 = vunpack.c.l.b16 %v199
      %v215 = vpack.c.b16 %v213, %v212
      %v216 = vpack.c.b16 %v214, %v214
      %v220 = vunpack.c.l.b16 %v200
      %v221 = vpack.c.b16 %v220, %v214
      %vm222 = vsmask.f32 7424
      %v224 = vshrl.u32 %v215, 16
      %v226 = vshll.u32 %v215, 16
      %v228 = vrot.slane %v226, 1
      %v229 = vor.u32 %v224, %v228
      %v231 = vshll.u32 %v221, 16
      %v233 = vrot.slane %v231, 1
      %v234 = vsel %vm222, %v229, %v233
      %v235 = vshrl.u32 %v221, 16
      %v237 = vor.u32 %v235, %v233
      %v241 = vunpack.c.l.b16 %v201
      %v242 = vpack.c.b16 %v213, %v241
      %vm243 = vcmask 1046528
      %v244 = vrot.slane %v242, 1
      %v245 = vrot.slane %v221, 1
      %v246 = vsel %vm243, %v244, %v245
      %v251 = vunpack.c.l.b16 %v202
      %v252 = vunpack.c.l.b16 %v203
      %v253 = vpack.c.b16 %v213, %v251
      %v254 = vpack.c.b16 %v252, %v214
      %vm255 = vcmask 1044480
      %v256 = vrot.slane %v253, 3
      %v257 = vrot.slane %v254, 3
      %v258 = vsel %vm255, %v256, %v257
      %v262 = vunpack.c.l.b16 %v204
      %v263 = vpack.c.b16 %v262, %v214
      %vm264 = vsmask.f32 4352
      %v266 = vshrl.u32 %v253, 16
      %v268 = vrot.slane %v266, 3
      %v269 = vshll.u32 %v253, 16
      %v271 = vrot.slane %v269, 4
      %v272 = vor.u32 %v268, %v271
      %v274 = vshrl.u32 %v263, 16
      %v276 = vrot.slane %v274, 3
      %v277 = vshll.u32 %v263, 16
      %v279 = vrot.slane %v277, 4
      %v280 = vor.u32 %v276, %v279
      %v281 = vsel %vm264, %v272, %v280
      %v284 = vpack.c.b16 %v214, %v213
      %v285 = vpack.c.b16 %v262, %v262
      %v290 = vunpack.c.l.b16 %v205
      %v291 = vunpack.c.l.b16 %v206
      %v292 = vpack.c.b16 %v214, %v290
      %v293 = vpack.c.b16 %v291, %v262
      %vm294 = vcmask 1045504
      %v295 = vrot.slane %v292, 2
      %v296 = vrot.slane %v293, 2
      %v297 = vsel %vm294, %v295, %v296
      %v301 = vunpack.c.l.b16 %v207
      %v302 = vpack.c.b16 %v301, %v262
      %vm303 = vsmask.f32 5376
      %v305 = vshrl.u32 %v292, 16
      %v307 = vrot.slane %v305, 2
      %v308 = vshll.u32 %v292, 16
      %v310 = vrot.slane %v308, 3
      %v311 = vor.u32 %v307, %v310
      %v313 = vshrl.u32 %v302, 16
      %v315 = vrot.slane %v313, 2
      %v316 = vshll.u32 %v302, 16
      %v318 = vrot.slane %v316, 3
      %v319 = vor.u32 %v315, %v318
      %v320 = vsel %vm303, %v311, %v319
      %v324 = vunpack.c.l.b16 %v208
      %v325 = vpack.c.b16 %v214, %v324
      %v326 = vrot.slane %v325, 3
      %v327 = vrot.slane %v302, 3
      %v328 = vsel %vm255, %v326, %v327
      %v331 = vld [vmem:[%s1] sm:$0xf]
      %v332 = vld [vmem:[%s1 + $0x4] sm:$0xf]
      %v333 = vld [vmem:[%s1 + $0x8] sm:$0xf]
      %v334 = vld [vmem:[%s1 + $0xc] sm:$0xf]
      %v335 = vld [vmem:[%s1 + $0x10] sm:$0xf]
      %v336 = vld [vmem:[%s1 + $0x14] sm:$0xf]
      %v337 = vld [vmem:[%s1 + $0x18] sm:$0xf]
      %v338 = vld [vmem:[%s1 + $0x1c] sm:$0xf]
      %v339 = vld [vmem:[%s1 + $0x20] sm:$0xf]
      %v340 = vld [vmem:[%s1 + $0x24] sm:$0xf]
      %v341 = vld [vmem:[%s1 + $0x28] sm:$0xf]
      %v342 = vld [vmem:[%s1 + $0x2c] sm:$0xf]
      %v343 = vld [vmem:[%s1 + $0x30] sm:$0xf]
      %v344 = vld [vmem:[%s1 + $0x34] sm:$0xf]
      %v345 = vld [vmem:[%s1 + $0x38] sm:$0xf]
      %v346 = vld [vmem:[%s1 + $0x3c] sm:$0xf]
      %v347 = vld [vmem:[%s1 + $0x40] sm:$0xf]
      %v348 = vld [vmem:[%s1 + $0x44] sm:$0xf]
      %v349 = vld [vmem:[%s1 + $0x48] sm:$0xf]
      %v350 = vld [vmem:[%s1 + $0x4c] sm:$0xf]
      %v351 = vld [vmem:[%s1 + $0x50] sm:$0xf]
      %v352 = vld [vmem:[%s1 + $0x54] sm:$0xf]
      %v353 = vld [vmem:[%s1 + $0x58] sm:$0xf]
      %v354 = vld [vmem:[%s1 + $0x5c] sm:$0xf]
      %v355 = vld [vmem:[%s1 + $0x60] sm:$0xf]
      %v356 = vld [vmem:[%s1 + $0x64] sm:$0xf]
      %v357 = vld [vmem:[%s1 + $0x68] sm:$0xf]
      %v358 = vld [vmem:[%s1 + $0x6c] sm:$0xf]
      %v359 = vld [vmem:[%s1 + $0x70] sm:$0xf]
      %v360 = vld [vmem:[%s1 + $0x74] sm:$0xf]
      %v361 = vld [vmem:[%s1 + $0x78] sm:$0xf]
      %v362 = vld [vmem:[%s1 + $0x7c] sm:$0xf]
      %v363 = vld [vmem:[%s1 + $0x80] sm:$0xf]
      %v364 = vld [vmem:[%s1 + $0x84] sm:$0xf]
      %v365 = vld [vmem:[%s1 + $0x88] sm:$0xf]
      %v366 = vld [vmem:[%s1 + $0x8c] sm:$0xf]
      %v367 = vld [vmem:[%s1 + $0x90] sm:$0xf]
      %v368 = vld [vmem:[%s1 + $0x94] sm:$0xf]
      %v369 = vld [vmem:[%s1 + $0x98] sm:$0xf]
      %v370 = vld [vmem:[%s1 + $0x9c] sm:$0xf]
      %v371 = vld [vmem:[%s1 + $0xa0] sm:$0xf]
      %v372 = vld [vmem:[%s1 + $0xa4] sm:$0xf]
      %v373 = vld [vmem:[%s1 + $0xa8] sm:$0xf]
      %v374 = vld [vmem:[%s1 + $0xac] sm:$0xf]
      %v375 = vld [vmem:[%s1 + $0xb0] sm:$0xf]
      %v376 = vld [vmem:[%s1 + $0xb4] sm:$0xf]
      %v377 = vld [vmem:[%s1 + $0xb8] sm:$0xf]
      %v378 = vld [vmem:[%s1 + $0xbc] sm:$0xf]
      %v379 = vld [vmem:[%s1 + $0xc0] sm:$0xf]
      %v380 = vld [vmem:[%s1 + $0xc4] sm:$0xf]
      %v381 = vld [vmem:[%s1 + $0xc8] sm:$0xf]
      %v382 = vld [vmem:[%s1 + $0xcc] sm:$0xf]
      %v383 = vld [vmem:[%s1 + $0xd0] sm:$0xf]
      %v384 = vld [vmem:[%s1 + $0xd4] sm:$0xf]
      %v385 = vld [vmem:[%s1 + $0xd8] sm:$0xf]
      %v386 = vld [vmem:[%s1 + $0xdc] sm:$0xf]
      %v387 = vld [vmem:[%s1 + $0xe0] sm:$0xf]
      %v388 = vld [vmem:[%s1 + $0xe4] sm:$0xf]
      %v389 = vld [vmem:[%s1 + $0xe8] sm:$0xf]
      %v390 = vld [vmem:[%s1 + $0xec] sm:$0xf]
      %v391 = vld [vmem:[%s1 + $0xf0] sm:$0xf]
      %v392 = vld [vmem:[%s1 + $0xf4] sm:$0xf]
      %v393 = vld [vmem:[%s1 + $0xf8] sm:$0xf]
      %v394 = vld [vmem:[%s1 + $0xfc] sm:$0xf]
      %v395 = vld [vmem:[%s1 + $0x100] sm:$0xf]
      %v396 = vld [vmem:[%s1 + $0x104] sm:$0xf]
      %v397 = vld [vmem:[%s1 + $0x108] sm:$0xf]
      %v398 = vld [vmem:[%s1 + $0x10c] sm:$0xf]
      %v399 = vld [vmem:[%s1 + $0x110] sm:$0xf]
      %v400 = vld [vmem:[%s1 + $0x114] sm:$0xf]
      %v401 = vld [vmem:[%s1 + $0x118] sm:$0xf]
      %v402 = vld [vmem:[%s1 + $0x11c] sm:$0xf]
      %v403 = vld [vmem:[%s1 + $0x120] sm:$0xf]
      %v404 = vld [vmem:[%s1 + $0x124] sm:$0xf]
      %v405 = vld [vmem:[%s1 + $0x128] sm:$0xf]
      %v406 = vld [vmem:[%s1 + $0x12c] sm:$0xf]
      %v407 = vld [vmem:[%s1 + $0x130] sm:$0xf]
      %v408 = vld [vmem:[%s1 + $0x134] sm:$0xf]
      %v409 = vld [vmem:[%s1 + $0x138] sm:$0xf]
      %v410 = vld [vmem:[%s1 + $0x13c] sm:$0xf]
      %v411 = vld [vmem:[%s1 + $0x140] sm:$0xf]
      %v412 = vld [vmem:[%s1 + $0x144] sm:$0xf]
      %v413 = vld [vmem:[%s1 + $0x148] sm:$0xf]
      %v414 = vld [vmem:[%s1 + $0x14c] sm:$0xf]
      %v415 = vld [vmem:[%s1 + $0x150] sm:$0xf]
      %v416 = vld [vmem:[%s1 + $0x154] sm:$0xf]
      %v417 = vld [vmem:[%s1 + $0x158] sm:$0xf]
      %v418 = vld [vmem:[%s1 + $0x15c] sm:$0xf]
      %v419 = vld [vmem:[%s1 + $0x160] sm:$0xf]
      %v420 = vld [vmem:[%s1 + $0x164] sm:$0xf]
      %v421 = vld [vmem:[%s1 + $0x168] sm:$0xf]
      %v422 = vld [vmem:[%s1 + $0x16c] sm:$0xf]
      %v423 = vld [vmem:[%s1 + $0x170] sm:$0xf]
      %v424 = vld [vmem:[%s1 + $0x174] sm:$0xf]
      %v425 = vld [vmem:[%s1 + $0x178] sm:$0xf]
      %v426 = vld [vmem:[%s1 + $0x17c] sm:$0xf]
      %v427 = vld [vmem:[%s1 + $0x180] sm:$0xf]
      %v428 = vld [vmem:[%s1 + $0x184] sm:$0xf]
      %v429 = vld [vmem:[%s1 + $0x188] sm:$0xf]
      %v430 = vld [vmem:[%s1 + $0x18c] sm:$0xf]
      %v431 = vld [vmem:[%s1 + $0x190] sm:$0xf]
      %v432 = vld [vmem:[%s1 + $0x194] sm:$0xf]
      %v433 = vld [vmem:[%s1 + $0x198] sm:$0xf]
      %v434 = vld [vmem:[%s1 + $0x19c] sm:$0xf]
      %v435 = vld [vmem:[%s1 + $0x1a0] sm:$0xf]
      %v436 = vld [vmem:[%s1 + $0x1a4] sm:$0xf]
      %v437 = vld [vmem:[%s1 + $0x1a8] sm:$0xf]
      %v438 = vld [vmem:[%s1 + $0x1ac] sm:$0xf]
      %v439 = vld [vmem:[%s1 + $0x1b0] sm:$0xf]
      %v440 = vld [vmem:[%s1 + $0x1b4] sm:$0xf]
      %v441 = vld [vmem:[%s1 + $0x1b8] sm:$0xf]
      %v442 = vld [vmem:[%s1 + $0x1bc] sm:$0xf]
      %v443 = vld [vmem:[%s1 + $0x1c0] sm:$0xf]
      %v444 = vld [vmem:[%s1 + $0x1c4] sm:$0xf]
      %v445 = vld [vmem:[%s1 + $0x1c8] sm:$0xf]
      %v446 = vld [vmem:[%s1 + $0x1cc] sm:$0xf]
      %v447 = vld [vmem:[%s1 + $0x1d0] sm:$0xf]
      %v448 = vld [vmem:[%s1 + $0x1d4] sm:$0xf]
      %v449 = vld [vmem:[%s1 + $0x1d8] sm:$0xf]
      %v450 = vld [vmem:[%s1 + $0x1dc] sm:$0xf]
      %v451 = vld [vmem:[%s1 + $0x1e0] sm:$0xf]
      %v452 = vld [vmem:[%s1 + $0x1e4] sm:$0xf]
      %v453 = vld [vmem:[%s1 + $0x1e8] sm:$0xf]
      %v454 = vld [vmem:[%s1 + $0x1ec] sm:$0xf]
      %v455 = vld [vmem:[%s1 + $0x1f0] sm:$0xf]
      %v456 = vld [vmem:[%s1 + $0x1f4] sm:$0xf]
      %v457 = vld [vmem:[%s1 + $0x1f8] sm:$0xf]
      %v458 = vld [vmem:[%s1 + $0x1fc] sm:$0xf]
      %v459 = vld [vmem:[%s1 + $0x200] sm:$0xf]
      %v460 = vld [vmem:[%s1 + $0x204] sm:$0xf]
      %v461 = vld [vmem:[%s1 + $0x208] sm:$0xf]
      %v462 = vld [vmem:[%s1 + $0x20c] sm:$0xf]
      %v463 = vld [vmem:[%s1 + $0x210] sm:$0xf]
      %v464 = vld [vmem:[%s1 + $0x214] sm:$0xf]
      %v465 = vld [vmem:[%s1 + $0x218] sm:$0xf]
      %v466 = vld [vmem:[%s1 + $0x21c] sm:$0xf]
      %v467 = vld [vmem:[%s1 + $0x220] sm:$0xf]
      %v468 = vld [vmem:[%s1 + $0x224] sm:$0xf]
      %v469 = vld [vmem:[%s1 + $0x228] sm:$0xf]
      %v470 = vld [vmem:[%s1 + $0x22c] sm:$0xf]
      %v471 = vld [vmem:[%s1 + $0x230] sm:$0xf]
      %v472 = vld [vmem:[%s1 + $0x234] sm:$0xf]
      %v473 = vld [vmem:[%s1 + $0x238] sm:$0xf]
      %v474 = vld [vmem:[%s1 + $0x23c] sm:$0xf]
      %v619 = vunpack.c.l.b16 %v331
      %v620 = vunpack.c.l.b16 %v332
      %v621 = vunpack.c.l.b16 %v333
      %v622 = vunpack.c.l.b16 %v334
      %v623 = vunpack.c.l.b16 %v335
      %v624 = vunpack.c.l.b16 %v336
      %v625 = vunpack.c.l.b16 %v337
      %v626 = vunpack.c.l.b16 %v338
      %v627 = vunpack.c.l.b16 %v339
      %v628 = vunpack.c.l.b16 %v340
      %v629 = vunpack.c.l.b16 %v341
      %v630 = vunpack.c.l.b16 %v342
      %v631 = vunpack.c.l.b16 %v343
      %v632 = vunpack.c.l.b16 %v344
      %v633 = vunpack.c.l.b16 %v345
      %v634 = vunpack.c.l.b16 %v346
      %v635 = vunpack.c.l.b16 %v347
      %v636 = vunpack.c.l.b16 %v348
      %v637 = vunpack.c.l.b16 %v349
      %v638 = vunpack.c.l.b16 %v350
      %v639 = vunpack.c.l.b16 %v351
      %v640 = vunpack.c.l.b16 %v352
      %v641 = vunpack.c.l.b16 %v353
      %v642 = vunpack.c.l.b16 %v354
      %v643 = vunpack.c.l.b16 %v355
      %v644 = vunpack.c.l.b16 %v356
      %v645 = vunpack.c.l.b16 %v357
      %v646 = vunpack.c.l.b16 %v358
      %v647 = vunpack.c.l.b16 %v359
      %v648 = vunpack.c.l.b16 %v360
      %v649 = vunpack.c.l.b16 %v361
      %v650 = vunpack.c.l.b16 %v362
      %v651 = vunpack.c.l.b16 %v363
      %v652 = vunpack.c.l.b16 %v364
      %v653 = vunpack.c.l.b16 %v365
      %v654 = vunpack.c.l.b16 %v366
      %v655 = vunpack.c.l.b16 %v367
      %v656 = vunpack.c.l.b16 %v368
      %v657 = vunpack.c.l.b16 %v369
      %v658 = vunpack.c.l.b16 %v370
      %v659 = vunpack.c.l.b16 %v371
      %v660 = vunpack.c.l.b16 %v372
      %v661 = vunpack.c.l.b16 %v373
      %v662 = vunpack.c.l.b16 %v374
      %v663 = vunpack.c.l.b16 %v375
      %v664 = vunpack.c.l.b16 %v376
      %v665 = vunpack.c.l.b16 %v377
      %v666 = vunpack.c.l.b16 %v378
      %v667 = vunpack.c.l.b16 %v379
      %v668 = vunpack.c.l.b16 %v380
      %v669 = vunpack.c.l.b16 %v381
      %v670 = vunpack.c.l.b16 %v382
      %v671 = vunpack.c.l.b16 %v383
      %v672 = vunpack.c.l.b16 %v384
      %v673 = vunpack.c.l.b16 %v385
      %v674 = vunpack.c.l.b16 %v386
      %v675 = vunpack.c.l.b16 %v387
      %v676 = vunpack.c.l.b16 %v388
      %v677 = vunpack.c.l.b16 %v389
      %v678 = vunpack.c.l.b16 %v390
      %v679 = vunpack.c.l.b16 %v391
      %v680 = vunpack.c.l.b16 %v392
      %v681 = vunpack.c.l.b16 %v393
      %v682 = vunpack.c.l.b16 %v394
      %v683 = vunpack.c.l.b16 %v395
      %v684 = vunpack.c.l.b16 %v396
      %v685 = vunpack.c.l.b16 %v397
      %v686 = vunpack.c.l.b16 %v398
      %v687 = vunpack.c.l.b16 %v399
      %v688 = vunpack.c.l.b16 %v400
      %v689 = vunpack.c.l.b16 %v401
      %v690 = vunpack.c.l.b16 %v402
      %v691 = vunpack.c.l.b16 %v403
      %v692 = vunpack.c.l.b16 %v404
      %v693 = vunpack.c.l.b16 %v405
      %v694 = vunpack.c.l.b16 %v406
      %v695 = vunpack.c.l.b16 %v407
      %v696 = vunpack.c.l.b16 %v408
      %v697 = vunpack.c.l.b16 %v409
      %v698 = vunpack.c.l.b16 %v410
      %v699 = vunpack.c.l.b16 %v411
      %v700 = vunpack.c.l.b16 %v412
      %v701 = vunpack.c.l.b16 %v413
      %v702 = vunpack.c.l.b16 %v414
      %v703 = vunpack.c.l.b16 %v415
      %v704 = vunpack.c.l.b16 %v416
      %v705 = vunpack.c.l.b16 %v417
      %v706 = vunpack.c.l.b16 %v418
      %v707 = vunpack.c.l.b16 %v419
      %v708 = vunpack.c.l.b16 %v420
      %v709 = vunpack.c.l.b16 %v421
      %v710 = vunpack.c.l.b16 %v422
      %v711 = vunpack.c.l.b16 %v423
      %v712 = vunpack.c.l.b16 %v424
      %v713 = vunpack.c.l.b16 %v425
      %v714 = vunpack.c.l.b16 %v426
      %v715 = vunpack.c.l.b16 %v427
      %v716 = vunpack.c.l.b16 %v428
      %v717 = vunpack.c.l.b16 %v429
      %v718 = vunpack.c.l.b16 %v430
      %v719 = vunpack.c.l.b16 %v431
      %v720 = vunpack.c.l.b16 %v432
      %v721 = vunpack.c.l.b16 %v433
      %v722 = vunpack.c.l.b16 %v434
      %v723 = vunpack.c.l.b16 %v435
      %v724 = vunpack.c.l.b16 %v436
      %v725 = vunpack.c.l.b16 %v437
      %v726 = vunpack.c.l.b16 %v438
      %v727 = vunpack.c.l.b16 %v439
      %v728 = vunpack.c.l.b16 %v440
      %v729 = vunpack.c.l.b16 %v441
      %v730 = vunpack.c.l.b16 %v442
      %v731 = vunpack.c.l.b16 %v443
      %v732 = vunpack.c.l.b16 %v444
      %v733 = vunpack.c.l.b16 %v445
      %v734 = vunpack.c.l.b16 %v446
      %v735 = vunpack.c.l.b16 %v447
      %v736 = vunpack.c.l.b16 %v448
      %v737 = vunpack.c.l.b16 %v449
      %v738 = vunpack.c.l.b16 %v450
      %v739 = vunpack.c.l.b16 %v451
      %v740 = vunpack.c.l.b16 %v452
      %v741 = vunpack.c.l.b16 %v453
      %v742 = vunpack.c.l.b16 %v454
      %v743 = vunpack.c.l.b16 %v455
      %v744 = vunpack.c.l.b16 %v456
      %v745 = vunpack.c.l.b16 %v457
      %v746 = vunpack.c.l.b16 %v458
      %v747 = vunpack.c.l.b16 %v459
      %v748 = vunpack.c.l.b16 %v460
      %v749 = vunpack.c.l.b16 %v461
      %v750 = vunpack.c.l.b16 %v462
      %v751 = vunpack.c.l.b16 %v463
      %v752 = vunpack.c.l.b16 %v464
      %v753 = vunpack.c.l.b16 %v465
      %v754 = vunpack.c.l.b16 %v466
      %v755 = vunpack.c.l.b16 %v467
      %v756 = vunpack.c.l.b16 %v468
      %v757 = vunpack.c.l.b16 %v469
      %v758 = vunpack.c.l.b16 %v470
      %v759 = vunpack.c.l.b16 %v471
      %v760 = vunpack.c.l.b16 %v472
      %v761 = vunpack.c.l.b16 %v473
      %v762 = vunpack.c.l.b16 %v474
      %v763 = vpack.c.b16 %v620, %v619
      %v764 = vpack.c.b16 %v622, %v621
      %v765 = vpack.c.b16 %v624, %v623
      %v766 = vpack.c.b16 %v626, %v625
      %v767 = vpack.c.b16 %v628, %v627
      %v768 = vpack.c.b16 %v630, %v629
      %v769 = vpack.c.b16 %v632, %v631
      %v770 = vpack.c.b16 %v634, %v633
      %v771 = vpack.c.b16 %v636, %v635
      %v772 = vpack.c.b16 %v638, %v637
      %v773 = vpack.c.b16 %v640, %v639
      %v774 = vpack.c.b16 %v642, %v641
      %v775 = vpack.c.b16 %v644, %v643
      %v776 = vpack.c.b16 %v646, %v645
      %v777 = vpack.c.b16 %v648, %v647
      %v778 = vpack.c.b16 %v650, %v649
      %v779 = vpack.c.b16 %v652, %v651
      %v780 = vpack.c.b16 %v654, %v653
      %v781 = vpack.c.b16 %v656, %v655
      %v782 = vpack.c.b16 %v658, %v657
      %v783 = vpack.c.b16 %v660, %v659
      %v784 = vpack.c.b16 %v662, %v661
      %v785 = vpack.c.b16 %v664, %v663
      %v786 = vpack.c.b16 %v666, %v665
      %v787 = vpack.c.b16 %v668, %v667
      %v788 = vpack.c.b16 %v670, %v669
      %v789 = vpack.c.b16 %v672, %v671
      %v790 = vpack.c.b16 %v674, %v673
      %v791 = vpack.c.b16 %v676, %v675
      %v792 = vpack.c.b16 %v678, %v677
      %v793 = vpack.c.b16 %v680, %v679
      %v794 = vpack.c.b16 %v682, %v681
      %v795 = vpack.c.b16 %v684, %v683
      %v796 = vpack.c.b16 %v686, %v685
      %v797 = vpack.c.b16 %v688, %v687
      %v798 = vpack.c.b16 %v690, %v689
      %v799 = vpack.c.b16 %v692, %v691
      %v800 = vpack.c.b16 %v694, %v693
      %v801 = vpack.c.b16 %v696, %v695
      %v802 = vpack.c.b16 %v698, %v697
      %v803 = vpack.c.b16 %v700, %v699
      %v804 = vpack.c.b16 %v702, %v701
      %v805 = vpack.c.b16 %v704, %v703
      %v806 = vpack.c.b16 %v706, %v705
      %v807 = vpack.c.b16 %v708, %v707
      %v808 = vpack.c.b16 %v710, %v709
      %v809 = vpack.c.b16 %v712, %v711
      %v810 = vpack.c.b16 %v714, %v713
      %v811 = vpack.c.b16 %v716, %v715
      %v812 = vpack.c.b16 %v718, %v717
      %v813 = vpack.c.b16 %v720, %v719
      %v814 = vpack.c.b16 %v722, %v721
      %v815 = vpack.c.b16 %v724, %v723
      %v816 = vpack.c.b16 %v726, %v725
      %v817 = vpack.c.b16 %v728, %v727
      %v818 = vpack.c.b16 %v730, %v729
      %v819 = vpack.c.b16 %v732, %v731
      %v820 = vpack.c.b16 %v734, %v733
      %v821 = vpack.c.b16 %v736, %v735
      %v822 = vpack.c.b16 %v738, %v737
      %v823 = vpack.c.b16 %v740, %v739
      %v824 = vpack.c.b16 %v742, %v741
      %v825 = vpack.c.b16 %v744, %v743
      %v826 = vpack.c.b16 %v746, %v745
      %v827 = vpack.c.b16 %v748, %v747
      %v828 = vpack.c.b16 %v750, %v749
      %v829 = vpack.c.b16 %v752, %v751
      %v830 = vpack.c.b16 %v754, %v753
      %v831 = vpack.c.b16 %v756, %v755
      %v832 = vpack.c.b16 %v758, %v757
      %v833 = vpack.c.b16 %v760, %v759
      %v834 = vpack.c.b16 %v762, %v761
      %907 = vmatprep.subr.bf16.mxu0 0
      %908 = vmatpush1.bf16.msra.mxu0 %v763
      %909 = vmatprep.subr.bf16.mxu0 0
      %910 = vmatpush1.bf16.msra.mxu0 %v764
      %911 = vmatprep.subr.bf16.mxu0 0
      %912 = vmatpush1.bf16.msra.mxu0 %v765
      %913 = vmatprep.subr.bf16.mxu0 0
      %914 = vmatpush1.bf16.msra.mxu0 %v766
      %915 = vmatprep.subr.bf16.mxu0 0
      %916 = vmatpush1.bf16.msra.mxu0 %v767
      %917 = vmatprep.subr.bf16.mxu0 0
      %918 = vmatpush1.bf16.msra.mxu0 %v768
      %919 = vmatprep.subr.bf16.mxu0 0
      %920 = vmatpush1.bf16.msra.mxu0 %v769
      %921 = vmatprep.subr.bf16.mxu0 0
      %922 = vmatpush1.bf16.msra.mxu0 %v770
      %923 = vmatprep.subr.bf16.mxu0 0
      %924 = vmatpush1.bf16.msra.mxu0 %v771
      %925 = vmatprep.subr.bf16.mxu0 0
      %926 = vmatpush1.bf16.msra.mxu0 %v772
      %927 = vmatprep.subr.bf16.mxu0 0
      %928 = vmatpush1.bf16.msra.mxu0 %v773
      %929 = vmatprep.subr.bf16.mxu0 0
      %930 = vmatpush1.bf16.msra.mxu0 %v774
      %931 = vmatprep.subr.bf16.mxu0 0
      %932 = vmatpush1.bf16.msra.mxu0 %v775
      %933 = vmatprep.subr.bf16.mxu0 0
      %934 = vmatpush1.bf16.msra.mxu0 %v776
      %935 = vmatprep.subr.bf16.mxu0 0
      %936 = vmatpush1.bf16.msra.mxu0 %v777
      %937 = vmatprep.subr.bf16.mxu0 0
      %938 = vmatpush1.bf16.msra.mxu0 %v778
      %939 = vmatprep.mubr.bf16.mxu0 %v234
      %940 = vmatmul.mubr.bf16.gmra.mrb[0].mxu0 %v215
      %v941 = vpop.f32.mrb[0].mxu0
      %v942 = vadd.f32 0.0, %v941
      %v943 = vpop.f32.mrb[0].mxu0
      %v944 = vpop.f32.mrb[0].mxu0
      %v945 = vadd.f32 0.0, %v944
      %v946 = vpop.f32.mrb[0].mxu0
      %947 = vmatprep.mubr.bf16.mxu0 %v237
      %948 = vmatmul.mubr.bf16.gmra.mrb[0].mxu0 %v216
      %v949 = vpop.f32.mrb[0].mxu0
      %v950 = vadd.f32 0.0, %v949
      %v951 = vpop.f32.mrb[0].mxu0
      %v952 = vpop.f32.mrb[0].mxu0
      %v953 = vpop.f32.mrb[0].mxu0
      %954 = vdwg.mxu0
      %955 = vmatprep.subr.bf16.mxu0 0
      %956 = vmatpush1.bf16.msra.mxu0 %v779
      %957 = vmatprep.subr.bf16.mxu0 0
      %958 = vmatpush1.bf16.msra.mxu0 %v780
      %959 = vmatprep.subr.bf16.mxu0 0
      %960 = vmatpush1.bf16.msra.mxu0 %v781
      %961 = vmatprep.subr.bf16.mxu0 0
      %962 = vmatpush1.bf16.msra.mxu0 %v782
      %963 = vmatprep.subr.bf16.mxu0 0
      %964 = vmatpush1.bf16.msra.mxu0 %v783
      %965 = vmatprep.subr.bf16.mxu0 0
      %966 = vmatpush1.bf16.msra.mxu0 %v784
      %967 = vmatprep.subr.bf16.mxu0 0
      %968 = vmatpush1.bf16.msra.mxu0 %v785
      %969 = vmatprep.subr.bf16.mxu0 0
      %970 = vmatpush1.bf16.msra.mxu0 %v786
      %971 = vmatprep.subr.bf16.mxu0 0
      %972 = vmatpush1.bf16.msra.mxu0 %v787
      %973 = vmatprep.subr.bf16.mxu0 0
      %974 = vmatpush1.bf16.msra.mxu0 %v788
      %975 = vmatprep.subr.bf16.mxu0 0
      %976 = vmatpush1.bf16.msra.mxu0 %v789
      %977 = vmatprep.subr.bf16.mxu0 0
      %978 = vmatpush1.bf16.msra.mxu0 %v790
      %979 = vmatprep.subr.bf16.mxu0 0
      %980 = vmatpush1.bf16.msra.mxu0 %v791
      %981 = vmatprep.subr.bf16.mxu0 0
      %982 = vmatpush1.bf16.msra.mxu0 %v792
      %983 = vmatprep.subr.bf16.mxu0 0
      %984 = vmatpush1.bf16.msra.mxu0 %v793
      %985 = vmatprep.subr.bf16.mxu0 0
      %986 = vmatpush1.bf16.msra.mxu0 %v794
      %987 = vmatprep.mubr.bf16.mxu0 %v258
      %988 = vmatmul.mubr.bf16.gmra.mrb[0].mxu0 %v246
      %v989 = vpop.f32.mrb[0].mxu0
      %v990 = vadd.f32 %v942, %v989
      %v991 = vpop.f32.mrb[0].mxu0
      %v992 = vpop.f32.mrb[0].mxu0
      %v993 = vadd.f32 %v945, %v992
      %v994 = vpop.f32.mrb[0].mxu0
      %995 = vmatprep.mubr.bf16.mxu0 %v257
      %996 = vmatmul.mubr.bf16.gmra.mrb[0].mxu0 %v245
      %v997 = vpop.f32.mrb[0].mxu0
      %v998 = vadd.f32 %v950, %v997
      %v999 = vpop.f32.mrb[0].mxu0
      %v1000 = vpop.f32.mrb[0].mxu0
      %v1001 = vpop.f32.mrb[0].mxu0
      %1002 = vdwg.mxu0
      %1003 = vmatprep.subr.bf16.mxu0 0
      %1004 = vmatpush1.bf16.msra.mxu0 %v795
      %1005 = vmatprep.subr.bf16.mxu0 0
      %1006 = vmatpush1.bf16.msra.mxu0 %v796
      %1007 = vmatprep.subr.bf16.mxu0 0
      %1008 = vmatpush1.bf16.msra.mxu0 %v797
      %1009 = vmatprep.subr.bf16.mxu0 0
      %1010 = vmatpush1.bf16.msra.mxu0 %v798
      %1011 = vmatprep.subr.bf16.mxu0 0
      %1012 = vmatpush1.bf16.msra.mxu0 %v799
      %1013 = vmatprep.subr.bf16.mxu0 0
      %1014 = vmatpush1.bf16.msra.mxu0 %v800
      %1015 = vmatprep.subr.bf16.mxu0 0
      %1016 = vmatpush1.bf16.msra.mxu0 %v801
      %1017 = vmatprep.subr.bf16.mxu0 0
      %1018 = vmatpush1.bf16.msra.mxu0 %v802
      %1019 = vmatprep.subr.bf16.mxu0 0
      %1020 = vmatpush1.bf16.msra.mxu0 %v803
      %1021 = vmatprep.subr.bf16.mxu0 0
      %1022 = vmatpush1.bf16.msra.mxu0 %v804
      %1023 = vmatprep.subr.bf16.mxu0 0
      %1024 = vmatpush1.bf16.msra.mxu0 %v805
      %1025 = vmatprep.subr.bf16.mxu0 0
      %1026 = vmatpush1.bf16.msra.mxu0 %v806
      %1027 = vmatprep.subr.bf16.mxu0 0
      %1028 = vmatpush1.bf16.msra.mxu0 %v807
      %1029 = vmatprep.subr.bf16.mxu0 0
      %1030 = vmatpush1.bf16.msra.mxu0 %v808
      %1031 = vmatprep.subr.bf16.mxu0 0
      %1032 = vmatpush1.bf16.msra.mxu0 %v809
      %1033 = vmatprep.subr.bf16.mxu0 0
      %1034 = vmatpush1.bf16.msra.mxu0 %v810
      %1035 = vmatprep.mubr.bf16.mxu0 %v284
      %1036 = vmatmul.mubr.bf16.gmra.mrb[0].mxu0 %v281
      %v1037 = vpop.f32.mrb[0].mxu0
      %v1038 = vadd.f32 %v990, %v1037
      %v1039 = vpop.f32.mrb[0].mxu0
      %v1040 = vpop.f32.mrb[0].mxu0
      %v1041 = vadd.f32 %v993, %v1040
      %v1042 = vpop.f32.mrb[0].mxu0
      %1043 = vmatprep.mubr.bf16.mxu0 %v285
      %1044 = vmatmul.mubr.bf16.gmra.mrb[0].mxu0 %v280
      %v1045 = vpop.f32.mrb[0].mxu0
      %v1046 = vadd.f32 %v998, %v1045
      %v1047 = vpop.f32.mrb[0].mxu0
      %v1048 = vpop.f32.mrb[0].mxu0
      %v1049 = vpop.f32.mrb[0].mxu0
      %1050 = vdwg.mxu0
      %1051 = vmatprep.subr.bf16.mxu0 0
      %1052 = vmatpush1.bf16.msra.mxu0 %v811
      %1053 = vmatprep.subr.bf16.mxu0 0
      %1054 = vmatpush1.bf16.msra.mxu0 %v812
      %1055 = vmatprep.subr.bf16.mxu0 0
      %1056 = vmatpush1.bf16.msra.mxu0 %v813
      %1057 = vmatprep.subr.bf16.mxu0 0
      %1058 = vmatpush1.bf16.msra.mxu0 %v814
      %1059 = vmatprep.subr.bf16.mxu0 0
      %1060 = vmatpush1.bf16.msra.mxu0 %v815
      %1061 = vmatprep.subr.bf16.mxu0 0
      %1062 = vmatpush1.bf16.msra.mxu0 %v816
      %1063 = vmatprep.subr.bf16.mxu0 0
      %1064 = vmatpush1.bf16.msra.mxu0 %v817
      %1065 = vmatprep.subr.bf16.mxu0 0
      %1066 = vmatpush1.bf16.msra.mxu0 %v818
      %1067 = vmatprep.subr.bf16.mxu0 0
      %1068 = vmatpush1.bf16.msra.mxu0 %v819
      %1069 = vmatprep.subr.bf16.mxu0 0
      %1070 = vmatpush1.bf16.msra.mxu0 %v820
      %1071 = vmatprep.subr.bf16.mxu0 0
      %1072 = vmatpush1.bf16.msra.mxu0 %v821
      %1073 = vmatprep.subr.bf16.mxu0 0
      %1074 = vmatpush1.bf16.msra.mxu0 %v822
      %1075 = vmatprep.subr.bf16.mxu0 0
      %1076 = vmatpush1.bf16.msra.mxu0 %v823
      %1077 = vmatprep.subr.bf16.mxu0 0
      %1078 = vmatpush1.bf16.msra.mxu0 %v824
      %1079 = vmatprep.subr.bf16.mxu0 0
      %1080 = vmatpush1.bf16.msra.mxu0 %v825
      %1081 = vmatprep.subr.bf16.mxu0 0
      %1082 = vmatpush1.bf16.msra.mxu0 %v826
      %1083 = vmatprep.mubr.bf16.mxu0 %v320
      %1084 = vmatmul.mubr.bf16.gmra.mrb[0].mxu0 %v297
      %v1085 = vpop.f32.mrb[0].mxu0
      %v1086 = vadd.f32 %v1038, %v1085
      %v1087 = vpop.f32.mrb[0].mxu0
      %v1088 = vpop.f32.mrb[0].mxu0
      %v1089 = vadd.f32 %v1041, %v1088
      %v1090 = vpop.f32.mrb[0].mxu0
      %1091 = vmatprep.mubr.bf16.mxu0 %v319
      %1092 = vmatmul.mubr.bf16.gmra.mrb[0].mxu0 %v296
      %v1093 = vpop.f32.mrb[0].mxu0
      %v1094 = vadd.f32 %v1046, %v1093
      %v1095 = vpop.f32.mrb[0].mxu0
      %v1096 = vpop.f32.mrb[0].mxu0
      %v1097 = vpop.f32.mrb[0].mxu0
      %1098 = vdwg.mxu0
      %1099 = vmatprep.subr.bf16.mxu0 0
      %1100 = vmatpush1.bf16.msra.mxu0 %v827
      %1101 = vmatprep.subr.bf16.mxu0 0
      %1102 = vmatpush1.bf16.msra.mxu0 %v828
      %1103 = vmatprep.subr.bf16.mxu0 0
      %1104 = vmatpush1.bf16.msra.mxu0 %v829
      %1105 = vmatprep.subr.bf16.mxu0 0
      %1106 = vmatpush1.bf16.msra.mxu0 %v830
      %1107 = vmatprep.subr.bf16.mxu0 0
      %1108 = vmatpush1.bf16.msra.mxu0 %v831
      %1109 = vmatprep.subr.bf16.mxu0 0
      %1110 = vmatpush1.bf16.msra.mxu0 %v832
      %1111 = vmatprep.subr.bf16.mxu0 0
      %1112 = vmatpush1.bf16.msra.mxu0 %v833
      %1113 = vmatprep.subr.bf16.mxu0 0
      %1114 = vmatpush1.bf16.msra.mxu0 %v834
      %1115 = vmatprep.subr.bf16.mxu0 0
      %1116 = vmatpush1.bf16.msra.mxu0 0
      %1117 = vmatprep.subr.bf16.mxu0 0
      %1118 = vmatpush1.bf16.msra.mxu0 0
      %1119 = vmatprep.subr.bf16.mxu0 0
      %1120 = vmatpush1.bf16.msra.mxu0 0
      %1121 = vmatprep.subr.bf16.mxu0 0
      %1122 = vmatpush1.bf16.msra.mxu0 0
      %1123 = vmatprep.subr.bf16.mxu0 0
      %1124 = vmatpush1.bf16.msra.mxu0 0
      %1125 = vmatprep.subr.bf16.mxu0 0
      %1126 = vmatpush1.bf16.msra.mxu0 0
      %1127 = vmatprep.subr.bf16.mxu0 0
      %1128 = vmatpush1.bf16.msra.mxu0 0
      %1129 = vmatprep.subr.bf16.mxu0 0
      %1130 = vmatpush1.bf16.msra.mxu0 0
      %1131 = vmatprep.mubr.bf16.mxu0 0
      %1132 = vmatmul.mubr.bf16.gmra.mrb[0].mxu0 %v328
      %v1133 = vpop.f32.mrb[0].mxu0
      %v1134 = vadd.f32 %v1086, %v1133
      %v1135 = vpop.f32.mrb[0].mxu0
      %v1136 = vpop.f32.mrb[0].mxu0
      %v1137 = vadd.f32 %v1089, %v1136
      %v1138 = vpop.f32.mrb[0].mxu0
      %1139 = vmatprep.mubr.bf16.mxu0 0
      %1140 = vmatmul.mubr.bf16.gmra.mrb[0].mxu0 %v327
      %v1141 = vpop.f32.mrb[0].mxu0
      %v1142 = vadd.f32 %v1094, %v1141
      %v1143 = vpop.f32.mrb[0].mxu0
      %v1144 = vpop.f32.mrb[0].mxu0
      %v1145 = vpop.f32.mrb[0].mxu0
      %1146 = vdwg.mxu0
      %v1147 = vld [vmem:[%s2] sm:$0x1]
      %v1149 = vlaneseq
      %v1150 = vshrl.u32 %v1149, 7
      %v1151 = vsub.s32 0, %v1150
      %v1152 = vrot.slane %v1147, %v1151
      %v1154 = vmul.f32 %v1134, %v1152
      %v1155 = vmul.f32 %v1137, %v1152
      %v1156 = vmul.f32 %v1142, %v1152
      %v1157 = vld [vmem:[%s3] sm:$0x1]
      %v1159 = vlaneseq
      %v1160 = vshrl.u32 %v1159, 7
      %v1161 = vsub.s32 0, %v1160
      %v1162 = vrot.slane %v1157, %v1161
      %v1164 = vadd.f32 %v1154, %v1162
      %v1165 = vadd.f32 %v1155, %v1162
      %v1166 = vadd.f32 %v1156, %v1162
      %v1167 = vmax.f32 %v1164, 0.0
      %v1168 = vmax.f32 %v1165, 0.0
      %v1169 = vmax.f32 %v1166, 0.0
      %1170 = vst [vmem:[#allocation2] sm:$0xff] %v1167
      %1171 = vst [vmem:[#allocation2 + $0x8] sm:$0xff] %v1168
      %1172 = vst [vmem:[#allocation2 + $0x10] sm:$0xff] %v1169
      %v1173 = vld [vmem:[#allocation2] ss:$2 sm:$0xff]
      %s1174 = scalar_lea.vmem [#allocation2], 16
      %v1175 = vld [vmem:[%s1174] ss:$2 sm:$0xf]
      %s1176 = scalar_lea.vmem [#allocation2], 1
      %v1177 = vld [vmem:[%s1176] ss:$2 sm:$0xff]
      %s1178 = scalar_lea.vmem [#allocation2], 17
      %v1179 = vld [vmem:[%s1178] ss:$2 sm:$0xf]
      %v1180 = vmax.f32 %v1173, %v1177
      %v1181 = vmax.f32 %v1175, %v1179
      %v1183 = vrot.slane %v1180, 3
      %v1185 = vmax.f32 %v1180, %v1183
      %v1186 = vpack.c.bf16 %v1185, %v1185
      %1187 = vst [vmem:[%s195] sm:$0x1] %v1186
      %v1189 = vrot.slane %v1181, 3
      %v1191 = vmax.f32 %v1180, %v1189
      %v1192 = vpack.c.bf16 %v1191, %v1191
      %v1195 = vunpack.c.l.s4 1966171168
      %v1196 = vunpack.c.0.s8 %v1195
      %v1197 = vlaneseq
      %v1198 = vshrl.u32 %v1197, 7
      %v1199 = vsub.s32 %v1196, %v1198
      %v1200 = vrot.slane %v1192, %v1199
      %v1201 = vcombine.high %v1200, %v1200
      %v1203 = vunpack.c.l.s4 1966171168
      %v1204 = vunpack.c.0.s8 %v1203
      %v1205 = vlaneseq
      %v1206 = vshrl.u32 %v1205, 7
      %v1207 = vsub.s32 %v1204, %v1206
      %v1208 = vrot.slane %v1201, %v1207
      %v1209 = vcombine.high %v1208, %v1208
      %s1211 = scalar_lea.vmem %s195, 1
      %1212 = vst [vmem:[%s1211] sm:$0x1] %v1209
      %p1213 = scmp.lt.s32.totalorder %s15, 1
      %s1214 = scalar_select %p1213, %s15, 1
      %s1215 = smul.addr %s1214, 2
      %s1216 = scalar_lea.vmem %s4, %s1215
      // Predicated region
      $region37: #{localization_network.6} parent=35 // pred_check
        %p1217 = pneg %p122
      $region38: #{localization_network.6} parent=35 // pred_check_branch
        %1219 = sbr.rel (%p1217) target = $region40
      $region39: #{localization_network.6} parent=35 // pred_region
        _
      $region40: #{localization_network.6} parent=35 // pred_fallthru
        _
    $region36: #{localization_network.6} parent=5 // pred_fallthru
      _
    %p1220 = scmp.le.s32.totalorder 2, %s10
    // Predicated region
    $region41: #{localization_network.6} parent=5 // pred_check
      %p1221 = pneg %p1220
    $region42: #{localization_network.6} parent=5 // pred_check_branch
      %1223 = sbr.rel (%p1221) target = $region44
    $region43: #{localization_network.6} parent=5 // pred_region
      %s1224 = ssub.s32 %s10, 2
      // Predicated region
      $region45: #{localization_network.6} parent=43 // pred_check
        %p1225 = pneg %p128
      $region46: #{localization_network.6} parent=43 // pred_check_branch
        %1227 = sbr.rel (%p1225) target = $region48
      $region47: #{localization_network.6} parent=43 // pred_region
        %p1228 = scmp.lt.s32.totalorder %s16, 1
        %s1229 = scalar_select %p1228, %s16, 1
        %s1230 = smul.addr %s1229, 2
        %s1231 = scalar_lea.vmem %s4, %s1230
      $region48: #{localization_network.6} parent=43 // pred_fallthru
        _
    $region44: #{localization_network.6} parent=5 // pred_fallthru
      _
  $region6: #{localization_network.6} parent=0 // loop_footer
    %s14 = sadd.s32 1, %s10
  $region7: #{localization_network.6} parent=0 // loop_footer_branch
    %9 = sbr.rel target = $region3
  $region8: #{localization_network.6} parent=0 // loop_exit
    _

// kernel: localization_network.5
$region0: #{localization_network.5}
  #allocation0 [shape = 'u32[]', space=smem, size = 0x4, offset = 0x4, fixed_abs, tag = 'smem constant byte address 0x4 - core index']
  #allocation1 [shape = 'u32[144,128]{1,0:T(1,128)}', space=vmem, size = 0x12000, scoped, tag = 'internal scratch']
  #allocation2 [shape = 'f32[80,128]{1,0:T(8,128)}', space=vmem, size = 0xa000, scoped, tag = 'scratch operand']
  %s0 = inlined_call_operand.vmem [shape: bf16[2,110,128], index: 0, kind: input, shape index: {}]
  %s1 = inlined_call_operand.vmem [shape: bf16[1152,128], index: 1, kind: input, shape index: {}]
  %s2 = inlined_call_operand.vmem [shape: f32[1,128], index: 2, kind: input, shape index: {}]
  %s3 = inlined_call_operand.vmem [shape: f32[1,128], index: 3, kind: input, shape index: {}]
  %s4 = inlined_call_operand.vmem [shape: bf16[2,4,4,128], index: 4, kind: output, shape index: {}]
  %s5 = sld [smem:[#allocation0]]
  $region49: #{localization_network.5} parent=0
    _
  %s7 = ssub.s32 1, %s5
  %s8 = scalar_select 0, %s7, %s5
  loop: start=0, step=1, limit=4
  $region2: #{localization_network.5} parent=0 // loop_pre_header
    _
  $region3: #{localization_network.5} parent=0 // loop_header
    %s10 = sphi 0, %s14
    %p11 = scmp.ge.s32.totalorder %s10, 4
    %s20 = sphi 0, %s22
    %s23 = sphi 0, %s20
    %s24 = sphi 0, %s23
    %s40 = sphi 0, %s24
    %s44 = sphi 0, %s44
    %s46 = sphi 0, %s44
    %s47 = sphi 0, %s46
    %s61 = sphi 0, %s47
    %s65 = sphi 0, %s65
    %s67 = sphi 0, %s65
    %s68 = sphi 0, %s67
    %s82 = sphi 0, %s68
    %s86 = sphi 0, %s86
    %s88 = sphi 0, %s86
    %s89 = sphi 0, %s88
    %s103 = sphi 0, %s89
    %s109 = sphi 0, %s111
    %s112 = sphi 0, %s109
    %s113 = sphi 0, %s112
    %s129 = sphi 0, %s113
  $region4: #{localization_network.5} parent=0 // loop_header_branch
    %13 = sbr.rel (%p11) target = $region8
  $region5: #{localization_network.5} parent=0 // loop_body
    %s15 = ssub.s32 %s10, 1
    %s16 = ssub.s32 %s10, 2
    %s17 = sadd.s32 %s10, 1
    %s18 = ssub.s32 %s10, %s17
    %p19 = scmp.eq.s32.totalorder %s18, 0
    %s21 = sadd.s32 %s20, 1
    %s22 = scalar_select %p19, %s20, %s21
    %p25 = pneg %p19
    %p26 = scmp.eq.s32.totalorder %s10, 1
    %p27 = por %p25, %p26
    %p28 = scmp.ne.s32.totalorder %s20, %s23
    %p29 = scmp.eq.s32.totalorder %s10, 0
    %p30 = por %p28, %p29
    %p31 = scmp.ne.s32.totalorder %s20, %s23
    %p32 = scmp.eq.s32.totalorder %s15, 1
    %p33 = por %p31, %p32
    %p34 = scmp.ne.s32.totalorder %s23, %s24
    %p35 = scmp.eq.s32.totalorder %s15, 0
    %p36 = por %p34, %p35
    %p37 = scmp.ne.s32.totalorder %s23, %s24
    %p38 = scmp.eq.s32.totalorder %s16, 1
    %p39 = por %p37, %p38
    %p41 = scmp.ne.s32.totalorder %s24, %s40
    %p42 = scmp.eq.s32.totalorder %s16, 0
    %p43 = por %p41, %p42
    %s45 = sadd.s32 %s44, 1
    %p48 = scmp.eq.s32.totalorder %s10, 1
    %p49 = scmp.ne.s32.totalorder %s44, %s46
    %p50 = scmp.eq.s32.totalorder %s10, 0
    %p51 = por %p49, %p50
    %p52 = scmp.ne.s32.totalorder %s44, %s46
    %p53 = scmp.eq.s32.totalorder %s15, 1
    %p54 = por %p52, %p53
    %p55 = scmp.ne.s32.totalorder %s46, %s47
    %p56 = scmp.eq.s32.totalorder %s15, 0
    %p57 = por %p55, %p56
    %p58 = scmp.ne.s32.totalorder %s46, %s47
    %p59 = scmp.eq.s32.totalorder %s16, 1
    %p60 = por %p58, %p59
    %p62 = scmp.ne.s32.totalorder %s47, %s61
    %p63 = scmp.eq.s32.totalorder %s16, 0
    %p64 = por %p62, %p63
    %s66 = sadd.s32 %s65, 1
    %p69 = scmp.eq.s32.totalorder %s10, 1
    %p70 = scmp.ne.s32.totalorder %s65, %s67
    %p71 = scmp.eq.s32.totalorder %s10, 0
    %p72 = por %p70, %p71
    %p73 = scmp.ne.s32.totalorder %s65, %s67
    %p74 = scmp.eq.s32.totalorder %s15, 1
    %p75 = por %p73, %p74
    %p76 = scmp.ne.s32.totalorder %s67, %s68
    %p77 = scmp.eq.s32.totalorder %s15, 0
    %p78 = por %p76, %p77
    %p79 = scmp.ne.s32.totalorder %s67, %s68
    %p80 = scmp.eq.s32.totalorder %s16, 1
    %p81 = por %p79, %p80
    %p83 = scmp.ne.s32.totalorder %s68, %s82
    %p84 = scmp.eq.s32.totalorder %s16, 0
    %p85 = por %p83, %p84
    %s87 = sadd.s32 %s86, 1
    %p90 = scmp.eq.s32.totalorder %s10, 1
    %p91 = scmp.ne.s32.totalorder %s86, %s88
    %p92 = scmp.eq.s32.totalorder %s10, 0
    %p93 = por %p91, %p92
    %p94 = scmp.ne.s32.totalorder %s86, %s88
    %p95 = scmp.eq.s32.totalorder %s15, 1
    %p96 = por %p94, %p95
    %p97 = scmp.ne.s32.totalorder %s88, %s89
    %p98 = scmp.eq.s32.totalorder %s15, 0
    %p99 = por %p97, %p98
    %p100 = scmp.ne.s32.totalorder %s88, %s89
    %p101 = scmp.eq.s32.totalorder %s16, 1
    %p102 = por %p100, %p101
    %p104 = scmp.ne.s32.totalorder %s89, %s103
    %p105 = scmp.eq.s32.totalorder %s16, 0
    %p106 = por %p104, %p105
    %s107 = ssub.s32 %s10, %s17
    %p108 = scmp.eq.s32.totalorder %s107, 0
    %s110 = sadd.s32 %s109, 1
    %s111 = scalar_select %p108, %s109, %s110
    %p114 = pneg %p108
    %p115 = scmp.eq.s32.totalorder %s10, 1
    %p116 = por %p114, %p115
    %p117 = scmp.ne.s32.totalorder %s109, %s112
    %p118 = scmp.eq.s32.totalorder %s10, 0
    %p119 = por %p117, %p118
    %p120 = scmp.ne.s32.totalorder %s109, %s112
    %p121 = scmp.eq.s32.totalorder %s15, 1
    %p122 = por %p120, %p121
    %p123 = scmp.ne.s32.totalorder %s112, %s113
    %p124 = scmp.eq.s32.totalorder %s15, 0
    %p125 = por %p123, %p124
    %p126 = scmp.ne.s32.totalorder %s112, %s113
    %p127 = scmp.eq.s32.totalorder %s16, 1
    %p128 = por %p126, %p127
    %p130 = scmp.ne.s32.totalorder %s113, %s129
    %p131 = scmp.eq.s32.totalorder %s16, 0
    %p132 = por %p130, %p131
    %p133 = scmp.le.s32.totalorder 1, %s10
    %p134 = scmp.lt.s32.totalorder %s10, 3
    %p135 = pnand %p133, %p134
    %p136 = pneg %p135
    // Predicated region
    $region9: #{localization_network.5} parent=5 // pred_check
      _
    $region10: #{localization_network.5} parent=5 // pred_check_branch
      %138 = sbr.rel (%p135) target = $region12
    $region11: #{localization_network.5} parent=5 // pred_region
      %s139 = ssub.s32 %s10, 1
      // Predicated region
      $region13: #{localization_network.5} parent=11 // pred_check
        %p140 = pneg %p57
      $region14: #{localization_network.5} parent=11 // pred_check_branch
        %142 = sbr.rel (%p140) target = $region16
      $region15: #{localization_network.5} parent=11 // pred_region
        _
      $region16: #{localization_network.5} parent=11 // pred_fallthru
        _
      // Predicated region
      $region17: #{localization_network.5} parent=11 // pred_check
        %p143 = pneg %p78
      $region18: #{localization_network.5} parent=11 // pred_check_branch
        %145 = sbr.rel (%p143) target = $region20
      $region19: #{localization_network.5} parent=11 // pred_region
        _
      $region20: #{localization_network.5} parent=11 // pred_fallthru
        _
      // Predicated region
      $region21: #{localization_network.5} parent=11 // pred_check
        %p146 = pneg %p99
      $region22: #{localization_network.5} parent=11 // pred_check_branch
        %148 = sbr.rel (%p146) target = $region24
      $region23: #{localization_network.5} parent=11 // pred_region
        _
      $region24: #{localization_network.5} parent=11 // pred_fallthru
        _
    $region12: #{localization_network.5} parent=5 // pred_fallthru
      _
    %p149 = scmp.lt.s32.totalorder %s10, 2
    // Predicated region
    $region25: #{localization_network.5} parent=5 // pred_check
      %p150 = pneg %p149
    $region26: #{localization_network.5} parent=5 // pred_check_branch
      %152 = sbr.rel (%p150) target = $region28
    $region27: #{localization_network.5} parent=5 // pred_region
      // Predicated region
      $region29: #{localization_network.5} parent=27 // pred_check
        %p153 = pneg %p30
      $region30: #{localization_network.5} parent=27 // pred_check_branch
        %155 = sbr.rel (%p153) target = $region32
      $region31: #{localization_network.5} parent=27 // pred_region
        %p156 = scmp.lt.s32.totalorder %s10, 1
        %s157 = scalar_select %p156, %s10, 1
        %s158 = smul.addr %s157, 14
        %s159 = smul.addr %s158, 4
        %s160 = scalar_lea.vmem %s0, %s159
      $region32: #{localization_network.5} parent=27 // pred_fallthru
        _
    $region28: #{localization_network.5} parent=5 // pred_fallthru
      _
    %p161 = scmp.le.s32.totalorder 1, %s10
    %p162 = scmp.lt.s32.totalorder %s10, 3
    %p163 = pnand %p161, %p162
    %p164 = pneg %p163
    // Predicated region
    $region33: #{localization_network.5} parent=5 // pred_check
      _
    $region34: #{localization_network.5} parent=5 // pred_check_branch
      %166 = sbr.rel (%p163) target = $region36
    $region35: #{localization_network.5} parent=5 // pred_region
      %s167 = ssub.s32 %s10, 1
      %p168 = scmp.lt.s32.totalorder %s15, 1
      %s169 = scalar_select %p168, %s15, 1
      %s170 = smul.addr %s169, 14
      %s171 = smul.addr %s170, 4
      %s172 = scalar_lea.vmem %s0, %s171
      %p173 = pneg %p36
      %p174 = pneg %p33
      %p175 = pneg %p57
      %p176 = pneg %p54
      %p177 = pneg %p78
      %p178 = pneg %p75
      %p179 = pneg %p99
      %p180 = pneg %p96
      %p181 = pneg %p125
      %p182 = pneg %p122
      %p183 = scmp.lt.s32.totalorder %s15, 1
      %s184 = scalar_select %p183, %s15, 1
      %s185 = smul.addr %s184, 4
      %s186 = smul.addr %s185, 2
      %s187 = scalar_lea.vmem %s4, %s186
      %p188 = scmp.lt.s32.totalorder %s15, 1
      %s189 = scalar_select %p188, %s15, 1
      %s190 = smul.addr %s189, 14
      %s191 = smul.addr %s190, 4
      %s192 = scalar_lea.vmem %s0, %s191
      %p193 = scmp.lt.s32.totalorder %s15, 1
      %s194 = scalar_select %p193, %s15, 1
      %s195 = smul.addr %s194, 4
      %s196 = smul.addr %s195, 2
      %s197 = scalar_lea.vmem %s4, %s196
      %v199 = vld [vmem:[%s192] sm:$0xf]
      %v200 = vld [vmem:[%s192 + $0x4] sm:$0xf]
      %v201 = vld [vmem:[%s192 + $0x8] sm:$0xf]
      %v202 = vld [vmem:[%s192 + $0xc] sm:$0xf]
      %v203 = vld [vmem:[%s192 + $0x10] sm:$0xf]
      %v204 = vld [vmem:[%s192 + $0x14] sm:$0xf]
      %v205 = vld [vmem:[%s192 + $0x18] sm:$0xf]
      %v206 = vld [vmem:[%s192 + $0x1c] sm:$0xf]
      %v207 = vld [vmem:[%s192 + $0x20] sm:$0xf]
      %v208 = vld [vmem:[%s192 + $0x24] sm:$0xf]
      %v209 = vld [vmem:[%s192 + $0x28] sm:$0x1]
      %v210 = vld [vmem:[%s192] sm:$0xe]
      %v211 = vld [vmem:[%s192 + $0x4] sm:$0xe]
      %v212 = vld [vmem:[%s192 + $0x28] sm:$0xf]
      %v213 = vld [vmem:[%s192 + $0x2c] sm:$0x1]
      %v214 = vld [vmem:[%s192 + $0x2c] sm:$0x3]
      %v215 = vld [vmem:[%s192 + $0x4] sm:$0xc]
      %v216 = vld [vmem:[%s192 + $0x8] sm:$0xc]
      %v217 = vld [vmem:[%s192 + $0x2c] sm:$0xf]
      %v218 = vld [vmem:[%s192 + $0x30] sm:$0x3]
      %v219 = vld [vmem:[%s192 + $0x30] sm:$0x7]
      %v220 = vld [vmem:[%s192 + $0x8] sm:$0x8]
      %v231 = vunpack.c.l.b16 %v199
      %v232 = vunpack.c.l.b16 %v200
      %v233 = vunpack.c.l.b16 %v201
      %v234 = vunpack.c.l.b16 %v202
      %v235 = vunpack.c.l.b16 %v203
      %v236 = vunpack.c.l.b16 %v204
      %v237 = vunpack.c.l.b16 %v205
      %v238 = vunpack.c.l.b16 %v206
      %v239 = vunpack.c.l.b16 %v207
      %v240 = vunpack.c.l.b16 %v208
      %v241 = vpack.c.b16 %v232, %v231
      %v242 = vpack.c.b16 %v234, %v233
      %v243 = vpack.c.b16 %v236, %v235
      %v244 = vpack.c.b16 %v238, %v237
      %v245 = vpack.c.b16 %v240, %v239
      %v252 = vunpack.c.l.b16 %v209
      %v253 = vpack.c.b16 %v252, %v252
      %vm254 = vsmask.f32 7424
      %v256 = vshrl.u32 %v241, 16
      %v258 = vshll.u32 %v241, 16
      %v260 = vrot.slane %v258, 1
      %v261 = vor.u32 %v256, %v260
      %v263 = vshll.u32 %v242, 16
      %v265 = vrot.slane %v263, 1
      %v266 = vsel %vm254, %v261, %v265
      %v267 = vshrl.u32 %v242, 16
      %v269 = vor.u32 %v267, %v265
      %v271 = vshll.u32 %v243, 16
      %v273 = vrot.slane %v271, 1
      %v274 = vsel %vm254, %v269, %v273
      %v275 = vshrl.u32 %v243, 16
      %v277 = vor.u32 %v275, %v273
      %v279 = vshll.u32 %v244, 16
      %v281 = vrot.slane %v279, 1
      %v282 = vsel %vm254, %v277, %v281
      %v283 = vshrl.u32 %v244, 16
      %v285 = vor.u32 %v283, %v281
      %v287 = vshll.u32 %v245, 16
      %v289 = vrot.slane %v287, 1
      %v290 = vsel %vm254, %v285, %v289
      %v291 = vshrl.u32 %v245, 16
      %v293 = vor.u32 %v291, %v289
      %v295 = vshll.u32 %v253, 16
      %v297 = vrot.slane %v295, 1
      %v298 = vsel %vm254, %v293, %v297
      %v305 = vunpack.c.l.b16 %v210
      %v306 = vpack.c.b16 %v232, %v305
      %vm307 = vcmask 1046528
      %v308 = vrot.slane %v306, 1
      %v309 = vrot.slane %v242, 1
      %v310 = vsel %vm307, %v308, %v309
      %v311 = vrot.slane %v243, 1
      %v312 = vsel %vm307, %v309, %v311
      %v313 = vrot.slane %v244, 1
      %v314 = vsel %vm307, %v311, %v313
      %v315 = vrot.slane %v245, 1
      %v316 = vsel %vm307, %v313, %v315
      %v317 = vrot.slane %v253, 1
      %v318 = vsel %vm307, %v315, %v317
      %v327 = vunpack.c.l.b16 %v211
      %v328 = vunpack.c.l.b16 %v212
      %v329 = vunpack.c.l.b16 %v213
      %v330 = vpack.c.b16 %v233, %v327
      %v331 = vpack.c.b16 %v235, %v234
      %v332 = vpack.c.b16 %v237, %v236
      %v333 = vpack.c.b16 %v239, %v238
      %v334 = vpack.c.b16 %v328, %v240
      %v335 = vpack.c.b16 %v329, %v329
      %v336 = vrot.slane %v330, 1
      %v337 = vrot.slane %v331, 1
      %v338 = vsel %vm307, %v336, %v337
      %v339 = vrot.slane %v332, 1
      %v340 = vsel %vm307, %v337, %v339
      %v341 = vrot.slane %v333, 1
      %v342 = vsel %vm307, %v339, %v341
      %v343 = vrot.slane %v334, 1
      %v344 = vsel %vm307, %v341, %v343
      %v345 = vrot.slane %v335, 1
      %v346 = vsel %vm307, %v343, %v345
      %v353 = vunpack.c.l.b16 %v214
      %v354 = vpack.c.b16 %v353, %v353
      %vm355 = vsmask.f32 6400
      %v357 = vshrl.u32 %v330, 16
      %v359 = vrot.slane %v357, 1
      %v360 = vshll.u32 %v330, 16
      %v362 = vrot.slane %v360, 2
      %v363 = vor.u32 %v359, %v362
      %v365 = vshrl.u32 %v331, 16
      %v367 = vrot.slane %v365, 1
      %v368 = vshll.u32 %v331, 16
      %v370 = vrot.slane %v368, 2
      %v371 = vor.u32 %v367, %v370
      %v372 = vsel %vm355, %v363, %v371
      %v374 = vshrl.u32 %v332, 16
      %v376 = vrot.slane %v374, 1
      %v377 = vshll.u32 %v332, 16
      %v379 = vrot.slane %v377, 2
      %v380 = vor.u32 %v376, %v379
      %v381 = vsel %vm355, %v371, %v380
      %v383 = vshrl.u32 %v333, 16
      %v385 = vrot.slane %v383, 1
      %v386 = vshll.u32 %v333, 16
      %v388 = vrot.slane %v386, 2
      %v389 = vor.u32 %v385, %v388
      %v390 = vsel %vm355, %v380, %v389
      %v392 = vshrl.u32 %v334, 16
      %v394 = vrot.slane %v392, 1
      %v395 = vshll.u32 %v334, 16
      %v397 = vrot.slane %v395, 2
      %v398 = vor.u32 %v394, %v397
      %v399 = vsel %vm355, %v389, %v398
      %v401 = vshrl.u32 %v354, 16
      %v403 = vrot.slane %v401, 1
      %v404 = vshll.u32 %v354, 16
      %v406 = vrot.slane %v404, 2
      %v407 = vor.u32 %v403, %v406
      %v408 = vsel %vm355, %v398, %v407
      %v415 = vunpack.c.l.b16 %v215
      %v416 = vpack.c.b16 %v233, %v415
      %vm417 = vcmask 1045504
      %v418 = vrot.slane %v416, 2
      %v419 = vrot.slane %v331, 2
      %v420 = vsel %vm417, %v418, %v419
      %v421 = vrot.slane %v332, 2
      %v422 = vsel %vm417, %v419, %v421
      %v423 = vrot.slane %v333, 2
      %v424 = vsel %vm417, %v421, %v423
      %v425 = vrot.slane %v334, 2
      %v426 = vsel %vm417, %v423, %v425
      %v427 = vrot.slane %v354, 2
      %v428 = vsel %vm417, %v425, %v427
      %v437 = vunpack.c.l.b16 %v216
      %v438 = vunpack.c.l.b16 %v217
      %v439 = vunpack.c.l.b16 %v218
      %v440 = vpack.c.b16 %v234, %v437
      %v441 = vpack.c.b16 %v438, %v328
      %v442 = vpack.c.b16 %v439, %v439
      %v443 = vrot.slane %v440, 2
      %v444 = vrot.slane %v243, 2
      %v445 = vsel %vm417, %v443, %v444
      %v446 = vrot.slane %v244, 2
      %v447 = vsel %vm417, %v444, %v446
      %v448 = vrot.slane %v245, 2
      %v449 = vsel %vm417, %v446, %v448
      %v450 = vrot.slane %v441, 2
      %v451 = vsel %vm417, %v448, %v450
      %v452 = vrot.slane %v442, 2
      %v453 = vsel %vm417, %v450, %v452
      %v460 = vunpack.c.l.b16 %v219
      %v461 = vpack.c.b16 %v460, %v460
      %vm462 = vsmask.f32 5376
      %v464 = vshrl.u32 %v440, 16
      %v466 = vrot.slane %v464, 2
      %v467 = vshll.u32 %v440, 16
      %v469 = vrot.slane %v467, 3
      %v470 = vor.u32 %v466, %v469
      %v471 = vrot.slane %v275, 2
      %v472 = vrot.slane %v271, 3
      %v473 = vor.u32 %v471, %v472
      %v474 = vsel %vm462, %v470, %v473
      %v475 = vrot.slane %v283, 2
      %v476 = vrot.slane %v279, 3
      %v477 = vor.u32 %v475, %v476
      %v478 = vsel %vm462, %v473, %v477
      %v479 = vrot.slane %v291, 2
      %v480 = vrot.slane %v287, 3
      %v481 = vor.u32 %v479, %v480
      %v482 = vsel %vm462, %v477, %v481
      %v484 = vshrl.u32 %v441, 16
      %v486 = vrot.slane %v484, 2
      %v487 = vshll.u32 %v441, 16
      %v489 = vrot.slane %v487, 3
      %v490 = vor.u32 %v486, %v489
      %v491 = vsel %vm462, %v481, %v490
      %v493 = vshrl.u32 %v461, 16
      %v495 = vrot.slane %v493, 2
      %v496 = vshll.u32 %v461, 16
      %v498 = vrot.slane %v496, 3
      %v499 = vor.u32 %v495, %v498
      %v500 = vsel %vm462, %v490, %v499
      %v507 = vunpack.c.l.b16 %v220
      %v508 = vpack.c.b16 %v234, %v507
      %vm509 = vcmask 1044480
      %v510 = vrot.slane %v508, 3
      %v511 = vrot.slane %v243, 3
      %v512 = vsel %vm509, %v510, %v511
      %v513 = vrot.slane %v244, 3
      %v514 = vsel %vm509, %v511, %v513
      %v515 = vrot.slane %v245, 3
      %v516 = vsel %vm509, %v513, %v515
      %v517 = vrot.slane %v441, 3
      %v518 = vsel %vm509, %v515, %v517
      %v519 = vrot.slane %v461, 3
      %v520 = vsel %vm509, %v517, %v519
      %v526 = vld [vmem:[%s1] sm:$0xf]
      %v527 = vld [vmem:[%s1 + $0x4] sm:$0xf]
      %v528 = vld [vmem:[%s1 + $0x8] sm:$0xf]
      %v529 = vld [vmem:[%s1 + $0xc] sm:$0xf]
      %v530 = vld [vmem:[%s1 + $0x10] sm:$0xf]
      %v531 = vld [vmem:[%s1 + $0x14] sm:$0xf]
      %v532 = vld [vmem:[%s1 + $0x18] sm:$0xf]
      %v533 = vld [vmem:[%s1 + $0x1c] sm:$0xf]
      %v534 = vld [vmem:[%s1 + $0x20] sm:$0xf]
      %v535 = vld [vmem:[%s1 + $0x24] sm:$0xf]
      %v536 = vld [vmem:[%s1 + $0x28] sm:$0xf]
      %v537 = vld [vmem:[%s1 + $0x2c] sm:$0xf]
      %v538 = vld [vmem:[%s1 + $0x30] sm:$0xf]
      %v539 = vld [vmem:[%s1 + $0x34] sm:$0xf]
      %v540 = vld [vmem:[%s1 + $0x38] sm:$0xf]
      %v541 = vld [vmem:[%s1 + $0x3c] sm:$0xf]
      %v542 = vld [vmem:[%s1 + $0x40] sm:$0xf]
      %v543 = vld [vmem:[%s1 + $0x44] sm:$0xf]
      %v544 = vld [vmem:[%s1 + $0x48] sm:$0xf]
      %v545 = vld [vmem:[%s1 + $0x4c] sm:$0xf]
      %v546 = vld [vmem:[%s1 + $0x50] sm:$0xf]
      %v547 = vld [vmem:[%s1 + $0x54] sm:$0xf]
      %v548 = vld [vmem:[%s1 + $0x58] sm:$0xf]
      %v549 = vld [vmem:[%s1 + $0x5c] sm:$0xf]
      %v550 = vld [vmem:[%s1 + $0x60] sm:$0xf]
      %v551 = vld [vmem:[%s1 + $0x64] sm:$0xf]
      %v552 = vld [vmem:[%s1 + $0x68] sm:$0xf]
      %v553 = vld [vmem:[%s1 + $0x6c] sm:$0xf]
      %v554 = vld [vmem:[%s1 + $0x70] sm:$0xf]
      %v555 = vld [vmem:[%s1 + $0x74] sm:$0xf]
      %v556 = vld [vmem:[%s1 + $0x78] sm:$0xf]
      %v557 = vld [vmem:[%s1 + $0x7c] sm:$0xf]
      %v558 = vld [vmem:[%s1 + $0x80] sm:$0xf]
      %v559 = vld [vmem:[%s1 + $0x84] sm:$0xf]
      %v560 = vld [vmem:[%s1 + $0x88] sm:$0xf]
      %v561 = vld [vmem:[%s1 + $0x8c] sm:$0xf]
      %v562 = vld [vmem:[%s1 + $0x90] sm:$0xf]
      %v563 = vld [vmem:[%s1 + $0x94] sm:$0xf]
      %v564 = vld [vmem:[%s1 + $0x98] sm:$0xf]
      %v565 = vld [vmem:[%s1 + $0x9c] sm:$0xf]
      %v566 = vld [vmem:[%s1 + $0xa0] sm:$0xf]
      %v567 = vld [vmem:[%s1 + $0xa4] sm:$0xf]
      %v568 = vld [vmem:[%s1 + $0xa8] sm:$0xf]
      %v569 = vld [vmem:[%s1 + $0xac] sm:$0xf]
      %v570 = vld [vmem:[%s1 + $0xb0] sm:$0xf]
      %v571 = vld [vmem:[%s1 + $0xb4] sm:$0xf]
      %v572 = vld [vmem:[%s1 + $0xb8] sm:$0xf]
      %v573 = vld [vmem:[%s1 + $0xbc] sm:$0xf]
      %v574 = vld [vmem:[%s1 + $0xc0] sm:$0xf]
      %v575 = vld [vmem:[%s1 + $0xc4] sm:$0xf]
      %v576 = vld [vmem:[%s1 + $0xc8] sm:$0xf]
      %v577 = vld [vmem:[%s1 + $0xcc] sm:$0xf]
      %v578 = vld [vmem:[%s1 + $0xd0] sm:$0xf]
      %v579 = vld [vmem:[%s1 + $0xd4] sm:$0xf]
      %v580 = vld [vmem:[%s1 + $0xd8] sm:$0xf]
      %v581 = vld [vmem:[%s1 + $0xdc] sm:$0xf]
      %v582 = vld [vmem:[%s1 + $0xe0] sm:$0xf]
      %v583 = vld [vmem:[%s1 + $0xe4] sm:$0xf]
      %v584 = vld [vmem:[%s1 + $0xe8] sm:$0xf]
      %v585 = vld [vmem:[%s1 + $0xec] sm:$0xf]
      %v586 = vld [vmem:[%s1 + $0xf0] sm:$0xf]
      %v587 = vld [vmem:[%s1 + $0xf4] sm:$0xf]
      %v588 = vld [vmem:[%s1 + $0xf8] sm:$0xf]
      %v589 = vld [vmem:[%s1 + $0xfc] sm:$0xf]
      %v590 = vld [vmem:[%s1 + $0x100] sm:$0xf]
      %v591 = vld [vmem:[%s1 + $0x104] sm:$0xf]
      %v592 = vld [vmem:[%s1 + $0x108] sm:$0xf]
      %v593 = vld [vmem:[%s1 + $0x10c] sm:$0xf]
      %v594 = vld [vmem:[%s1 + $0x110] sm:$0xf]
      %v595 = vld [vmem:[%s1 + $0x114] sm:$0xf]
      %v596 = vld [vmem:[%s1 + $0x118] sm:$0xf]
      %v597 = vld [vmem:[%s1 + $0x11c] sm:$0xf]
      %v598 = vld [vmem:[%s1 + $0x120] sm:$0xf]
      %v599 = vld [vmem:[%s1 + $0x124] sm:$0xf]
      %v600 = vld [vmem:[%s1 + $0x128] sm:$0xf]
      %v601 = vld [vmem:[%s1 + $0x12c] sm:$0xf]
      %v602 = vld [vmem:[%s1 + $0x130] sm:$0xf]
      %v603 = vld [vmem:[%s1 + $0x134] sm:$0xf]
      %v604 = vld [vmem:[%s1 + $0x138] sm:$0xf]
      %v605 = vld [vmem:[%s1 + $0x13c] sm:$0xf]
      %v606 = vld [vmem:[%s1 + $0x140] sm:$0xf]
      %v607 = vld [vmem:[%s1 + $0x144] sm:$0xf]
      %v608 = vld [vmem:[%s1 + $0x148] sm:$0xf]
      %v609 = vld [vmem:[%s1 + $0x14c] sm:$0xf]
      %v610 = vld [vmem:[%s1 + $0x150] sm:$0xf]
      %v611 = vld [vmem:[%s1 + $0x154] sm:$0xf]
      %v612 = vld [vmem:[%s1 + $0x158] sm:$0xf]
      %v613 = vld [vmem:[%s1 + $0x15c] sm:$0xf]
      %v614 = vld [vmem:[%s1 + $0x160] sm:$0xf]
      %v615 = vld [vmem:[%s1 + $0x164] sm:$0xf]
      %v616 = vld [vmem:[%s1 + $0x168] sm:$0xf]
      %v617 = vld [vmem:[%s1 + $0x16c] sm:$0xf]
      %v618 = vld [vmem:[%s1 + $0x170] sm:$0xf]
      %v619 = vld [vmem:[%s1 + $0x174] sm:$0xf]
      %v620 = vld [vmem:[%s1 + $0x178] sm:$0xf]
      %v621 = vld [vmem:[%s1 + $0x17c] sm:$0xf]
      %v622 = vld [vmem:[%s1 + $0x180] sm:$0xf]
      %v623 = vld [vmem:[%s1 + $0x184] sm:$0xf]
      %v624 = vld [vmem:[%s1 + $0x188] sm:$0xf]
      %v625 = vld [vmem:[%s1 + $0x18c] sm:$0xf]
      %v626 = vld [vmem:[%s1 + $0x190] sm:$0xf]
      %v627 = vld [vmem:[%s1 + $0x194] sm:$0xf]
      %v628 = vld [vmem:[%s1 + $0x198] sm:$0xf]
      %v629 = vld [vmem:[%s1 + $0x19c] sm:$0xf]
      %v630 = vld [vmem:[%s1 + $0x1a0] sm:$0xf]
      %v631 = vld [vmem:[%s1 + $0x1a4] sm:$0xf]
      %v632 = vld [vmem:[%s1 + $0x1a8] sm:$0xf]
      %v633 = vld [vmem:[%s1 + $0x1ac] sm:$0xf]
      %v634 = vld [vmem:[%s1 + $0x1b0] sm:$0xf]
      %v635 = vld [vmem:[%s1 + $0x1b4] sm:$0xf]
      %v636 = vld [vmem:[%s1 + $0x1b8] sm:$0xf]
      %v637 = vld [vmem:[%s1 + $0x1bc] sm:$0xf]
      %v638 = vld [vmem:[%s1 + $0x1c0] sm:$0xf]
      %v639 = vld [vmem:[%s1 + $0x1c4] sm:$0xf]
      %v640 = vld [vmem:[%s1 + $0x1c8] sm:$0xf]
      %v641 = vld [vmem:[%s1 + $0x1cc] sm:$0xf]
      %v642 = vld [vmem:[%s1 + $0x1d0] sm:$0xf]
      %v643 = vld [vmem:[%s1 + $0x1d4] sm:$0xf]
      %v644 = vld [vmem:[%s1 + $0x1d8] sm:$0xf]
      %v645 = vld [vmem:[%s1 + $0x1dc] sm:$0xf]
      %v646 = vld [vmem:[%s1 + $0x1e0] sm:$0xf]
      %v647 = vld [vmem:[%s1 + $0x1e4] sm:$0xf]
      %v648 = vld [vmem:[%s1 + $0x1e8] sm:$0xf]
      %v649 = vld [vmem:[%s1 + $0x1ec] sm:$0xf]
      %v650 = vld [vmem:[%s1 + $0x1f0] sm:$0xf]
      %v651 = vld [vmem:[%s1 + $0x1f4] sm:$0xf]
      %v652 = vld [vmem:[%s1 + $0x1f8] sm:$0xf]
      %v653 = vld [vmem:[%s1 + $0x1fc] sm:$0xf]
      %v654 = vld [vmem:[%s1 + $0x200] sm:$0xf]
      %v655 = vld [vmem:[%s1 + $0x204] sm:$0xf]
      %v656 = vld [vmem:[%s1 + $0x208] sm:$0xf]
      %v657 = vld [vmem:[%s1 + $0x20c] sm:$0xf]
      %v658 = vld [vmem:[%s1 + $0x210] sm:$0xf]
      %v659 = vld [vmem:[%s1 + $0x214] sm:$0xf]
      %v660 = vld [vmem:[%s1 + $0x218] sm:$0xf]
      %v661 = vld [vmem:[%s1 + $0x21c] sm:$0xf]
      %v662 = vld [vmem:[%s1 + $0x220] sm:$0xf]
      %v663 = vld [vmem:[%s1 + $0x224] sm:$0xf]
      %v664 = vld [vmem:[%s1 + $0x228] sm:$0xf]
      %v665 = vld [vmem:[%s1 + $0x22c] sm:$0xf]
      %v666 = vld [vmem:[%s1 + $0x230] sm:$0xf]
      %v667 = vld [vmem:[%s1 + $0x234] sm:$0xf]
      %v668 = vld [vmem:[%s1 + $0x238] sm:$0xf]
      %v669 = vld [vmem:[%s1 + $0x23c] sm:$0xf]
      %v814 = vunpack.c.l.b16 %v526
      %v815 = vunpack.c.l.b16 %v527
      %v816 = vunpack.c.l.b16 %v528
      %v817 = vunpack.c.l.b16 %v529
      %v818 = vunpack.c.l.b16 %v530
      %v819 = vunpack.c.l.b16 %v531
      %v820 = vunpack.c.l.b16 %v532
      %v821 = vunpack.c.l.b16 %v533
      %v822 = vunpack.c.l.b16 %v534
      %v823 = vunpack.c.l.b16 %v535
      %v824 = vunpack.c.l.b16 %v536
      %v825 = vunpack.c.l.b16 %v537
      %v826 = vunpack.c.l.b16 %v538
      %v827 = vunpack.c.l.b16 %v539
      %v828 = vunpack.c.l.b16 %v540
      %v829 = vunpack.c.l.b16 %v541
      %v830 = vunpack.c.l.b16 %v542
      %v831 = vunpack.c.l.b16 %v543
      %v832 = vunpack.c.l.b16 %v544
      %v833 = vunpack.c.l.b16 %v545
      %v834 = vunpack.c.l.b16 %v546
      %v835 = vunpack.c.l.b16 %v547
      %v836 = vunpack.c.l.b16 %v548
      %v837 = vunpack.c.l.b16 %v549
      %v838 = vunpack.c.l.b16 %v550
      %v839 = vunpack.c.l.b16 %v551
      %v840 = vunpack.c.l.b16 %v552
      %v841 = vunpack.c.l.b16 %v553
      %v842 = vunpack.c.l.b16 %v554
      %v843 = vunpack.c.l.b16 %v555
      %v844 = vunpack.c.l.b16 %v556
      %v845 = vunpack.c.l.b16 %v557
      %v846 = vunpack.c.l.b16 %v558
      %v847 = vunpack.c.l.b16 %v559
      %v848 = vunpack.c.l.b16 %v560
      %v849 = vunpack.c.l.b16 %v561
      %v850 = vunpack.c.l.b16 %v562
      %v851 = vunpack.c.l.b16 %v563
      %v852 = vunpack.c.l.b16 %v564
      %v853 = vunpack.c.l.b16 %v565
      %v854 = vunpack.c.l.b16 %v566
      %v855 = vunpack.c.l.b16 %v567
      %v856 = vunpack.c.l.b16 %v568
      %v857 = vunpack.c.l.b16 %v569
      %v858 = vunpack.c.l.b16 %v570
      %v859 = vunpack.c.l.b16 %v571
      %v860 = vunpack.c.l.b16 %v572
      %v861 = vunpack.c.l.b16 %v573
      %v862 = vunpack.c.l.b16 %v574
      %v863 = vunpack.c.l.b16 %v575
      %v864 = vunpack.c.l.b16 %v576
      %v865 = vunpack.c.l.b16 %v577
      %v866 = vunpack.c.l.b16 %v578
      %v867 = vunpack.c.l.b16 %v579
      %v868 = vunpack.c.l.b16 %v580
      %v869 = vunpack.c.l.b16 %v581
      %v870 = vunpack.c.l.b16 %v582
      %v871 = vunpack.c.l.b16 %v583
      %v872 = vunpack.c.l.b16 %v584
      %v873 = vunpack.c.l.b16 %v585
      %v874 = vunpack.c.l.b16 %v586
      %v875 = vunpack.c.l.b16 %v587
      %v876 = vunpack.c.l.b16 %v588
      %v877 = vunpack.c.l.b16 %v589
      %v878 = vunpack.c.l.b16 %v590
      %v879 = vunpack.c.l.b16 %v591
      %v880 = vunpack.c.l.b16 %v592
      %v881 = vunpack.c.l.b16 %v593
      %v882 = vunpack.c.l.b16 %v594
      %v883 = vunpack.c.l.b16 %v595
      %v884 = vunpack.c.l.b16 %v596
      %v885 = vunpack.c.l.b16 %v597
      %v886 = vunpack.c.l.b16 %v598
      %v887 = vunpack.c.l.b16 %v599
      %v888 = vunpack.c.l.b16 %v600
      %v889 = vunpack.c.l.b16 %v601
      %v890 = vunpack.c.l.b16 %v602
      %v891 = vunpack.c.l.b16 %v603
      %v892 = vunpack.c.l.b16 %v604
      %v893 = vunpack.c.l.b16 %v605
      %v894 = vunpack.c.l.b16 %v606
      %v895 = vunpack.c.l.b16 %v607
      %v896 = vunpack.c.l.b16 %v608
      %v897 = vunpack.c.l.b16 %v609
      %v898 = vunpack.c.l.b16 %v610
      %v899 = vunpack.c.l.b16 %v611
      %v900 = vunpack.c.l.b16 %v612
      %v901 = vunpack.c.l.b16 %v613
      %v902 = vunpack.c.l.b16 %v614
      %v903 = vunpack.c.l.b16 %v615
      %v904 = vunpack.c.l.b16 %v616
      %v905 = vunpack.c.l.b16 %v617
      %v906 = vunpack.c.l.b16 %v618
      %v907 = vunpack.c.l.b16 %v619
      %v908 = vunpack.c.l.b16 %v620
      %v909 = vunpack.c.l.b16 %v621
      %v910 = vunpack.c.l.b16 %v622
      %v911 = vunpack.c.l.b16 %v623
      %v912 = vunpack.c.l.b16 %v624
      %v913 = vunpack.c.l.b16 %v625
      %v914 = vunpack.c.l.b16 %v626
      %v915 = vunpack.c.l.b16 %v627
      %v916 = vunpack.c.l.b16 %v628
      %v917 = vunpack.c.l.b16 %v629
      %v918 = vunpack.c.l.b16 %v630
      %v919 = vunpack.c.l.b16 %v631
      %v920 = vunpack.c.l.b16 %v632
      %v921 = vunpack.c.l.b16 %v633
      %v922 = vunpack.c.l.b16 %v634
      %v923 = vunpack.c.l.b16 %v635
      %v924 = vunpack.c.l.b16 %v636
      %v925 = vunpack.c.l.b16 %v637
      %v926 = vunpack.c.l.b16 %v638
      %v927 = vunpack.c.l.b16 %v639
      %v928 = vunpack.c.l.b16 %v640
      %v929 = vunpack.c.l.b16 %v641
      %v930 = vunpack.c.l.b16 %v642
      %v931 = vunpack.c.l.b16 %v643
      %v932 = vunpack.c.l.b16 %v644
      %v933 = vunpack.c.l.b16 %v645
      %v934 = vunpack.c.l.b16 %v646
      %v935 = vunpack.c.l.b16 %v647
      %v936 = vunpack.c.l.b16 %v648
      %v937 = vunpack.c.l.b16 %v649
      %v938 = vunpack.c.l.b16 %v650
      %v939 = vunpack.c.l.b16 %v651
      %v940 = vunpack.c.l.b16 %v652
      %v941 = vunpack.c.l.b16 %v653
      %v942 = vunpack.c.l.b16 %v654
      %v943 = vunpack.c.l.b16 %v655
      %v944 = vunpack.c.l.b16 %v656
      %v945 = vunpack.c.l.b16 %v657
      %v946 = vunpack.c.l.b16 %v658
      %v947 = vunpack.c.l.b16 %v659
      %v948 = vunpack.c.l.b16 %v660
      %v949 = vunpack.c.l.b16 %v661
      %v950 = vunpack.c.l.b16 %v662
      %v951 = vunpack.c.l.b16 %v663
      %v952 = vunpack.c.l.b16 %v664
      %v953 = vunpack.c.l.b16 %v665
      %v954 = vunpack.c.l.b16 %v666
      %v955 = vunpack.c.l.b16 %v667
      %v956 = vunpack.c.l.b16 %v668
      %v957 = vunpack.c.l.b16 %v669
      %v958 = vpack.c.b16 %v815, %v814
      %v959 = vpack.c.b16 %v817, %v816
      %v960 = vpack.c.b16 %v819, %v818
      %v961 = vpack.c.b16 %v821, %v820
      %v962 = vpack.c.b16 %v823, %v822
      %v963 = vpack.c.b16 %v825, %v824
      %v964 = vpack.c.b16 %v827, %v826
      %v965 = vpack.c.b16 %v829, %v828
      %v966 = vpack.c.b16 %v831, %v830
      %v967 = vpack.c.b16 %v833, %v832
      %v968 = vpack.c.b16 %v835, %v834
      %v969 = vpack.c.b16 %v837, %v836
      %v970 = vpack.c.b16 %v839, %v838
      %v971 = vpack.c.b16 %v841, %v840
      %v972 = vpack.c.b16 %v843, %v842
      %v973 = vpack.c.b16 %v845, %v844
      %v974 = vpack.c.b16 %v847, %v846
      %v975 = vpack.c.b16 %v849, %v848
      %v976 = vpack.c.b16 %v851, %v850
      %v977 = vpack.c.b16 %v853, %v852
      %v978 = vpack.c.b16 %v855, %v854
      %v979 = vpack.c.b16 %v857, %v856
      %v980 = vpack.c.b16 %v859, %v858
      %v981 = vpack.c.b16 %v861, %v860
      %v982 = vpack.c.b16 %v863, %v862
      %v983 = vpack.c.b16 %v865, %v864
      %v984 = vpack.c.b16 %v867, %v866
      %v985 = vpack.c.b16 %v869, %v868
      %v986 = vpack.c.b16 %v871, %v870
      %v987 = vpack.c.b16 %v873, %v872
      %v988 = vpack.c.b16 %v875, %v874
      %v989 = vpack.c.b16 %v877, %v876
      %v990 = vpack.c.b16 %v879, %v878
      %v991 = vpack.c.b16 %v881, %v880
      %v992 = vpack.c.b16 %v883, %v882
      %v993 = vpack.c.b16 %v885, %v884
      %v994 = vpack.c.b16 %v887, %v886
      %v995 = vpack.c.b16 %v889, %v888
      %v996 = vpack.c.b16 %v891, %v890
      %v997 = vpack.c.b16 %v893, %v892
      %v998 = vpack.c.b16 %v895, %v894
      %v999 = vpack.c.b16 %v897, %v896
      %v1000 = vpack.c.b16 %v899, %v898
      %v1001 = vpack.c.b16 %v901, %v900
      %v1002 = vpack.c.b16 %v903, %v902
      %v1003 = vpack.c.b16 %v905, %v904
      %v1004 = vpack.c.b16 %v907, %v906
      %v1005 = vpack.c.b16 %v909, %v908
      %v1006 = vpack.c.b16 %v911, %v910
      %v1007 = vpack.c.b16 %v913, %v912
      %v1008 = vpack.c.b16 %v915, %v914
      %v1009 = vpack.c.b16 %v917, %v916
      %v1010 = vpack.c.b16 %v919, %v918
      %v1011 = vpack.c.b16 %v921, %v920
      %v1012 = vpack.c.b16 %v923, %v922
      %v1013 = vpack.c.b16 %v925, %v924
      %v1014 = vpack.c.b16 %v927, %v926
      %v1015 = vpack.c.b16 %v929, %v928
      %v1016 = vpack.c.b16 %v931, %v930
      %v1017 = vpack.c.b16 %v933, %v932
      %v1018 = vpack.c.b16 %v935, %v934
      %v1019 = vpack.c.b16 %v937, %v936
      %v1020 = vpack.c.b16 %v939, %v938
      %v1021 = vpack.c.b16 %v941, %v940
      %v1022 = vpack.c.b16 %v943, %v942
      %v1023 = vpack.c.b16 %v945, %v944
      %v1024 = vpack.c.b16 %v947, %v946
      %v1025 = vpack.c.b16 %v949, %v948
      %v1026 = vpack.c.b16 %v951, %v950
      %v1027 = vpack.c.b16 %v953, %v952
      %v1028 = vpack.c.b16 %v955, %v954
      %v1029 = vpack.c.b16 %v957, %v956
      %1102 = vmatprep.subr.bf16.mxu0 0
      %1103 = vmatpush1.bf16.msra.mxu0 %v958
      %1104 = vmatprep.subr.bf16.mxu0 0
      %1105 = vmatpush1.bf16.msra.mxu0 %v959
      %1106 = vmatprep.subr.bf16.mxu0 0
      %1107 = vmatpush1.bf16.msra.mxu0 %v960
      %1108 = vmatprep.subr.bf16.mxu0 0
      %1109 = vmatpush1.bf16.msra.mxu0 %v961
      %1110 = vmatprep.subr.bf16.mxu0 0
      %1111 = vmatpush1.bf16.msra.mxu0 %v962
      %1112 = vmatprep.subr.bf16.mxu0 0
      %1113 = vmatpush1.bf16.msra.mxu0 %v963
      %1114 = vmatprep.subr.bf16.mxu0 0
      %1115 = vmatpush1.bf16.msra.mxu0 %v964
      %1116 = vmatprep.subr.bf16.mxu0 0
      %1117 = vmatpush1.bf16.msra.mxu0 %v965
      %1118 = vmatprep.subr.bf16.mxu0 0
      %1119 = vmatpush1.bf16.msra.mxu0 %v966
      %1120 = vmatprep.subr.bf16.mxu0 0
      %1121 = vmatpush1.bf16.msra.mxu0 %v967
      %1122 = vmatprep.subr.bf16.mxu0 0
      %1123 = vmatpush1.bf16.msra.mxu0 %v968
      %1124 = vmatprep.subr.bf16.mxu0 0
      %1125 = vmatpush1.bf16.msra.mxu0 %v969
      %1126 = vmatprep.subr.bf16.mxu0 0
      %1127 = vmatpush1.bf16.msra.mxu0 %v970
      %1128 = vmatprep.subr.bf16.mxu0 0
      %1129 = vmatpush1.bf16.msra.mxu0 %v971
      %1130 = vmatprep.subr.bf16.mxu0 0
      %1131 = vmatpush1.bf16.msra.mxu0 %v972
      %1132 = vmatprep.subr.bf16.mxu0 0
      %1133 = vmatpush1.bf16.msra.mxu0 %v973
      %1134 = vmatprep.mubr.bf16.mxu0 %v266
      %1135 = vmatmul.mubr.bf16.gmra.mrb[0].mxu0 %v241
      %v1136 = vpop.f32.mrb[0].mxu0
      %v1137 = vadd.f32 0.0, %v1136
      %v1138 = vpop.f32.mrb[0].mxu0
      %v1139 = vpop.f32.mrb[0].mxu0
      %v1140 = vadd.f32 0.0, %v1139
      %v1141 = vpop.f32.mrb[0].mxu0
      %1142 = vmatprep.mubr.bf16.mxu0 %v274
      %1143 = vmatmul.mubr.bf16.gmra.mrb[0].mxu0 %v242
      %v1144 = vpop.f32.mrb[0].mxu0
      %v1145 = vadd.f32 0.0, %v1144
      %v1146 = vpop.f32.mrb[0].mxu0
      %v1147 = vpop.f32.mrb[0].mxu0
      %v1148 = vadd.f32 0.0, %v1147
      %v1149 = vpop.f32.mrb[0].mxu0
      %1150 = vmatprep.mubr.bf16.mxu0 %v282
      %1151 = vmatmul.mubr.bf16.gmra.mrb[0].mxu0 %v243
      %v1152 = vpop.f32.mrb[0].mxu0
      %v1153 = vadd.f32 0.0, %v1152
      %v1154 = vpop.f32.mrb[0].mxu0
      %v1155 = vpop.f32.mrb[0].mxu0
      %v1156 = vadd.f32 0.0, %v1155
      %v1157 = vpop.f32.mrb[0].mxu0
      %1158 = vmatprep.mubr.bf16.mxu0 %v290
      %1159 = vmatmul.mubr.bf16.gmra.mrb[0].mxu0 %v244
      %v1160 = vpop.f32.mrb[0].mxu0
      %v1161 = vadd.f32 0.0, %v1160
      %v1162 = vpop.f32.mrb[0].mxu0
      %v1163 = vpop.f32.mrb[0].mxu0
      %v1164 = vadd.f32 0.0, %v1163
      %v1165 = vpop.f32.mrb[0].mxu0
      %1166 = vmatprep.mubr.bf16.mxu0 %v298
      %1167 = vmatmul.mubr.bf16.gmra.mrb[0].mxu0 %v245
      %v1168 = vpop.f32.mrb[0].mxu0
      %v1169 = vadd.f32 0.0, %v1168
      %v1170 = vpop.f32.mrb[0].mxu0
      %v1171 = vpop.f32.mrb[0].mxu0
      %v1172 = vadd.f32 0.0, %v1171
      %v1173 = vpop.f32.mrb[0].mxu0
      %1174 = vdwg.mxu0
      %1175 = vmatprep.subr.bf16.mxu0 0
      %1176 = vmatpush1.bf16.msra.mxu0 %v974
      %1177 = vmatprep.subr.bf16.mxu0 0
      %1178 = vmatpush1.bf16.msra.mxu0 %v975
      %1179 = vmatprep.subr.bf16.mxu0 0
      %1180 = vmatpush1.bf16.msra.mxu0 %v976
      %1181 = vmatprep.subr.bf16.mxu0 0
      %1182 = vmatpush1.bf16.msra.mxu0 %v977
      %1183 = vmatprep.subr.bf16.mxu0 0
      %1184 = vmatpush1.bf16.msra.mxu0 %v978
      %1185 = vmatprep.subr.bf16.mxu0 0
      %1186 = vmatpush1.bf16.msra.mxu0 %v979
      %1187 = vmatprep.subr.bf16.mxu0 0
      %1188 = vmatpush1.bf16.msra.mxu0 %v980
      %1189 = vmatprep.subr.bf16.mxu0 0
      %1190 = vmatpush1.bf16.msra.mxu0 %v981
      %1191 = vmatprep.subr.bf16.mxu0 0
      %1192 = vmatpush1.bf16.msra.mxu0 %v982
      %1193 = vmatprep.subr.bf16.mxu0 0
      %1194 = vmatpush1.bf16.msra.mxu0 %v983
      %1195 = vmatprep.subr.bf16.mxu0 0
      %1196 = vmatpush1.bf16.msra.mxu0 %v984
      %1197 = vmatprep.subr.bf16.mxu0 0
      %1198 = vmatpush1.bf16.msra.mxu0 %v985
      %1199 = vmatprep.subr.bf16.mxu0 0
      %1200 = vmatpush1.bf16.msra.mxu0 %v986
      %1201 = vmatprep.subr.bf16.mxu0 0
      %1202 = vmatpush1.bf16.msra.mxu0 %v987
      %1203 = vmatprep.subr.bf16.mxu0 0
      %1204 = vmatpush1.bf16.msra.mxu0 %v988
      %1205 = vmatprep.subr.bf16.mxu0 0
      %1206 = vmatpush1.bf16.msra.mxu0 %v989
      %1207 = vmatprep.mubr.bf16.mxu0 %v338
      %1208 = vmatmul.mubr.bf16.gmra.mrb[0].mxu0 %v310
      %v1209 = vpop.f32.mrb[0].mxu0
      %v1210 = vadd.f32 %v1137, %v1209
      %v1211 = vpop.f32.mrb[0].mxu0
      %v1212 = vpop.f32.mrb[0].mxu0
      %v1213 = vadd.f32 %v1140, %v1212
      %v1214 = vpop.f32.mrb[0].mxu0
      %1215 = vmatprep.mubr.bf16.mxu0 %v340
      %1216 = vmatmul.mubr.bf16.gmra.mrb[0].mxu0 %v312
      %v1217 = vpop.f32.mrb[0].mxu0
      %v1218 = vadd.f32 %v1145, %v1217
      %v1219 = vpop.f32.mrb[0].mxu0
      %v1220 = vpop.f32.mrb[0].mxu0
      %v1221 = vadd.f32 %v1148, %v1220
      %v1222 = vpop.f32.mrb[0].mxu0
      %1223 = vmatprep.mubr.bf16.mxu0 %v342
      %1224 = vmatmul.mubr.bf16.gmra.mrb[0].mxu0 %v314
      %v1225 = vpop.f32.mrb[0].mxu0
      %v1226 = vadd.f32 %v1153, %v1225
      %v1227 = vpop.f32.mrb[0].mxu0
      %v1228 = vpop.f32.mrb[0].mxu0
      %v1229 = vadd.f32 %v1156, %v1228
      %v1230 = vpop.f32.mrb[0].mxu0
      %1231 = vmatprep.mubr.bf16.mxu0 %v344
      %1232 = vmatmul.mubr.bf16.gmra.mrb[0].mxu0 %v316
      %v1233 = vpop.f32.mrb[0].mxu0
      %v1234 = vadd.f32 %v1161, %v1233
      %v1235 = vpop.f32.mrb[0].mxu0
      %v1236 = vpop.f32.mrb[0].mxu0
      %v1237 = vadd.f32 %v1164, %v1236
      %v1238 = vpop.f32.mrb[0].mxu0
      %1239 = vmatprep.mubr.bf16.mxu0 %v346
      %1240 = vmatmul.mubr.bf16.gmra.mrb[0].mxu0 %v318
      %v1241 = vpop.f32.mrb[0].mxu0
      %v1242 = vadd.f32 %v1169, %v1241
      %v1243 = vpop.f32.mrb[0].mxu0
      %v1244 = vpop.f32.mrb[0].mxu0
      %v1245 = vadd.f32 %v1172, %v1244
      %v1246 = vpop.f32.mrb[0].mxu0
      %1247 = vdwg.mxu0
      %1248 = vmatprep.subr.bf16.mxu0 0
      %1249 = vmatpush1.bf16.msra.mxu0 %v990
      %1250 = vmatprep.subr.bf16.mxu0 0
      %1251 = vmatpush1.bf16.msra.mxu0 %v991
      %1252 = vmatprep.subr.bf16.mxu0 0
      %1253 = vmatpush1.bf16.msra.mxu0 %v992
      %1254 = vmatprep.subr.bf16.mxu0 0
      %1255 = vmatpush1.bf16.msra.mxu0 %v993
      %1256 = vmatprep.subr.bf16.mxu0 0
      %1257 = vmatpush1.bf16.msra.mxu0 %v994
      %1258 = vmatprep.subr.bf16.mxu0 0
      %1259 = vmatpush1.bf16.msra.mxu0 %v995
      %1260 = vmatprep.subr.bf16.mxu0 0
      %1261 = vmatpush1.bf16.msra.mxu0 %v996
      %1262 = vmatprep.subr.bf16.mxu0 0
      %1263 = vmatpush1.bf16.msra.mxu0 %v997
      %1264 = vmatprep.subr.bf16.mxu0 0
      %1265 = vmatpush1.bf16.msra.mxu0 %v998
      %1266 = vmatprep.subr.bf16.mxu0 0
      %1267 = vmatpush1.bf16.msra.mxu0 %v999
      %1268 = vmatprep.subr.bf16.mxu0 0
      %1269 = vmatpush1.bf16.msra.mxu0 %v1000
      %1270 = vmatprep.subr.bf16.mxu0 0
      %1271 = vmatpush1.bf16.msra.mxu0 %v1001
      %1272 = vmatprep.subr.bf16.mxu0 0
      %1273 = vmatpush1.bf16.msra.mxu0 %v1002
      %1274 = vmatprep.subr.bf16.mxu0 0
      %1275 = vmatpush1.bf16.msra.mxu0 %v1003
      %1276 = vmatprep.subr.bf16.mxu0 0
      %1277 = vmatpush1.bf16.msra.mxu0 %v1004
      %1278 = vmatprep.subr.bf16.mxu0 0
      %1279 = vmatpush1.bf16.msra.mxu0 %v1005
      %1280 = vmatprep.mubr.bf16.mxu0 %v420
      %1281 = vmatmul.mubr.bf16.gmra.mrb[0].mxu0 %v372
      %v1282 = vpop.f32.mrb[0].mxu0
      %v1283 = vadd.f32 %v1210, %v1282
      %v1284 = vpop.f32.mrb[0].mxu0
      %v1285 = vpop.f32.mrb[0].mxu0
      %v1286 = vadd.f32 %v1213, %v1285
      %v1287 = vpop.f32.mrb[0].mxu0
      %1288 = vmatprep.mubr.bf16.mxu0 %v422
      %1289 = vmatmul.mubr.bf16.gmra.mrb[0].mxu0 %v381
      %v1290 = vpop.f32.mrb[0].mxu0
      %v1291 = vadd.f32 %v1218, %v1290
      %v1292 = vpop.f32.mrb[0].mxu0
      %v1293 = vpop.f32.mrb[0].mxu0
      %v1294 = vadd.f32 %v1221, %v1293
      %v1295 = vpop.f32.mrb[0].mxu0
      %1296 = vmatprep.mubr.bf16.mxu0 %v424
      %1297 = vmatmul.mubr.bf16.gmra.mrb[0].mxu0 %v390
      %v1298 = vpop.f32.mrb[0].mxu0
      %v1299 = vadd.f32 %v1226, %v1298
      %v1300 = vpop.f32.mrb[0].mxu0
      %v1301 = vpop.f32.mrb[0].mxu0
      %v1302 = vadd.f32 %v1229, %v1301
      %v1303 = vpop.f32.mrb[0].mxu0
      %1304 = vmatprep.mubr.bf16.mxu0 %v426
      %1305 = vmatmul.mubr.bf16.gmra.mrb[0].mxu0 %v399
      %v1306 = vpop.f32.mrb[0].mxu0
      %v1307 = vadd.f32 %v1234, %v1306
      %v1308 = vpop.f32.mrb[0].mxu0
      %v1309 = vpop.f32.mrb[0].mxu0
      %v1310 = vadd.f32 %v1237, %v1309
      %v1311 = vpop.f32.mrb[0].mxu0
      %1312 = vmatprep.mubr.bf16.mxu0 %v428
      %1313 = vmatmul.mubr.bf16.gmra.mrb[0].mxu0 %v408
      %v1314 = vpop.f32.mrb[0].mxu0
      %v1315 = vadd.f32 %v1242, %v1314
      %v1316 = vpop.f32.mrb[0].mxu0
      %v1317 = vpop.f32.mrb[0].mxu0
      %v1318 = vadd.f32 %v1245, %v1317
      %v1319 = vpop.f32.mrb[0].mxu0
      %1320 = vdwg.mxu0
      %1321 = vmatprep.subr.bf16.mxu0 0
      %1322 = vmatpush1.bf16.msra.mxu0 %v1006
      %1323 = vmatprep.subr.bf16.mxu0 0
      %1324 = vmatpush1.bf16.msra.mxu0 %v1007
      %1325 = vmatprep.subr.bf16.mxu0 0
      %1326 = vmatpush1.bf16.msra.mxu0 %v1008
      %1327 = vmatprep.subr.bf16.mxu0 0
      %1328 = vmatpush1.bf16.msra.mxu0 %v1009
      %1329 = vmatprep.subr.bf16.mxu0 0
      %1330 = vmatpush1.bf16.msra.mxu0 %v1010
      %1331 = vmatprep.subr.bf16.mxu0 0
      %1332 = vmatpush1.bf16.msra.mxu0 %v1011
      %1333 = vmatprep.subr.bf16.mxu0 0
      %1334 = vmatpush1.bf16.msra.mxu0 %v1012
      %1335 = vmatprep.subr.bf16.mxu0 0
      %1336 = vmatpush1.bf16.msra.mxu0 %v1013
      %1337 = vmatprep.subr.bf16.mxu0 0
      %1338 = vmatpush1.bf16.msra.mxu0 %v1014
      %1339 = vmatprep.subr.bf16.mxu0 0
      %1340 = vmatpush1.bf16.msra.mxu0 %v1015
      %1341 = vmatprep.subr.bf16.mxu0 0
      %1342 = vmatpush1.bf16.msra.mxu0 %v1016
      %1343 = vmatprep.subr.bf16.mxu0 0
      %1344 = vmatpush1.bf16.msra.mxu0 %v1017
      %1345 = vmatprep.subr.bf16.mxu0 0
      %1346 = vmatpush1.bf16.msra.mxu0 %v1018
      %1347 = vmatprep.subr.bf16.mxu0 0
      %1348 = vmatpush1.bf16.msra.mxu0 %v1019
      %1349 = vmatprep.subr.bf16.mxu0 0
      %1350 = vmatpush1.bf16.msra.mxu0 %v1020
      %1351 = vmatprep.subr.bf16.mxu0 0
      %1352 = vmatpush1.bf16.msra.mxu0 %v1021
      %1353 = vmatprep.mubr.bf16.mxu0 %v474
      %1354 = vmatmul.mubr.bf16.gmra.mrb[0].mxu0 %v445
      %v1355 = vpop.f32.mrb[0].mxu0
      %v1356 = vadd.f32 %v1283, %v1355
      %v1357 = vpop.f32.mrb[0].mxu0
      %v1358 = vpop.f32.mrb[0].mxu0
      %v1359 = vadd.f32 %v1286, %v1358
      %v1360 = vpop.f32.mrb[0].mxu0
      %1361 = vmatprep.mubr.bf16.mxu0 %v478
      %1362 = vmatmul.mubr.bf16.gmra.mrb[0].mxu0 %v447
      %v1363 = vpop.f32.mrb[0].mxu0
      %v1364 = vadd.f32 %v1291, %v1363
      %v1365 = vpop.f32.mrb[0].mxu0
      %v1366 = vpop.f32.mrb[0].mxu0
      %v1367 = vadd.f32 %v1294, %v1366
      %v1368 = vpop.f32.mrb[0].mxu0
      %1369 = vmatprep.mubr.bf16.mxu0 %v482
      %1370 = vmatmul.mubr.bf16.gmra.mrb[0].mxu0 %v449
      %v1371 = vpop.f32.mrb[0].mxu0
      %v1372 = vadd.f32 %v1299, %v1371
      %v1373 = vpop.f32.mrb[0].mxu0
      %v1374 = vpop.f32.mrb[0].mxu0
      %v1375 = vadd.f32 %v1302, %v1374
      %v1376 = vpop.f32.mrb[0].mxu0
      %1377 = vmatprep.mubr.bf16.mxu0 %v491
      %1378 = vmatmul.mubr.bf16.gmra.mrb[0].mxu0 %v451
      %v1379 = vpop.f32.mrb[0].mxu0
      %v1380 = vadd.f32 %v1307, %v1379
      %v1381 = vpop.f32.mrb[0].mxu0
      %v1382 = vpop.f32.mrb[0].mxu0
      %v1383 = vadd.f32 %v1310, %v1382
      %v1384 = vpop.f32.mrb[0].mxu0
      %1385 = vmatprep.mubr.bf16.mxu0 %v500
      %1386 = vmatmul.mubr.bf16.gmra.mrb[0].mxu0 %v453
      %v1387 = vpop.f32.mrb[0].mxu0
      %v1388 = vadd.f32 %v1315, %v1387
      %v1389 = vpop.f32.mrb[0].mxu0
      %v1390 = vpop.f32.mrb[0].mxu0
      %v1391 = vadd.f32 %v1318, %v1390
      %v1392 = vpop.f32.mrb[0].mxu0
      %1393 = vdwg.mxu0
      %1394 = vmatprep.subr.bf16.mxu0 0
      %1395 = vmatpush1.bf16.msra.mxu0 %v1022
      %1396 = vmatprep.subr.bf16.mxu0 0
      %1397 = vmatpush1.bf16.msra.mxu0 %v1023
      %1398 = vmatprep.subr.bf16.mxu0 0
      %1399 = vmatpush1.bf16.msra.mxu0 %v1024
      %1400 = vmatprep.subr.bf16.mxu0 0
      %1401 = vmatpush1.bf16.msra.mxu0 %v1025
      %1402 = vmatprep.subr.bf16.mxu0 0
      %1403 = vmatpush1.bf16.msra.mxu0 %v1026
      %1404 = vmatprep.subr.bf16.mxu0 0
      %1405 = vmatpush1.bf16.msra.mxu0 %v1027
      %1406 = vmatprep.subr.bf16.mxu0 0
      %1407 = vmatpush1.bf16.msra.mxu0 %v1028
      %1408 = vmatprep.subr.bf16.mxu0 0
      %1409 = vmatpush1.bf16.msra.mxu0 %v1029
      %1410 = vmatprep.subr.bf16.mxu0 0
      %1411 = vmatpush1.bf16.msra.mxu0 0
      %1412 = vmatprep.subr.bf16.mxu0 0
      %1413 = vmatpush1.bf16.msra.mxu0 0
      %1414 = vmatprep.subr.bf16.mxu0 0
      %1415 = vmatpush1.bf16.msra.mxu0 0
      %1416 = vmatprep.subr.bf16.mxu0 0
      %1417 = vmatpush1.bf16.msra.mxu0 0
      %1418 = vmatprep.subr.bf16.mxu0 0
      %1419 = vmatpush1.bf16.msra.mxu0 0
      %1420 = vmatprep.subr.bf16.mxu0 0
      %1421 = vmatpush1.bf16.msra.mxu0 0
      %1422 = vmatprep.subr.bf16.mxu0 0
      %1423 = vmatpush1.bf16.msra.mxu0 0
      %1424 = vmatprep.subr.bf16.mxu0 0
      %1425 = vmatpush1.bf16.msra.mxu0 0
      %1426 = vmatprep.mubr.bf16.mxu0 0
      %1427 = vmatmul.mubr.bf16.gmra.mrb[0].mxu0 %v512
      %v1428 = vpop.f32.mrb[0].mxu0
      %v1429 = vadd.f32 %v1356, %v1428
      %v1430 = vpop.f32.mrb[0].mxu0
      %v1431 = vpop.f32.mrb[0].mxu0
      %v1432 = vadd.f32 %v1359, %v1431
      %v1433 = vpop.f32.mrb[0].mxu0
      %1434 = vmatprep.mubr.bf16.mxu0 0
      %1435 = vmatmul.mubr.bf16.gmra.mrb[0].mxu0 %v514
      %v1436 = vpop.f32.mrb[0].mxu0
      %v1437 = vadd.f32 %v1364, %v1436
      %v1438 = vpop.f32.mrb[0].mxu0
      %v1439 = vpop.f32.mrb[0].mxu0
      %v1440 = vadd.f32 %v1367, %v1439
      %v1441 = vpop.f32.mrb[0].mxu0
      %1442 = vmatprep.mubr.bf16.mxu0 0
      %1443 = vmatmul.mubr.bf16.gmra.mrb[0].mxu0 %v516
      %v1444 = vpop.f32.mrb[0].mxu0
      %v1445 = vadd.f32 %v1372, %v1444
      %v1446 = vpop.f32.mrb[0].mxu0
      %v1447 = vpop.f32.mrb[0].mxu0
      %v1448 = vadd.f32 %v1375, %v1447
      %v1449 = vpop.f32.mrb[0].mxu0
      %1450 = vmatprep.mubr.bf16.mxu0 0
      %1451 = vmatmul.mubr.bf16.gmra.mrb[0].mxu0 %v518
      %v1452 = vpop.f32.mrb[0].mxu0
      %v1453 = vadd.f32 %v1380, %v1452
      %v1454 = vpop.f32.mrb[0].mxu0
      %v1455 = vpop.f32.mrb[0].mxu0
      %v1456 = vadd.f32 %v1383, %v1455
      %v1457 = vpop.f32.mrb[0].mxu0
      %1458 = vmatprep.mubr.bf16.mxu0 0
      %1459 = vmatmul.mubr.bf16.gmra.mrb[0].mxu0 %v520
      %v1460 = vpop.f32.mrb[0].mxu0
      %v1461 = vadd.f32 %v1388, %v1460
      %v1462 = vpop.f32.mrb[0].mxu0
      %v1463 = vpop.f32.mrb[0].mxu0
      %v1464 = vadd.f32 %v1391, %v1463
      %v1465 = vpop.f32.mrb[0].mxu0
      %1466 = vdwg.mxu0
      %v1467 = vld [vmem:[%s2] sm:$0x1]
      %v1469 = vlaneseq
      %v1470 = vshrl.u32 %v1469, 7
      %v1471 = vsub.s32 0, %v1470
      %v1472 = vrot.slane %v1467, %v1471
      %v1474 = vmul.f32 %v1429, %v1472
      %v1475 = vmul.f32 %v1432, %v1472
      %v1476 = vmul.f32 %v1437, %v1472
      %v1477 = vmul.f32 %v1440, %v1472
      %v1478 = vmul.f32 %v1445, %v1472
      %v1479 = vmul.f32 %v1448, %v1472
      %v1480 = vmul.f32 %v1453, %v1472
      %v1481 = vmul.f32 %v1456, %v1472
      %v1482 = vmul.f32 %v1461, %v1472
      %v1483 = vmul.f32 %v1464, %v1472
      %v1484 = vld [vmem:[%s3] sm:$0x1]
      %v1486 = vlaneseq
      %v1487 = vshrl.u32 %v1486, 7
      %v1488 = vsub.s32 0, %v1487
      %v1489 = vrot.slane %v1484, %v1488
      %v1491 = vadd.f32 %v1474, %v1489
      %v1492 = vadd.f32 %v1475, %v1489
      %v1493 = vadd.f32 %v1476, %v1489
      %v1494 = vadd.f32 %v1477, %v1489
      %v1495 = vadd.f32 %v1478, %v1489
      %v1496 = vadd.f32 %v1479, %v1489
      %v1497 = vadd.f32 %v1480, %v1489
      %v1498 = vadd.f32 %v1481, %v1489
      %v1499 = vadd.f32 %v1482, %v1489
      %v1500 = vadd.f32 %v1483, %v1489
      %v1501 = vmax.f32 %v1491, 0.0
      %v1502 = vmax.f32 %v1492, 0.0
      %v1503 = vmax.f32 %v1493, 0.0
      %v1504 = vmax.f32 %v1494, 0.0
      %v1505 = vmax.f32 %v1495, 0.0
      %v1506 = vmax.f32 %v1496, 0.0
      %v1507 = vmax.f32 %v1497, 0.0
      %v1508 = vmax.f32 %v1498, 0.0
      %v1509 = vmax.f32 %v1499, 0.0
      %v1510 = vmax.f32 %v1500, 0.0
      %1511 = vst [vmem:[#allocation2] sm:$0xff] %v1501
      %1512 = vst [vmem:[#allocation2 + $0x8] sm:$0xff] %v1502
      %1513 = vst [vmem:[#allocation2 + $0x10] sm:$0xff] %v1503
      %1514 = vst [vmem:[#allocation2 + $0x18] sm:$0xff] %v1504
      %1515 = vst [vmem:[#allocation2 + $0x20] sm:$0xff] %v1505
      %1516 = vst [vmem:[#allocation2 + $0x28] sm:$0xff] %v1506
      %1517 = vst [vmem:[#allocation2 + $0x30] sm:$0xff] %v1507
      %1518 = vst [vmem:[#allocation2 + $0x38] sm:$0xff] %v1508
      %1519 = vst [vmem:[#allocation2 + $0x40] sm:$0xff] %v1509
      %1520 = vst [vmem:[#allocation2 + $0x48] sm:$0xff] %v1510
      %v1521 = vld [vmem:[#allocation2] ss:$2 sm:$0xff]
      %s1522 = scalar_lea.vmem [#allocation2], 16
      %v1523 = vld [vmem:[%s1522] ss:$2 sm:$0xff]
      %s1524 = scalar_lea.vmem [#allocation2], 32
      %v1525 = vld [vmem:[%s1524] ss:$2 sm:$0xff]
      %s1526 = scalar_lea.vmem [#allocation2], 48
      %v1527 = vld [vmem:[%s1526] ss:$2 sm:$0xff]
      %s1528 = scalar_lea.vmem [#allocation2], 64
      %v1529 = vld [vmem:[%s1528] ss:$2 sm:$0xff]
      %s1530 = scalar_lea.vmem [#allocation2], 1
      %v1531 = vld [vmem:[%s1530] ss:$2 sm:$0xff]
      %s1532 = scalar_lea.vmem [#allocation2], 17
      %v1533 = vld [vmem:[%s1532] ss:$2 sm:$0xff]
      %s1534 = scalar_lea.vmem [#allocation2], 33
      %v1535 = vld [vmem:[%s1534] ss:$2 sm:$0xff]
      %s1536 = scalar_lea.vmem [#allocation2], 49
      %v1537 = vld [vmem:[%s1536] ss:$2 sm:$0xff]
      %s1538 = scalar_lea.vmem [#allocation2], 65
      %v1539 = vld [vmem:[%s1538] ss:$2 sm:$0xff]
      %v1540 = vmax.f32 %v1521, %v1531
      %v1541 = vmax.f32 %v1523, %v1533
      %v1542 = vmax.f32 %v1525, %v1535
      %v1543 = vmax.f32 %v1527, %v1537
      %v1544 = vmax.f32 %v1529, %v1539
      %vm1547 = vcmask 1042432
      %v1548 = vrot.slane %v1540, 5
      %v1549 = vrot.slane %v1541, 5
      %v1550 = vsel %vm1547, %v1548, %v1549
      %v1552 = vmax.f32 %v1540, %v1550
      %v1553 = vpack.c.bf16 %v1552, %v1552
      %1554 = vst [vmem:[%s197] sm:$0x3] %v1553
      %v1556 = vrot.slane %v1542, 5
      %v1557 = vsel %vm1547, %v1549, %v1556
      %v1559 = vmax.f32 %v1541, %v1557
      %v1560 = vpack.c.bf16 %v1559, %v1559
      %v1563 = vunpack.c.l.s4 1983009808
      %v1564 = vunpack.c.0.s8 %v1563
      %v1565 = vlaneseq
      %v1566 = vshrl.u32 %v1565, 7
      %v1567 = vsub.s32 %v1564, %v1566
      %v1568 = vrot.slane %v1560, %v1567
      %v1569 = vcombine.high %v1568, %v1568
      %vm1570 = vcmask 1040384
      %vm1571 = vcmask 1042434
      %vm1572 = vmor %vm1570, %vm1571
      %vm1573 = vcmask 1044484
      %vm1574 = vmor %vm1572, %vm1573
      %vm1575 = vcmask 1046534
      %vm1576 = vmor %vm1574, %vm1575
      %v1577 = vrot.slane %v1568, 7
      %v1578 = vrot.slane %v1577, 2
      %v1579 = vrot.slane %v1569, 7
      %v1580 = vsel %vm1576, %v1578, %v1579
      %s1582 = scalar_lea.vmem %s197, 2
      %1583 = vst [vmem:[%s1582] sm:$0x3] %v1580
      %v1585 = vrot.slane %v1543, 5
      %v1587 = vmax.f32 %v1542, %v1585
      %v1588 = vpack.c.bf16 %v1587, %v1587
      %v1591 = vunpack.c.l.s4 1983009808
      %v1592 = vunpack.c.0.s8 %v1591
      %v1593 = vlaneseq
      %v1594 = vshrl.u32 %v1593, 7
      %v1595 = vsub.s32 %v1592, %v1594
      %v1596 = vrot.slane %v1588, %v1595
      %v1597 = vcombine.high %v1596, %v1596
      %s1599 = scalar_lea.vmem %s197, 4
      %1600 = vst [vmem:[%s1599] sm:$0x3] %v1597
      %v1602 = vrot.slane %v1544, 5
      %v1604 = vmax.f32 %v1543, %v1602
      %v1605 = vmax.f32 %v1544, %v1602
      %v1606 = vpack.c.bf16 %v1605, %v1604
      %v1608 = vcombine.high %v1606, %v1606
      %v1610 = vunpack.c.l.s4 1983009808
      %v1611 = vunpack.c.0.s8 %v1610
      %v1612 = vlaneseq
      %v1613 = vshrl.u32 %v1612, 7
      %v1614 = vsub.s32 %v1611, %v1613
      %v1615 = vrot.slane %v1606, %v1614
      %v1617 = vunpack.c.l.s4 1983009808
      %v1618 = vunpack.c.0.s8 %v1617
      %v1619 = vlaneseq
      %v1620 = vshrl.u32 %v1619, 7
      %v1621 = vsub.s32 %v1618, %v1620
      %v1622 = vrot.slane %v1608, %v1621
      %v1623 = vcombine.high %v1615, %v1615
      %v1624 = vrot.slane %v1623, 7
      %v1625 = vrot.slane %v1624, 2
      %v1626 = vrot.slane %v1622, 7
      %v1627 = vsel %vm1576, %v1625, %v1626
      %s1629 = scalar_lea.vmem %s197, 6
      %1630 = vst [vmem:[%s1629] sm:$0x3] %v1627
      %p1631 = scmp.lt.s32.totalorder %s15, 1
      %s1632 = scalar_select %p1631, %s15, 1
      %s1633 = smul.addr %s1632, 4
      %s1634 = smul.addr %s1633, 2
      %s1635 = scalar_lea.vmem %s4, %s1634
      // Predicated region
      $region37: #{localization_network.5} parent=35 // pred_check
        %p1636 = pneg %p122
      $region38: #{localization_network.5} parent=35 // pred_check_branch
        %1638 = sbr.rel (%p1636) target = $region40
      $region39: #{localization_network.5} parent=35 // pred_region
        _
      $region40: #{localization_network.5} parent=35 // pred_fallthru
        _
    $region36: #{localization_network.5} parent=5 // pred_fallthru
      _
    %p1639 = scmp.le.s32.totalorder 2, %s10
    // Predicated region
    $region41: #{localization_network.5} parent=5 // pred_check
      %p1640 = pneg %p1639
    $region42: #{localization_network.5} parent=5 // pred_check_branch
      %1642 = sbr.rel (%p1640) target = $region44
    $region43: #{localization_network.5} parent=5 // pred_region
      %s1643 = ssub.s32 %s10, 2
      // Predicated region
      $region45: #{localization_network.5} parent=43 // pred_check
        %p1644 = pneg %p128
      $region46: #{localization_network.5} parent=43 // pred_check_branch
        %1646 = sbr.rel (%p1644) target = $region48
      $region47: #{localization_network.5} parent=43 // pred_region
        %p1647 = scmp.lt.s32.totalorder %s16, 1
        %s1648 = scalar_select %p1647, %s16, 1
        %s1649 = smul.addr %s1648, 4
        %s1650 = smul.addr %s1649, 2
        %s1651 = scalar_lea.vmem %s4, %s1650
      $region48: #{localization_network.5} parent=43 // pred_fallthru
        _
    $region44: #{localization_network.5} parent=5 // pred_fallthru
      _
  $region6: #{localization_network.5} parent=0 // loop_footer
    %s14 = sadd.s32 1, %s10
  $region7: #{localization_network.5} parent=0 // loop_footer_branch
    %9 = sbr.rel target = $region3
  $region8: #{localization_network.5} parent=0 // loop_exit
    _

// kernel: localization_network.4
$region0: #{localization_network.4}
  #allocation0 [shape = 'u32[]', space=smem, size = 0x4, offset = 0x4, fixed_abs, tag = 'smem constant byte address 0x4 - core index']
  #allocation1 [shape = 'u32[144,128]{1,0:T(1,128)}', space=vmem, size = 0x12000, scoped, tag = 'internal scratch']
  #allocation2 [shape = 'f32[288,128]{1,0:T(8,128)}', space=vmem, size = 0x24000, scoped, tag = 'scratch operand']
  %s0 = inlined_call_operand.vmem [shape: bf16[2,342,128], index: 0, kind: input, shape index: {}]
  %s1 = inlined_call_operand.vmem [shape: bf16[1152,128], index: 1, kind: input, shape index: {}]
  %s2 = inlined_call_operand.vmem [shape: f32[1,128], index: 2, kind: input, shape index: {}]
  %s3 = inlined_call_operand.vmem [shape: f32[1,128], index: 3, kind: input, shape index: {}]
  %s4 = inlined_call_operand.vmem [shape: bf16[2,8,8,128], index: 4, kind: output, shape index: {}]
  %s5 = sld [smem:[#allocation0]]
  $region49: #{localization_network.4} parent=0
    _
  %s7 = ssub.s32 1, %s5
  %s8 = scalar_select 0, %s7, %s5
  loop: start=0, step=1, limit=4
  $region2: #{localization_network.4} parent=0 // loop_pre_header
    _
  $region3: #{localization_network.4} parent=0 // loop_header
    %s10 = sphi 0, %s14
    %p11 = scmp.ge.s32.totalorder %s10, 4
    %s20 = sphi 0, %s22
    %s23 = sphi 0, %s20
    %s24 = sphi 0, %s23
    %s40 = sphi 0, %s24
    %s44 = sphi 0, %s44
    %s46 = sphi 0, %s44
    %s47 = sphi 0, %s46
    %s61 = sphi 0, %s47
    %s65 = sphi 0, %s65
    %s67 = sphi 0, %s65
    %s68 = sphi 0, %s67
    %s82 = sphi 0, %s68
    %s86 = sphi 0, %s86
    %s88 = sphi 0, %s86
    %s89 = sphi 0, %s88
    %s103 = sphi 0, %s89
    %s109 = sphi 0, %s111
    %s112 = sphi 0, %s109
    %s113 = sphi 0, %s112
    %s129 = sphi 0, %s113
  $region4: #{localization_network.4} parent=0 // loop_header_branch
    %13 = sbr.rel (%p11) target = $region8
  $region5: #{localization_network.4} parent=0 // loop_body
    %s15 = ssub.s32 %s10, 1
    %s16 = ssub.s32 %s10, 2
    %s17 = sadd.s32 %s10, 1
    %s18 = ssub.s32 %s10, %s17
    %p19 = scmp.eq.s32.totalorder %s18, 0
    %s21 = sadd.s32 %s20, 1
    %s22 = scalar_select %p19, %s20, %s21
    %p25 = pneg %p19
    %p26 = scmp.eq.s32.totalorder %s10, 1
    %p27 = por %p25, %p26
    %p28 = scmp.ne.s32.totalorder %s20, %s23
    %p29 = scmp.eq.s32.totalorder %s10, 0
    %p30 = por %p28, %p29
    %p31 = scmp.ne.s32.totalorder %s20, %s23
    %p32 = scmp.eq.s32.totalorder %s15, 1
    %p33 = por %p31, %p32
    %p34 = scmp.ne.s32.totalorder %s23, %s24
    %p35 = scmp.eq.s32.totalorder %s15, 0
    %p36 = por %p34, %p35
    %p37 = scmp.ne.s32.totalorder %s23, %s24
    %p38 = scmp.eq.s32.totalorder %s16, 1
    %p39 = por %p37, %p38
    %p41 = scmp.ne.s32.totalorder %s24, %s40
    %p42 = scmp.eq.s32.totalorder %s16, 0
    %p43 = por %p41, %p42
    %s45 = sadd.s32 %s44, 1
    %p48 = scmp.eq.s32.totalorder %s10, 1
    %p49 = scmp.ne.s32.totalorder %s44, %s46
    %p50 = scmp.eq.s32.totalorder %s10, 0
    %p51 = por %p49, %p50
    %p52 = scmp.ne.s32.totalorder %s44, %s46
    %p53 = scmp.eq.s32.totalorder %s15, 1
    %p54 = por %p52, %p53
    %p55 = scmp.ne.s32.totalorder %s46, %s47
    %p56 = scmp.eq.s32.totalorder %s15, 0
    %p57 = por %p55, %p56
    %p58 = scmp.ne.s32.totalorder %s46, %s47
    %p59 = scmp.eq.s32.totalorder %s16, 1
    %p60 = por %p58, %p59
    %p62 = scmp.ne.s32.totalorder %s47, %s61
    %p63 = scmp.eq.s32.totalorder %s16, 0
    %p64 = por %p62, %p63
    %s66 = sadd.s32 %s65, 1
    %p69 = scmp.eq.s32.totalorder %s10, 1
    %p70 = scmp.ne.s32.totalorder %s65, %s67
    %p71 = scmp.eq.s32.totalorder %s10, 0
    %p72 = por %p70, %p71
    %p73 = scmp.ne.s32.totalorder %s65, %s67
    %p74 = scmp.eq.s32.totalorder %s15, 1
    %p75 = por %p73, %p74
    %p76 = scmp.ne.s32.totalorder %s67, %s68
    %p77 = scmp.eq.s32.totalorder %s15, 0
    %p78 = por %p76, %p77
    %p79 = scmp.ne.s32.totalorder %s67, %s68
    %p80 = scmp.eq.s32.totalorder %s16, 1
    %p81 = por %p79, %p80
    %p83 = scmp.ne.s32.totalorder %s68, %s82
    %p84 = scmp.eq.s32.totalorder %s16, 0
    %p85 = por %p83, %p84
    %s87 = sadd.s32 %s86, 1
    %p90 = scmp.eq.s32.totalorder %s10, 1
    %p91 = scmp.ne.s32.totalorder %s86, %s88
    %p92 = scmp.eq.s32.totalorder %s10, 0
    %p93 = por %p91, %p92
    %p94 = scmp.ne.s32.totalorder %s86, %s88
    %p95 = scmp.eq.s32.totalorder %s15, 1
    %p96 = por %p94, %p95
    %p97 = scmp.ne.s32.totalorder %s88, %s89
    %p98 = scmp.eq.s32.totalorder %s15, 0
    %p99 = por %p97, %p98
    %p100 = scmp.ne.s32.totalorder %s88, %s89
    %p101 = scmp.eq.s32.totalorder %s16, 1
    %p102 = por %p100, %p101
    %p104 = scmp.ne.s32.totalorder %s89, %s103
    %p105 = scmp.eq.s32.totalorder %s16, 0
    %p106 = por %p104, %p105
    %s107 = ssub.s32 %s10, %s17
    %p108 = scmp.eq.s32.totalorder %s107, 0
    %s110 = sadd.s32 %s109, 1
    %s111 = scalar_select %p108, %s109, %s110
    %p114 = pneg %p108
    %p115 = scmp.eq.s32.totalorder %s10, 1
    %p116 = por %p114, %p115
    %p117 = scmp.ne.s32.totalorder %s109, %s112
    %p118 = scmp.eq.s32.totalorder %s10, 0
    %p119 = por %p117, %p118
    %p120 = scmp.ne.s32.totalorder %s109, %s112
    %p121 = scmp.eq.s32.totalorder %s15, 1
    %p122 = por %p120, %p121
    %p123 = scmp.ne.s32.totalorder %s112, %s113
    %p124 = scmp.eq.s32.totalorder %s15, 0
    %p125 = por %p123, %p124
    %p126 = scmp.ne.s32.totalorder %s112, %s113
    %p127 = scmp.eq.s32.totalorder %s16, 1
    %p128 = por %p126, %p127
    %p130 = scmp.ne.s32.totalorder %s113, %s129
    %p131 = scmp.eq.s32.totalorder %s16, 0
    %p132 = por %p130, %p131
    %p133 = scmp.le.s32.totalorder 1, %s10
    %p134 = scmp.lt.s32.totalorder %s10, 3
    %p135 = pnand %p133, %p134
    %p136 = pneg %p135
    // Predicated region
    $region9: #{localization_network.4} parent=5 // pred_check
      _
    $region10: #{localization_network.4} parent=5 // pred_check_branch
      %138 = sbr.rel (%p135) target = $region12
    $region11: #{localization_network.4} parent=5 // pred_region
      %s139 = ssub.s32 %s10, 1
      // Predicated region
      $region13: #{localization_network.4} parent=11 // pred_check
        %p140 = pneg %p57
      $region14: #{localization_network.4} parent=11 // pred_check_branch
        %142 = sbr.rel (%p140) target = $region16
      $region15: #{localization_network.4} parent=11 // pred_region
        _
      $region16: #{localization_network.4} parent=11 // pred_fallthru
        _
      // Predicated region
      $region17: #{localization_network.4} parent=11 // pred_check
        %p143 = pneg %p78
      $region18: #{localization_network.4} parent=11 // pred_check_branch
        %145 = sbr.rel (%p143) target = $region20
      $region19: #{localization_network.4} parent=11 // pred_region
        _
      $region20: #{localization_network.4} parent=11 // pred_fallthru
        _
      // Predicated region
      $region21: #{localization_network.4} parent=11 // pred_check
        %p146 = pneg %p99
      $region22: #{localization_network.4} parent=11 // pred_check_branch
        %148 = sbr.rel (%p146) target = $region24
      $region23: #{localization_network.4} parent=11 // pred_region
        _
      $region24: #{localization_network.4} parent=11 // pred_fallthru
        _
    $region12: #{localization_network.4} parent=5 // pred_fallthru
      _
    %p149 = scmp.lt.s32.totalorder %s10, 2
    // Predicated region
    $region25: #{localization_network.4} parent=5 // pred_check
      %p150 = pneg %p149
    $region26: #{localization_network.4} parent=5 // pred_check_branch
      %152 = sbr.rel (%p150) target = $region28
    $region27: #{localization_network.4} parent=5 // pred_region
      // Predicated region
      $region29: #{localization_network.4} parent=27 // pred_check
        %p153 = pneg %p30
      $region30: #{localization_network.4} parent=27 // pred_check_branch
        %155 = sbr.rel (%p153) target = $region32
      $region31: #{localization_network.4} parent=27 // pred_region
        %p156 = scmp.lt.s32.totalorder %s10, 1
        %s157 = scalar_select %p156, %s10, 1
        %s158 = smul.addr %s157, 43
        %s159 = smul.addr %s158, 4
        %s160 = scalar_lea.vmem %s0, %s159
      $region32: #{localization_network.4} parent=27 // pred_fallthru
        _
    $region28: #{localization_network.4} parent=5 // pred_fallthru
      _
    %p161 = scmp.le.s32.totalorder 1, %s10
    %p162 = scmp.lt.s32.totalorder %s10, 3
    %p163 = pnand %p161, %p162
    %p164 = pneg %p163
    // Predicated region
    $region33: #{localization_network.4} parent=5 // pred_check
      _
    $region34: #{localization_network.4} parent=5 // pred_check_branch
      %166 = sbr.rel (%p163) target = $region36
    $region35: #{localization_network.4} parent=5 // pred_region
      %s167 = ssub.s32 %s10, 1
      %p168 = scmp.lt.s32.totalorder %s15, 1
      %s169 = scalar_select %p168, %s15, 1
      %s170 = smul.addr %s169, 43
      %s171 = smul.addr %s170, 4
      %s172 = scalar_lea.vmem %s0, %s171
      %p173 = pneg %p36
      %p174 = pneg %p33
      %p175 = pneg %p57
      %p176 = pneg %p54
      %p177 = pneg %p78
      %p178 = pneg %p75
      %p179 = pneg %p99
      %p180 = pneg %p96
      %p181 = pneg %p125
      %p182 = pneg %p122
      %p183 = scmp.lt.s32.totalorder %s15, 1
      %s184 = scalar_select %p183, %s15, 1
      %s185 = smul.addr %s184, 8
      %s186 = smul.addr %s185, 4
      %s187 = scalar_lea.vmem %s4, %s186
      %p188 = scmp.lt.s32.totalorder %s15, 1
      %s189 = scalar_select %p188, %s15, 1
      %s190 = smul.addr %s189, 43
      %s191 = smul.addr %s190, 4
      %s192 = scalar_lea.vmem %s0, %s191
      %p193 = scmp.lt.s32.totalorder %s15, 1
      %s194 = scalar_select %p193, %s15, 1
      %s195 = smul.addr %s194, 8
      %s196 = smul.addr %s195, 4
      %s197 = scalar_lea.vmem %s4, %s196
      %v199 = vld [vmem:[%s192] sm:$0xf]
      %v200 = vld [vmem:[%s192 + $0x4] sm:$0xf]
      %v201 = vld [vmem:[%s192 + $0x8] sm:$0xf]
      %v202 = vld [vmem:[%s192 + $0xc] sm:$0xf]
      %v203 = vld [vmem:[%s192 + $0x10] sm:$0xf]
      %v204 = vld [vmem:[%s192 + $0x14] sm:$0xf]
      %v205 = vld [vmem:[%s192 + $0x18] sm:$0xf]
      %v206 = vld [vmem:[%s192 + $0x1c] sm:$0xf]
      %v207 = vld [vmem:[%s192 + $0x20] sm:$0xf]
      %v208 = vld [vmem:[%s192 + $0x24] sm:$0xf]
      %v209 = vld [vmem:[%s192 + $0x28] sm:$0xf]
      %v210 = vld [vmem:[%s192 + $0x2c] sm:$0xf]
      %v211 = vld [vmem:[%s192 + $0x30] sm:$0xf]
      %v212 = vld [vmem:[%s192 + $0x34] sm:$0xf]
      %v213 = vld [vmem:[%s192 + $0x38] sm:$0xf]
      %v214 = vld [vmem:[%s192 + $0x3c] sm:$0xf]
      %v215 = vld [vmem:[%s192 + $0x40] sm:$0xf]
      %v216 = vld [vmem:[%s192 + $0x44] sm:$0xf]
      %v217 = vld [vmem:[%s192 + $0x48] sm:$0xf]
      %v218 = vld [vmem:[%s192 + $0x4c] sm:$0xf]
      %v219 = vld [vmem:[%s192 + $0x50] sm:$0xf]
      %v220 = vld [vmem:[%s192 + $0x54] sm:$0xf]
      %v221 = vld [vmem:[%s192 + $0x58] sm:$0xf]
      %v222 = vld [vmem:[%s192 + $0x5c] sm:$0xf]
      %v223 = vld [vmem:[%s192 + $0x60] sm:$0xf]
      %v224 = vld [vmem:[%s192 + $0x64] sm:$0xf]
      %v225 = vld [vmem:[%s192 + $0x68] sm:$0xf]
      %v226 = vld [vmem:[%s192 + $0x6c] sm:$0xf]
      %v227 = vld [vmem:[%s192 + $0x70] sm:$0xf]
      %v228 = vld [vmem:[%s192 + $0x74] sm:$0xf]
      %v229 = vld [vmem:[%s192 + $0x78] sm:$0xf]
      %v230 = vld [vmem:[%s192 + $0x7c] sm:$0xf]
      %v231 = vld [vmem:[%s192 + $0x80] sm:$0xf]
      %v232 = vld [vmem:[%s192 + $0x84] sm:$0xf]
      %v233 = vld [vmem:[%s192 + $0x88] sm:$0xf]
      %v234 = vld [vmem:[%s192 + $0x8c] sm:$0xf]
      %v235 = vld [vmem:[%s192 + $0x90] sm:$0x1]
      %v236 = vld [vmem:[%s192] sm:$0xe]
      %v237 = vld [vmem:[%s192 + $0x8] sm:$0xe]
      %v238 = vld [vmem:[%s192 + $0x90] sm:$0xf]
      %v239 = vld [vmem:[%s192 + $0x94] sm:$0xf]
      %v240 = vld [vmem:[%s192 + $0x98] sm:$0x1]
      %v241 = vld [vmem:[%s192 + $0x98] sm:$0x3]
      %v242 = vld [vmem:[%s192 + $0x8] sm:$0xc]
      %v243 = vld [vmem:[%s192 + $0x10] sm:$0xc]
      %v244 = vld [vmem:[%s192 + $0x98] sm:$0xf]
      %v245 = vld [vmem:[%s192 + $0x9c] sm:$0xf]
      %v246 = vld [vmem:[%s192 + $0xa0] sm:$0x3]
      %v247 = vld [vmem:[%s192 + $0xa0] sm:$0x7]
      %v248 = vld [vmem:[%s192 + $0x10] sm:$0x8]
      %v285 = vunpack.c.l.b16 %v199
      %v286 = vunpack.c.l.b16 %v200
      %v287 = vunpack.c.l.b16 %v201
      %v288 = vunpack.c.l.b16 %v202
      %v289 = vunpack.c.l.b16 %v203
      %v290 = vunpack.c.l.b16 %v204
      %v291 = vunpack.c.l.b16 %v205
      %v292 = vunpack.c.l.b16 %v206
      %v293 = vunpack.c.l.b16 %v207
      %v294 = vunpack.c.l.b16 %v208
      %v295 = vunpack.c.l.b16 %v209
      %v296 = vunpack.c.l.b16 %v210
      %v297 = vunpack.c.l.b16 %v211
      %v298 = vunpack.c.l.b16 %v212
      %v299 = vunpack.c.l.b16 %v213
      %v300 = vunpack.c.l.b16 %v214
      %v301 = vunpack.c.l.b16 %v215
      %v302 = vunpack.c.l.b16 %v216
      %v303 = vunpack.c.l.b16 %v217
      %v304 = vunpack.c.l.b16 %v218
      %v305 = vunpack.c.l.b16 %v219
      %v306 = vunpack.c.l.b16 %v220
      %v307 = vunpack.c.l.b16 %v221
      %v308 = vunpack.c.l.b16 %v222
      %v309 = vunpack.c.l.b16 %v223
      %v310 = vunpack.c.l.b16 %v224
      %v311 = vunpack.c.l.b16 %v225
      %v312 = vunpack.c.l.b16 %v226
      %v313 = vunpack.c.l.b16 %v227
      %v314 = vunpack.c.l.b16 %v228
      %v315 = vunpack.c.l.b16 %v229
      %v316 = vunpack.c.l.b16 %v230
      %v317 = vunpack.c.l.b16 %v231
      %v318 = vunpack.c.l.b16 %v232
      %v319 = vunpack.c.l.b16 %v233
      %v320 = vunpack.c.l.b16 %v234
      %v321 = vpack.c.b16 %v286, %v285
      %v322 = vpack.c.b16 %v288, %v287
      %v323 = vpack.c.b16 %v290, %v289
      %v324 = vpack.c.b16 %v292, %v291
      %v325 = vpack.c.b16 %v294, %v293
      %v326 = vpack.c.b16 %v296, %v295
      %v327 = vpack.c.b16 %v298, %v297
      %v328 = vpack.c.b16 %v300, %v299
      %v329 = vpack.c.b16 %v302, %v301
      %v330 = vpack.c.b16 %v304, %v303
      %v331 = vpack.c.b16 %v306, %v305
      %v332 = vpack.c.b16 %v308, %v307
      %v333 = vpack.c.b16 %v310, %v309
      %v334 = vpack.c.b16 %v312, %v311
      %v335 = vpack.c.b16 %v314, %v313
      %v336 = vpack.c.b16 %v316, %v315
      %v337 = vpack.c.b16 %v318, %v317
      %v338 = vpack.c.b16 %v320, %v319
      %v358 = vunpack.c.l.b16 %v235
      %v359 = vpack.c.b16 %v358, %v358
      %vm360 = vsmask.f32 7424
      %v362 = vshrl.u32 %v321, 16
      %v364 = vshll.u32 %v321, 16
      %v366 = vrot.slane %v364, 1
      %v367 = vor.u32 %v362, %v366
      %v369 = vshll.u32 %v322, 16
      %v371 = vrot.slane %v369, 1
      %v372 = vsel %vm360, %v367, %v371
      %v373 = vshrl.u32 %v322, 16
      %v375 = vor.u32 %v373, %v371
      %v377 = vshll.u32 %v323, 16
      %v379 = vrot.slane %v377, 1
      %v380 = vsel %vm360, %v375, %v379
      %v381 = vshrl.u32 %v323, 16
      %v383 = vor.u32 %v381, %v379
      %v385 = vshll.u32 %v324, 16
      %v387 = vrot.slane %v385, 1
      %v388 = vsel %vm360, %v383, %v387
      %v389 = vshrl.u32 %v324, 16
      %v391 = vor.u32 %v389, %v387
      %v393 = vshll.u32 %v325, 16
      %v395 = vrot.slane %v393, 1
      %v396 = vsel %vm360, %v391, %v395
      %v397 = vshrl.u32 %v325, 16
      %v399 = vor.u32 %v397, %v395
      %v401 = vshll.u32 %v326, 16
      %v403 = vrot.slane %v401, 1
      %v404 = vsel %vm360, %v399, %v403
      %v405 = vshrl.u32 %v326, 16
      %v407 = vor.u32 %v405, %v403
      %v409 = vshll.u32 %v327, 16
      %v411 = vrot.slane %v409, 1
      %v412 = vsel %vm360, %v407, %v411
      %v413 = vshrl.u32 %v327, 16
      %v415 = vor.u32 %v413, %v411
      %v417 = vshll.u32 %v328, 16
      %v419 = vrot.slane %v417, 1
      %v420 = vsel %vm360, %v415, %v419
      %v421 = vshrl.u32 %v328, 16
      %v423 = vor.u32 %v421, %v419
      %v425 = vshll.u32 %v329, 16
      %v427 = vrot.slane %v425, 1
      %v428 = vsel %vm360, %v423, %v427
      %v429 = vshrl.u32 %v329, 16
      %v431 = vor.u32 %v429, %v427
      %v433 = vshll.u32 %v330, 16
      %v435 = vrot.slane %v433, 1
      %v436 = vsel %vm360, %v431, %v435
      %v437 = vshrl.u32 %v330, 16
      %v439 = vor.u32 %v437, %v435
      %v441 = vshll.u32 %v331, 16
      %v443 = vrot.slane %v441, 1
      %v444 = vsel %vm360, %v439, %v443
      %v445 = vshrl.u32 %v331, 16
      %v447 = vor.u32 %v445, %v443
      %v449 = vshll.u32 %v332, 16
      %v451 = vrot.slane %v449, 1
      %v452 = vsel %vm360, %v447, %v451
      %v453 = vshrl.u32 %v332, 16
      %v455 = vor.u32 %v453, %v451
      %v457 = vshll.u32 %v333, 16
      %v459 = vrot.slane %v457, 1
      %v460 = vsel %vm360, %v455, %v459
      %v461 = vshrl.u32 %v333, 16
      %v463 = vor.u32 %v461, %v459
      %v465 = vshll.u32 %v334, 16
      %v467 = vrot.slane %v465, 1
      %v468 = vsel %vm360, %v463, %v467
      %v469 = vshrl.u32 %v334, 16
      %v471 = vor.u32 %v469, %v467
      %v473 = vshll.u32 %v335, 16
      %v475 = vrot.slane %v473, 1
      %v476 = vsel %vm360, %v471, %v475
      %v477 = vshrl.u32 %v335, 16
      %v479 = vor.u32 %v477, %v475
      %v481 = vshll.u32 %v336, 16
      %v483 = vrot.slane %v481, 1
      %v484 = vsel %vm360, %v479, %v483
      %v485 = vshrl.u32 %v336, 16
      %v487 = vor.u32 %v485, %v483
      %v489 = vshll.u32 %v337, 16
      %v491 = vrot.slane %v489, 1
      %v492 = vsel %vm360, %v487, %v491
      %v493 = vshrl.u32 %v337, 16
      %v495 = vor.u32 %v493, %v491
      %v497 = vshll.u32 %v338, 16
      %v499 = vrot.slane %v497, 1
      %v500 = vsel %vm360, %v495, %v499
      %v501 = vshrl.u32 %v338, 16
      %v503 = vor.u32 %v501, %v499
      %v505 = vshll.u32 %v359, 16
      %v507 = vrot.slane %v505, 1
      %v508 = vsel %vm360, %v503, %v507
      %v528 = vunpack.c.l.b16 %v236
      %v529 = vpack.c.b16 %v286, %v528
      %vm530 = vcmask 1046528
      %v531 = vrot.slane %v529, 1
      %v532 = vrot.slane %v322, 1
      %v533 = vsel %vm530, %v531, %v532
      %v534 = vrot.slane %v323, 1
      %v535 = vsel %vm530, %v532, %v534
      %v536 = vrot.slane %v324, 1
      %v537 = vsel %vm530, %v534, %v536
      %v538 = vrot.slane %v325, 1
      %v539 = vsel %vm530, %v536, %v538
      %v540 = vrot.slane %v326, 1
      %v541 = vsel %vm530, %v538, %v540
      %v542 = vrot.slane %v327, 1
      %v543 = vsel %vm530, %v540, %v542
      %v544 = vrot.slane %v328, 1
      %v545 = vsel %vm530, %v542, %v544
      %v546 = vrot.slane %v329, 1
      %v547 = vsel %vm530, %v544, %v546
      %v548 = vrot.slane %v330, 1
      %v549 = vsel %vm530, %v546, %v548
      %v550 = vrot.slane %v331, 1
      %v551 = vsel %vm530, %v548, %v550
      %v552 = vrot.slane %v332, 1
      %v553 = vsel %vm530, %v550, %v552
      %v554 = vrot.slane %v333, 1
      %v555 = vsel %vm530, %v552, %v554
      %v556 = vrot.slane %v334, 1
      %v557 = vsel %vm530, %v554, %v556
      %v558 = vrot.slane %v335, 1
      %v559 = vsel %vm530, %v556, %v558
      %v560 = vrot.slane %v336, 1
      %v561 = vsel %vm530, %v558, %v560
      %v562 = vrot.slane %v337, 1
      %v563 = vsel %vm530, %v560, %v562
      %v564 = vrot.slane %v338, 1
      %v565 = vsel %vm530, %v562, %v564
      %v566 = vrot.slane %v359, 1
      %v567 = vsel %vm530, %v564, %v566
      %v590 = vunpack.c.l.b16 %v237
      %v591 = vunpack.c.l.b16 %v238
      %v592 = vunpack.c.l.b16 %v239
      %v593 = vunpack.c.l.b16 %v240
      %v594 = vpack.c.b16 %v288, %v590
      %v595 = vpack.c.b16 %v592, %v591
      %v596 = vpack.c.b16 %v593, %v593
      %v597 = vrot.slane %v594, 1
      %v598 = vsel %vm530, %v597, %v534
      %v599 = vrot.slane %v595, 1
      %v600 = vsel %vm530, %v564, %v599
      %v601 = vrot.slane %v596, 1
      %v602 = vsel %vm530, %v599, %v601
      %v607 = vunpack.c.l.b16 %v241
      %v608 = vpack.c.b16 %v607, %v607
      %vm609 = vsmask.f32 6400
      %v611 = vshrl.u32 %v594, 16
      %v613 = vrot.slane %v611, 1
      %v614 = vshll.u32 %v594, 16
      %v616 = vrot.slane %v614, 2
      %v617 = vor.u32 %v613, %v616
      %v618 = vrot.slane %v381, 1
      %v619 = vrot.slane %v377, 2
      %v620 = vor.u32 %v618, %v619
      %v621 = vsel %vm609, %v617, %v620
      %v622 = vrot.slane %v389, 1
      %v623 = vrot.slane %v385, 2
      %v624 = vor.u32 %v622, %v623
      %v625 = vsel %vm609, %v620, %v624
      %v626 = vrot.slane %v397, 1
      %v627 = vrot.slane %v393, 2
      %v628 = vor.u32 %v626, %v627
      %v629 = vsel %vm609, %v624, %v628
      %v630 = vrot.slane %v405, 1
      %v631 = vrot.slane %v401, 2
      %v632 = vor.u32 %v630, %v631
      %v633 = vsel %vm609, %v628, %v632
      %v634 = vrot.slane %v413, 1
      %v635 = vrot.slane %v409, 2
      %v636 = vor.u32 %v634, %v635
      %v637 = vsel %vm609, %v632, %v636
      %v638 = vrot.slane %v421, 1
      %v639 = vrot.slane %v417, 2
      %v640 = vor.u32 %v638, %v639
      %v641 = vsel %vm609, %v636, %v640
      %v642 = vrot.slane %v429, 1
      %v643 = vrot.slane %v425, 2
      %v644 = vor.u32 %v642, %v643
      %v645 = vsel %vm609, %v640, %v644
      %v646 = vrot.slane %v437, 1
      %v647 = vrot.slane %v433, 2
      %v648 = vor.u32 %v646, %v647
      %v649 = vsel %vm609, %v644, %v648
      %v650 = vrot.slane %v445, 1
      %v651 = vrot.slane %v441, 2
      %v652 = vor.u32 %v650, %v651
      %v653 = vsel %vm609, %v648, %v652
      %v654 = vrot.slane %v453, 1
      %v655 = vrot.slane %v449, 2
      %v656 = vor.u32 %v654, %v655
      %v657 = vsel %vm609, %v652, %v656
      %v658 = vrot.slane %v461, 1
      %v659 = vrot.slane %v457, 2
      %v660 = vor.u32 %v658, %v659
      %v661 = vsel %vm609, %v656, %v660
      %v662 = vrot.slane %v469, 1
      %v663 = vrot.slane %v465, 2
      %v664 = vor.u32 %v662, %v663
      %v665 = vsel %vm609, %v660, %v664
      %v666 = vrot.slane %v477, 1
      %v667 = vrot.slane %v473, 2
      %v668 = vor.u32 %v666, %v667
      %v669 = vsel %vm609, %v664, %v668
      %v670 = vrot.slane %v485, 1
      %v671 = vrot.slane %v481, 2
      %v672 = vor.u32 %v670, %v671
      %v673 = vsel %vm609, %v668, %v672
      %v674 = vrot.slane %v493, 1
      %v675 = vrot.slane %v489, 2
      %v676 = vor.u32 %v674, %v675
      %v677 = vsel %vm609, %v672, %v676
      %v678 = vrot.slane %v501, 1
      %v679 = vrot.slane %v497, 2
      %v680 = vor.u32 %v678, %v679
      %v681 = vsel %vm609, %v676, %v680
      %v683 = vshrl.u32 %v595, 16
      %v685 = vrot.slane %v683, 1
      %v686 = vshll.u32 %v595, 16
      %v688 = vrot.slane %v686, 2
      %v689 = vor.u32 %v685, %v688
      %v690 = vsel %vm609, %v680, %v689
      %v692 = vshrl.u32 %v608, 16
      %v694 = vrot.slane %v692, 1
      %v695 = vshll.u32 %v608, 16
      %v697 = vrot.slane %v695, 2
      %v698 = vor.u32 %v694, %v697
      %v699 = vsel %vm609, %v689, %v698
      %v719 = vunpack.c.l.b16 %v242
      %v720 = vpack.c.b16 %v288, %v719
      %vm721 = vcmask 1045504
      %v722 = vrot.slane %v720, 2
      %v723 = vrot.slane %v323, 2
      %v724 = vsel %vm721, %v722, %v723
      %v725 = vrot.slane %v324, 2
      %v726 = vsel %vm721, %v723, %v725
      %v727 = vrot.slane %v325, 2
      %v728 = vsel %vm721, %v725, %v727
      %v729 = vrot.slane %v326, 2
      %v730 = vsel %vm721, %v727, %v729
      %v731 = vrot.slane %v327, 2
      %v732 = vsel %vm721, %v729, %v731
      %v733 = vrot.slane %v328, 2
      %v734 = vsel %vm721, %v731, %v733
      %v735 = vrot.slane %v329, 2
      %v736 = vsel %vm721, %v733, %v735
      %v737 = vrot.slane %v330, 2
      %v738 = vsel %vm721, %v735, %v737
      %v739 = vrot.slane %v331, 2
      %v740 = vsel %vm721, %v737, %v739
      %v741 = vrot.slane %v332, 2
      %v742 = vsel %vm721, %v739, %v741
      %v743 = vrot.slane %v333, 2
      %v744 = vsel %vm721, %v741, %v743
      %v745 = vrot.slane %v334, 2
      %v746 = vsel %vm721, %v743, %v745
      %v747 = vrot.slane %v335, 2
      %v748 = vsel %vm721, %v745, %v747
      %v749 = vrot.slane %v336, 2
      %v750 = vsel %vm721, %v747, %v749
      %v751 = vrot.slane %v337, 2
      %v752 = vsel %vm721, %v749, %v751
      %v753 = vrot.slane %v338, 2
      %v754 = vsel %vm721, %v751, %v753
      %v755 = vrot.slane %v595, 2
      %v756 = vsel %vm721, %v753, %v755
      %v757 = vrot.slane %v608, 2
      %v758 = vsel %vm721, %v755, %v757
      %v781 = vunpack.c.l.b16 %v243
      %v782 = vunpack.c.l.b16 %v244
      %v783 = vunpack.c.l.b16 %v245
      %v784 = vunpack.c.l.b16 %v246
      %v785 = vpack.c.b16 %v290, %v781
      %v786 = vpack.c.b16 %v783, %v782
      %v787 = vpack.c.b16 %v784, %v784
      %v788 = vrot.slane %v785, 2
      %v789 = vsel %vm721, %v788, %v725
      %v790 = vrot.slane %v786, 2
      %v791 = vsel %vm721, %v755, %v790
      %v792 = vrot.slane %v787, 2
      %v793 = vsel %vm721, %v790, %v792
      %v798 = vunpack.c.l.b16 %v247
      %v799 = vpack.c.b16 %v798, %v798
      %vm800 = vsmask.f32 5376
      %v802 = vshrl.u32 %v785, 16
      %v804 = vrot.slane %v802, 2
      %v805 = vshll.u32 %v785, 16
      %v807 = vrot.slane %v805, 3
      %v808 = vor.u32 %v804, %v807
      %v809 = vrot.slane %v389, 2
      %v810 = vrot.slane %v385, 3
      %v811 = vor.u32 %v809, %v810
      %v812 = vsel %vm800, %v808, %v811
      %v813 = vrot.slane %v397, 2
      %v814 = vrot.slane %v393, 3
      %v815 = vor.u32 %v813, %v814
      %v816 = vsel %vm800, %v811, %v815
      %v817 = vrot.slane %v405, 2
      %v818 = vrot.slane %v401, 3
      %v819 = vor.u32 %v817, %v818
      %v820 = vsel %vm800, %v815, %v819
      %v821 = vrot.slane %v413, 2
      %v822 = vrot.slane %v409, 3
      %v823 = vor.u32 %v821, %v822
      %v824 = vsel %vm800, %v819, %v823
      %v825 = vrot.slane %v421, 2
      %v826 = vrot.slane %v417, 3
      %v827 = vor.u32 %v825, %v826
      %v828 = vsel %vm800, %v823, %v827
      %v829 = vrot.slane %v429, 2
      %v830 = vrot.slane %v425, 3
      %v831 = vor.u32 %v829, %v830
      %v832 = vsel %vm800, %v827, %v831
      %v833 = vrot.slane %v437, 2
      %v834 = vrot.slane %v433, 3
      %v835 = vor.u32 %v833, %v834
      %v836 = vsel %vm800, %v831, %v835
      %v837 = vrot.slane %v445, 2
      %v838 = vrot.slane %v441, 3
      %v839 = vor.u32 %v837, %v838
      %v840 = vsel %vm800, %v835, %v839
      %v841 = vrot.slane %v453, 2
      %v842 = vrot.slane %v449, 3
      %v843 = vor.u32 %v841, %v842
      %v844 = vsel %vm800, %v839, %v843
      %v845 = vrot.slane %v461, 2
      %v846 = vrot.slane %v457, 3
      %v847 = vor.u32 %v845, %v846
      %v848 = vsel %vm800, %v843, %v847
      %v849 = vrot.slane %v469, 2
      %v850 = vrot.slane %v465, 3
      %v851 = vor.u32 %v849, %v850
      %v852 = vsel %vm800, %v847, %v851
      %v853 = vrot.slane %v477, 2
      %v854 = vrot.slane %v473, 3
      %v855 = vor.u32 %v853, %v854
      %v856 = vsel %vm800, %v851, %v855
      %v857 = vrot.slane %v485, 2
      %v858 = vrot.slane %v481, 3
      %v859 = vor.u32 %v857, %v858
      %v860 = vsel %vm800, %v855, %v859
      %v861 = vrot.slane %v493, 2
      %v862 = vrot.slane %v489, 3
      %v863 = vor.u32 %v861, %v862
      %v864 = vsel %vm800, %v859, %v863
      %v865 = vrot.slane %v501, 2
      %v866 = vrot.slane %v497, 3
      %v867 = vor.u32 %v865, %v866
      %v868 = vsel %vm800, %v863, %v867
      %v869 = vrot.slane %v683, 2
      %v870 = vrot.slane %v686, 3
      %v871 = vor.u32 %v869, %v870
      %v872 = vsel %vm800, %v867, %v871
      %v874 = vshrl.u32 %v786, 16
      %v876 = vrot.slane %v874, 2
      %v877 = vshll.u32 %v786, 16
      %v879 = vrot.slane %v877, 3
      %v880 = vor.u32 %v876, %v879
      %v881 = vsel %vm800, %v871, %v880
      %v883 = vshrl.u32 %v799, 16
      %v885 = vrot.slane %v883, 2
      %v886 = vshll.u32 %v799, 16
      %v888 = vrot.slane %v886, 3
      %v889 = vor.u32 %v885, %v888
      %v890 = vsel %vm800, %v880, %v889
      %v910 = vunpack.c.l.b16 %v248
      %v911 = vpack.c.b16 %v290, %v910
      %vm912 = vcmask 1044480
      %v913 = vrot.slane %v911, 3
      %v914 = vrot.slane %v324, 3
      %v915 = vsel %vm912, %v913, %v914
      %v916 = vrot.slane %v325, 3
      %v917 = vsel %vm912, %v914, %v916
      %v918 = vrot.slane %v326, 3
      %v919 = vsel %vm912, %v916, %v918
      %v920 = vrot.slane %v327, 3
      %v921 = vsel %vm912, %v918, %v920
      %v922 = vrot.slane %v328, 3
      %v923 = vsel %vm912, %v920, %v922
      %v924 = vrot.slane %v329, 3
      %v925 = vsel %vm912, %v922, %v924
      %v926 = vrot.slane %v330, 3
      %v927 = vsel %vm912, %v924, %v926
      %v928 = vrot.slane %v331, 3
      %v929 = vsel %vm912, %v926, %v928
      %v930 = vrot.slane %v332, 3
      %v931 = vsel %vm912, %v928, %v930
      %v932 = vrot.slane %v333, 3
      %v933 = vsel %vm912, %v930, %v932
      %v934 = vrot.slane %v334, 3
      %v935 = vsel %vm912, %v932, %v934
      %v936 = vrot.slane %v335, 3
      %v937 = vsel %vm912, %v934, %v936
      %v938 = vrot.slane %v336, 3
      %v939 = vsel %vm912, %v936, %v938
      %v940 = vrot.slane %v337, 3
      %v941 = vsel %vm912, %v938, %v940
      %v942 = vrot.slane %v338, 3
      %v943 = vsel %vm912, %v940, %v942
      %v944 = vrot.slane %v595, 3
      %v945 = vsel %vm912, %v942, %v944
      %v946 = vrot.slane %v786, 3
      %v947 = vsel %vm912, %v944, %v946
      %v948 = vrot.slane %v799, 3
      %v949 = vsel %vm912, %v946, %v948
      %v968 = vld [vmem:[%s1] sm:$0xf]
      %v969 = vld [vmem:[%s1 + $0x4] sm:$0xf]
      %v970 = vld [vmem:[%s1 + $0x8] sm:$0xf]
      %v971 = vld [vmem:[%s1 + $0xc] sm:$0xf]
      %v972 = vld [vmem:[%s1 + $0x10] sm:$0xf]
      %v973 = vld [vmem:[%s1 + $0x14] sm:$0xf]
      %v974 = vld [vmem:[%s1 + $0x18] sm:$0xf]
      %v975 = vld [vmem:[%s1 + $0x1c] sm:$0xf]
      %v976 = vld [vmem:[%s1 + $0x20] sm:$0xf]
      %v977 = vld [vmem:[%s1 + $0x24] sm:$0xf]
      %v978 = vld [vmem:[%s1 + $0x28] sm:$0xf]
      %v979 = vld [vmem:[%s1 + $0x2c] sm:$0xf]
      %v980 = vld [vmem:[%s1 + $0x30] sm:$0xf]
      %v981 = vld [vmem:[%s1 + $0x34] sm:$0xf]
      %v982 = vld [vmem:[%s1 + $0x38] sm:$0xf]
      %v983 = vld [vmem:[%s1 + $0x3c] sm:$0xf]
      %v984 = vld [vmem:[%s1 + $0x40] sm:$0xf]
      %v985 = vld [vmem:[%s1 + $0x44] sm:$0xf]
      %v986 = vld [vmem:[%s1 + $0x48] sm:$0xf]
      %v987 = vld [vmem:[%s1 + $0x4c] sm:$0xf]
      %v988 = vld [vmem:[%s1 + $0x50] sm:$0xf]
      %v989 = vld [vmem:[%s1 + $0x54] sm:$0xf]
      %v990 = vld [vmem:[%s1 + $0x58] sm:$0xf]
      %v991 = vld [vmem:[%s1 + $0x5c] sm:$0xf]
      %v992 = vld [vmem:[%s1 + $0x60] sm:$0xf]
      %v993 = vld [vmem:[%s1 + $0x64] sm:$0xf]
      %v994 = vld [vmem:[%s1 + $0x68] sm:$0xf]
      %v995 = vld [vmem:[%s1 + $0x6c] sm:$0xf]
      %v996 = vld [vmem:[%s1 + $0x70] sm:$0xf]
      %v997 = vld [vmem:[%s1 + $0x74] sm:$0xf]
      %v998 = vld [vmem:[%s1 + $0x78] sm:$0xf]
      %v999 = vld [vmem:[%s1 + $0x7c] sm:$0xf]
      %v1000 = vld [vmem:[%s1 + $0x80] sm:$0xf]
      %v1001 = vld [vmem:[%s1 + $0x84] sm:$0xf]
      %v1002 = vld [vmem:[%s1 + $0x88] sm:$0xf]
      %v1003 = vld [vmem:[%s1 + $0x8c] sm:$0xf]
      %v1004 = vld [vmem:[%s1 + $0x90] sm:$0xf]
      %v1005 = vld [vmem:[%s1 + $0x94] sm:$0xf]
      %v1006 = vld [vmem:[%s1 + $0x98] sm:$0xf]
      %v1007 = vld [vmem:[%s1 + $0x9c] sm:$0xf]
      %v1008 = vld [vmem:[%s1 + $0xa0] sm:$0xf]
      %v1009 = vld [vmem:[%s1 + $0xa4] sm:$0xf]
      %v1010 = vld [vmem:[%s1 + $0xa8] sm:$0xf]
      %v1011 = vld [vmem:[%s1 + $0xac] sm:$0xf]
      %v1012 = vld [vmem:[%s1 + $0xb0] sm:$0xf]
      %v1013 = vld [vmem:[%s1 + $0xb4] sm:$0xf]
      %v1014 = vld [vmem:[%s1 + $0xb8] sm:$0xf]
      %v1015 = vld [vmem:[%s1 + $0xbc] sm:$0xf]
      %v1016 = vld [vmem:[%s1 + $0xc0] sm:$0xf]
      %v1017 = vld [vmem:[%s1 + $0xc4] sm:$0xf]
      %v1018 = vld [vmem:[%s1 + $0xc8] sm:$0xf]
      %v1019 = vld [vmem:[%s1 + $0xcc] sm:$0xf]
      %v1020 = vld [vmem:[%s1 + $0xd0] sm:$0xf]
      %v1021 = vld [vmem:[%s1 + $0xd4] sm:$0xf]
      %v1022 = vld [vmem:[%s1 + $0xd8] sm:$0xf]
      %v1023 = vld [vmem:[%s1 + $0xdc] sm:$0xf]
      %v1024 = vld [vmem:[%s1 + $0xe0] sm:$0xf]
      %v1025 = vld [vmem:[%s1 + $0xe4] sm:$0xf]
      %v1026 = vld [vmem:[%s1 + $0xe8] sm:$0xf]
      %v1027 = vld [vmem:[%s1 + $0xec] sm:$0xf]
      %v1028 = vld [vmem:[%s1 + $0xf0] sm:$0xf]
      %v1029 = vld [vmem:[%s1 + $0xf4] sm:$0xf]
      %v1030 = vld [vmem:[%s1 + $0xf8] sm:$0xf]
      %v1031 = vld [vmem:[%s1 + $0xfc] sm:$0xf]
      %v1032 = vld [vmem:[%s1 + $0x100] sm:$0xf]
      %v1033 = vld [vmem:[%s1 + $0x104] sm:$0xf]
      %v1034 = vld [vmem:[%s1 + $0x108] sm:$0xf]
      %v1035 = vld [vmem:[%s1 + $0x10c] sm:$0xf]
      %v1036 = vld [vmem:[%s1 + $0x110] sm:$0xf]
      %v1037 = vld [vmem:[%s1 + $0x114] sm:$0xf]
      %v1038 = vld [vmem:[%s1 + $0x118] sm:$0xf]
      %v1039 = vld [vmem:[%s1 + $0x11c] sm:$0xf]
      %v1040 = vld [vmem:[%s1 + $0x120] sm:$0xf]
      %v1041 = vld [vmem:[%s1 + $0x124] sm:$0xf]
      %v1042 = vld [vmem:[%s1 + $0x128] sm:$0xf]
      %v1043 = vld [vmem:[%s1 + $0x12c] sm:$0xf]
      %v1044 = vld [vmem:[%s1 + $0x130] sm:$0xf]
      %v1045 = vld [vmem:[%s1 + $0x134] sm:$0xf]
      %v1046 = vld [vmem:[%s1 + $0x138] sm:$0xf]
      %v1047 = vld [vmem:[%s1 + $0x13c] sm:$0xf]
      %v1048 = vld [vmem:[%s1 + $0x140] sm:$0xf]
      %v1049 = vld [vmem:[%s1 + $0x144] sm:$0xf]
      %v1050 = vld [vmem:[%s1 + $0x148] sm:$0xf]
      %v1051 = vld [vmem:[%s1 + $0x14c] sm:$0xf]
      %v1052 = vld [vmem:[%s1 + $0x150] sm:$0xf]
      %v1053 = vld [vmem:[%s1 + $0x154] sm:$0xf]
      %v1054 = vld [vmem:[%s1 + $0x158] sm:$0xf]
      %v1055 = vld [vmem:[%s1 + $0x15c] sm:$0xf]
      %v1056 = vld [vmem:[%s1 + $0x160] sm:$0xf]
      %v1057 = vld [vmem:[%s1 + $0x164] sm:$0xf]
      %v1058 = vld [vmem:[%s1 + $0x168] sm:$0xf]
      %v1059 = vld [vmem:[%s1 + $0x16c] sm:$0xf]
      %v1060 = vld [vmem:[%s1 + $0x170] sm:$0xf]
      %v1061 = vld [vmem:[%s1 + $0x174] sm:$0xf]
      %v1062 = vld [vmem:[%s1 + $0x178] sm:$0xf]
      %v1063 = vld [vmem:[%s1 + $0x17c] sm:$0xf]
      %v1064 = vld [vmem:[%s1 + $0x180] sm:$0xf]
      %v1065 = vld [vmem:[%s1 + $0x184] sm:$0xf]
      %v1066 = vld [vmem:[%s1 + $0x188] sm:$0xf]
      %v1067 = vld [vmem:[%s1 + $0x18c] sm:$0xf]
      %v1068 = vld [vmem:[%s1 + $0x190] sm:$0xf]
      %v1069 = vld [vmem:[%s1 + $0x194] sm:$0xf]
      %v1070 = vld [vmem:[%s1 + $0x198] sm:$0xf]
      %v1071 = vld [vmem:[%s1 + $0x19c] sm:$0xf]
      %v1072 = vld [vmem:[%s1 + $0x1a0] sm:$0xf]
      %v1073 = vld [vmem:[%s1 + $0x1a4] sm:$0xf]
      %v1074 = vld [vmem:[%s1 + $0x1a8] sm:$0xf]
      %v1075 = vld [vmem:[%s1 + $0x1ac] sm:$0xf]
      %v1076 = vld [vmem:[%s1 + $0x1b0] sm:$0xf]
      %v1077 = vld [vmem:[%s1 + $0x1b4] sm:$0xf]
      %v1078 = vld [vmem:[%s1 + $0x1b8] sm:$0xf]
      %v1079 = vld [vmem:[%s1 + $0x1bc] sm:$0xf]
      %v1080 = vld [vmem:[%s1 + $0x1c0] sm:$0xf]
      %v1081 = vld [vmem:[%s1 + $0x1c4] sm:$0xf]
      %v1082 = vld [vmem:[%s1 + $0x1c8] sm:$0xf]
      %v1083 = vld [vmem:[%s1 + $0x1cc] sm:$0xf]
      %v1084 = vld [vmem:[%s1 + $0x1d0] sm:$0xf]
      %v1085 = vld [vmem:[%s1 + $0x1d4] sm:$0xf]
      %v1086 = vld [vmem:[%s1 + $0x1d8] sm:$0xf]
      %v1087 = vld [vmem:[%s1 + $0x1dc] sm:$0xf]
      %v1088 = vld [vmem:[%s1 + $0x1e0] sm:$0xf]
      %v1089 = vld [vmem:[%s1 + $0x1e4] sm:$0xf]
      %v1090 = vld [vmem:[%s1 + $0x1e8] sm:$0xf]
      %v1091 = vld [vmem:[%s1 + $0x1ec] sm:$0xf]
      %v1092 = vld [vmem:[%s1 + $0x1f0] sm:$0xf]
      %v1093 = vld [vmem:[%s1 + $0x1f4] sm:$0xf]
      %v1094 = vld [vmem:[%s1 + $0x1f8] sm:$0xf]
      %v1095 = vld [vmem:[%s1 + $0x1fc] sm:$0xf]
      %v1096 = vld [vmem:[%s1 + $0x200] sm:$0xf]
      %v1097 = vld [vmem:[%s1 + $0x204] sm:$0xf]
      %v1098 = vld [vmem:[%s1 + $0x208] sm:$0xf]
      %v1099 = vld [vmem:[%s1 + $0x20c] sm:$0xf]
      %v1100 = vld [vmem:[%s1 + $0x210] sm:$0xf]
      %v1101 = vld [vmem:[%s1 + $0x214] sm:$0xf]
      %v1102 = vld [vmem:[%s1 + $0x218] sm:$0xf]
      %v1103 = vld [vmem:[%s1 + $0x21c] sm:$0xf]
      %v1104 = vld [vmem:[%s1 + $0x220] sm:$0xf]
      %v1105 = vld [vmem:[%s1 + $0x224] sm:$0xf]
      %v1106 = vld [vmem:[%s1 + $0x228] sm:$0xf]
      %v1107 = vld [vmem:[%s1 + $0x22c] sm:$0xf]
      %v1108 = vld [vmem:[%s1 + $0x230] sm:$0xf]
      %v1109 = vld [vmem:[%s1 + $0x234] sm:$0xf]
      %v1110 = vld [vmem:[%s1 + $0x238] sm:$0xf]
      %v1111 = vld [vmem:[%s1 + $0x23c] sm:$0xf]
      %v1256 = vunpack.c.l.b16 %v968
      %v1257 = vunpack.c.l.b16 %v969
      %v1258 = vunpack.c.l.b16 %v970
      %v1259 = vunpack.c.l.b16 %v971
      %v1260 = vunpack.c.l.b16 %v972
      %v1261 = vunpack.c.l.b16 %v973
      %v1262 = vunpack.c.l.b16 %v974
      %v1263 = vunpack.c.l.b16 %v975
      %v1264 = vunpack.c.l.b16 %v976
      %v1265 = vunpack.c.l.b16 %v977
      %v1266 = vunpack.c.l.b16 %v978
      %v1267 = vunpack.c.l.b16 %v979
      %v1268 = vunpack.c.l.b16 %v980
      %v1269 = vunpack.c.l.b16 %v981
      %v1270 = vunpack.c.l.b16 %v982
      %v1271 = vunpack.c.l.b16 %v983
      %v1272 = vunpack.c.l.b16 %v984
      %v1273 = vunpack.c.l.b16 %v985
      %v1274 = vunpack.c.l.b16 %v986
      %v1275 = vunpack.c.l.b16 %v987
      %v1276 = vunpack.c.l.b16 %v988
      %v1277 = vunpack.c.l.b16 %v989
      %v1278 = vunpack.c.l.b16 %v990
      %v1279 = vunpack.c.l.b16 %v991
      %v1280 = vunpack.c.l.b16 %v992
      %v1281 = vunpack.c.l.b16 %v993
      %v1282 = vunpack.c.l.b16 %v994
      %v1283 = vunpack.c.l.b16 %v995
      %v1284 = vunpack.c.l.b16 %v996
      %v1285 = vunpack.c.l.b16 %v997
      %v1286 = vunpack.c.l.b16 %v998
      %v1287 = vunpack.c.l.b16 %v999
      %v1288 = vunpack.c.l.b16 %v1000
      %v1289 = vunpack.c.l.b16 %v1001
      %v1290 = vunpack.c.l.b16 %v1002
      %v1291 = vunpack.c.l.b16 %v1003
      %v1292 = vunpack.c.l.b16 %v1004
      %v1293 = vunpack.c.l.b16 %v1005
      %v1294 = vunpack.c.l.b16 %v1006
      %v1295 = vunpack.c.l.b16 %v1007
      %v1296 = vunpack.c.l.b16 %v1008
      %v1297 = vunpack.c.l.b16 %v1009
      %v1298 = vunpack.c.l.b16 %v1010
      %v1299 = vunpack.c.l.b16 %v1011
      %v1300 = vunpack.c.l.b16 %v1012
      %v1301 = vunpack.c.l.b16 %v1013
      %v1302 = vunpack.c.l.b16 %v1014
      %v1303 = vunpack.c.l.b16 %v1015
      %v1304 = vunpack.c.l.b16 %v1016
      %v1305 = vunpack.c.l.b16 %v1017
      %v1306 = vunpack.c.l.b16 %v1018
      %v1307 = vunpack.c.l.b16 %v1019
      %v1308 = vunpack.c.l.b16 %v1020
      %v1309 = vunpack.c.l.b16 %v1021
      %v1310 = vunpack.c.l.b16 %v1022
      %v1311 = vunpack.c.l.b16 %v1023
      %v1312 = vunpack.c.l.b16 %v1024
      %v1313 = vunpack.c.l.b16 %v1025
      %v1314 = vunpack.c.l.b16 %v1026
      %v1315 = vunpack.c.l.b16 %v1027
      %v1316 = vunpack.c.l.b16 %v1028
      %v1317 = vunpack.c.l.b16 %v1029
      %v1318 = vunpack.c.l.b16 %v1030
      %v1319 = vunpack.c.l.b16 %v1031
      %v1320 = vunpack.c.l.b16 %v1032
      %v1321 = vunpack.c.l.b16 %v1033
      %v1322 = vunpack.c.l.b16 %v1034
      %v1323 = vunpack.c.l.b16 %v1035
      %v1324 = vunpack.c.l.b16 %v1036
      %v1325 = vunpack.c.l.b16 %v1037
      %v1326 = vunpack.c.l.b16 %v1038
      %v1327 = vunpack.c.l.b16 %v1039
      %v1328 = vunpack.c.l.b16 %v1040
      %v1329 = vunpack.c.l.b16 %v1041
      %v1330 = vunpack.c.l.b16 %v1042
      %v1331 = vunpack.c.l.b16 %v1043
      %v1332 = vunpack.c.l.b16 %v1044
      %v1333 = vunpack.c.l.b16 %v1045
      %v1334 = vunpack.c.l.b16 %v1046
      %v1335 = vunpack.c.l.b16 %v1047
      %v1336 = vunpack.c.l.b16 %v1048
      %v1337 = vunpack.c.l.b16 %v1049
      %v1338 = vunpack.c.l.b16 %v1050
      %v1339 = vunpack.c.l.b16 %v1051
      %v1340 = vunpack.c.l.b16 %v1052
      %v1341 = vunpack.c.l.b16 %v1053
      %v1342 = vunpack.c.l.b16 %v1054
      %v1343 = vunpack.c.l.b16 %v1055
      %v1344 = vunpack.c.l.b16 %v1056
      %v1345 = vunpack.c.l.b16 %v1057
      %v1346 = vunpack.c.l.b16 %v1058
      %v1347 = vunpack.c.l.b16 %v1059
      %v1348 = vunpack.c.l.b16 %v1060
      %v1349 = vunpack.c.l.b16 %v1061
      %v1350 = vunpack.c.l.b16 %v1062
      %v1351 = vunpack.c.l.b16 %v1063
      %v1352 = vunpack.c.l.b16 %v1064
      %v1353 = vunpack.c.l.b16 %v1065
      %v1354 = vunpack.c.l.b16 %v1066
      %v1355 = vunpack.c.l.b16 %v1067
      %v1356 = vunpack.c.l.b16 %v1068
      %v1357 = vunpack.c.l.b16 %v1069
      %v1358 = vunpack.c.l.b16 %v1070
      %v1359 = vunpack.c.l.b16 %v1071
      %v1360 = vunpack.c.l.b16 %v1072
      %v1361 = vunpack.c.l.b16 %v1073
      %v1362 = vunpack.c.l.b16 %v1074
      %v1363 = vunpack.c.l.b16 %v1075
      %v1364 = vunpack.c.l.b16 %v1076
      %v1365 = vunpack.c.l.b16 %v1077
      %v1366 = vunpack.c.l.b16 %v1078
      %v1367 = vunpack.c.l.b16 %v1079
      %v1368 = vunpack.c.l.b16 %v1080
      %v1369 = vunpack.c.l.b16 %v1081
      %v1370 = vunpack.c.l.b16 %v1082
      %v1371 = vunpack.c.l.b16 %v1083
      %v1372 = vunpack.c.l.b16 %v1084
      %v1373 = vunpack.c.l.b16 %v1085
      %v1374 = vunpack.c.l.b16 %v1086
      %v1375 = vunpack.c.l.b16 %v1087
      %v1376 = vunpack.c.l.b16 %v1088
      %v1377 = vunpack.c.l.b16 %v1089
      %v1378 = vunpack.c.l.b16 %v1090
      %v1379 = vunpack.c.l.b16 %v1091
      %v1380 = vunpack.c.l.b16 %v1092
      %v1381 = vunpack.c.l.b16 %v1093
      %v1382 = vunpack.c.l.b16 %v1094
      %v1383 = vunpack.c.l.b16 %v1095
      %v1384 = vunpack.c.l.b16 %v1096
      %v1385 = vunpack.c.l.b16 %v1097
      %v1386 = vunpack.c.l.b16 %v1098
      %v1387 = vunpack.c.l.b16 %v1099
      %v1388 = vunpack.c.l.b16 %v1100
      %v1389 = vunpack.c.l.b16 %v1101
      %v1390 = vunpack.c.l.b16 %v1102
      %v1391 = vunpack.c.l.b16 %v1103
      %v1392 = vunpack.c.l.b16 %v1104
      %v1393 = vunpack.c.l.b16 %v1105
      %v1394 = vunpack.c.l.b16 %v1106
      %v1395 = vunpack.c.l.b16 %v1107
      %v1396 = vunpack.c.l.b16 %v1108
      %v1397 = vunpack.c.l.b16 %v1109
      %v1398 = vunpack.c.l.b16 %v1110
      %v1399 = vunpack.c.l.b16 %v1111
      %v1400 = vpack.c.b16 %v1257, %v1256
      %v1401 = vpack.c.b16 %v1259, %v1258
      %v1402 = vpack.c.b16 %v1261, %v1260
      %v1403 = vpack.c.b16 %v1263, %v1262
      %v1404 = vpack.c.b16 %v1265, %v1264
      %v1405 = vpack.c.b16 %v1267, %v1266
      %v1406 = vpack.c.b16 %v1269, %v1268
      %v1407 = vpack.c.b16 %v1271, %v1270
      %v1408 = vpack.c.b16 %v1273, %v1272
      %v1409 = vpack.c.b16 %v1275, %v1274
      %v1410 = vpack.c.b16 %v1277, %v1276
      %v1411 = vpack.c.b16 %v1279, %v1278
      %v1412 = vpack.c.b16 %v1281, %v1280
      %v1413 = vpack.c.b16 %v1283, %v1282
      %v1414 = vpack.c.b16 %v1285, %v1284
      %v1415 = vpack.c.b16 %v1287, %v1286
      %v1416 = vpack.c.b16 %v1289, %v1288
      %v1417 = vpack.c.b16 %v1291, %v1290
      %v1418 = vpack.c.b16 %v1293, %v1292
      %v1419 = vpack.c.b16 %v1295, %v1294
      %v1420 = vpack.c.b16 %v1297, %v1296
      %v1421 = vpack.c.b16 %v1299, %v1298
      %v1422 = vpack.c.b16 %v1301, %v1300
      %v1423 = vpack.c.b16 %v1303, %v1302
      %v1424 = vpack.c.b16 %v1305, %v1304
      %v1425 = vpack.c.b16 %v1307, %v1306
      %v1426 = vpack.c.b16 %v1309, %v1308
      %v1427 = vpack.c.b16 %v1311, %v1310
      %v1428 = vpack.c.b16 %v1313, %v1312
      %v1429 = vpack.c.b16 %v1315, %v1314
      %v1430 = vpack.c.b16 %v1317, %v1316
      %v1431 = vpack.c.b16 %v1319, %v1318
      %v1432 = vpack.c.b16 %v1321, %v1320
      %v1433 = vpack.c.b16 %v1323, %v1322
      %v1434 = vpack.c.b16 %v1325, %v1324
      %v1435 = vpack.c.b16 %v1327, %v1326
      %v1436 = vpack.c.b16 %v1329, %v1328
      %v1437 = vpack.c.b16 %v1331, %v1330
      %v1438 = vpack.c.b16 %v1333, %v1332
      %v1439 = vpack.c.b16 %v1335, %v1334
      %v1440 = vpack.c.b16 %v1337, %v1336
      %v1441 = vpack.c.b16 %v1339, %v1338
      %v1442 = vpack.c.b16 %v1341, %v1340
      %v1443 = vpack.c.b16 %v1343, %v1342
      %v1444 = vpack.c.b16 %v1345, %v1344
      %v1445 = vpack.c.b16 %v1347, %v1346
      %v1446 = vpack.c.b16 %v1349, %v1348
      %v1447 = vpack.c.b16 %v1351, %v1350
      %v1448 = vpack.c.b16 %v1353, %v1352
      %v1449 = vpack.c.b16 %v1355, %v1354
      %v1450 = vpack.c.b16 %v1357, %v1356
      %v1451 = vpack.c.b16 %v1359, %v1358
      %v1452 = vpack.c.b16 %v1361, %v1360
      %v1453 = vpack.c.b16 %v1363, %v1362
      %v1454 = vpack.c.b16 %v1365, %v1364
      %v1455 = vpack.c.b16 %v1367, %v1366
      %v1456 = vpack.c.b16 %v1369, %v1368
      %v1457 = vpack.c.b16 %v1371, %v1370
      %v1458 = vpack.c.b16 %v1373, %v1372
      %v1459 = vpack.c.b16 %v1375, %v1374
      %v1460 = vpack.c.b16 %v1377, %v1376
      %v1461 = vpack.c.b16 %v1379, %v1378
      %v1462 = vpack.c.b16 %v1381, %v1380
      %v1463 = vpack.c.b16 %v1383, %v1382
      %v1464 = vpack.c.b16 %v1385, %v1384
      %v1465 = vpack.c.b16 %v1387, %v1386
      %v1466 = vpack.c.b16 %v1389, %v1388
      %v1467 = vpack.c.b16 %v1391, %v1390
      %v1468 = vpack.c.b16 %v1393, %v1392
      %v1469 = vpack.c.b16 %v1395, %v1394
      %v1470 = vpack.c.b16 %v1397, %v1396
      %v1471 = vpack.c.b16 %v1399, %v1398
      %1544 = vmatprep.subr.bf16.mxu0 0
      %1545 = vmatpush1.bf16.msra.mxu0 %v1400
      %1546 = vmatprep.subr.bf16.mxu0 0
      %1547 = vmatpush1.bf16.msra.mxu0 %v1401
      %1548 = vmatprep.subr.bf16.mxu0 0
      %1549 = vmatpush1.bf16.msra.mxu0 %v1402
      %1550 = vmatprep.subr.bf16.mxu0 0
      %1551 = vmatpush1.bf16.msra.mxu0 %v1403
      %1552 = vmatprep.subr.bf16.mxu0 0
      %1553 = vmatpush1.bf16.msra.mxu0 %v1404
      %1554 = vmatprep.subr.bf16.mxu0 0
      %1555 = vmatpush1.bf16.msra.mxu0 %v1405
      %1556 = vmatprep.subr.bf16.mxu0 0
      %1557 = vmatpush1.bf16.msra.mxu0 %v1406
      %1558 = vmatprep.subr.bf16.mxu0 0
      %1559 = vmatpush1.bf16.msra.mxu0 %v1407
      %1560 = vmatprep.subr.bf16.mxu0 0
      %1561 = vmatpush1.bf16.msra.mxu0 %v1408
      %1562 = vmatprep.subr.bf16.mxu0 0
      %1563 = vmatpush1.bf16.msra.mxu0 %v1409
      %1564 = vmatprep.subr.bf16.mxu0 0
      %1565 = vmatpush1.bf16.msra.mxu0 %v1410
      %1566 = vmatprep.subr.bf16.mxu0 0
      %1567 = vmatpush1.bf16.msra.mxu0 %v1411
      %1568 = vmatprep.subr.bf16.mxu0 0
      %1569 = vmatpush1.bf16.msra.mxu0 %v1412
      %1570 = vmatprep.subr.bf16.mxu0 0
      %1571 = vmatpush1.bf16.msra.mxu0 %v1413
      %1572 = vmatprep.subr.bf16.mxu0 0
      %1573 = vmatpush1.bf16.msra.mxu0 %v1414
      %1574 = vmatprep.subr.bf16.mxu0 0
      %1575 = vmatpush1.bf16.msra.mxu0 %v1415
      %1576 = vmatprep.mubr.bf16.mxu0 %v372
      %1577 = vmatmul.mubr.bf16.gmra.mrb[0].mxu0 %v321
      %v1578 = vpop.f32.mrb[0].mxu0
      %v1579 = vadd.f32 0.0, %v1578
      %v1580 = vpop.f32.mrb[0].mxu0
      %v1581 = vpop.f32.mrb[0].mxu0
      %v1582 = vadd.f32 0.0, %v1581
      %v1583 = vpop.f32.mrb[0].mxu0
      %1584 = vmatprep.mubr.bf16.mxu0 %v380
      %1585 = vmatmul.mubr.bf16.gmra.mrb[0].mxu0 %v322
      %v1586 = vpop.f32.mrb[0].mxu0
      %v1587 = vadd.f32 0.0, %v1586
      %v1588 = vpop.f32.mrb[0].mxu0
      %v1589 = vpop.f32.mrb[0].mxu0
      %v1590 = vadd.f32 0.0, %v1589
      %v1591 = vpop.f32.mrb[0].mxu0
      %1592 = vmatprep.mubr.bf16.mxu0 %v388
      %1593 = vmatmul.mubr.bf16.gmra.mrb[0].mxu0 %v323
      %v1594 = vpop.f32.mrb[0].mxu0
      %v1595 = vadd.f32 0.0, %v1594
      %v1596 = vpop.f32.mrb[0].mxu0
      %v1597 = vpop.f32.mrb[0].mxu0
      %v1598 = vadd.f32 0.0, %v1597
      %v1599 = vpop.f32.mrb[0].mxu0
      %1600 = vmatprep.mubr.bf16.mxu0 %v396
      %1601 = vmatmul.mubr.bf16.gmra.mrb[0].mxu0 %v324
      %v1602 = vpop.f32.mrb[0].mxu0
      %v1603 = vadd.f32 0.0, %v1602
      %v1604 = vpop.f32.mrb[0].mxu0
      %v1605 = vpop.f32.mrb[0].mxu0
      %v1606 = vadd.f32 0.0, %v1605
      %v1607 = vpop.f32.mrb[0].mxu0
      %1608 = vmatprep.mubr.bf16.mxu0 %v404
      %1609 = vmatmul.mubr.bf16.gmra.mrb[0].mxu0 %v325
      %v1610 = vpop.f32.mrb[0].mxu0
      %v1611 = vadd.f32 0.0, %v1610
      %v1612 = vpop.f32.mrb[0].mxu0
      %v1613 = vpop.f32.mrb[0].mxu0
      %v1614 = vadd.f32 0.0, %v1613
      %v1615 = vpop.f32.mrb[0].mxu0
      %1616 = vmatprep.mubr.bf16.mxu0 %v412
      %1617 = vmatmul.mubr.bf16.gmra.mrb[0].mxu0 %v326
      %v1618 = vpop.f32.mrb[0].mxu0
      %v1619 = vadd.f32 0.0, %v1618
      %v1620 = vpop.f32.mrb[0].mxu0
      %v1621 = vpop.f32.mrb[0].mxu0
      %v1622 = vadd.f32 0.0, %v1621
      %v1623 = vpop.f32.mrb[0].mxu0
      %1624 = vmatprep.mubr.bf16.mxu0 %v420
      %1625 = vmatmul.mubr.bf16.gmra.mrb[0].mxu0 %v327
      %v1626 = vpop.f32.mrb[0].mxu0
      %v1627 = vadd.f32 0.0, %v1626
      %v1628 = vpop.f32.mrb[0].mxu0
      %v1629 = vpop.f32.mrb[0].mxu0
      %v1630 = vadd.f32 0.0, %v1629
      %v1631 = vpop.f32.mrb[0].mxu0
      %1632 = vmatprep.mubr.bf16.mxu0 %v428
      %1633 = vmatmul.mubr.bf16.gmra.mrb[0].mxu0 %v328
      %v1634 = vpop.f32.mrb[0].mxu0
      %v1635 = vadd.f32 0.0, %v1634
      %v1636 = vpop.f32.mrb[0].mxu0
      %v1637 = vpop.f32.mrb[0].mxu0
      %v1638 = vadd.f32 0.0, %v1637
      %v1639 = vpop.f32.mrb[0].mxu0
      %1640 = vmatprep.mubr.bf16.mxu0 %v436
      %1641 = vmatmul.mubr.bf16.gmra.mrb[0].mxu0 %v329
      %v1642 = vpop.f32.mrb[0].mxu0
      %v1643 = vadd.f32 0.0, %v1642
      %v1644 = vpop.f32.mrb[0].mxu0
      %v1645 = vpop.f32.mrb[0].mxu0
      %v1646 = vadd.f32 0.0, %v1645
      %v1647 = vpop.f32.mrb[0].mxu0
      %1648 = vmatprep.mubr.bf16.mxu0 %v444
      %1649 = vmatmul.mubr.bf16.gmra.mrb[0].mxu0 %v330
      %v1650 = vpop.f32.mrb[0].mxu0
      %v1651 = vadd.f32 0.0, %v1650
      %v1652 = vpop.f32.mrb[0].mxu0
      %v1653 = vpop.f32.mrb[0].mxu0
      %v1654 = vadd.f32 0.0, %v1653
      %v1655 = vpop.f32.mrb[0].mxu0
      %1656 = vmatprep.mubr.bf16.mxu0 %v452
      %1657 = vmatmul.mubr.bf16.gmra.mrb[0].mxu0 %v331
      %v1658 = vpop.f32.mrb[0].mxu0
      %v1659 = vadd.f32 0.0, %v1658
      %v1660 = vpop.f32.mrb[0].mxu0
      %v1661 = vpop.f32.mrb[0].mxu0
      %v1662 = vadd.f32 0.0, %v1661
      %v1663 = vpop.f32.mrb[0].mxu0
      %1664 = vmatprep.mubr.bf16.mxu0 %v460
      %1665 = vmatmul.mubr.bf16.gmra.mrb[0].mxu0 %v332
      %v1666 = vpop.f32.mrb[0].mxu0
      %v1667 = vadd.f32 0.0, %v1666
      %v1668 = vpop.f32.mrb[0].mxu0
      %v1669 = vpop.f32.mrb[0].mxu0
      %v1670 = vadd.f32 0.0, %v1669
      %v1671 = vpop.f32.mrb[0].mxu0
      %1672 = vmatprep.mubr.bf16.mxu0 %v468
      %1673 = vmatmul.mubr.bf16.gmra.mrb[0].mxu0 %v333
      %v1674 = vpop.f32.mrb[0].mxu0
      %v1675 = vadd.f32 0.0, %v1674
      %v1676 = vpop.f32.mrb[0].mxu0
      %v1677 = vpop.f32.mrb[0].mxu0
      %v1678 = vadd.f32 0.0, %v1677
      %v1679 = vpop.f32.mrb[0].mxu0
      %1680 = vmatprep.mubr.bf16.mxu0 %v476
      %1681 = vmatmul.mubr.bf16.gmra.mrb[0].mxu0 %v334
      %v1682 = vpop.f32.mrb[0].mxu0
      %v1683 = vadd.f32 0.0, %v1682
      %v1684 = vpop.f32.mrb[0].mxu0
      %v1685 = vpop.f32.mrb[0].mxu0
      %v1686 = vadd.f32 0.0, %v1685
      %v1687 = vpop.f32.mrb[0].mxu0
      %1688 = vmatprep.mubr.bf16.mxu0 %v484
      %1689 = vmatmul.mubr.bf16.gmra.mrb[0].mxu0 %v335
      %v1690 = vpop.f32.mrb[0].mxu0
      %v1691 = vadd.f32 0.0, %v1690
      %v1692 = vpop.f32.mrb[0].mxu0
      %v1693 = vpop.f32.mrb[0].mxu0
      %v1694 = vadd.f32 0.0, %v1693
      %v1695 = vpop.f32.mrb[0].mxu0
      %1696 = vmatprep.mubr.bf16.mxu0 %v492
      %1697 = vmatmul.mubr.bf16.gmra.mrb[0].mxu0 %v336
      %v1698 = vpop.f32.mrb[0].mxu0
      %v1699 = vadd.f32 0.0, %v1698
      %v1700 = vpop.f32.mrb[0].mxu0
      %v1701 = vpop.f32.mrb[0].mxu0
      %v1702 = vadd.f32 0.0, %v1701
      %v1703 = vpop.f32.mrb[0].mxu0
      %1704 = vmatprep.mubr.bf16.mxu0 %v500
      %1705 = vmatmul.mubr.bf16.gmra.mrb[0].mxu0 %v337
      %v1706 = vpop.f32.mrb[0].mxu0
      %v1707 = vadd.f32 0.0, %v1706
      %v1708 = vpop.f32.mrb[0].mxu0
      %v1709 = vpop.f32.mrb[0].mxu0
      %v1710 = vadd.f32 0.0, %v1709
      %v1711 = vpop.f32.mrb[0].mxu0
      %1712 = vmatprep.mubr.bf16.mxu0 %v508
      %1713 = vmatmul.mubr.bf16.gmra.mrb[0].mxu0 %v338
      %v1714 = vpop.f32.mrb[0].mxu0
      %v1715 = vadd.f32 0.0, %v1714
      %v1716 = vpop.f32.mrb[0].mxu0
      %v1717 = vpop.f32.mrb[0].mxu0
      %v1718 = vadd.f32 0.0, %v1717
      %v1719 = vpop.f32.mrb[0].mxu0
      %1720 = vdwg.mxu0
      %1721 = vmatprep.subr.bf16.mxu0 0
      %1722 = vmatpush1.bf16.msra.mxu0 %v1416
      %1723 = vmatprep.subr.bf16.mxu0 0
      %1724 = vmatpush1.bf16.msra.mxu0 %v1417
      %1725 = vmatprep.subr.bf16.mxu0 0
      %1726 = vmatpush1.bf16.msra.mxu0 %v1418
      %1727 = vmatprep.subr.bf16.mxu0 0
      %1728 = vmatpush1.bf16.msra.mxu0 %v1419
      %1729 = vmatprep.subr.bf16.mxu0 0
      %1730 = vmatpush1.bf16.msra.mxu0 %v1420
      %1731 = vmatprep.subr.bf16.mxu0 0
      %1732 = vmatpush1.bf16.msra.mxu0 %v1421
      %1733 = vmatprep.subr.bf16.mxu0 0
      %1734 = vmatpush1.bf16.msra.mxu0 %v1422
      %1735 = vmatprep.subr.bf16.mxu0 0
      %1736 = vmatpush1.bf16.msra.mxu0 %v1423
      %1737 = vmatprep.subr.bf16.mxu0 0
      %1738 = vmatpush1.bf16.msra.mxu0 %v1424
      %1739 = vmatprep.subr.bf16.mxu0 0
      %1740 = vmatpush1.bf16.msra.mxu0 %v1425
      %1741 = vmatprep.subr.bf16.mxu0 0
      %1742 = vmatpush1.bf16.msra.mxu0 %v1426
      %1743 = vmatprep.subr.bf16.mxu0 0
      %1744 = vmatpush1.bf16.msra.mxu0 %v1427
      %1745 = vmatprep.subr.bf16.mxu0 0
      %1746 = vmatpush1.bf16.msra.mxu0 %v1428
      %1747 = vmatprep.subr.bf16.mxu0 0
      %1748 = vmatpush1.bf16.msra.mxu0 %v1429
      %1749 = vmatprep.subr.bf16.mxu0 0
      %1750 = vmatpush1.bf16.msra.mxu0 %v1430
      %1751 = vmatprep.subr.bf16.mxu0 0
      %1752 = vmatpush1.bf16.msra.mxu0 %v1431
      %1753 = vmatprep.mubr.bf16.mxu0 %v598
      %1754 = vmatmul.mubr.bf16.gmra.mrb[0].mxu0 %v533
      %v1755 = vpop.f32.mrb[0].mxu0
      %v1756 = vadd.f32 %v1579, %v1755
      %v1757 = vpop.f32.mrb[0].mxu0
      %v1758 = vpop.f32.mrb[0].mxu0
      %v1759 = vadd.f32 %v1582, %v1758
      %v1760 = vpop.f32.mrb[0].mxu0
      %1761 = vmatprep.mubr.bf16.mxu0 %v537
      %1762 = vmatmul.mubr.bf16.gmra.mrb[0].mxu0 %v535
      %v1763 = vpop.f32.mrb[0].mxu0
      %v1764 = vadd.f32 %v1587, %v1763
      %v1765 = vpop.f32.mrb[0].mxu0
      %v1766 = vpop.f32.mrb[0].mxu0
      %v1767 = vadd.f32 %v1590, %v1766
      %v1768 = vpop.f32.mrb[0].mxu0
      %1769 = vmatprep.mubr.bf16.mxu0 %v539
      %1770 = vmatmul.mubr.bf16.gmra.mrb[0].mxu0 %v537
      %v1771 = vpop.f32.mrb[0].mxu0
      %v1772 = vadd.f32 %v1595, %v1771
      %v1773 = vpop.f32.mrb[0].mxu0
      %v1774 = vpop.f32.mrb[0].mxu0
      %v1775 = vadd.f32 %v1598, %v1774
      %v1776 = vpop.f32.mrb[0].mxu0
      %1777 = vmatprep.mubr.bf16.mxu0 %v541
      %1778 = vmatmul.mubr.bf16.gmra.mrb[0].mxu0 %v539
      %v1779 = vpop.f32.mrb[0].mxu0
      %v1780 = vadd.f32 %v1603, %v1779
      %v1781 = vpop.f32.mrb[0].mxu0
      %v1782 = vpop.f32.mrb[0].mxu0
      %v1783 = vadd.f32 %v1606, %v1782
      %v1784 = vpop.f32.mrb[0].mxu0
      %1785 = vmatprep.mubr.bf16.mxu0 %v543
      %1786 = vmatmul.mubr.bf16.gmra.mrb[0].mxu0 %v541
      %v1787 = vpop.f32.mrb[0].mxu0
      %v1788 = vadd.f32 %v1611, %v1787
      %v1789 = vpop.f32.mrb[0].mxu0
      %v1790 = vpop.f32.mrb[0].mxu0
      %v1791 = vadd.f32 %v1614, %v1790
      %v1792 = vpop.f32.mrb[0].mxu0
      %1793 = vmatprep.mubr.bf16.mxu0 %v545
      %1794 = vmatmul.mubr.bf16.gmra.mrb[0].mxu0 %v543
      %v1795 = vpop.f32.mrb[0].mxu0
      %v1796 = vadd.f32 %v1619, %v1795
      %v1797 = vpop.f32.mrb[0].mxu0
      %v1798 = vpop.f32.mrb[0].mxu0
      %v1799 = vadd.f32 %v1622, %v1798
      %v1800 = vpop.f32.mrb[0].mxu0
      %1801 = vmatprep.mubr.bf16.mxu0 %v547
      %1802 = vmatmul.mubr.bf16.gmra.mrb[0].mxu0 %v545
      %v1803 = vpop.f32.mrb[0].mxu0
      %v1804 = vadd.f32 %v1627, %v1803
      %v1805 = vpop.f32.mrb[0].mxu0
      %v1806 = vpop.f32.mrb[0].mxu0
      %v1807 = vadd.f32 %v1630, %v1806
      %v1808 = vpop.f32.mrb[0].mxu0
      %1809 = vmatprep.mubr.bf16.mxu0 %v549
      %1810 = vmatmul.mubr.bf16.gmra.mrb[0].mxu0 %v547
      %v1811 = vpop.f32.mrb[0].mxu0
      %v1812 = vadd.f32 %v1635, %v1811
      %v1813 = vpop.f32.mrb[0].mxu0
      %v1814 = vpop.f32.mrb[0].mxu0
      %v1815 = vadd.f32 %v1638, %v1814
      %v1816 = vpop.f32.mrb[0].mxu0
      %1817 = vmatprep.mubr.bf16.mxu0 %v551
      %1818 = vmatmul.mubr.bf16.gmra.mrb[0].mxu0 %v549
      %v1819 = vpop.f32.mrb[0].mxu0
      %v1820 = vadd.f32 %v1643, %v1819
      %v1821 = vpop.f32.mrb[0].mxu0
      %v1822 = vpop.f32.mrb[0].mxu0
      %v1823 = vadd.f32 %v1646, %v1822
      %v1824 = vpop.f32.mrb[0].mxu0
      %1825 = vmatprep.mubr.bf16.mxu0 %v553
      %1826 = vmatmul.mubr.bf16.gmra.mrb[0].mxu0 %v551
      %v1827 = vpop.f32.mrb[0].mxu0
      %v1828 = vadd.f32 %v1651, %v1827
      %v1829 = vpop.f32.mrb[0].mxu0
      %v1830 = vpop.f32.mrb[0].mxu0
      %v1831 = vadd.f32 %v1654, %v1830
      %v1832 = vpop.f32.mrb[0].mxu0
      %1833 = vmatprep.mubr.bf16.mxu0 %v555
      %1834 = vmatmul.mubr.bf16.gmra.mrb[0].mxu0 %v553
      %v1835 = vpop.f32.mrb[0].mxu0
      %v1836 = vadd.f32 %v1659, %v1835
      %v1837 = vpop.f32.mrb[0].mxu0
      %v1838 = vpop.f32.mrb[0].mxu0
      %v1839 = vadd.f32 %v1662, %v1838
      %v1840 = vpop.f32.mrb[0].mxu0
      %1841 = vmatprep.mubr.bf16.mxu0 %v557
      %1842 = vmatmul.mubr.bf16.gmra.mrb[0].mxu0 %v555
      %v1843 = vpop.f32.mrb[0].mxu0
      %v1844 = vadd.f32 %v1667, %v1843
      %v1845 = vpop.f32.mrb[0].mxu0
      %v1846 = vpop.f32.mrb[0].mxu0
      %v1847 = vadd.f32 %v1670, %v1846
      %v1848 = vpop.f32.mrb[0].mxu0
      %1849 = vmatprep.mubr.bf16.mxu0 %v559
      %1850 = vmatmul.mubr.bf16.gmra.mrb[0].mxu0 %v557
      %v1851 = vpop.f32.mrb[0].mxu0
      %v1852 = vadd.f32 %v1675, %v1851
      %v1853 = vpop.f32.mrb[0].mxu0
      %v1854 = vpop.f32.mrb[0].mxu0
      %v1855 = vadd.f32 %v1678, %v1854
      %v1856 = vpop.f32.mrb[0].mxu0
      %1857 = vmatprep.mubr.bf16.mxu0 %v561
      %1858 = vmatmul.mubr.bf16.gmra.mrb[0].mxu0 %v559
      %v1859 = vpop.f32.mrb[0].mxu0
      %v1860 = vadd.f32 %v1683, %v1859
      %v1861 = vpop.f32.mrb[0].mxu0
      %v1862 = vpop.f32.mrb[0].mxu0
      %v1863 = vadd.f32 %v1686, %v1862
      %v1864 = vpop.f32.mrb[0].mxu0
      %1865 = vmatprep.mubr.bf16.mxu0 %v563
      %1866 = vmatmul.mubr.bf16.gmra.mrb[0].mxu0 %v561
      %v1867 = vpop.f32.mrb[0].mxu0
      %v1868 = vadd.f32 %v1691, %v1867
      %v1869 = vpop.f32.mrb[0].mxu0
      %v1870 = vpop.f32.mrb[0].mxu0
      %v1871 = vadd.f32 %v1694, %v1870
      %v1872 = vpop.f32.mrb[0].mxu0
      %1873 = vmatprep.mubr.bf16.mxu0 %v565
      %1874 = vmatmul.mubr.bf16.gmra.mrb[0].mxu0 %v563
      %v1875 = vpop.f32.mrb[0].mxu0
      %v1876 = vadd.f32 %v1699, %v1875
      %v1877 = vpop.f32.mrb[0].mxu0
      %v1878 = vpop.f32.mrb[0].mxu0
      %v1879 = vadd.f32 %v1702, %v1878
      %v1880 = vpop.f32.mrb[0].mxu0
      %1881 = vmatprep.mubr.bf16.mxu0 %v600
      %1882 = vmatmul.mubr.bf16.gmra.mrb[0].mxu0 %v565
      %v1883 = vpop.f32.mrb[0].mxu0
      %v1884 = vadd.f32 %v1707, %v1883
      %v1885 = vpop.f32.mrb[0].mxu0
      %v1886 = vpop.f32.mrb[0].mxu0
      %v1887 = vadd.f32 %v1710, %v1886
      %v1888 = vpop.f32.mrb[0].mxu0
      %1889 = vmatprep.mubr.bf16.mxu0 %v602
      %1890 = vmatmul.mubr.bf16.gmra.mrb[0].mxu0 %v567
      %v1891 = vpop.f32.mrb[0].mxu0
      %v1892 = vadd.f32 %v1715, %v1891
      %v1893 = vpop.f32.mrb[0].mxu0
      %v1894 = vpop.f32.mrb[0].mxu0
      %v1895 = vadd.f32 %v1718, %v1894
      %v1896 = vpop.f32.mrb[0].mxu0
      %1897 = vdwg.mxu0
      %1898 = vmatprep.subr.bf16.mxu0 0
      %1899 = vmatpush1.bf16.msra.mxu0 %v1432
      %1900 = vmatprep.subr.bf16.mxu0 0
      %1901 = vmatpush1.bf16.msra.mxu0 %v1433
      %1902 = vmatprep.subr.bf16.mxu0 0
      %1903 = vmatpush1.bf16.msra.mxu0 %v1434
      %1904 = vmatprep.subr.bf16.mxu0 0
      %1905 = vmatpush1.bf16.msra.mxu0 %v1435
      %1906 = vmatprep.subr.bf16.mxu0 0
      %1907 = vmatpush1.bf16.msra.mxu0 %v1436
      %1908 = vmatprep.subr.bf16.mxu0 0
      %1909 = vmatpush1.bf16.msra.mxu0 %v1437
      %1910 = vmatprep.subr.bf16.mxu0 0
      %1911 = vmatpush1.bf16.msra.mxu0 %v1438
      %1912 = vmatprep.subr.bf16.mxu0 0
      %1913 = vmatpush1.bf16.msra.mxu0 %v1439
      %1914 = vmatprep.subr.bf16.mxu0 0
      %1915 = vmatpush1.bf16.msra.mxu0 %v1440
      %1916 = vmatprep.subr.bf16.mxu0 0
      %1917 = vmatpush1.bf16.msra.mxu0 %v1441
      %1918 = vmatprep.subr.bf16.mxu0 0
      %1919 = vmatpush1.bf16.msra.mxu0 %v1442
      %1920 = vmatprep.subr.bf16.mxu0 0
      %1921 = vmatpush1.bf16.msra.mxu0 %v1443
      %1922 = vmatprep.subr.bf16.mxu0 0
      %1923 = vmatpush1.bf16.msra.mxu0 %v1444
      %1924 = vmatprep.subr.bf16.mxu0 0
      %1925 = vmatpush1.bf16.msra.mxu0 %v1445
      %1926 = vmatprep.subr.bf16.mxu0 0
      %1927 = vmatpush1.bf16.msra.mxu0 %v1446
      %1928 = vmatprep.subr.bf16.mxu0 0
      %1929 = vmatpush1.bf16.msra.mxu0 %v1447
      %1930 = vmatprep.mubr.bf16.mxu0 %v724
      %1931 = vmatmul.mubr.bf16.gmra.mrb[0].mxu0 %v621
      %v1932 = vpop.f32.mrb[0].mxu0
      %v1933 = vadd.f32 %v1756, %v1932
      %v1934 = vpop.f32.mrb[0].mxu0
      %v1935 = vpop.f32.mrb[0].mxu0
      %v1936 = vadd.f32 %v1759, %v1935
      %v1937 = vpop.f32.mrb[0].mxu0
      %1938 = vmatprep.mubr.bf16.mxu0 %v726
      %1939 = vmatmul.mubr.bf16.gmra.mrb[0].mxu0 %v625
      %v1940 = vpop.f32.mrb[0].mxu0
      %v1941 = vadd.f32 %v1764, %v1940
      %v1942 = vpop.f32.mrb[0].mxu0
      %v1943 = vpop.f32.mrb[0].mxu0
      %v1944 = vadd.f32 %v1767, %v1943
      %v1945 = vpop.f32.mrb[0].mxu0
      %1946 = vmatprep.mubr.bf16.mxu0 %v728
      %1947 = vmatmul.mubr.bf16.gmra.mrb[0].mxu0 %v629
      %v1948 = vpop.f32.mrb[0].mxu0
      %v1949 = vadd.f32 %v1772, %v1948
      %v1950 = vpop.f32.mrb[0].mxu0
      %v1951 = vpop.f32.mrb[0].mxu0
      %v1952 = vadd.f32 %v1775, %v1951
      %v1953 = vpop.f32.mrb[0].mxu0
      %1954 = vmatprep.mubr.bf16.mxu0 %v730
      %1955 = vmatmul.mubr.bf16.gmra.mrb[0].mxu0 %v633
      %v1956 = vpop.f32.mrb[0].mxu0
      %v1957 = vadd.f32 %v1780, %v1956
      %v1958 = vpop.f32.mrb[0].mxu0
      %v1959 = vpop.f32.mrb[0].mxu0
      %v1960 = vadd.f32 %v1783, %v1959
      %v1961 = vpop.f32.mrb[0].mxu0
      %1962 = vmatprep.mubr.bf16.mxu0 %v732
      %1963 = vmatmul.mubr.bf16.gmra.mrb[0].mxu0 %v637
      %v1964 = vpop.f32.mrb[0].mxu0
      %v1965 = vadd.f32 %v1788, %v1964
      %v1966 = vpop.f32.mrb[0].mxu0
      %v1967 = vpop.f32.mrb[0].mxu0
      %v1968 = vadd.f32 %v1791, %v1967
      %v1969 = vpop.f32.mrb[0].mxu0
      %1970 = vmatprep.mubr.bf16.mxu0 %v734
      %1971 = vmatmul.mubr.bf16.gmra.mrb[0].mxu0 %v641
      %v1972 = vpop.f32.mrb[0].mxu0
      %v1973 = vadd.f32 %v1796, %v1972
      %v1974 = vpop.f32.mrb[0].mxu0
      %v1975 = vpop.f32.mrb[0].mxu0
      %v1976 = vadd.f32 %v1799, %v1975
      %v1977 = vpop.f32.mrb[0].mxu0
      %1978 = vmatprep.mubr.bf16.mxu0 %v736
      %1979 = vmatmul.mubr.bf16.gmra.mrb[0].mxu0 %v645
      %v1980 = vpop.f32.mrb[0].mxu0
      %v1981 = vadd.f32 %v1804, %v1980
      %v1982 = vpop.f32.mrb[0].mxu0
      %v1983 = vpop.f32.mrb[0].mxu0
      %v1984 = vadd.f32 %v1807, %v1983
      %v1985 = vpop.f32.mrb[0].mxu0
      %1986 = vmatprep.mubr.bf16.mxu0 %v738
      %1987 = vmatmul.mubr.bf16.gmra.mrb[0].mxu0 %v649
      %v1988 = vpop.f32.mrb[0].mxu0
      %v1989 = vadd.f32 %v1812, %v1988
      %v1990 = vpop.f32.mrb[0].mxu0
      %v1991 = vpop.f32.mrb[0].mxu0
      %v1992 = vadd.f32 %v1815, %v1991
      %v1993 = vpop.f32.mrb[0].mxu0
      %1994 = vmatprep.mubr.bf16.mxu0 %v740
      %1995 = vmatmul.mubr.bf16.gmra.mrb[0].mxu0 %v653
      %v1996 = vpop.f32.mrb[0].mxu0
      %v1997 = vadd.f32 %v1820, %v1996
      %v1998 = vpop.f32.mrb[0].mxu0
      %v1999 = vpop.f32.mrb[0].mxu0
      %v2000 = vadd.f32 %v1823, %v1999
      %v2001 = vpop.f32.mrb[0].mxu0
      %2002 = vmatprep.mubr.bf16.mxu0 %v742
      %2003 = vmatmul.mubr.bf16.gmra.mrb[0].mxu0 %v657
      %v2004 = vpop.f32.mrb[0].mxu0
      %v2005 = vadd.f32 %v1828, %v2004
      %v2006 = vpop.f32.mrb[0].mxu0
      %v2007 = vpop.f32.mrb[0].mxu0
      %v2008 = vadd.f32 %v1831, %v2007
      %v2009 = vpop.f32.mrb[0].mxu0
      %2010 = vmatprep.mubr.bf16.mxu0 %v744
      %2011 = vmatmul.mubr.bf16.gmra.mrb[0].mxu0 %v661
      %v2012 = vpop.f32.mrb[0].mxu0
      %v2013 = vadd.f32 %v1836, %v2012
      %v2014 = vpop.f32.mrb[0].mxu0
      %v2015 = vpop.f32.mrb[0].mxu0
      %v2016 = vadd.f32 %v1839, %v2015
      %v2017 = vpop.f32.mrb[0].mxu0
      %2018 = vmatprep.mubr.bf16.mxu0 %v746
      %2019 = vmatmul.mubr.bf16.gmra.mrb[0].mxu0 %v665
      %v2020 = vpop.f32.mrb[0].mxu0
      %v2021 = vadd.f32 %v1844, %v2020
      %v2022 = vpop.f32.mrb[0].mxu0
      %v2023 = vpop.f32.mrb[0].mxu0
      %v2024 = vadd.f32 %v1847, %v2023
      %v2025 = vpop.f32.mrb[0].mxu0
      %2026 = vmatprep.mubr.bf16.mxu0 %v748
      %2027 = vmatmul.mubr.bf16.gmra.mrb[0].mxu0 %v669
      %v2028 = vpop.f32.mrb[0].mxu0
      %v2029 = vadd.f32 %v1852, %v2028
      %v2030 = vpop.f32.mrb[0].mxu0
      %v2031 = vpop.f32.mrb[0].mxu0
      %v2032 = vadd.f32 %v1855, %v2031
      %v2033 = vpop.f32.mrb[0].mxu0
      %2034 = vmatprep.mubr.bf16.mxu0 %v750
      %2035 = vmatmul.mubr.bf16.gmra.mrb[0].mxu0 %v673
      %v2036 = vpop.f32.mrb[0].mxu0
      %v2037 = vadd.f32 %v1860, %v2036
      %v2038 = vpop.f32.mrb[0].mxu0
      %v2039 = vpop.f32.mrb[0].mxu0
      %v2040 = vadd.f32 %v1863, %v2039
      %v2041 = vpop.f32.mrb[0].mxu0
      %2042 = vmatprep.mubr.bf16.mxu0 %v752
      %2043 = vmatmul.mubr.bf16.gmra.mrb[0].mxu0 %v677
      %v2044 = vpop.f32.mrb[0].mxu0
      %v2045 = vadd.f32 %v1868, %v2044
      %v2046 = vpop.f32.mrb[0].mxu0
      %v2047 = vpop.f32.mrb[0].mxu0
      %v2048 = vadd.f32 %v1871, %v2047
      %v2049 = vpop.f32.mrb[0].mxu0
      %2050 = vmatprep.mubr.bf16.mxu0 %v754
      %2051 = vmatmul.mubr.bf16.gmra.mrb[0].mxu0 %v681
      %v2052 = vpop.f32.mrb[0].mxu0
      %v2053 = vadd.f32 %v1876, %v2052
      %v2054 = vpop.f32.mrb[0].mxu0
      %v2055 = vpop.f32.mrb[0].mxu0
      %v2056 = vadd.f32 %v1879, %v2055
      %v2057 = vpop.f32.mrb[0].mxu0
      %2058 = vmatprep.mubr.bf16.mxu0 %v756
      %2059 = vmatmul.mubr.bf16.gmra.mrb[0].mxu0 %v690
      %v2060 = vpop.f32.mrb[0].mxu0
      %v2061 = vadd.f32 %v1884, %v2060
      %v2062 = vpop.f32.mrb[0].mxu0
      %v2063 = vpop.f32.mrb[0].mxu0
      %v2064 = vadd.f32 %v1887, %v2063
      %v2065 = vpop.f32.mrb[0].mxu0
      %2066 = vmatprep.mubr.bf16.mxu0 %v758
      %2067 = vmatmul.mubr.bf16.gmra.mrb[0].mxu0 %v699
      %v2068 = vpop.f32.mrb[0].mxu0
      %v2069 = vadd.f32 %v1892, %v2068
      %v2070 = vpop.f32.mrb[0].mxu0
      %v2071 = vpop.f32.mrb[0].mxu0
      %v2072 = vadd.f32 %v1895, %v2071
      %v2073 = vpop.f32.mrb[0].mxu0
      %2074 = vdwg.mxu0
      %2075 = vmatprep.subr.bf16.mxu0 0
      %2076 = vmatpush1.bf16.msra.mxu0 %v1448
      %2077 = vmatprep.subr.bf16.mxu0 0
      %2078 = vmatpush1.bf16.msra.mxu0 %v1449
      %2079 = vmatprep.subr.bf16.mxu0 0
      %2080 = vmatpush1.bf16.msra.mxu0 %v1450
      %2081 = vmatprep.subr.bf16.mxu0 0
      %2082 = vmatpush1.bf16.msra.mxu0 %v1451
      %2083 = vmatprep.subr.bf16.mxu0 0
      %2084 = vmatpush1.bf16.msra.mxu0 %v1452
      %2085 = vmatprep.subr.bf16.mxu0 0
      %2086 = vmatpush1.bf16.msra.mxu0 %v1453
      %2087 = vmatprep.subr.bf16.mxu0 0
      %2088 = vmatpush1.bf16.msra.mxu0 %v1454
      %2089 = vmatprep.subr.bf16.mxu0 0
      %2090 = vmatpush1.bf16.msra.mxu0 %v1455
      %2091 = vmatprep.subr.bf16.mxu0 0
      %2092 = vmatpush1.bf16.msra.mxu0 %v1456
      %2093 = vmatprep.subr.bf16.mxu0 0
      %2094 = vmatpush1.bf16.msra.mxu0 %v1457
      %2095 = vmatprep.subr.bf16.mxu0 0
      %2096 = vmatpush1.bf16.msra.mxu0 %v1458
      %2097 = vmatprep.subr.bf16.mxu0 0
      %2098 = vmatpush1.bf16.msra.mxu0 %v1459
      %2099 = vmatprep.subr.bf16.mxu0 0
      %2100 = vmatpush1.bf16.msra.mxu0 %v1460
      %2101 = vmatprep.subr.bf16.mxu0 0
      %2102 = vmatpush1.bf16.msra.mxu0 %v1461
      %2103 = vmatprep.subr.bf16.mxu0 0
      %2104 = vmatpush1.bf16.msra.mxu0 %v1462
      %2105 = vmatprep.subr.bf16.mxu0 0
      %2106 = vmatpush1.bf16.msra.mxu0 %v1463
      %2107 = vmatprep.mubr.bf16.mxu0 %v812
      %2108 = vmatmul.mubr.bf16.gmra.mrb[0].mxu0 %v789
      %v2109 = vpop.f32.mrb[0].mxu0
      %v2110 = vadd.f32 %v1933, %v2109
      %v2111 = vpop.f32.mrb[0].mxu0
      %v2112 = vpop.f32.mrb[0].mxu0
      %v2113 = vadd.f32 %v1936, %v2112
      %v2114 = vpop.f32.mrb[0].mxu0
      %2115 = vmatprep.mubr.bf16.mxu0 %v816
      %2116 = vmatmul.mubr.bf16.gmra.mrb[0].mxu0 %v728
      %v2117 = vpop.f32.mrb[0].mxu0
      %v2118 = vadd.f32 %v1941, %v2117
      %v2119 = vpop.f32.mrb[0].mxu0
      %v2120 = vpop.f32.mrb[0].mxu0
      %v2121 = vadd.f32 %v1944, %v2120
      %v2122 = vpop.f32.mrb[0].mxu0
      %2123 = vmatprep.mubr.bf16.mxu0 %v820
      %2124 = vmatmul.mubr.bf16.gmra.mrb[0].mxu0 %v730
      %v2125 = vpop.f32.mrb[0].mxu0
      %v2126 = vadd.f32 %v1949, %v2125
      %v2127 = vpop.f32.mrb[0].mxu0
      %v2128 = vpop.f32.mrb[0].mxu0
      %v2129 = vadd.f32 %v1952, %v2128
      %v2130 = vpop.f32.mrb[0].mxu0
      %2131 = vmatprep.mubr.bf16.mxu0 %v824
      %2132 = vmatmul.mubr.bf16.gmra.mrb[0].mxu0 %v732
      %v2133 = vpop.f32.mrb[0].mxu0
      %v2134 = vadd.f32 %v1957, %v2133
      %v2135 = vpop.f32.mrb[0].mxu0
      %v2136 = vpop.f32.mrb[0].mxu0
      %v2137 = vadd.f32 %v1960, %v2136
      %v2138 = vpop.f32.mrb[0].mxu0
      %2139 = vmatprep.mubr.bf16.mxu0 %v828
      %2140 = vmatmul.mubr.bf16.gmra.mrb[0].mxu0 %v734
      %v2141 = vpop.f32.mrb[0].mxu0
      %v2142 = vadd.f32 %v1965, %v2141
      %v2143 = vpop.f32.mrb[0].mxu0
      %v2144 = vpop.f32.mrb[0].mxu0
      %v2145 = vadd.f32 %v1968, %v2144
      %v2146 = vpop.f32.mrb[0].mxu0
      %2147 = vmatprep.mubr.bf16.mxu0 %v832
      %2148 = vmatmul.mubr.bf16.gmra.mrb[0].mxu0 %v736
      %v2149 = vpop.f32.mrb[0].mxu0
      %v2150 = vadd.f32 %v1973, %v2149
      %v2151 = vpop.f32.mrb[0].mxu0
      %v2152 = vpop.f32.mrb[0].mxu0
      %v2153 = vadd.f32 %v1976, %v2152
      %v2154 = vpop.f32.mrb[0].mxu0
      %2155 = vmatprep.mubr.bf16.mxu0 %v836
      %2156 = vmatmul.mubr.bf16.gmra.mrb[0].mxu0 %v738
      %v2157 = vpop.f32.mrb[0].mxu0
      %v2158 = vadd.f32 %v1981, %v2157
      %v2159 = vpop.f32.mrb[0].mxu0
      %v2160 = vpop.f32.mrb[0].mxu0
      %v2161 = vadd.f32 %v1984, %v2160
      %v2162 = vpop.f32.mrb[0].mxu0
      %2163 = vmatprep.mubr.bf16.mxu0 %v840
      %2164 = vmatmul.mubr.bf16.gmra.mrb[0].mxu0 %v740
      %v2165 = vpop.f32.mrb[0].mxu0
      %v2166 = vadd.f32 %v1989, %v2165
      %v2167 = vpop.f32.mrb[0].mxu0
      %v2168 = vpop.f32.mrb[0].mxu0
      %v2169 = vadd.f32 %v1992, %v2168
      %v2170 = vpop.f32.mrb[0].mxu0
      %2171 = vmatprep.mubr.bf16.mxu0 %v844
      %2172 = vmatmul.mubr.bf16.gmra.mrb[0].mxu0 %v742
      %v2173 = vpop.f32.mrb[0].mxu0
      %v2174 = vadd.f32 %v1997, %v2173
      %v2175 = vpop.f32.mrb[0].mxu0
      %v2176 = vpop.f32.mrb[0].mxu0
      %v2177 = vadd.f32 %v2000, %v2176
      %v2178 = vpop.f32.mrb[0].mxu0
      %2179 = vmatprep.mubr.bf16.mxu0 %v848
      %2180 = vmatmul.mubr.bf16.gmra.mrb[0].mxu0 %v744
      %v2181 = vpop.f32.mrb[0].mxu0
      %v2182 = vadd.f32 %v2005, %v2181
      %v2183 = vpop.f32.mrb[0].mxu0
      %v2184 = vpop.f32.mrb[0].mxu0
      %v2185 = vadd.f32 %v2008, %v2184
      %v2186 = vpop.f32.mrb[0].mxu0
      %2187 = vmatprep.mubr.bf16.mxu0 %v852
      %2188 = vmatmul.mubr.bf16.gmra.mrb[0].mxu0 %v746
      %v2189 = vpop.f32.mrb[0].mxu0
      %v2190 = vadd.f32 %v2013, %v2189
      %v2191 = vpop.f32.mrb[0].mxu0
      %v2192 = vpop.f32.mrb[0].mxu0
      %v2193 = vadd.f32 %v2016, %v2192
      %v2194 = vpop.f32.mrb[0].mxu0
      %2195 = vmatprep.mubr.bf16.mxu0 %v856
      %2196 = vmatmul.mubr.bf16.gmra.mrb[0].mxu0 %v748
      %v2197 = vpop.f32.mrb[0].mxu0
      %v2198 = vadd.f32 %v2021, %v2197
      %v2199 = vpop.f32.mrb[0].mxu0
      %v2200 = vpop.f32.mrb[0].mxu0
      %v2201 = vadd.f32 %v2024, %v2200
      %v2202 = vpop.f32.mrb[0].mxu0
      %2203 = vmatprep.mubr.bf16.mxu0 %v860
      %2204 = vmatmul.mubr.bf16.gmra.mrb[0].mxu0 %v750
      %v2205 = vpop.f32.mrb[0].mxu0
      %v2206 = vadd.f32 %v2029, %v2205
      %v2207 = vpop.f32.mrb[0].mxu0
      %v2208 = vpop.f32.mrb[0].mxu0
      %v2209 = vadd.f32 %v2032, %v2208
      %v2210 = vpop.f32.mrb[0].mxu0
      %2211 = vmatprep.mubr.bf16.mxu0 %v864
      %2212 = vmatmul.mubr.bf16.gmra.mrb[0].mxu0 %v752
      %v2213 = vpop.f32.mrb[0].mxu0
      %v2214 = vadd.f32 %v2037, %v2213
      %v2215 = vpop.f32.mrb[0].mxu0
      %v2216 = vpop.f32.mrb[0].mxu0
      %v2217 = vadd.f32 %v2040, %v2216
      %v2218 = vpop.f32.mrb[0].mxu0
      %2219 = vmatprep.mubr.bf16.mxu0 %v868
      %2220 = vmatmul.mubr.bf16.gmra.mrb[0].mxu0 %v754
      %v2221 = vpop.f32.mrb[0].mxu0
      %v2222 = vadd.f32 %v2045, %v2221
      %v2223 = vpop.f32.mrb[0].mxu0
      %v2224 = vpop.f32.mrb[0].mxu0
      %v2225 = vadd.f32 %v2048, %v2224
      %v2226 = vpop.f32.mrb[0].mxu0
      %2227 = vmatprep.mubr.bf16.mxu0 %v872
      %2228 = vmatmul.mubr.bf16.gmra.mrb[0].mxu0 %v756
      %v2229 = vpop.f32.mrb[0].mxu0
      %v2230 = vadd.f32 %v2053, %v2229
      %v2231 = vpop.f32.mrb[0].mxu0
      %v2232 = vpop.f32.mrb[0].mxu0
      %v2233 = vadd.f32 %v2056, %v2232
      %v2234 = vpop.f32.mrb[0].mxu0
      %2235 = vmatprep.mubr.bf16.mxu0 %v881
      %2236 = vmatmul.mubr.bf16.gmra.mrb[0].mxu0 %v791
      %v2237 = vpop.f32.mrb[0].mxu0
      %v2238 = vadd.f32 %v2061, %v2237
      %v2239 = vpop.f32.mrb[0].mxu0
      %v2240 = vpop.f32.mrb[0].mxu0
      %v2241 = vadd.f32 %v2064, %v2240
      %v2242 = vpop.f32.mrb[0].mxu0
      %2243 = vmatprep.mubr.bf16.mxu0 %v890
      %2244 = vmatmul.mubr.bf16.gmra.mrb[0].mxu0 %v793
      %v2245 = vpop.f32.mrb[0].mxu0
      %v2246 = vadd.f32 %v2069, %v2245
      %v2247 = vpop.f32.mrb[0].mxu0
      %v2248 = vpop.f32.mrb[0].mxu0
      %v2249 = vadd.f32 %v2072, %v2248
      %v2250 = vpop.f32.mrb[0].mxu0
      %2251 = vdwg.mxu0
      %2252 = vmatprep.subr.bf16.mxu0 0
      %2253 = vmatpush1.bf16.msra.mxu0 %v1464
      %2254 = vmatprep.subr.bf16.mxu0 0
      %2255 = vmatpush1.bf16.msra.mxu0 %v1465
      %2256 = vmatprep.subr.bf16.mxu0 0
      %2257 = vmatpush1.bf16.msra.mxu0 %v1466
      %2258 = vmatprep.subr.bf16.mxu0 0
      %2259 = vmatpush1.bf16.msra.mxu0 %v1467
      %2260 = vmatprep.subr.bf16.mxu0 0
      %2261 = vmatpush1.bf16.msra.mxu0 %v1468
      %2262 = vmatprep.subr.bf16.mxu0 0
      %2263 = vmatpush1.bf16.msra.mxu0 %v1469
      %2264 = vmatprep.subr.bf16.mxu0 0
      %2265 = vmatpush1.bf16.msra.mxu0 %v1470
      %2266 = vmatprep.subr.bf16.mxu0 0
      %2267 = vmatpush1.bf16.msra.mxu0 %v1471
      %2268 = vmatprep.subr.bf16.mxu0 0
      %2269 = vmatpush1.bf16.msra.mxu0 0
      %2270 = vmatprep.subr.bf16.mxu0 0
      %2271 = vmatpush1.bf16.msra.mxu0 0
      %2272 = vmatprep.subr.bf16.mxu0 0
      %2273 = vmatpush1.bf16.msra.mxu0 0
      %2274 = vmatprep.subr.bf16.mxu0 0
      %2275 = vmatpush1.bf16.msra.mxu0 0
      %2276 = vmatprep.subr.bf16.mxu0 0
      %2277 = vmatpush1.bf16.msra.mxu0 0
      %2278 = vmatprep.subr.bf16.mxu0 0
      %2279 = vmatpush1.bf16.msra.mxu0 0
      %2280 = vmatprep.subr.bf16.mxu0 0
      %2281 = vmatpush1.bf16.msra.mxu0 0
      %2282 = vmatprep.subr.bf16.mxu0 0
      %2283 = vmatpush1.bf16.msra.mxu0 0
      %2284 = vmatprep.mubr.bf16.mxu0 0
      %2285 = vmatmul.mubr.bf16.gmra.mrb[0].mxu0 %v915
      %v2286 = vpop.f32.mrb[0].mxu0
      %v2287 = vadd.f32 %v2110, %v2286
      %v2288 = vpop.f32.mrb[0].mxu0
      %v2289 = vpop.f32.mrb[0].mxu0
      %v2290 = vadd.f32 %v2113, %v2289
      %v2291 = vpop.f32.mrb[0].mxu0
      %2292 = vmatprep.mubr.bf16.mxu0 0
      %2293 = vmatmul.mubr.bf16.gmra.mrb[0].mxu0 %v917
      %v2294 = vpop.f32.mrb[0].mxu0
      %v2295 = vadd.f32 %v2118, %v2294
      %v2296 = vpop.f32.mrb[0].mxu0
      %v2297 = vpop.f32.mrb[0].mxu0
      %v2298 = vadd.f32 %v2121, %v2297
      %v2299 = vpop.f32.mrb[0].mxu0
      %2300 = vmatprep.mubr.bf16.mxu0 0
      %2301 = vmatmul.mubr.bf16.gmra.mrb[0].mxu0 %v919
      %v2302 = vpop.f32.mrb[0].mxu0
      %v2303 = vadd.f32 %v2126, %v2302
      %v2304 = vpop.f32.mrb[0].mxu0
      %v2305 = vpop.f32.mrb[0].mxu0
      %v2306 = vadd.f32 %v2129, %v2305
      %v2307 = vpop.f32.mrb[0].mxu0
      %2308 = vmatprep.mubr.bf16.mxu0 0
      %2309 = vmatmul.mubr.bf16.gmra.mrb[0].mxu0 %v921
      %v2310 = vpop.f32.mrb[0].mxu0
      %v2311 = vadd.f32 %v2134, %v2310
      %v2312 = vpop.f32.mrb[0].mxu0
      %v2313 = vpop.f32.mrb[0].mxu0
      %v2314 = vadd.f32 %v2137, %v2313
      %v2315 = vpop.f32.mrb[0].mxu0
      %2316 = vmatprep.mubr.bf16.mxu0 0
      %2317 = vmatmul.mubr.bf16.gmra.mrb[0].mxu0 %v923
      %v2318 = vpop.f32.mrb[0].mxu0
      %v2319 = vadd.f32 %v2142, %v2318
      %v2320 = vpop.f32.mrb[0].mxu0
      %v2321 = vpop.f32.mrb[0].mxu0
      %v2322 = vadd.f32 %v2145, %v2321
      %v2323 = vpop.f32.mrb[0].mxu0
      %2324 = vmatprep.mubr.bf16.mxu0 0
      %2325 = vmatmul.mubr.bf16.gmra.mrb[0].mxu0 %v925
      %v2326 = vpop.f32.mrb[0].mxu0
      %v2327 = vadd.f32 %v2150, %v2326
      %v2328 = vpop.f32.mrb[0].mxu0
      %v2329 = vpop.f32.mrb[0].mxu0
      %v2330 = vadd.f32 %v2153, %v2329
      %v2331 = vpop.f32.mrb[0].mxu0
      %2332 = vmatprep.mubr.bf16.mxu0 0
      %2333 = vmatmul.mubr.bf16.gmra.mrb[0].mxu0 %v927
      %v2334 = vpop.f32.mrb[0].mxu0
      %v2335 = vadd.f32 %v2158, %v2334
      %v2336 = vpop.f32.mrb[0].mxu0
      %v2337 = vpop.f32.mrb[0].mxu0
      %v2338 = vadd.f32 %v2161, %v2337
      %v2339 = vpop.f32.mrb[0].mxu0
      %2340 = vmatprep.mubr.bf16.mxu0 0
      %2341 = vmatmul.mubr.bf16.gmra.mrb[0].mxu0 %v929
      %v2342 = vpop.f32.mrb[0].mxu0
      %v2343 = vadd.f32 %v2166, %v2342
      %v2344 = vpop.f32.mrb[0].mxu0
      %v2345 = vpop.f32.mrb[0].mxu0
      %v2346 = vadd.f32 %v2169, %v2345
      %v2347 = vpop.f32.mrb[0].mxu0
      %2348 = vmatprep.mubr.bf16.mxu0 0
      %2349 = vmatmul.mubr.bf16.gmra.mrb[0].mxu0 %v931
      %v2350 = vpop.f32.mrb[0].mxu0
      %v2351 = vadd.f32 %v2174, %v2350
      %v2352 = vpop.f32.mrb[0].mxu0
      %v2353 = vpop.f32.mrb[0].mxu0
      %v2354 = vadd.f32 %v2177, %v2353
      %v2355 = vpop.f32.mrb[0].mxu0
      %2356 = vmatprep.mubr.bf16.mxu0 0
      %2357 = vmatmul.mubr.bf16.gmra.mrb[0].mxu0 %v933
      %v2358 = vpop.f32.mrb[0].mxu0
      %v2359 = vadd.f32 %v2182, %v2358
      %v2360 = vpop.f32.mrb[0].mxu0
      %v2361 = vpop.f32.mrb[0].mxu0
      %v2362 = vadd.f32 %v2185, %v2361
      %v2363 = vpop.f32.mrb[0].mxu0
      %2364 = vmatprep.mubr.bf16.mxu0 0
      %2365 = vmatmul.mubr.bf16.gmra.mrb[0].mxu0 %v935
      %v2366 = vpop.f32.mrb[0].mxu0
      %v2367 = vadd.f32 %v2190, %v2366
      %v2368 = vpop.f32.mrb[0].mxu0
      %v2369 = vpop.f32.mrb[0].mxu0
      %v2370 = vadd.f32 %v2193, %v2369
      %v2371 = vpop.f32.mrb[0].mxu0
      %2372 = vmatprep.mubr.bf16.mxu0 0
      %2373 = vmatmul.mubr.bf16.gmra.mrb[0].mxu0 %v937
      %v2374 = vpop.f32.mrb[0].mxu0
      %v2375 = vadd.f32 %v2198, %v2374
      %v2376 = vpop.f32.mrb[0].mxu0
      %v2377 = vpop.f32.mrb[0].mxu0
      %v2378 = vadd.f32 %v2201, %v2377
      %v2379 = vpop.f32.mrb[0].mxu0
      %2380 = vmatprep.mubr.bf16.mxu0 0
      %2381 = vmatmul.mubr.bf16.gmra.mrb[0].mxu0 %v939
      %v2382 = vpop.f32.mrb[0].mxu0
      %v2383 = vadd.f32 %v2206, %v2382
      %v2384 = vpop.f32.mrb[0].mxu0
      %v2385 = vpop.f32.mrb[0].mxu0
      %v2386 = vadd.f32 %v2209, %v2385
      %v2387 = vpop.f32.mrb[0].mxu0
      %2388 = vmatprep.mubr.bf16.mxu0 0
      %2389 = vmatmul.mubr.bf16.gmra.mrb[0].mxu0 %v941
      %v2390 = vpop.f32.mrb[0].mxu0
      %v2391 = vadd.f32 %v2214, %v2390
      %v2392 = vpop.f32.mrb[0].mxu0
      %v2393 = vpop.f32.mrb[0].mxu0
      %v2394 = vadd.f32 %v2217, %v2393
      %v2395 = vpop.f32.mrb[0].mxu0
      %2396 = vmatprep.mubr.bf16.mxu0 0
      %2397 = vmatmul.mubr.bf16.gmra.mrb[0].mxu0 %v943
      %v2398 = vpop.f32.mrb[0].mxu0
      %v2399 = vadd.f32 %v2222, %v2398
      %v2400 = vpop.f32.mrb[0].mxu0
      %v2401 = vpop.f32.mrb[0].mxu0
      %v2402 = vadd.f32 %v2225, %v2401
      %v2403 = vpop.f32.mrb[0].mxu0
      %2404 = vmatprep.mubr.bf16.mxu0 0
      %2405 = vmatmul.mubr.bf16.gmra.mrb[0].mxu0 %v945
      %v2406 = vpop.f32.mrb[0].mxu0
      %v2407 = vadd.f32 %v2230, %v2406
      %v2408 = vpop.f32.mrb[0].mxu0
      %v2409 = vpop.f32.mrb[0].mxu0
      %v2410 = vadd.f32 %v2233, %v2409
      %v2411 = vpop.f32.mrb[0].mxu0
      %2412 = vmatprep.mubr.bf16.mxu0 0
      %2413 = vmatmul.mubr.bf16.gmra.mrb[0].mxu0 %v947
      %v2414 = vpop.f32.mrb[0].mxu0
      %v2415 = vadd.f32 %v2238, %v2414
      %v2416 = vpop.f32.mrb[0].mxu0
      %v2417 = vpop.f32.mrb[0].mxu0
      %v2418 = vadd.f32 %v2241, %v2417
      %v2419 = vpop.f32.mrb[0].mxu0
      %2420 = vmatprep.mubr.bf16.mxu0 0
      %2421 = vmatmul.mubr.bf16.gmra.mrb[0].mxu0 %v949
      %v2422 = vpop.f32.mrb[0].mxu0
      %v2423 = vadd.f32 %v2246, %v2422
      %v2424 = vpop.f32.mrb[0].mxu0
      %v2425 = vpop.f32.mrb[0].mxu0
      %v2426 = vadd.f32 %v2249, %v2425
      %v2427 = vpop.f32.mrb[0].mxu0
      %2428 = vdwg.mxu0
      %v2429 = vld [vmem:[%s2] sm:$0x1]
      %v2431 = vlaneseq
      %v2432 = vshrl.u32 %v2431, 7
      %v2433 = vsub.s32 0, %v2432
      %v2434 = vrot.slane %v2429, %v2433
      %v2436 = vmul.f32 %v2287, %v2434
      %v2437 = vmul.f32 %v2290, %v2434
      %v2438 = vmul.f32 %v2295, %v2434
      %v2439 = vmul.f32 %v2298, %v2434
      %v2440 = vmul.f32 %v2303, %v2434
      %v2441 = vmul.f32 %v2306, %v2434
      %v2442 = vmul.f32 %v2311, %v2434
      %v2443 = vmul.f32 %v2314, %v2434
      %v2444 = vmul.f32 %v2319, %v2434
      %v2445 = vmul.f32 %v2322, %v2434
      %v2446 = vmul.f32 %v2327, %v2434
      %v2447 = vmul.f32 %v2330, %v2434
      %v2448 = vmul.f32 %v2335, %v2434
      %v2449 = vmul.f32 %v2338, %v2434
      %v2450 = vmul.f32 %v2343, %v2434
      %v2451 = vmul.f32 %v2346, %v2434
      %v2452 = vmul.f32 %v2351, %v2434
      %v2453 = vmul.f32 %v2354, %v2434
      %v2454 = vmul.f32 %v2359, %v2434
      %v2455 = vmul.f32 %v2362, %v2434
      %v2456 = vmul.f32 %v2367, %v2434
      %v2457 = vmul.f32 %v2370, %v2434
      %v2458 = vmul.f32 %v2375, %v2434
      %v2459 = vmul.f32 %v2378, %v2434
      %v2460 = vmul.f32 %v2383, %v2434
      %v2461 = vmul.f32 %v2386, %v2434
      %v2462 = vmul.f32 %v2391, %v2434
      %v2463 = vmul.f32 %v2394, %v2434
      %v2464 = vmul.f32 %v2399, %v2434
      %v2465 = vmul.f32 %v2402, %v2434
      %v2466 = vmul.f32 %v2407, %v2434
      %v2467 = vmul.f32 %v2410, %v2434
      %v2468 = vmul.f32 %v2415, %v2434
      %v2469 = vmul.f32 %v2418, %v2434
      %v2470 = vmul.f32 %v2423, %v2434
      %v2471 = vmul.f32 %v2426, %v2434
      %v2472 = vld [vmem:[%s3] sm:$0x1]
      %v2474 = vlaneseq
      %v2475 = vshrl.u32 %v2474, 7
      %v2476 = vsub.s32 0, %v2475
      %v2477 = vrot.slane %v2472, %v2476
      %v2479 = vadd.f32 %v2436, %v2477
      %v2480 = vadd.f32 %v2437, %v2477
      %v2481 = vadd.f32 %v2438, %v2477
      %v2482 = vadd.f32 %v2439, %v2477
      %v2483 = vadd.f32 %v2440, %v2477
      %v2484 = vadd.f32 %v2441, %v2477
      %v2485 = vadd.f32 %v2442, %v2477
      %v2486 = vadd.f32 %v2443, %v2477
      %v2487 = vadd.f32 %v2444, %v2477
      %v2488 = vadd.f32 %v2445, %v2477
      %v2489 = vadd.f32 %v2446, %v2477
      %v2490 = vadd.f32 %v2447, %v2477
      %v2491 = vadd.f32 %v2448, %v2477
      %v2492 = vadd.f32 %v2449, %v2477
      %v2493 = vadd.f32 %v2450, %v2477
      %v2494 = vadd.f32 %v2451, %v2477
      %v2495 = vadd.f32 %v2452, %v2477
      %v2496 = vadd.f32 %v2453, %v2477
      %v2497 = vadd.f32 %v2454, %v2477
      %v2498 = vadd.f32 %v2455, %v2477
      %v2499 = vadd.f32 %v2456, %v2477
      %v2500 = vadd.f32 %v2457, %v2477
      %v2501 = vadd.f32 %v2458, %v2477
      %v2502 = vadd.f32 %v2459, %v2477
      %v2503 = vadd.f32 %v2460, %v2477
      %v2504 = vadd.f32 %v2461, %v2477
      %v2505 = vadd.f32 %v2462, %v2477
      %v2506 = vadd.f32 %v2463, %v2477
      %v2507 = vadd.f32 %v2464, %v2477
      %v2508 = vadd.f32 %v2465, %v2477
      %v2509 = vadd.f32 %v2466, %v2477
      %v2510 = vadd.f32 %v2467, %v2477
      %v2511 = vadd.f32 %v2468, %v2477
      %v2512 = vadd.f32 %v2469, %v2477
      %v2513 = vadd.f32 %v2470, %v2477
      %v2514 = vadd.f32 %v2471, %v2477
      %v2515 = vmax.f32 %v2479, 0.0
      %v2516 = vmax.f32 %v2480, 0.0
      %v2517 = vmax.f32 %v2481, 0.0
      %v2518 = vmax.f32 %v2482, 0.0
      %v2519 = vmax.f32 %v2483, 0.0
      %v2520 = vmax.f32 %v2484, 0.0
      %v2521 = vmax.f32 %v2485, 0.0
      %v2522 = vmax.f32 %v2486, 0.0
      %v2523 = vmax.f32 %v2487, 0.0
      %v2524 = vmax.f32 %v2488, 0.0
      %v2525 = vmax.f32 %v2489, 0.0
      %v2526 = vmax.f32 %v2490, 0.0
      %v2527 = vmax.f32 %v2491, 0.0
      %v2528 = vmax.f32 %v2492, 0.0
      %v2529 = vmax.f32 %v2493, 0.0
      %v2530 = vmax.f32 %v2494, 0.0
      %v2531 = vmax.f32 %v2495, 0.0
      %v2532 = vmax.f32 %v2496, 0.0
      %v2533 = vmax.f32 %v2497, 0.0
      %v2534 = vmax.f32 %v2498, 0.0
      %v2535 = vmax.f32 %v2499, 0.0
      %v2536 = vmax.f32 %v2500, 0.0
      %v2537 = vmax.f32 %v2501, 0.0
      %v2538 = vmax.f32 %v2502, 0.0
      %v2539 = vmax.f32 %v2503, 0.0
      %v2540 = vmax.f32 %v2504, 0.0
      %v2541 = vmax.f32 %v2505, 0.0
      %v2542 = vmax.f32 %v2506, 0.0
      %v2543 = vmax.f32 %v2507, 0.0
      %v2544 = vmax.f32 %v2508, 0.0
      %v2545 = vmax.f32 %v2509, 0.0
      %v2546 = vmax.f32 %v2510, 0.0
      %v2547 = vmax.f32 %v2511, 0.0
      %v2548 = vmax.f32 %v2512, 0.0
      %v2549 = vmax.f32 %v2513, 0.0
      %v2550 = vmax.f32 %v2514, 0.0
      %2551 = vst [vmem:[#allocation2] sm:$0xff] %v2515
      %2552 = vst [vmem:[#allocation2 + $0x8] sm:$0xff] %v2516
      %2553 = vst [vmem:[#allocation2 + $0x10] sm:$0xff] %v2517
      %2554 = vst [vmem:[#allocation2 + $0x18] sm:$0xff] %v2518
      %2555 = vst [vmem:[#allocation2 + $0x20] sm:$0xff] %v2519
      %2556 = vst [vmem:[#allocation2 + $0x28] sm:$0xff] %v2520
      %2557 = vst [vmem:[#allocation2 + $0x30] sm:$0xff] %v2521
      %2558 = vst [vmem:[#allocation2 + $0x38] sm:$0xff] %v2522
      %2559 = vst [vmem:[#allocation2 + $0x40] sm:$0xff] %v2523
      %2560 = vst [vmem:[#allocation2 + $0x48] sm:$0xff] %v2524
      %2561 = vst [vmem:[#allocation2 + $0x50] sm:$0xff] %v2525
      %2562 = vst [vmem:[#allocation2 + $0x58] sm:$0xff] %v2526
      %2563 = vst [vmem:[#allocation2 + $0x60] sm:$0xff] %v2527
      %2564 = vst [vmem:[#allocation2 + $0x68] sm:$0xff] %v2528
      %2565 = vst [vmem:[#allocation2 + $0x70] sm:$0xff] %v2529
      %2566 = vst [vmem:[#allocation2 + $0x78] sm:$0xff] %v2530
      %2567 = vst [vmem:[#allocation2 + $0x80] sm:$0xff] %v2531
      %2568 = vst [vmem:[#allocation2 + $0x88] sm:$0xff] %v2532
      %2569 = vst [vmem:[#allocation2 + $0x90] sm:$0xff] %v2533
      %2570 = vst [vmem:[#allocation2 + $0x98] sm:$0xff] %v2534
      %2571 = vst [vmem:[#allocation2 + $0xa0] sm:$0xff] %v2535
      %2572 = vst [vmem:[#allocation2 + $0xa8] sm:$0xff] %v2536
      %2573 = vst [vmem:[#allocation2 + $0xb0] sm:$0xff] %v2537
      %2574 = vst [vmem:[#allocation2 + $0xb8] sm:$0xff] %v2538
      %2575 = vst [vmem:[#allocation2 + $0xc0] sm:$0xff] %v2539
      %2576 = vst [vmem:[#allocation2 + $0xc8] sm:$0xff] %v2540
      %2577 = vst [vmem:[#allocation2 + $0xd0] sm:$0xff] %v2541
      %2578 = vst [vmem:[#allocation2 + $0xd8] sm:$0xff] %v2542
      %2579 = vst [vmem:[#allocation2 + $0xe0] sm:$0xff] %v2543
      %2580 = vst [vmem:[#allocation2 + $0xe8] sm:$0xff] %v2544
      %2581 = vst [vmem:[#allocation2 + $0xf0] sm:$0xff] %v2545
      %2582 = vst [vmem:[#allocation2 + $0xf8] sm:$0xff] %v2546
      %2583 = vst [vmem:[#allocation2 + $0x100] sm:$0xff] %v2547
      %2584 = vst [vmem:[#allocation2 + $0x108] sm:$0xff] %v2548
      %2585 = vst [vmem:[#allocation2 + $0x110] sm:$0xff] %v2549
      %2586 = vst [vmem:[#allocation2 + $0x118] sm:$0xff] %v2550
      %v2587 = vld [vmem:[#allocation2] ss:$2 sm:$0xff]
      %s2588 = scalar_lea.vmem [#allocation2], 16
      %v2589 = vld [vmem:[%s2588] ss:$2 sm:$0xff]
      %s2590 = scalar_lea.vmem [#allocation2], 32
      %v2591 = vld [vmem:[%s2590] ss:$2 sm:$0xff]
      %s2592 = scalar_lea.vmem [#allocation2], 48
      %v2593 = vld [vmem:[%s2592] ss:$2 sm:$0xff]
      %s2594 = scalar_lea.vmem [#allocation2], 64
      %v2595 = vld [vmem:[%s2594] ss:$2 sm:$0xff]
      %s2596 = scalar_lea.vmem [#allocation2], 80
      %v2597 = vld [vmem:[%s2596] ss:$2 sm:$0xff]
      %s2598 = scalar_lea.vmem [#allocation2], 96
      %v2599 = vld [vmem:[%s2598] ss:$2 sm:$0xff]
      %s2600 = scalar_lea.vmem [#allocation2], 112
      %v2601 = vld [vmem:[%s2600] ss:$2 sm:$0xff]
      %s2602 = scalar_lea.vmem [#allocation2], 128
      %v2603 = vld [vmem:[%s2602] ss:$2 sm:$0xff]
      %s2604 = scalar_lea.vmem [#allocation2], 144
      %v2605 = vld [vmem:[%s2604] ss:$2 sm:$0xff]
      %s2606 = scalar_lea.vmem [#allocation2], 160
      %v2607 = vld [vmem:[%s2606] ss:$2 sm:$0xff]
      %s2608 = scalar_lea.vmem [#allocation2], 176
      %v2609 = vld [vmem:[%s2608] ss:$2 sm:$0xff]
      %s2610 = scalar_lea.vmem [#allocation2], 192
      %v2611 = vld [vmem:[%s2610] ss:$2 sm:$0xff]
      %s2612 = scalar_lea.vmem [#allocation2], 208
      %v2613 = vld [vmem:[%s2612] ss:$2 sm:$0xff]
      %s2614 = scalar_lea.vmem [#allocation2], 224
      %v2615 = vld [vmem:[%s2614] ss:$2 sm:$0xff]
      %s2616 = scalar_lea.vmem [#allocation2], 240
      %v2617 = vld [vmem:[%s2616] ss:$2 sm:$0xff]
      %s2618 = scalar_lea.vmem [#allocation2], 256
      %v2619 = vld [vmem:[%s2618] ss:$2 sm:$0xff]
      %s2620 = scalar_lea.vmem [#allocation2], 272
      %v2621 = vld [vmem:[%s2620] ss:$2 sm:$0xff]
      %s2622 = scalar_lea.vmem [#allocation2], 1
      %v2623 = vld [vmem:[%s2622] ss:$2 sm:$0xff]
      %s2624 = scalar_lea.vmem [#allocation2], 17
      %v2625 = vld [vmem:[%s2624] ss:$2 sm:$0xff]
      %s2626 = scalar_lea.vmem [#allocation2], 33
      %v2627 = vld [vmem:[%s2626] ss:$2 sm:$0xff]
      %s2628 = scalar_lea.vmem [#allocation2], 49
      %v2629 = vld [vmem:[%s2628] ss:$2 sm:$0xff]
      %s2630 = scalar_lea.vmem [#allocation2], 65
      %v2631 = vld [vmem:[%s2630] ss:$2 sm:$0xff]
      %s2632 = scalar_lea.vmem [#allocation2], 81
      %v2633 = vld [vmem:[%s2632] ss:$2 sm:$0xff]
      %s2634 = scalar_lea.vmem [#allocation2], 97
      %v2635 = vld [vmem:[%s2634] ss:$2 sm:$0xff]
      %s2636 = scalar_lea.vmem [#allocation2], 113
      %v2637 = vld [vmem:[%s2636] ss:$2 sm:$0xff]
      %s2638 = scalar_lea.vmem [#allocation2], 129
      %v2639 = vld [vmem:[%s2638] ss:$2 sm:$0xff]
      %s2640 = scalar_lea.vmem [#allocation2], 145
      %v2641 = vld [vmem:[%s2640] ss:$2 sm:$0xff]
      %s2642 = scalar_lea.vmem [#allocation2], 161
      %v2643 = vld [vmem:[%s2642] ss:$2 sm:$0xff]
      %s2644 = scalar_lea.vmem [#allocation2], 177
      %v2645 = vld [vmem:[%s2644] ss:$2 sm:$0xff]
      %s2646 = scalar_lea.vmem [#allocation2], 193
      %v2647 = vld [vmem:[%s2646] ss:$2 sm:$0xff]
      %s2648 = scalar_lea.vmem [#allocation2], 209
      %v2649 = vld [vmem:[%s2648] ss:$2 sm:$0xff]
      %s2650 = scalar_lea.vmem [#allocation2], 225
      %v2651 = vld [vmem:[%s2650] ss:$2 sm:$0xff]
      %s2652 = scalar_lea.vmem [#allocation2], 241
      %v2653 = vld [vmem:[%s2652] ss:$2 sm:$0xff]
      %s2654 = scalar_lea.vmem [#allocation2], 257
      %v2655 = vld [vmem:[%s2654] ss:$2 sm:$0xff]
      %s2656 = scalar_lea.vmem [#allocation2], 273
      %v2657 = vld [vmem:[%s2656] ss:$2 sm:$0xff]
      %v2658 = vmax.f32 %v2587, %v2623
      %v2659 = vmax.f32 %v2589, %v2625
      %v2660 = vmax.f32 %v2591, %v2627
      %v2661 = vmax.f32 %v2593, %v2629
      %v2662 = vmax.f32 %v2595, %v2631
      %v2663 = vmax.f32 %v2597, %v2633
      %v2664 = vmax.f32 %v2599, %v2635
      %v2665 = vmax.f32 %v2601, %v2637
      %v2666 = vmax.f32 %v2603, %v2639
      %v2667 = vmax.f32 %v2605, %v2641
      %v2668 = vmax.f32 %v2607, %v2643
      %v2669 = vmax.f32 %v2609, %v2645
      %v2670 = vmax.f32 %v2611, %v2647
      %v2671 = vmax.f32 %v2613, %v2649
      %v2672 = vmax.f32 %v2615, %v2651
      %v2673 = vmax.f32 %v2617, %v2653
      %v2674 = vmax.f32 %v2619, %v2655
      %v2675 = vmax.f32 %v2621, %v2657
      %vm2678 = vcmask 1046528
      %v2679 = vrot.slane %v2659, 1
      %v2680 = vrot.slane %v2660, 1
      %v2681 = vsel %vm2678, %v2679, %v2680
      %v2683 = vmax.f32 %v2658, %v2681
      %v2684 = vpack.c.bf16 %v2683, %v2683
      %2685 = vst [vmem:[%s197] sm:$0xf] %v2684
      %v2688 = vrot.slane %v2661, 1
      %v2689 = vrot.slane %v2662, 1
      %v2690 = vsel %vm2678, %v2688, %v2689
      %v2693 = vmax.f32 %v2660, %v2690
      %v2694 = vmax.f32 %v2661, %v2689
      %v2695 = vpack.c.bf16 %v2694, %v2693
      %v2697 = vunpack.c.l.b16 %v2695
      %v2698 = vunpack.c.h.b16 %v2695
      %v2699 = vpack.c.b16 %v2697, %v2697
      %v2700 = vpack.c.b16 %v2698, %v2698
      %vm2701 = vcmask 1042432
      %vm2702 = vcmask 1046532
      %vm2703 = vmor %vm2701, %vm2702
      %v2704 = vrot.slane %v2699, 5
      %v2705 = vrot.slane %v2704, 4
      %v2706 = vrot.slane %v2700, 5
      %v2707 = vsel %vm2703, %v2705, %v2706
      %s2709 = scalar_lea.vmem %s197, 4
      %2710 = vst [vmem:[%s2709] sm:$0xf] %v2707
      %v2713 = vrot.slane %v2663, 1
      %v2714 = vrot.slane %v2664, 1
      %v2715 = vsel %vm2678, %v2713, %v2714
      %v2718 = vmax.f32 %v2662, %v2715
      %v2719 = vmax.f32 %v2663, %v2714
      %v2720 = vpack.c.bf16 %v2719, %v2718
      %v2722 = vunpack.c.l.b16 %v2720
      %v2723 = vunpack.c.h.b16 %v2720
      %v2724 = vpack.c.b16 %v2722, %v2722
      %v2725 = vpack.c.b16 %v2723, %v2723
      %vm2726 = vcmask 1041408
      %vm2727 = vcmask 1045508
      %vm2728 = vmor %vm2726, %vm2727
      %v2729 = vrot.slane %v2724, 6
      %v2730 = vrot.slane %v2729, 4
      %v2731 = vrot.slane %v2725, 6
      %v2732 = vsel %vm2728, %v2730, %v2731
      %s2734 = scalar_lea.vmem %s197, 8
      %2735 = vst [vmem:[%s2734] sm:$0xf] %v2732
      %v2738 = vrot.slane %v2665, 1
      %v2739 = vrot.slane %v2666, 1
      %v2740 = vsel %vm2678, %v2738, %v2739
      %v2743 = vmax.f32 %v2664, %v2740
      %v2744 = vmax.f32 %v2665, %v2739
      %v2745 = vpack.c.bf16 %v2744, %v2743
      %v2747 = vunpack.c.l.b16 %v2745
      %v2748 = vunpack.c.h.b16 %v2745
      %v2749 = vpack.c.b16 %v2747, %v2747
      %v2750 = vpack.c.b16 %v2748, %v2748
      %vm2751 = vcmask 1040384
      %vm2752 = vcmask 1044484
      %vm2753 = vmor %vm2751, %vm2752
      %v2754 = vrot.slane %v2749, 7
      %v2755 = vrot.slane %v2754, 4
      %v2756 = vrot.slane %v2750, 7
      %v2757 = vsel %vm2753, %v2755, %v2756
      %s2759 = scalar_lea.vmem %s197, 12
      %2760 = vst [vmem:[%s2759] sm:$0xf] %v2757
      %v2763 = vrot.slane %v2668, 1
      %v2764 = vrot.slane %v2669, 1
      %v2765 = vsel %vm2678, %v2763, %v2764
      %v2767 = vmax.f32 %v2667, %v2765
      %v2768 = vpack.c.bf16 %v2767, %v2767
      %s2769 = scalar_lea.vmem %s197, 16
      %2770 = vst [vmem:[%s2769] sm:$0xf] %v2768
      %v2773 = vrot.slane %v2670, 1
      %v2774 = vrot.slane %v2671, 1
      %v2775 = vsel %vm2678, %v2773, %v2774
      %v2778 = vmax.f32 %v2669, %v2775
      %v2779 = vmax.f32 %v2670, %v2774
      %v2780 = vpack.c.bf16 %v2779, %v2778
      %v2782 = vunpack.c.l.b16 %v2780
      %v2783 = vunpack.c.h.b16 %v2780
      %v2784 = vpack.c.b16 %v2782, %v2782
      %v2785 = vpack.c.b16 %v2783, %v2783
      %v2786 = vrot.slane %v2784, 5
      %v2787 = vrot.slane %v2786, 4
      %v2788 = vrot.slane %v2785, 5
      %v2789 = vsel %vm2703, %v2787, %v2788
      %s2791 = scalar_lea.vmem %s197, 20
      %2792 = vst [vmem:[%s2791] sm:$0xf] %v2789
      %v2795 = vrot.slane %v2672, 1
      %v2796 = vrot.slane %v2673, 1
      %v2797 = vsel %vm2678, %v2795, %v2796
      %v2800 = vmax.f32 %v2671, %v2797
      %v2801 = vmax.f32 %v2672, %v2796
      %v2802 = vpack.c.bf16 %v2801, %v2800
      %v2804 = vunpack.c.l.b16 %v2802
      %v2805 = vunpack.c.h.b16 %v2802
      %v2806 = vpack.c.b16 %v2804, %v2804
      %v2807 = vpack.c.b16 %v2805, %v2805
      %v2808 = vrot.slane %v2806, 6
      %v2809 = vrot.slane %v2808, 4
      %v2810 = vrot.slane %v2807, 6
      %v2811 = vsel %vm2728, %v2809, %v2810
      %s2813 = scalar_lea.vmem %s197, 24
      %2814 = vst [vmem:[%s2813] sm:$0xf] %v2811
      %v2817 = vrot.slane %v2674, 1
      %v2818 = vrot.slane %v2675, 1
      %v2819 = vsel %vm2678, %v2817, %v2818
      %v2822 = vmax.f32 %v2673, %v2819
      %v2823 = vmax.f32 %v2674, %v2818
      %v2824 = vpack.c.bf16 %v2823, %v2822
      %v2826 = vunpack.c.l.b16 %v2824
      %v2827 = vunpack.c.h.b16 %v2824
      %v2828 = vpack.c.b16 %v2826, %v2826
      %v2829 = vpack.c.b16 %v2827, %v2827
      %v2830 = vrot.slane %v2828, 7
      %v2831 = vrot.slane %v2830, 4
      %v2832 = vrot.slane %v2829, 7
      %v2833 = vsel %vm2753, %v2831, %v2832
      %s2835 = scalar_lea.vmem %s197, 28
      %2836 = vst [vmem:[%s2835] sm:$0xf] %v2833
      %p2837 = scmp.lt.s32.totalorder %s15, 1
      %s2838 = scalar_select %p2837, %s15, 1
      %s2839 = smul.addr %s2838, 8
      %s2840 = smul.addr %s2839, 4
      %s2841 = scalar_lea.vmem %s4, %s2840
      // Predicated region
      $region37: #{localization_network.4} parent=35 // pred_check
        %p2842 = pneg %p122
      $region38: #{localization_network.4} parent=35 // pred_check_branch
        %2844 = sbr.rel (%p2842) target = $region40
      $region39: #{localization_network.4} parent=35 // pred_region
        _
      $region40: #{localization_network.4} parent=35 // pred_fallthru
        _
    $region36: #{localization_network.4} parent=5 // pred_fallthru
      _
    %p2845 = scmp.le.s32.totalorder 2, %s10
    // Predicated region
    $region41: #{localization_network.4} parent=5 // pred_check
      %p2846 = pneg %p2845
    $region42: #{localization_network.4} parent=5 // pred_check_branch
      %2848 = sbr.rel (%p2846) target = $region44
    $region43: #{localization_network.4} parent=5 // pred_region
      %s2849 = ssub.s32 %s10, 2
      // Predicated region
      $region45: #{localization_network.4} parent=43 // pred_check
        %p2850 = pneg %p128
      $region46: #{localization_network.4} parent=43 // pred_check_branch
        %2852 = sbr.rel (%p2850) target = $region48
      $region47: #{localization_network.4} parent=43 // pred_region
        %p2853 = scmp.lt.s32.totalorder %s16, 1
        %s2854 = scalar_select %p2853, %s16, 1
        %s2855 = smul.addr %s2854, 8
        %s2856 = smul.addr %s2855, 4
        %s2857 = scalar_lea.vmem %s4, %s2856
      $region48: #{localization_network.4} parent=43 // pred_fallthru
        _
    $region44: #{localization_network.4} parent=5 // pred_fallthru
      _
  $region6: #{localization_network.4} parent=0 // loop_footer
    %s14 = sadd.s32 1, %s10
  $region7: #{localization_network.4} parent=0 // loop_footer_branch
    %9 = sbr.rel target = $region3
  $region8: #{localization_network.4} parent=0 // loop_exit
    _

</llo_original>
